<compile_context>
chip_gen: v6e
topology: v6e:2x2x1
jax: 0.10.0
libtpu: 0.0.40
codegen_flags: <defaults>
</compile_context>

<pallas_src>
import functools

import jax
import jax.numpy as jnp
from jax import lax
from jax.experimental import pallas as pl
from jax.experimental.pallas import tpu as pltpu


# ----------------------------------------------------------------------------
# Fused DBlock kernel (one grid step == one batch element)
# ----------------------------------------------------------------------------
def _dblock_kernel(x_ref, w1a_ref, b1a_ref, wg_ref, bg_ref,
                   wse1_ref, wse2_ref, w2a_ref, b2a_ref, w1b_ref, b1b_ref,
                   o_ref, ap_ref, *, H, W, cg, d1, d2, pad):
    HW = H * W
    dmax = max(d1, d2)
    row_halo = dmax * W          # multiple of W -> column masks stay valid
    slab_w = HW + 2 * row_halo

    x = x_ref[0]                                             # (cin, HW)

    # Zero ONLY the two halo strips; the interior [pad, pad+HW) is fully
    # rewritten before every tap read, for both halves.  Done every grid step
    # because under megacore sharding each TensorCore owns its own scratch.
    ap_ref[:, :pad] = jnp.zeros((cg, pad), jnp.float32)
    ap_ref[:, pad + HW:] = jnp.zeros((cg, pad), jnp.float32)

    # slab position -> image column coordinate (row_halo is a multiple of W).
    col_idx = lax.broadcasted_iota(jnp.int32, (1, slab_w), 1) % W
    # identity mask used to fold the SE gate into the conv2a weight columns.
    eye = (lax.broadcasted_iota(jnp.int32, (cg, cg), 0) ==
           lax.broadcasted_iota(jnp.int32, (cg, cg), 1))

    # conv1a (+ folded bn1a) + ReLU: both channel halves in ONE MXU matmul.
    a_full = jnp.dot(w1a_ref[...], x, preferred_element_type=jnp.float32)
    a_full = jnp.maximum(a_full + b1a_ref[...], 0.0)         # (oc, HW)

    halves = []                                              # group-conv outputs
    pooled = []                                              # SE max-pool per half
    for hh, d in enumerate((d1, d2)):
        a_h = a_full[hh * cg:(hh + 1) * cg, :]               # (cg, HW)

        # Grouped dilated 3x3 conv as 9 per-tap MXU matmuls over flat shifts.
        # kx outer: one masked column-shifted slab per kx, reused by the 3 row
        # shifts -> only 2 lane-misaligned slices + 2 mask selects per half.
        ap_ref[:, pad:pad + HW] = a_h
        acc = None
        for kx in range(3):
            start = pad - row_halo + (kx - 1) * d
            slab = ap_ref[:, start:start + slab_w]           # (cg, slab_w)
            if kx == 0:
                slab = jnp.where(col_idx >= d, slab, 0.0)        # no left wrap
            elif kx == 2:
                slab = jnp.where(col_idx < W - d, slab, 0.0)     # no right wrap
            for ky in range(3):
                off = row_halo + (ky - 1) * d * W
                t = jnp.dot(wg_ref[hh, ky * 3 + kx], slab[:, off:off + HW],
                            preferred_element_type=jnp.float32)
                acc = t if acc is None else acc + t
        g_h = jnp.maximum(acc + bg_ref[hh], 0.0)             # folded bn_group + ReLU
        halves.append(g_h)
        pooled.append(jnp.max(g_h, axis=1, keepdims=True))   # (cg, 1)

    # SE excitation: Linear -> ReLU -> Linear -> sigmoid (one gate per channel).
    z = jnp.maximum(
        jnp.dot(wse1_ref[0], pooled[0], preferred_element_type=jnp.float32) +
        jnp.dot(wse1_ref[1], pooled[1], preferred_element_type=jnp.float32), 0.0)
    gates = jax.nn.sigmoid(
        jnp.dot(wse2_ref[...], z, preferred_element_type=jnp.float32))  # (oc, 1)

    # conv2a (folded bn2a): SE gate folded into the weight COLUMNS via a tiny
    # diagonal-gate matmul so the (cg, HW) activation slabs are not re-touched
    # by the VPU; halves summed.
    ba = None
    for hh in range(2):
        gate_h = gates[hh * cg:(hh + 1) * cg, :]             # (cg, 1)
        w_gated = jnp.dot(w2a_ref[hh], jnp.where(eye, gate_h, 0.0),
                          preferred_element_type=jnp.float32)    # (oc, cg)
        part = jnp.dot(w_gated, halves[hh], preferred_element_type=jnp.float32)
        ba = part if ba is None else ba + part
    ba = jnp.maximum(ba + b2a_ref[...], 0.0)                 # (oc, HW)

    # branch_b: global average pool -> conv1b (folded bn1b) + ReLU.
    m = jnp.mean(x, axis=1, keepdims=True)                   # (cin, 1)
    bb = jnp.maximum(
        jnp.dot(w1b_ref[...], m, preferred_element_type=jnp.float32)
        + b1b_ref[...], 0.0)                                 # (oc, 1)

    # final = relu(branch_a + branch_b)  (branch_b broadcasts over spatial).
    o_ref[0] = jnp.maximum(ba + bb, 0.0)


# ----------------------------------------------------------------------------
# Host-side glue: BN folding, weight packing, pallas_call
# ----------------------------------------------------------------------------
def fold_bn(gamma, beta, mean, var, eps=1e-5):
    scale = gamma / jnp.sqrt(var + eps)
    bias = beta - mean * scale
    return scale.astype(jnp.float32), bias.astype(jnp.float32)


def _group_tap_matrices(w, scale, groups):
    """(cg, cpg, 3, 3) grouped-conv weight -> (9, cg, cg) block-diagonal dense
    per-tap matrices with the BN scale folded into the output rows."""
    cg, cpg = w.shape[0], w.shape[1]
    ws = w * scale[:, None, None, None]
    taps = []
    for ky in range(3):
        for kx in range(3):
            rows = []
            for g in range(groups):
                blk = ws[g * cpg:(g + 1) * cpg, :, ky, kx]          # (cpg, cpg)
                rows.append(jnp.pad(blk, ((0, 0),
                                          (g * cpg, cg - (g + 1) * cpg))))
            taps.append(jnp.concatenate(rows, axis=0))              # (cg, cg)
    return jnp.stack(taps, axis=0)


def dblock_forward(x, params, *, groups, d1, d2):
    # x: (B, Cin, H, W), NCHW — same as the PyTorch module.
    B, cin, H, W = x.shape
    oc = params["w_conv1a"].shape[0]
    cg = oc // 2
    HW = H * W
    dmax = max(d1, d2)
    # lane-aligned halo for the flat-shift scratch (>= dmax*W + dmax); with
    # W % 128 == 0 every slab/interior access except the +-d column shifts is
    # lane-aligned.
    pad = ((dmax * W + dmax + 127) // 128) * 128

    s1a, b1a = fold_bn(*params["bn1a"])
    sg1, bg1 = fold_bn(*params["bn_group1"])
    sg2, bg2 = fold_bn(*params["bn_group2"])
    s2a, b2a = fold_bn(*params["bn2a"])
    s1b, b1b = fold_bn(*params["bn1b"])

    # Fold BN scales into conv weights; split conv2a / group weights by channel
    # half so every in-kernel access is a full load or a static indexed load.
    w1a_p = params["w_conv1a"] * s1a[:, None]                       # (oc, cin)
    b1a_p = b1a[:, None]                                            # (oc, 1)
    wg_p = jnp.stack([_group_tap_matrices(params["w_group1"], sg1, groups),
                      _group_tap_matrices(params["w_group2"], sg2, groups)])
    bg_p = jnp.stack([bg1, bg2])[:, :, None]                        # (2, cg, 1)
    wse1_p = jnp.stack([params["w_se1"][:, :cg], params["w_se1"][:, cg:]])
    wse2_p = params["w_se2"]                                        # (oc, r)
    w2a_s = params["w_conv2a"] * s2a[:, None]
    w2a_p = jnp.stack([w2a_s[:, :cg], w2a_s[:, cg:]])               # (2, oc, cg)
    b2a_p = b2a[:, None]
    w1b_p = params["w_conv1b"] * s1b[:, None]
    b1b_p = b1b[:, None]

    x_flat = x.reshape(B, cin, HW)
    weights = (w1a_p, b1a_p, wg_p, bg_p, wse1_p, wse2_p,
               w2a_p, b2a_p, w1b_p, b1b_p)

    kern = functools.partial(_dblock_kernel, H=H, W=W, cg=cg,
                             d1=d1, d2=d2, pad=pad)

    def build_call(single_buffer_weights):
        def wspec(a):
            nd = a.ndim
            kwargs = {}
            if single_buffer_weights:
                # Grid-invariant weights: no double buffering (saves VMEM).
                kwargs["pipeline_mode"] = pl.Buffered(1)
            return pl.BlockSpec(a.shape, lambda b, nd=nd: (0,) * nd, **kwargs)

        return pl.pallas_call(
            kern,
            out_shape=jax.ShapeDtypeStruct((B, oc, HW), jnp.float32),
            grid=(B,),
            in_specs=[pl.BlockSpec((1, cin, HW), lambda b: (b, 0, 0))]
                     + [wspec(a) for a in weights],
            out_specs=pl.BlockSpec((1, oc, HW), lambda b: (b, 0, 0)),
            scratch_shapes=[pltpu.VMEM((cg, HW + 2 * pad), jnp.float32)],
            compiler_params=pltpu.CompilerParams(
                dimension_semantics=("parallel",),
                vmem_limit_bytes=64 * 1024 * 1024),
        )

    try:
        out = build_call(True)(x_flat, *weights)
    except Exception:
        # Fallback for jax versions without single-buffer (pl.Buffered(1))
        # support: identical correctness, default double-buffered weights.
        out = build_call(False)(x_flat, *weights)
    return out.reshape(B, oc, H, W)


# ----------------------------------------------------------------------------
# Deterministic parameter init (shapes from DBlock.__init__)
# ----------------------------------------------------------------------------
def init_params(key, cin, oc, groups):
    cg = oc // 2
    r = oc // groups   # SEBlock(ratio=groups)
    keys = jax.random.split(key, 12)

    def w(k, shape, fan_in):
        return jax.random.normal(k, shape, jnp.float32) / jnp.sqrt(fan_in)

    def bn(k, c):
        k1, k2, k3, k4 = jax.random.split(k, 4)
        gamma = jax.random.uniform(k1, (c,), jnp.float32, 0.5, 1.5)
        beta = 0.1 * jax.random.normal(k2, (c,), jnp.float32)
        mean = 0.1 * jax.random.normal(k3, (c,), jnp.float32)
        var = jax.random.uniform(k4, (c,), jnp.float32, 0.5, 1.5)
        return (gamma, beta, mean, var)

    return dict(
        w_conv1a=w(keys[0], (oc, cin), cin),
        w_conv2a=w(keys[1], (oc, oc), oc),
        w_group1=w(keys[2], (cg, cg // groups, 3, 3), 9 * (cg // groups)),
        w_group2=w(keys[3], (cg, cg // groups, 3, 3), 9 * (cg // groups)),
        w_conv1b=w(keys[4], (oc, cin), cin),
        w_se1=w(keys[5], (r, oc), oc),
        w_se2=w(keys[6], (oc, r), r),
        bn1a=bn(keys[7], oc),
        bn_group1=bn(keys[8], cg),
        bn_group2=bn(keys[9], cg),
        bn2a=bn(keys[10], oc),
        bn1b=bn(keys[11], oc),
    )


# ----------------------------------------------------------------------------
# Pure-JAX reference (ground truth for verification, f32 HIGHEST precision)
# ----------------------------------------------------------------------------
def reference_forward(x, params, *, groups, d1, d2, eps=1e-5):
    dn = ("NCHW", "OIHW", "NCHW")
    hp = lax.Precision.HIGHEST
    relu = lambda t: jnp.maximum(t, 0.0)

    def bn(t, p):
        gamma, beta, mean, var = p
        scale = gamma / jnp.sqrt(var + eps)
        return t * scale[None, :, None, None] + (beta - mean * scale)[None, :, None, None]

    def conv1x1(t, w):
        return lax.conv_general_dilated(t, w[:, :, None, None], (1, 1), "VALID",
                                        dimension_numbers=dn, precision=hp)

    def gconv(t, w, d):
        return lax.conv_general_dilated(t, w, (1, 1), [(d, d), (d, d)],
                                        rhs_dilation=(d, d), dimension_numbers=dn,
                                        feature_group_count=groups, precision=hp)

    oc = params["w_conv1a"].shape[0]
    cg = oc // 2

    a = relu(bn(conv1x1(x, params["w_conv1a"]), params["bn1a"]))
    a1 = relu(bn(gconv(a[:, :cg], params["w_group1"], d1), params["bn_group1"]))
    a2 = relu(bn(gconv(a[:, cg:], params["w_group2"], d2), params["bn_group2"]))
    a = jnp.concatenate([a1, a2], axis=1)
    # SE block
    y = jnp.max(a, axis=(2, 3))
    z = relu(jnp.einsum("ri,bi->br", params["w_se1"], y, precision=hp))
    s = jax.nn.sigmoid(jnp.einsum("or,br->bo", params["w_se2"], z, precision=hp))
    a = a * s[:, :, None, None]
    a = relu(bn(conv1x1(a, params["w_conv2a"]), params["bn2a"]))
    # branch_b
    b = jnp.mean(x, axis=(2, 3), keepdims=True)
    b = jnp.einsum("oi,bihw->bohw", params["w_conv1b"], b, precision=hp)
    b = relu(bn(b, params["bn1b"]))
    return relu(a + b)


if __name__ == "__main__":
    B, CIN, OC, H, W = 2, 4, 8, 16, 16
    GROUPS, D1, D2 = 2, 1, 2   # stride=1, out_size=1

    key = jax.random.PRNGKey(0)
    kx, kp = jax.random.split(key)
    x = jax.random.normal(kx, (B, CIN, H, W), jnp.float32)
    params = init_params(kp, CIN, OC, GROUPS)

    out = dblock_forward(x, params, groups=GROUPS, d1=D1, d2=D2)
    out = jax.block_until_ready(out)

    ref = reference_forward(x, params, groups=GROUPS, d1=D1, d2=D2)
    assert out.shape == (B, OC, H, W), out.shape
    err = float(jnp.max(jnp.abs(out - ref)))
    # default-precision (bf16-pass) MXU matmuls in the kernel vs f32 HIGHEST
    # reference -> allow a few 1e-2 of absolute/relative slack.
    assert jnp.allclose(out, ref, atol=5e-2, rtol=5e-2), err

    print("KERNEL_OK")
</pallas_src>

<mosaic_0001>
module attributes {stable_mosaic.version = 11 : i64} {
  func.func @_dblock_kernel(%arg0: i32, %arg1: memref<1x4x256xf32, #tpu.memory_space<vmem>>, %arg2: memref<8x4xf32, #tpu.memory_space<vmem>>, %arg3: memref<8x1xf32, #tpu.memory_space<vmem>>, %arg4: memref<2x9x4x4xf32, #tpu.memory_space<vmem>>, %arg5: memref<2x4x1xf32, #tpu.memory_space<vmem>>, %arg6: memref<2x4x4xf32, #tpu.memory_space<vmem>>, %arg7: memref<8x4xf32, #tpu.memory_space<vmem>>, %arg8: memref<2x8x4xf32, #tpu.memory_space<vmem>>, %arg9: memref<8x1xf32, #tpu.memory_space<vmem>>, %arg10: memref<8x4xf32, #tpu.memory_space<vmem>>, %arg11: memref<8x1xf32, #tpu.memory_space<vmem>>, %arg12: memref<1x8x256xf32, #tpu.memory_space<vmem>>, %arg13: memref<4x512xf32, #tpu.memory_space<vmem>>) attributes {dimension_semantics = [#tpu.dimension_semantics<parallel>], iteration_bounds = array<i64: 2>, scalar_prefetch = 0 : i64, scratch_operands = 1 : i64, tpu.core_type = #tpu.core_type<tc>, window_params = [{transform_indices = @transform_0, window_bounds = array<i64: 1, 4, 256>}, {pipeline_mode = #tpu.pipeline_mode<synchronous>, transform_indices = @transform_1, window_bounds = array<i64: 8, 4>}, {pipeline_mode = #tpu.pipeline_mode<synchronous>, transform_indices = @transform_2, window_bounds = array<i64: 8, 1>}, {pipeline_mode = #tpu.pipeline_mode<synchronous>, transform_indices = @transform_3, window_bounds = array<i64: 2, 9, 4, 4>}, {pipeline_mode = #tpu.pipeline_mode<synchronous>, transform_indices = @transform_4, window_bounds = array<i64: 2, 4, 1>}, {pipeline_mode = #tpu.pipeline_mode<synchronous>, transform_indices = @transform_5, window_bounds = array<i64: 2, 4, 4>}, {pipeline_mode = #tpu.pipeline_mode<synchronous>, transform_indices = @transform_6, window_bounds = array<i64: 8, 4>}, {pipeline_mode = #tpu.pipeline_mode<synchronous>, transform_indices = @transform_7, window_bounds = array<i64: 2, 8, 4>}, {pipeline_mode = #tpu.pipeline_mode<synchronous>, transform_indices = @transform_8, window_bounds = array<i64: 8, 1>}, {pipeline_mode = #tpu.pipeline_mode<synchronous>, transform_indices = @transform_9, window_bounds = array<i64: 8, 4>}, {pipeline_mode = #tpu.pipeline_mode<synchronous>, transform_indices = @transform_10, window_bounds = array<i64: 8, 1>}, {transform_indices = @transform_11, window_bounds = array<i64: 1, 8, 256>}]} {
    %c0 = arith.constant 0 : index
    %c0_0 = arith.constant 0 : index
    %c0_1 = arith.constant 0 : index
    %0 = vector.load %arg1[%c0, %c0_0, %c0_1] : memref<1x4x256xf32, #tpu.memory_space<vmem>>, vector<1x4x256xf32>
    %1 = vector.shape_cast %0 : vector<1x4x256xf32> to vector<4x256xf32>
    %cst = arith.constant 0.000000e+00 : f32
    %2 = vector.broadcast %cst : f32 to vector<4x128xf32>
    %c0_2 = arith.constant 0 : index
    %c0_3 = arith.constant 0 : index
    %3 = vector.load %arg13[%c0_2, %c0_3] : memref<4x512xf32, #tpu.memory_space<vmem>>, vector<4x128xf32>
    tpu.vector_store %arg13[%c0_2, %c0_3], %2 {strides = array<i32>} : memref<4x512xf32, #tpu.memory_space<vmem>>, vector<4x128xf32>,
    %cst_4 = arith.constant 0.000000e+00 : f32
    %4 = vector.broadcast %cst_4 : f32 to vector<4x128xf32>
    %c0_5 = arith.constant 0 : index
    %c384 = arith.constant 384 : index
    %5 = vector.load %arg13[%c0_5, %c384] : memref<4x512xf32, #tpu.memory_space<vmem>>, vector<4x128xf32>
    tpu.vector_store %arg13[%c0_5, %c384], %4 {strides = array<i32>} : memref<4x512xf32, #tpu.memory_space<vmem>>, vector<4x128xf32>,
    %6 = tpu.iota {dimensions = array<i32: 1>} : vector<1x320xi32>
    %c16_i32 = arith.constant 16 : i32
    %c0_i32 = arith.constant 0 : i32
    %7 = arith.cmpi eq, %c16_i32, %c0_i32 : i32
    %c1_i32 = arith.constant 1 : i32
    %8 = arith.select %7, %c1_i32, %c16_i32 : i32
    %9 = vector.broadcast %8 : i32 to vector<1x320xi32>
    %10 = arith.remsi %6, %9 : vector<1x320xi32>
    %c0_i32_6 = arith.constant 0 : i32
    %11 = vector.broadcast %c0_i32_6 : i32 to vector<1x320xi32>
    %12 = arith.cmpi ne, %10, %11 : vector<1x320xi32>
    %c0_i32_7 = arith.constant 0 : i32
    %13 = vector.broadcast %c0_i32_7 : i32 to vector<1x320xi32>
    %14 = arith.cmpi slt, %10, %13 : vector<1x320xi32>
    %c0_i32_8 = arith.constant 0 : i32
    %15 = arith.cmpi slt, %8, %c0_i32_8 : i32
    %16 = vector.broadcast %15 : i1 to vector<1x320xi1>
    %17 = vector.broadcast %16 : vector<1x320xi1> to vector<1x320xi1>
    %18 = arith.xori %14, %17 : vector<1x320xi1>
    %19 = arith.andi %18, %12 : vector<1x320xi1>
    %20 = vector.broadcast %8 : i32 to vector<1x320xi32>
    %21 = arith.addi %10, %20 : vector<1x320xi32>
    %22 = arith.select %19, %21, %10 : vector<1x320xi1>, vector<1x320xi32>
    %23 = tpu.iota {dimensions = array<i32: 0>} : vector<4x4xi32>
    %24 = tpu.iota {dimensions = array<i32: 1>} : vector<4x4xi32>
    %25 = arith.cmpi eq, %23, %24 : vector<4x4xi32>
    %c0_9 = arith.constant 0 : index
    %c0_10 = arith.constant 0 : index
    %26 = vector.load %arg2[%c0_9, %c0_10] : memref<8x4xf32, #tpu.memory_space<vmem>>, vector<8x4xf32>
    %cst_11 = arith.constant dense<0.000000e+00> : vector<8x256xf32>
    %27 = tpu.matmul %26, %1, %cst_11 {dimension_numbers = #tpu.dot_dimension_numbers<[1], [0], [0], [1], [0, 0, 1, 1], [], []>} : vector<8x4xf32>, vector<4x256xf32>, vector<8x256xf32> -> vector<8x256xf32>
    %c0_12 = arith.constant 0 : index
    %c0_13 = arith.constant 0 : index
    %28 = vector.load %arg3[%c0_12, %c0_13] : memref<8x1xf32, #tpu.memory_space<vmem>>, vector<8x1xf32>
    %29 = vector.broadcast %28 : vector<8x1xf32> to vector<8x256xf32>
    %30 = arith.addf %27, %29 : vector<8x256xf32>
    %cst_14 = arith.constant 0.000000e+00 : f32
    %31 = vector.broadcast %cst_14 : f32 to vector<8x256xf32>
    %32 = arith.maximumf %30, %31 : vector<8x256xf32>
    %33 = vector.extract_strided_slice %32 {offsets = [0, 0], sizes = [4, 256], strides = [1, 1]} : vector<8x256xf32> to vector<4x256xf32>
    %c0_15 = arith.constant 0 : index
    %c128 = arith.constant 128 : index
    %34 = vector.load %arg13[%c0_15, %c128] : memref<4x512xf32, #tpu.memory_space<vmem>>, vector<4x256xf32>
    tpu.vector_store %arg13[%c0_15, %c128], %33 {strides = array<i32>} : memref<4x512xf32, #tpu.memory_space<vmem>>, vector<4x256xf32>,
    %c0_16 = arith.constant 0 : index
    %c95 = arith.constant 95 : index
    %35 = vector.load %arg13[%c0_16, %c95] : memref<4x512xf32, #tpu.memory_space<vmem>>, vector<4x320xf32>
    %c1_i32_17 = arith.constant 1 : i32
    %36 = vector.broadcast %c1_i32_17 : i32 to vector<1x320xi32>
    %37 = arith.cmpi sge, %22, %36 : vector<1x320xi32>
    %cst_18 = arith.constant 0.000000e+00 : f32
    %38 = vector.shape_cast %37 : vector<1x320xi1> to vector<1x320xi1>
    %39 = vector.broadcast %38 : vector<1x320xi1> to vector<4x320xi1>
    %40 = vector.broadcast %cst_18 : f32 to vector<4x320xf32>
    %41 = arith.select %39, %35, %40 : vector<4x320xi1>, vector<4x320xf32>
    %c0_19 = arith.constant 0 : index
    %c0_20 = arith.constant 0 : index
    %c0_21 = arith.constant 0 : index
    %c0_22 = arith.constant 0 : index
    %42 = vector.load %arg4[%c0_19, %c0_20, %c0_21, %c0_22] : memref<2x9x4x4xf32, #tpu.memory_space<vmem>>, vector<1x1x4x4xf32>
    %43 = vector.shape_cast %42 : vector<1x1x4x4xf32> to vector<4x4xf32>
    %44 = vector.extract_strided_slice %41 {offsets = [0, 16], sizes = [4, 256], strides = [1, 1]} : vector<4x320xf32> to vector<4x256xf32>
    %cst_23 = arith.constant dense<0.000000e+00> : vector<4x256xf32>
    %45 = tpu.matmul %43, %44, %cst_23 {dimension_numbers = #tpu.dot_dimension_numbers<[1], [0], [0], [1], [0, 0, 1, 1], [], []>} : vector<4x4xf32>, vector<4x256xf32>, vector<4x256xf32> -> vector<4x256xf32>
    %c0_24 = arith.constant 0 : index
    %c3 = arith.constant 3 : index
    %c0_25 = arith.constant 0 : index
    %c0_26 = arith.constant 0 : index
    %46 = vector.load %arg4[%c0_24, %c3, %c0_25, %c0_26] : memref<2x9x4x4xf32, #tpu.memory_space<vmem>>, vector<1x1x4x4xf32>
    %47 = vector.shape_cast %46 : vector<1x1x4x4xf32> to vector<4x4xf32>
    %48 = vector.extract_strided_slice %41 {offsets = [0, 32], sizes = [4, 256], strides = [1, 1]} : vector<4x320xf32> to vector<4x256xf32>
    %cst_27 = arith.constant dense<0.000000e+00> : vector<4x256xf32>
    %49 = tpu.matmul %47, %48, %cst_27 {dimension_numbers = #tpu.dot_dimension_numbers<[1], [0], [0], [1], [0, 0, 1, 1], [], []>} : vector<4x4xf32>, vector<4x256xf32>, vector<4x256xf32> -> vector<4x256xf32>
    %50 = arith.addf %45, %49 : vector<4x256xf32>
    %c0_28 = arith.constant 0 : index
    %c6 = arith.constant 6 : index
    %c0_29 = arith.constant 0 : index
    %c0_30 = arith.constant 0 : index
    %51 = vector.load %arg4[%c0_28, %c6, %c0_29, %c0_30] : memref<2x9x4x4xf32, #tpu.memory_space<vmem>>, vector<1x1x4x4xf32>
    %52 = vector.shape_cast %51 : vector<1x1x4x4xf32> to vector<4x4xf32>
    %53 = vector.extract_strided_slice %41 {offsets = [0, 48], sizes = [4, 256], strides = [1, 1]} : vector<4x320xf32> to vector<4x256xf32>
    %cst_31 = arith.constant dense<0.000000e+00> : vector<4x256xf32>
    %54 = tpu.matmul %52, %53, %cst_31 {dimension_numbers = #tpu.dot_dimension_numbers<[1], [0], [0], [1], [0, 0, 1, 1], [], []>} : vector<4x4xf32>, vector<4x256xf32>, vector<4x256xf32> -> vector<4x256xf32>
    %55 = arith.addf %50, %54 : vector<4x256xf32>
    %c0_32 = arith.constant 0 : index
    %c96 = arith.constant 96 : index
    %56 = vector.load %arg13[%c0_32, %c96] : memref<4x512xf32, #tpu.memory_space<vmem>>, vector<4x320xf32>
    %c0_33 = arith.constant 0 : index
    %c1 = arith.constant 1 : index
    %c0_34 = arith.constant 0 : index
    %c0_35 = arith.constant 0 : index
    %57 = vector.load %arg4[%c0_33, %c1, %c0_34, %c0_35] : memref<2x9x4x4xf32, #tpu.memory_space<vmem>>, vector<1x1x4x4xf32>
    %58 = vector.shape_cast %57 : vector<1x1x4x4xf32> to vector<4x4xf32>
    %59 = vector.extract_strided_slice %56 {offsets = [0, 16], sizes = [4, 256], strides = [1, 1]} : vector<4x320xf32> to vector<4x256xf32>
    %cst_36 = arith.constant dense<0.000000e+00> : vector<4x256xf32>
    %60 = tpu.matmul %58, %59, %cst_36 {dimension_numbers = #tpu.dot_dimension_numbers<[1], [0], [0], [1], [0, 0, 1, 1], [], []>} : vector<4x4xf32>, vector<4x256xf32>, vector<4x256xf32> -> vector<4x256xf32>
    %61 = arith.addf %55, %60 : vector<4x256xf32>
    %c0_37 = arith.constant 0 : index
    %c4 = arith.constant 4 : index
    %c0_38 = arith.constant 0 : index
    %c0_39 = arith.constant 0 : index
    %62 = vector.load %arg4[%c0_37, %c4, %c0_38, %c0_39] : memref<2x9x4x4xf32, #tpu.memory_space<vmem>>, vector<1x1x4x4xf32>
    %63 = vector.shape_cast %62 : vector<1x1x4x4xf32> to vector<4x4xf32>
    %64 = vector.extract_strided_slice %56 {offsets = [0, 32], sizes = [4, 256], strides = [1, 1]} : vector<4x320xf32> to vector<4x256xf32>
    %cst_40 = arith.constant dense<0.000000e+00> : vector<4x256xf32>
    %65 = tpu.matmul %63, %64, %cst_40 {dimension_numbers = #tpu.dot_dimension_numbers<[1], [0], [0], [1], [0, 0, 1, 1], [], []>} : vector<4x4xf32>, vector<4x256xf32>, vector<4x256xf32> -> vector<4x256xf32>
    %66 = arith.addf %61, %65 : vector<4x256xf32>
    %c0_41 = arith.constant 0 : index
    %c7 = arith.constant 7 : index
    %c0_42 = arith.constant 0 : index
    %c0_43 = arith.constant 0 : index
    %67 = vector.load %arg4[%c0_41, %c7, %c0_42, %c0_43] : memref<2x9x4x4xf32, #tpu.memory_space<vmem>>, vector<1x1x4x4xf32>
    %68 = vector.shape_cast %67 : vector<1x1x4x4xf32> to vector<4x4xf32>
    %69 = vector.extract_strided_slice %56 {offsets = [0, 48], sizes = [4, 256], strides = [1, 1]} : vector<4x320xf32> to vector<4x256xf32>
    %cst_44 = arith.constant dense<0.000000e+00> : vector<4x256xf32>
    %70 = tpu.matmul %68, %69, %cst_44 {dimension_numbers = #tpu.dot_dimension_numbers<[1], [0], [0], [1], [0, 0, 1, 1], [], []>} : vector<4x4xf32>, vector<4x256xf32>, vector<4x256xf32> -> vector<4x256xf32>
    %71 = arith.addf %66, %70 : vector<4x256xf32>
    %c0_45 = arith.constant 0 : index
    %c97 = arith.constant 97 : index
    %72 = vector.load %arg13[%c0_45, %c97] : memref<4x512xf32, #tpu.memory_space<vmem>>, vector<4x320xf32>
    %c15_i32 = arith.constant 15 : i32
    %73 = vector.broadcast %c15_i32 : i32 to vector<1x320xi32>
    %74 = arith.cmpi slt, %22, %73 : vector<1x320xi32>
    %cst_46 = arith.constant 0.000000e+00 : f32
    %75 = vector.shape_cast %74 : vector<1x320xi1> to vector<1x320xi1>
    %76 = vector.broadcast %75 : vector<1x320xi1> to vector<4x320xi1>
    %77 = vector.broadcast %cst_46 : f32 to vector<4x320xf32>
    %78 = arith.select %76, %72, %77 : vector<4x320xi1>, vector<4x320xf32>
    %c0_47 = arith.constant 0 : index
    %c2 = arith.constant 2 : index
    %c0_48 = arith.constant 0 : index
    %c0_49 = arith.constant 0 : index
    %79 = vector.load %arg4[%c0_47, %c2, %c0_48, %c0_49] : memref<2x9x4x4xf32, #tpu.memory_space<vmem>>, vector<1x1x4x4xf32>
    %80 = vector.shape_cast %79 : vector<1x1x4x4xf32> to vector<4x4xf32>
    %81 = vector.extract_strided_slice %78 {offsets = [0, 16], sizes = [4, 256], strides = [1, 1]} : vector<4x320xf32> to vector<4x256xf32>
    %cst_50 = arith.constant dense<0.000000e+00> : vector<4x256xf32>
    %82 = tpu.matmul %80, %81, %cst_50 {dimension_numbers = #tpu.dot_dimension_numbers<[1], [0], [0], [1], [0, 0, 1, 1], [], []>} : vector<4x4xf32>, vector<4x256xf32>, vector<4x256xf32> -> vector<4x256xf32>
    %83 = arith.addf %71, %82 : vector<4x256xf32>
    %c0_51 = arith.constant 0 : index
    %c5 = arith.constant 5 : index
    %c0_52 = arith.constant 0 : index
    %c0_53 = arith.constant 0 : index
    %84 = vector.load %arg4[%c0_51, %c5, %c0_52, %c0_53] : memref<2x9x4x4xf32, #tpu.memory_space<vmem>>, vector<1x1x4x4xf32>
    %85 = vector.shape_cast %84 : vector<1x1x4x4xf32> to vector<4x4xf32>
    %86 = vector.extract_strided_slice %78 {offsets = [0, 32], sizes = [4, 256], strides = [1, 1]} : vector<4x320xf32> to vector<4x256xf32>
    %cst_54 = arith.constant dense<0.000000e+00> : vector<4x256xf32>
    %87 = tpu.matmul %85, %86, %cst_54 {dimension_numbers = #tpu.dot_dimension_numbers<[1], [0], [0], [1], [0, 0, 1, 1], [], []>} : vector<4x4xf32>, vector<4x256xf32>, vector<4x256xf32> -> vector<4x256xf32>
    %88 = arith.addf %83, %87 : vector<4x256xf32>
    %c0_55 = arith.constant 0 : index
    %c8 = arith.constant 8 : index
    %c0_56 = arith.constant 0 : index
    %c0_57 = arith.constant 0 : index
    %89 = vector.load %arg4[%c0_55, %c8, %c0_56, %c0_57] : memref<2x9x4x4xf32, #tpu.memory_space<vmem>>, vector<1x1x4x4xf32>
    %90 = vector.shape_cast %89 : vector<1x1x4x4xf32> to vector<4x4xf32>
    %91 = vector.extract_strided_slice %78 {offsets = [0, 48], sizes = [4, 256], strides = [1, 1]} : vector<4x320xf32> to vector<4x256xf32>
    %cst_58 = arith.constant dense<0.000000e+00> : vector<4x256xf32>
    %92 = tpu.matmul %90, %91, %cst_58 {dimension_numbers = #tpu.dot_dimension_numbers<[1], [0], [0], [1], [0, 0, 1, 1], [], []>} : vector<4x4xf32>, vector<4x256xf32>, vector<4x256xf32> -> vector<4x256xf32>
    %93 = arith.addf %88, %92 : vector<4x256xf32>
    %c0_59 = arith.constant 0 : index
    %c0_60 = arith.constant 0 : index
    %c0_61 = arith.constant 0 : index
    %94 = vector.load %arg5[%c0_59, %c0_60, %c0_61] : memref<2x4x1xf32, #tpu.memory_space<vmem>>, vector<1x4x1xf32>
    %95 = vector.shape_cast %94 : vector<1x4x1xf32> to vector<4x1xf32>
    %96 = vector.broadcast %95 : vector<4x1xf32> to vector<4x256xf32>
    %97 = arith.addf %93, %96 : vector<4x256xf32>
    %cst_62 = arith.constant 0.000000e+00 : f32
    %98 = vector.broadcast %cst_62 : f32 to vector<4x256xf32>
    %99 = arith.maximumf %97, %98 : vector<4x256xf32>
    %cst_63 = arith.constant dense<0xFF800000> : vector<4xf32>
    %100 = vector.multi_reduction <maximumf>, %99, %cst_63 [1] : vector<4x256xf32> to vector<4xf32>
    %101 = vector.shape_cast %100 : vector<4xf32> to vector<4x1xf32>
    %102 = vector.extract_strided_slice %32 {offsets = [4, 0], sizes = [4, 256], strides = [1, 1]} : vector<8x256xf32> to vector<4x256xf32>
    %c0_64 = arith.constant 0 : index
    %c128_65 = arith.constant 128 : index
    %103 = vector.load %arg13[%c0_64, %c128_65] : memref<4x512xf32, #tpu.memory_space<vmem>>, vector<4x256xf32>
    tpu.vector_store %arg13[%c0_64, %c128_65], %102 {strides = array<i32>} : memref<4x512xf32, #tpu.memory_space<vmem>>, vector<4x256xf32>,
    %c0_66 = arith.constant 0 : index
    %c94 = arith.constant 94 : index
    %104 = vector.load %arg13[%c0_66, %c94] : memref<4x512xf32, #tpu.memory_space<vmem>>, vector<4x320xf32>
    %c2_i32 = arith.constant 2 : i32
    %105 = vector.broadcast %c2_i32 : i32 to vector<1x320xi32>
    %106 = arith.cmpi sge, %22, %105 : vector<1x320xi32>
    %cst_67 = arith.constant 0.000000e+00 : f32
    %107 = vector.shape_cast %106 : vector<1x320xi1> to vector<1x320xi1>
    %108 = vector.broadcast %107 : vector<1x320xi1> to vector<4x320xi1>
    %109 = vector.broadcast %cst_67 : f32 to vector<4x320xf32>
    %110 = arith.select %108, %104, %109 : vector<4x320xi1>, vector<4x320xf32>
    %c1_68 = arith.constant 1 : index
    %c0_69 = arith.constant 0 : index
    %c0_70 = arith.constant 0 : index
    %c0_71 = arith.constant 0 : index
    %111 = vector.load %arg4[%c1_68, %c0_69, %c0_70, %c0_71] : memref<2x9x4x4xf32, #tpu.memory_space<vmem>>, vector<1x1x4x4xf32>
    %112 = vector.shape_cast %111 : vector<1x1x4x4xf32> to vector<4x4xf32>
    %113 = vector.extract_strided_slice %110 {offsets = [0, 0], sizes = [4, 256], strides = [1, 1]} : vector<4x320xf32> to vector<4x256xf32>
    %cst_72 = arith.constant dense<0.000000e+00> : vector<4x256xf32>
    %114 = tpu.matmul %112, %113, %cst_72 {dimension_numbers = #tpu.dot_dimension_numbers<[1], [0], [0], [1], [0, 0, 1, 1], [], []>} : vector<4x4xf32>, vector<4x256xf32>, vector<4x256xf32> -> vector<4x256xf32>
    %c1_73 = arith.constant 1 : index
    %c3_74 = arith.constant 3 : index
    %c0_75 = arith.constant 0 : index
    %c0_76 = arith.constant 0 : index
    %115 = vector.load %arg4[%c1_73, %c3_74, %c0_75, %c0_76] : memref<2x9x4x4xf32, #tpu.memory_space<vmem>>, vector<1x1x4x4xf32>
    %116 = vector.shape_cast %115 : vector<1x1x4x4xf32> to vector<4x4xf32>
    %117 = vector.extract_strided_slice %110 {offsets = [0, 32], sizes = [4, 256], strides = [1, 1]} : vector<4x320xf32> to vector<4x256xf32>
    %cst_77 = arith.constant dense<0.000000e+00> : vector<4x256xf32>
    %118 = tpu.matmul %116, %117, %cst_77 {dimension_numbers = #tpu.dot_dimension_numbers<[1], [0], [0], [1], [0, 0, 1, 1], [], []>} : vector<4x4xf32>, vector<4x256xf32>, vector<4x256xf32> -> vector<4x256xf32>
    %119 = arith.addf %114, %118 : vector<4x256xf32>
    %c1_78 = arith.constant 1 : index
    %c6_79 = arith.constant 6 : index
    %c0_80 = arith.constant 0 : index
    %c0_81 = arith.constant 0 : index
    %120 = vector.load %arg4[%c1_78, %c6_79, %c0_80, %c0_81] : memref<2x9x4x4xf32, #tpu.memory_space<vmem>>, vector<1x1x4x4xf32>
    %121 = vector.shape_cast %120 : vector<1x1x4x4xf32> to vector<4x4xf32>
    %122 = vector.extract_strided_slice %110 {offsets = [0, 64], sizes = [4, 256], strides = [1, 1]} : vector<4x320xf32> to vector<4x256xf32>
    %cst_82 = arith.constant dense<0.000000e+00> : vector<4x256xf32>
    %123 = tpu.matmul %121, %122, %cst_82 {dimension_numbers = #tpu.dot_dimension_numbers<[1], [0], [0], [1], [0, 0, 1, 1], [], []>} : vector<4x4xf32>, vector<4x256xf32>, vector<4x256xf32> -> vector<4x256xf32>
    %124 = arith.addf %119, %123 : vector<4x256xf32>
    %c0_83 = arith.constant 0 : index
    %c96_84 = arith.constant 96 : index
    %125 = vector.load %arg13[%c0_83, %c96_84] : memref<4x512xf32, #tpu.memory_space<vmem>>, vector<4x320xf32>
    %c1_85 = arith.constant 1 : index
    %c1_86 = arith.constant 1 : index
    %c0_87 = arith.constant 0 : index
    %c0_88 = arith.constant 0 : index
    %126 = vector.load %arg4[%c1_85, %c1_86, %c0_87, %c0_88] : memref<2x9x4x4xf32, #tpu.memory_space<vmem>>, vector<1x1x4x4xf32>
    %127 = vector.shape_cast %126 : vector<1x1x4x4xf32> to vector<4x4xf32>
    %128 = vector.extract_strided_slice %125 {offsets = [0, 0], sizes = [4, 256], strides = [1, 1]} : vector<4x320xf32> to vector<4x256xf32>
    %cst_89 = arith.constant dense<0.000000e+00> : vector<4x256xf32>
    %129 = tpu.matmul %127, %128, %cst_89 {dimension_numbers = #tpu.dot_dimension_numbers<[1], [0], [0], [1], [0, 0, 1, 1], [], []>} : vector<4x4xf32>, vector<4x256xf32>, vector<4x256xf32> -> vector<4x256xf32>
    %130 = arith.addf %124, %129 : vector<4x256xf32>
    %c1_90 = arith.constant 1 : index
    %c4_91 = arith.constant 4 : index
    %c0_92 = arith.constant 0 : index
    %c0_93 = arith.constant 0 : index
    %131 = vector.load %arg4[%c1_90, %c4_91, %c0_92, %c0_93] : memref<2x9x4x4xf32, #tpu.memory_space<vmem>>, vector<1x1x4x4xf32>
    %132 = vector.shape_cast %131 : vector<1x1x4x4xf32> to vector<4x4xf32>
    %133 = vector.extract_strided_slice %125 {offsets = [0, 32], sizes = [4, 256], strides = [1, 1]} : vector<4x320xf32> to vector<4x256xf32>
    %cst_94 = arith.constant dense<0.000000e+00> : vector<4x256xf32>
    %134 = tpu.matmul %132, %133, %cst_94 {dimension_numbers = #tpu.dot_dimension_numbers<[1], [0], [0], [1], [0, 0, 1, 1], [], []>} : vector<4x4xf32>, vector<4x256xf32>, vector<4x256xf32> -> vector<4x256xf32>
    %135 = arith.addf %130, %134 : vector<4x256xf32>
    %c1_95 = arith.constant 1 : index
    %c7_96 = arith.constant 7 : index
    %c0_97 = arith.constant 0 : index
    %c0_98 = arith.constant 0 : index
    %136 = vector.load %arg4[%c1_95, %c7_96, %c0_97, %c0_98] : memref<2x9x4x4xf32, #tpu.memory_space<vmem>>, vector<1x1x4x4xf32>
    %137 = vector.shape_cast %136 : vector<1x1x4x4xf32> to vector<4x4xf32>
    %138 = vector.extract_strided_slice %125 {offsets = [0, 64], sizes = [4, 256], strides = [1, 1]} : vector<4x320xf32> to vector<4x256xf32>
    %cst_99 = arith.constant dense<0.000000e+00> : vector<4x256xf32>
    %139 = tpu.matmul %137, %138, %cst_99 {dimension_numbers = #tpu.dot_dimension_numbers<[1], [0], [0], [1], [0, 0, 1, 1], [], []>} : vector<4x4xf32>, vector<4x256xf32>, vector<4x256xf32> -> vector<4x256xf32>
    %140 = arith.addf %135, %139 : vector<4x256xf32>
    %c0_100 = arith.constant 0 : index
    %c98 = arith.constant 98 : index
    %141 = vector.load %arg13[%c0_100, %c98] : memref<4x512xf32, #tpu.memory_space<vmem>>, vector<4x320xf32>
    %c14_i32 = arith.constant 14 : i32
    %142 = vector.broadcast %c14_i32 : i32 to vector<1x320xi32>
    %143 = arith.cmpi slt, %22, %142 : vector<1x320xi32>
    %cst_101 = arith.constant 0.000000e+00 : f32
    %144 = vector.shape_cast %143 : vector<1x320xi1> to vector<1x320xi1>
    %145 = vector.broadcast %144 : vector<1x320xi1> to vector<4x320xi1>
    %146 = vector.broadcast %cst_101 : f32 to vector<4x320xf32>
    %147 = arith.select %145, %141, %146 : vector<4x320xi1>, vector<4x320xf32>
    %c1_102 = arith.constant 1 : index
    %c2_103 = arith.constant 2 : index
    %c0_104 = arith.constant 0 : index
    %c0_105 = arith.constant 0 : index
    %148 = vector.load %arg4[%c1_102, %c2_103, %c0_104, %c0_105] : memref<2x9x4x4xf32, #tpu.memory_space<vmem>>, vector<1x1x4x4xf32>
    %149 = vector.shape_cast %148 : vector<1x1x4x4xf32> to vector<4x4xf32>
    %150 = vector.extract_strided_slice %147 {offsets = [0, 0], sizes = [4, 256], strides = [1, 1]} : vector<4x320xf32> to vector<4x256xf32>
    %cst_106 = arith.constant dense<0.000000e+00> : vector<4x256xf32>
    %151 = tpu.matmul %149, %150, %cst_106 {dimension_numbers = #tpu.dot_dimension_numbers<[1], [0], [0], [1], [0, 0, 1, 1], [], []>} : vector<4x4xf32>, vector<4x256xf32>, vector<4x256xf32> -> vector<4x256xf32>
    %152 = arith.addf %140, %151 : vector<4x256xf32>
    %c1_107 = arith.constant 1 : index
    %c5_108 = arith.constant 5 : index
    %c0_109 = arith.constant 0 : index
    %c0_110 = arith.constant 0 : index
    %153 = vector.load %arg4[%c1_107, %c5_108, %c0_109, %c0_110] : memref<2x9x4x4xf32, #tpu.memory_space<vmem>>, vector<1x1x4x4xf32>
    %154 = vector.shape_cast %153 : vector<1x1x4x4xf32> to vector<4x4xf32>
    %155 = vector.extract_strided_slice %147 {offsets = [0, 32], sizes = [4, 256], strides = [1, 1]} : vector<4x320xf32> to vector<4x256xf32>
    %cst_111 = arith.constant dense<0.000000e+00> : vector<4x256xf32>
    %156 = tpu.matmul %154, %155, %cst_111 {dimension_numbers = #tpu.dot_dimension_numbers<[1], [0], [0], [1], [0, 0, 1, 1], [], []>} : vector<4x4xf32>, vector<4x256xf32>, vector<4x256xf32> -> vector<4x256xf32>
    %157 = arith.addf %152, %156 : vector<4x256xf32>
    %c1_112 = arith.constant 1 : index
    %c8_113 = arith.constant 8 : index
    %c0_114 = arith.constant 0 : index
    %c0_115 = arith.constant 0 : index
    %158 = vector.load %arg4[%c1_112, %c8_113, %c0_114, %c0_115] : memref<2x9x4x4xf32, #tpu.memory_space<vmem>>, vector<1x1x4x4xf32>
    %159 = vector.shape_cast %158 : vector<1x1x4x4xf32> to vector<4x4xf32>
    %160 = vector.extract_strided_slice %147 {offsets = [0, 64], sizes = [4, 256], strides = [1, 1]} : vector<4x320xf32> to vector<4x256xf32>
    %cst_116 = arith.constant dense<0.000000e+00> : vector<4x256xf32>
    %161 = tpu.matmul %159, %160, %cst_116 {dimension_numbers = #tpu.dot_dimension_numbers<[1], [0], [0], [1], [0, 0, 1, 1], [], []>} : vector<4x4xf32>, vector<4x256xf32>, vector<4x256xf32> -> vector<4x256xf32>
    %162 = arith.addf %157, %161 : vector<4x256xf32>
    %c1_117 = arith.constant 1 : index
    %c0_118 = arith.constant 0 : index
    %c0_119 = arith.constant 0 : index
    %163 = vector.load %arg5[%c1_117, %c0_118, %c0_119] : memref<2x4x1xf32, #tpu.memory_space<vmem>>, vector<1x4x1xf32>
    %164 = vector.shape_cast %163 : vector<1x4x1xf32> to vector<4x1xf32>
    %165 = vector.broadcast %164 : vector<4x1xf32> to vector<4x256xf32>
    %166 = arith.addf %162, %165 : vector<4x256xf32>
    %cst_120 = arith.constant 0.000000e+00 : f32
    %167 = vector.broadcast %cst_120 : f32 to vector<4x256xf32>
    %168 = arith.maximumf %166, %167 : vector<4x256xf32>
    %cst_121 = arith.constant dense<0xFF800000> : vector<4xf32>
    %169 = vector.multi_reduction <maximumf>, %168, %cst_121 [1] : vector<4x256xf32> to vector<4xf32>
    %170 = vector.shape_cast %169 : vector<4xf32> to vector<4x1xf32>
    %c0_122 = arith.constant 0 : index
    %c0_123 = arith.constant 0 : index
    %c0_124 = arith.constant 0 : index
    %171 = vector.load %arg6[%c0_122, %c0_123, %c0_124] : memref<2x4x4xf32, #tpu.memory_space<vmem>>, vector<1x4x4xf32>
    %172 = vector.shape_cast %171 : vector<1x4x4xf32> to vector<4x4xf32>
    %cst_125 = arith.constant dense<0.000000e+00> : vector<4x1xf32>
    %173 = tpu.matmul %172, %101, %cst_125 {dimension_numbers = #tpu.dot_dimension_numbers<[1], [0], [0], [1], [0, 0, 1, 1], [], []>} : vector<4x4xf32>, vector<4x1xf32>, vector<4x1xf32> -> vector<4x1xf32>
    %c1_126 = arith.constant 1 : index
    %c0_127 = arith.constant 0 : index
    %c0_128 = arith.constant 0 : index
    %174 = vector.load %arg6[%c1_126, %c0_127, %c0_128] : memref<2x4x4xf32, #tpu.memory_space<vmem>>, vector<1x4x4xf32>
    %175 = vector.shape_cast %174 : vector<1x4x4xf32> to vector<4x4xf32>
    %cst_129 = arith.constant dense<0.000000e+00> : vector<4x1xf32>
    %176 = tpu.matmul %175, %170, %cst_129 {dimension_numbers = #tpu.dot_dimension_numbers<[1], [0], [0], [1], [0, 0, 1, 1], [], []>} : vector<4x4xf32>, vector<4x1xf32>, vector<4x1xf32> -> vector<4x1xf32>
    %177 = arith.addf %173, %176 : vector<4x1xf32>
    %cst_130 = arith.constant 0.000000e+00 : f32
    %178 = vector.broadcast %cst_130 : f32 to vector<4x1xf32>
    %179 = arith.maximumf %177, %178 : vector<4x1xf32>
    %c0_131 = arith.constant 0 : index
    %c0_132 = arith.constant 0 : index
    %180 = vector.load %arg7[%c0_131, %c0_132] : memref<8x4xf32, #tpu.memory_space<vmem>>, vector<8x4xf32>
    %cst_133 = arith.constant dense<0.000000e+00> : vector<8x1xf32>
    %181 = tpu.matmul %180, %179, %cst_133 {dimension_numbers = #tpu.dot_dimension_numbers<[1], [0], [0], [1], [0, 0, 1, 1], [], []>} : vector<8x4xf32>, vector<4x1xf32>, vector<8x1xf32> -> vector<8x1xf32>
    %182 = arith.negf %181 : vector<8x1xf32>
    %183 = math.exp %182 : vector<8x1xf32>
    %cst_134 = arith.constant 1.000000e+00 : f32
    %184 = vector.broadcast %cst_134 : f32 to vector<8x1xf32>
    %185 = arith.addf %184, %183 : vector<8x1xf32>
    %186 = arith.divf %184, %185 : vector<8x1xf32>
    %187 = vector.extract_strided_slice %186 {offsets = [0, 0], sizes = [4, 1], strides = [1, 1]} : vector<8x1xf32> to vector<4x1xf32>
    %c0_135 = arith.constant 0 : index
    %c0_136 = arith.constant 0 : index
    %c0_137 = arith.constant 0 : index
    %188 = vector.load %arg8[%c0_135, %c0_136, %c0_137] : memref<2x8x4xf32, #tpu.memory_space<vmem>>, vector<1x8x4xf32>
    %189 = vector.shape_cast %188 : vector<1x8x4xf32> to vector<8x4xf32>
    %cst_138 = arith.constant 0.000000e+00 : f32
    %190 = vector.shape_cast %187 : vector<4x1xf32> to vector<4x1xf32>
    %191 = vector.broadcast %190 : vector<4x1xf32> to vector<4x4xf32>
    %192 = vector.broadcast %cst_138 : f32 to vector<4x4xf32>
    %193 = arith.select %25, %191, %192 : vector<4x4xi1>, vector<4x4xf32>
    %cst_139 = arith.constant dense<0.000000e+00> : vector<8x4xf32>
    %194 = tpu.matmul %189, %193, %cst_139 {dimension_numbers = #tpu.dot_dimension_numbers<[1], [0], [0], [1], [0, 0, 1, 1], [], []>} : vector<8x4xf32>, vector<4x4xf32>, vector<8x4xf32> -> vector<8x4xf32>
    %cst_140 = arith.constant dense<0.000000e+00> : vector<8x256xf32>
    %195 = tpu.matmul %194, %99, %cst_140 {dimension_numbers = #tpu.dot_dimension_numbers<[1], [0], [0], [1], [0, 0, 1, 1], [], []>} : vector<8x4xf32>, vector<4x256xf32>, vector<8x256xf32> -> vector<8x256xf32>
    %196 = vector.extract_strided_slice %186 {offsets = [4, 0], sizes = [4, 1], strides = [1, 1]} : vector<8x1xf32> to vector<4x1xf32>
    %c1_141 = arith.constant 1 : index
    %c0_142 = arith.constant 0 : index
    %c0_143 = arith.constant 0 : index
    %197 = vector.load %arg8[%c1_141, %c0_142, %c0_143] : memref<2x8x4xf32, #tpu.memory_space<vmem>>, vector<1x8x4xf32>
    %198 = vector.shape_cast %197 : vector<1x8x4xf32> to vector<8x4xf32>
    %cst_144 = arith.constant 0.000000e+00 : f32
    %199 = vector.shape_cast %196 : vector<4x1xf32> to vector<4x1xf32>
    %200 = vector.broadcast %199 : vector<4x1xf32> to vector<4x4xf32>
    %201 = vector.broadcast %cst_144 : f32 to vector<4x4xf32>
    %202 = arith.select %25, %200, %201 : vector<4x4xi1>, vector<4x4xf32>
    %cst_145 = arith.constant dense<0.000000e+00> : vector<8x4xf32>
    %203 = tpu.matmul %198, %202, %cst_145 {dimension_numbers = #tpu.dot_dimension_numbers<[1], [0], [0], [1], [0, 0, 1, 1], [], []>} : vector<8x4xf32>, vector<4x4xf32>, vector<8x4xf32> -> vector<8x4xf32>
    %cst_146 = arith.constant dense<0.000000e+00> : vector<8x256xf32>
    %204 = tpu.matmul %203, %168, %cst_146 {dimension_numbers = #tpu.dot_dimension_numbers<[1], [0], [0], [1], [0, 0, 1, 1], [], []>} : vector<8x4xf32>, vector<4x256xf32>, vector<8x256xf32> -> vector<8x256xf32>
    %205 = arith.addf %195, %204 : vector<8x256xf32>
    %c0_147 = arith.constant 0 : index
    %c0_148 = arith.constant 0 : index
    %206 = vector.load %arg9[%c0_147, %c0_148] : memref<8x1xf32, #tpu.memory_space<vmem>>, vector<8x1xf32>
    %207 = vector.broadcast %206 : vector<8x1xf32> to vector<8x256xf32>
    %208 = arith.addf %205, %207 : vector<8x256xf32>
    %cst_149 = arith.constant 0.000000e+00 : f32
    %209 = vector.broadcast %cst_149 : f32 to vector<8x256xf32>
    %210 = arith.maximumf %208, %209 : vector<8x256xf32>
    %cst_150 = arith.constant dense<0.000000e+00> : vector<4xf32>
    %211 = vector.multi_reduction <add>, %1, %cst_150 [1] : vector<4x256xf32> to vector<4xf32>
    %212 = vector.shape_cast %211 : vector<4xf32> to vector<4x1xf32>
    %cst_151 = arith.constant 2.560000e+02 : f32
    %213 = vector.broadcast %cst_151 : f32 to vector<4x1xf32>
    %214 = arith.divf %212, %213 : vector<4x1xf32>
    %c0_152 = arith.constant 0 : index
    %c0_153 = arith.constant 0 : index
    %215 = vector.load %arg10[%c0_152, %c0_153] : memref<8x4xf32, #tpu.memory_space<vmem>>, vector<8x4xf32>
    %cst_154 = arith.constant dense<0.000000e+00> : vector<8x1xf32>
    %216 = tpu.matmul %215, %214, %cst_154 {dimension_numbers = #tpu.dot_dimension_numbers<[1], [0], [0], [1], [0, 0, 1, 1], [], []>} : vector<8x4xf32>, vector<4x1xf32>, vector<8x1xf32> -> vector<8x1xf32>
    %c0_155 = arith.constant 0 : index
    %c0_156 = arith.constant 0 : index
    %217 = vector.load %arg11[%c0_155, %c0_156] : memref<8x1xf32, #tpu.memory_space<vmem>>, vector<8x1xf32>
    %218 = arith.addf %216, %217 : vector<8x1xf32>
    %cst_157 = arith.constant 0.000000e+00 : f32
    %219 = vector.broadcast %cst_157 : f32 to vector<8x1xf32>
    %220 = arith.maximumf %218, %219 : vector<8x1xf32>
    %221 = vector.broadcast %220 : vector<8x1xf32> to vector<8x256xf32>
    %222 = arith.addf %210, %221 : vector<8x256xf32>
    %cst_158 = arith.constant 0.000000e+00 : f32
    %223 = vector.broadcast %cst_158 : f32 to vector<8x256xf32>
    %224 = arith.maximumf %222, %223 : vector<8x256xf32>
    %c0_159 = arith.constant 0 : index
    %c0_160 = arith.constant 0 : index
    %c0_161 = arith.constant 0 : index
    %225 = vector.load %arg12[%c0_159, %c0_160, %c0_161] : memref<1x8x256xf32, #tpu.memory_space<vmem>>, vector<1x8x256xf32>
    %226 = vector.shape_cast %225 : vector<1x8x256xf32> to vector<8x256xf32>
    %227 = vector.shape_cast %224 : vector<8x256xf32> to vector<1x8x256xf32>
    tpu.vector_store %arg12[%c0_159, %c0_160, %c0_161], %227 {strides = array<i32>} : memref<1x8x256xf32, #tpu.memory_space<vmem>>, vector<1x8x256xf32>,
    return
  }
  func.func @transform_0(%arg0: i32) -> (i32, i32, i32) {
    %c0_i32 = arith.constant 0 : i32
    %c0_i32_0 = arith.constant 0 : i32
    %c0_i32_1 = arith.constant 0 : i32
    return %arg0, %c0_i32, %c0_i32_0 : i32, i32, i32
  }
  func.func @transform_1(%arg0: i32) -> (i32, i32) {
    %c0_i32 = arith.constant 0 : i32
    %c0_i32_0 = arith.constant 0 : i32
    %c0_i32_1 = arith.constant 0 : i32
    return %c0_i32, %c0_i32_0 : i32, i32
  }
  func.func @transform_2(%arg0: i32) -> (i32, i32) {
    %c0_i32 = arith.constant 0 : i32
    %c0_i32_0 = arith.constant 0 : i32
    %c0_i32_1 = arith.constant 0 : i32
    return %c0_i32, %c0_i32_0 : i32, i32
  }
  func.func @transform_3(%arg0: i32) -> (i32, i32, i32, i32) {
    %c0_i32 = arith.constant 0 : i32
    %c0_i32_0 = arith.constant 0 : i32
    %c0_i32_1 = arith.constant 0 : i32
    %c0_i32_2 = arith.constant 0 : i32
    %c0_i32_3 = arith.constant 0 : i32
    return %c0_i32, %c0_i32_0, %c0_i32_1, %c0_i32_2 : i32, i32, i32, i32
  }
  func.func @transform_4(%arg0: i32) -> (i32, i32, i32) {
    %c0_i32 = arith.constant 0 : i32
    %c0_i32_0 = arith.constant 0 : i32
    %c0_i32_1 = arith.constant 0 : i32
    %c0_i32_2 = arith.constant 0 : i32
    return %c0_i32, %c0_i32_0, %c0_i32_1 : i32, i32, i32
  }
  func.func @transform_5(%arg0: i32) -> (i32, i32, i32) {
    %c0_i32 = arith.constant 0 : i32
    %c0_i32_0 = arith.constant 0 : i32
    %c0_i32_1 = arith.constant 0 : i32
    %c0_i32_2 = arith.constant 0 : i32
    return %c0_i32, %c0_i32_0, %c0_i32_1 : i32, i32, i32
  }
  func.func @transform_6(%arg0: i32) -> (i32, i32) {
    %c0_i32 = arith.constant 0 : i32
    %c0_i32_0 = arith.constant 0 : i32
    %c0_i32_1 = arith.constant 0 : i32
    return %c0_i32, %c0_i32_0 : i32, i32
  }
  func.func @transform_7(%arg0: i32) -> (i32, i32, i32) {
    %c0_i32 = arith.constant 0 : i32
    %c0_i32_0 = arith.constant 0 : i32
    %c0_i32_1 = arith.constant 0 : i32
    %c0_i32_2 = arith.constant 0 : i32
    return %c0_i32, %c0_i32_0, %c0_i32_1 : i32, i32, i32
  }
  func.func @transform_8(%arg0: i32) -> (i32, i32) {
    %c0_i32 = arith.constant 0 : i32
    %c0_i32_0 = arith.constant 0 : i32
    %c0_i32_1 = arith.constant 0 : i32
    return %c0_i32, %c0_i32_0 : i32, i32
  }
  func.func @transform_9(%arg0: i32) -> (i32, i32) {
    %c0_i32 = arith.constant 0 : i32
    %c0_i32_0 = arith.constant 0 : i32
    %c0_i32_1 = arith.constant 0 : i32
    return %c0_i32, %c0_i32_0 : i32, i32
  }
  func.func @transform_10(%arg0: i32) -> (i32, i32) {
    %c0_i32 = arith.constant 0 : i32
    %c0_i32_0 = arith.constant 0 : i32
    %c0_i32_1 = arith.constant 0 : i32
    return %c0_i32, %c0_i32_0 : i32, i32
  }
  func.func @transform_11(%arg0: i32) -> (i32, i32, i32) {
    %c0_i32 = arith.constant 0 : i32
    %c0_i32_0 = arith.constant 0 : i32
    %c0_i32_1 = arith.constant 0 : i32
    return %arg0, %c0_i32, %c0_i32_0 : i32, i32, i32
  }
}

module attributes {stable_mosaic.version = 11 : i64} {
  func.func @_dblock_kernel(%arg0: i32, %arg1: memref<1x4x256xf32, #tpu.memory_space<vmem>>, %arg2: memref<8x4xf32, #tpu.memory_space<vmem>>, %arg3: memref<8x1xf32, #tpu.memory_space<vmem>>, %arg4: memref<2x9x4x4xf32, #tpu.memory_space<vmem>>, %arg5: memref<2x4x1xf32, #tpu.memory_space<vmem>>, %arg6: memref<2x4x4xf32, #tpu.memory_space<vmem>>, %arg7: memref<8x4xf32, #tpu.memory_space<vmem>>, %arg8: memref<2x8x4xf32, #tpu.memory_space<vmem>>, %arg9: memref<8x1xf32, #tpu.memory_space<vmem>>, %arg10: memref<8x4xf32, #tpu.memory_space<vmem>>, %arg11: memref<8x1xf32, #tpu.memory_space<vmem>>, %arg12: memref<1x8x256xf32, #tpu.memory_space<vmem>>, %arg13: memref<4x512xf32, #tpu.memory_space<vmem>>) attributes {dimension_semantics = [#tpu.dimension_semantics<parallel>], iteration_bounds = array<i64: 2>, scalar_prefetch = 0 : i64, scratch_operands = 1 : i64, tpu.core_type = #tpu.core_type<tc>, window_params = [{transform_indices = @transform_0, window_bounds = array<i64: 1, 4, 256>}, {pipeline_mode = #tpu.pipeline_mode<synchronous>, transform_indices = @transform_1, window_bounds = array<i64: 8, 4>}, {pipeline_mode = #tpu.pipeline_mode<synchronous>, transform_indices = @transform_2, window_bounds = array<i64: 8, 1>}, {pipeline_mode = #tpu.pipeline_mode<synchronous>, transform_indices = @transform_3, window_bounds = array<i64: 2, 9, 4, 4>}, {pipeline_mode = #tpu.pipeline_mode<synchronous>, transform_indices = @transform_4, window_bounds = array<i64: 2, 4, 1>}, {pipeline_mode = #tpu.pipeline_mode<synchronous>, transform_indices = @transform_5, window_bounds = array<i64: 2, 4, 4>}, {pipeline_mode = #tpu.pipeline_mode<synchronous>, transform_indices = @transform_6, window_bounds = array<i64: 8, 4>}, {pipeline_mode = #tpu.pipeline_mode<synchronous>, transform_indices = @transform_7, window_bounds = array<i64: 2, 8, 4>}, {pipeline_mode = #tpu.pipeline_mode<synchronous>, transform_indices = @transform_8, window_bounds = array<i64: 8, 1>}, {pipeline_mode = #tpu.pipeline_mode<synchronous>, transform_indices = @transform_9, window_bounds = array<i64: 8, 4>}, {pipeline_mode = #tpu.pipeline_mode<synchronous>, transform_indices = @transform_10, window_bounds = array<i64: 8, 1>}, {transform_indices = @transform_11, window_bounds = array<i64: 1, 8, 256>}]} {
    %c0 = arith.constant 0 : index
    %c0_0 = arith.constant 0 : index
    %c0_1 = arith.constant 0 : index
    %0 = vector.load %arg1[%c0, %c0_0, %c0_1] : memref<1x4x256xf32, #tpu.memory_space<vmem>>, vector<1x4x256xf32>
    %1 = vector.shape_cast %0 : vector<1x4x256xf32> to vector<4x256xf32>
    %cst = arith.constant 0.000000e+00 : f32
    %2 = vector.broadcast %cst : f32 to vector<4x128xf32>
    %c0_2 = arith.constant 0 : index
    %c0_3 = arith.constant 0 : index
    %3 = vector.load %arg13[%c0_2, %c0_3] : memref<4x512xf32, #tpu.memory_space<vmem>>, vector<4x128xf32>
    tpu.vector_store %arg13[%c0_2, %c0_3], %2 {strides = array<i32>} : memref<4x512xf32, #tpu.memory_space<vmem>>, vector<4x128xf32>,
    %cst_4 = arith.constant 0.000000e+00 : f32
    %4 = vector.broadcast %cst_4 : f32 to vector<4x128xf32>
    %c0_5 = arith.constant 0 : index
    %c384 = arith.constant 384 : index
    %5 = vector.load %arg13[%c0_5, %c384] : memref<4x512xf32, #tpu.memory_space<vmem>>, vector<4x128xf32>
    tpu.vector_store %arg13[%c0_5, %c384], %4 {strides = array<i32>} : memref<4x512xf32, #tpu.memory_space<vmem>>, vector<4x128xf32>,
    %6 = tpu.iota {dimensions = array<i32: 1>} : vector<1x320xi32>
    %c16_i32 = arith.constant 16 : i32
    %c0_i32 = arith.constant 0 : i32
    %7 = arith.cmpi eq, %c16_i32, %c0_i32 : i32
    %c1_i32 = arith.constant 1 : i32
    %8 = arith.select %7, %c1_i32, %c16_i32 : i32
    %9 = vector.broadcast %8 : i32 to vector<1x320xi32>
    %10 = arith.remsi %6, %9 : vector<1x320xi32>
    %c0_i32_6 = arith.constant 0 : i32
    %11 = vector.broadcast %c0_i32_6 : i32 to vector<1x320xi32>
    %12 = arith.cmpi ne, %10, %11 : vector<1x320xi32>
    %c0_i32_7 = arith.constant 0 : i32
    %13 = vector.broadcast %c0_i32_7 : i32 to vector<1x320xi32>
    %14 = arith.cmpi slt, %10, %13 : vector<1x320xi32>
    %c0_i32_8 = arith.constant 0 : i32
    %15 = arith.cmpi slt, %8, %c0_i32_8 : i32
    %16 = vector.broadcast %15 : i1 to vector<1x320xi1>
    %17 = vector.broadcast %16 : vector<1x320xi1> to vector<1x320xi1>
    %18 = arith.xori %14, %17 : vector<1x320xi1>
    %19 = arith.andi %18, %12 : vector<1x320xi1>
    %20 = vector.broadcast %8 : i32 to vector<1x320xi32>
    %21 = arith.addi %10, %20 : vector<1x320xi32>
    %22 = arith.select %19, %21, %10 : vector<1x320xi1>, vector<1x320xi32>
    %23 = tpu.iota {dimensions = array<i32: 0>} : vector<4x4xi32>
    %24 = tpu.iota {dimensions = array<i32: 1>} : vector<4x4xi32>
    %25 = arith.cmpi eq, %23, %24 : vector<4x4xi32>
    %c0_9 = arith.constant 0 : index
    %c0_10 = arith.constant 0 : index
    %26 = vector.load %arg2[%c0_9, %c0_10] : memref<8x4xf32, #tpu.memory_space<vmem>>, vector<8x4xf32>
    %cst_11 = arith.constant dense<0.000000e+00> : vector<8x256xf32>
    %27 = tpu.matmul %26, %1, %cst_11 {dimension_numbers = #tpu.dot_dimension_numbers<[1], [0], [0], [1], [0, 0, 1, 1], [], []>} : vector<8x4xf32>, vector<4x256xf32>, vector<8x256xf32> -> vector<8x256xf32>
    %c0_12 = arith.constant 0 : index
    %c0_13 = arith.constant 0 : index
    %28 = vector.load %arg3[%c0_12, %c0_13] : memref<8x1xf32, #tpu.memory_space<vmem>>, vector<8x1xf32>
    %29 = vector.broadcast %28 : vector<8x1xf32> to vector<8x256xf32>
    %30 = arith.addf %27, %29 : vector<8x256xf32>
    %cst_14 = arith.constant 0.000000e+00 : f32
    %31 = vector.broadcast %cst_14 : f32 to vector<8x256xf32>
    %32 = arith.maximumf %30, %31 : vector<8x256xf32>
    %33 = vector.extract_strided_slice %32 {offsets = [0, 0], sizes = [4, 256], strides = [1, 1]} : vector<8x256xf32> to vector<4x256xf32>
    %c0_15 = arith.constant 0 : index
    %c128 = arith.constant 128 : index
    %34 = vector.load %arg13[%c0_15, %c128] : memref<4x512xf32, #tpu.memory_space<vmem>>, vector<4x256xf32>
    tpu.vector_store %arg13[%c0_15, %c128], %33 {strides = array<i32>} : memref<4x512xf32, #tpu.memory_space<vmem>>, vector<4x256xf32>,
    %c0_16 = arith.constant 0 : index
    %c95 = arith.constant 95 : index
    %35 = vector.load %arg13[%c0_16, %c95] : memref<4x512xf32, #tpu.memory_space<vmem>>, vector<4x320xf32>
    %c1_i32_17 = arith.constant 1 : i32
    %36 = vector.broadcast %c1_i32_17 : i32 to vector<1x320xi32>
    %37 = arith.cmpi sge, %22, %36 : vector<1x320xi32>
    %cst_18 = arith.constant 0.000000e+00 : f32
    %38 = vector.shape_cast %37 : vector<1x320xi1> to vector<1x320xi1>
    %39 = vector.broadcast %38 : vector<1x320xi1> to vector<4x320xi1>
    %40 = vector.broadcast %cst_18 : f32 to vector<4x320xf32>
    %41 = arith.select %39, %35, %40 : vector<4x320xi1>, vector<4x320xf32>
    %c0_19 = arith.constant 0 : index
    %c0_20 = arith.constant 0 : index
    %c0_21 = arith.constant 0 : index
    %c0_22 = arith.constant 0 : index
    %42 = vector.load %arg4[%c0_19, %c0_20, %c0_21, %c0_22] : memref<2x9x4x4xf32, #tpu.memory_space<vmem>>, vector<1x1x4x4xf32>
    %43 = vector.shape_cast %42 : vector<1x1x4x4xf32> to vector<4x4xf32>
    %44 = vector.extract_strided_slice %41 {offsets = [0, 16], sizes = [4, 256], strides = [1, 1]} : vector<4x320xf32> to vector<4x256xf32>
    %cst_23 = arith.constant dense<0.000000e+00> : vector<4x256xf32>
    %45 = tpu.matmul %43, %44, %cst_23 {dimension_numbers = #tpu.dot_dimension_numbers<[1], [0], [0], [1], [0, 0, 1, 1], [], []>} : vector<4x4xf32>, vector<4x256xf32>, vector<4x256xf32> -> vector<4x256xf32>
    %c0_24 = arith.constant 0 : index
    %c3 = arith.constant 3 : index
    %c0_25 = arith.constant 0 : index
    %c0_26 = arith.constant 0 : index
    %46 = vector.load %arg4[%c0_24, %c3, %c0_25, %c0_26] : memref<2x9x4x4xf32, #tpu.memory_space<vmem>>, vector<1x1x4x4xf32>
    %47 = vector.shape_cast %46 : vector<1x1x4x4xf32> to vector<4x4xf32>
    %48 = vector.extract_strided_slice %41 {offsets = [0, 32], sizes = [4, 256], strides = [1, 1]} : vector<4x320xf32> to vector<4x256xf32>
    %cst_27 = arith.constant dense<0.000000e+00> : vector<4x256xf32>
    %49 = tpu.matmul %47, %48, %cst_27 {dimension_numbers = #tpu.dot_dimension_numbers<[1], [0], [0], [1], [0, 0, 1, 1], [], []>} : vector<4x4xf32>, vector<4x256xf32>, vector<4x256xf32> -> vector<4x256xf32>
    %50 = arith.addf %45, %49 : vector<4x256xf32>
    %c0_28 = arith.constant 0 : index
    %c6 = arith.constant 6 : index
    %c0_29 = arith.constant 0 : index
    %c0_30 = arith.constant 0 : index
    %51 = vector.load %arg4[%c0_28, %c6, %c0_29, %c0_30] : memref<2x9x4x4xf32, #tpu.memory_space<vmem>>, vector<1x1x4x4xf32>
    %52 = vector.shape_cast %51 : vector<1x1x4x4xf32> to vector<4x4xf32>
    %53 = vector.extract_strided_slice %41 {offsets = [0, 48], sizes = [4, 256], strides = [1, 1]} : vector<4x320xf32> to vector<4x256xf32>
    %cst_31 = arith.constant dense<0.000000e+00> : vector<4x256xf32>
    %54 = tpu.matmul %52, %53, %cst_31 {dimension_numbers = #tpu.dot_dimension_numbers<[1], [0], [0], [1], [0, 0, 1, 1], [], []>} : vector<4x4xf32>, vector<4x256xf32>, vector<4x256xf32> -> vector<4x256xf32>
    %55 = arith.addf %50, %54 : vector<4x256xf32>
    %c0_32 = arith.constant 0 : index
    %c96 = arith.constant 96 : index
    %56 = vector.load %arg13[%c0_32, %c96] : memref<4x512xf32, #tpu.memory_space<vmem>>, vector<4x320xf32>
    %c0_33 = arith.constant 0 : index
    %c1 = arith.constant 1 : index
    %c0_34 = arith.constant 0 : index
    %c0_35 = arith.constant 0 : index
    %57 = vector.load %arg4[%c0_33, %c1, %c0_34, %c0_35] : memref<2x9x4x4xf32, #tpu.memory_space<vmem>>, vector<1x1x4x4xf32>
    %58 = vector.shape_cast %57 : vector<1x1x4x4xf32> to vector<4x4xf32>
    %59 = vector.extract_strided_slice %56 {offsets = [0, 16], sizes = [4, 256], strides = [1, 1]} : vector<4x320xf32> to vector<4x256xf32>
    %cst_36 = arith.constant dense<0.000000e+00> : vector<4x256xf32>
    %60 = tpu.matmul %58, %59, %cst_36 {dimension_numbers = #tpu.dot_dimension_numbers<[1], [0], [0], [1], [0, 0, 1, 1], [], []>} : vector<4x4xf32>, vector<4x256xf32>, vector<4x256xf32> -> vector<4x256xf32>
    %61 = arith.addf %55, %60 : vector<4x256xf32>
    %c0_37 = arith.constant 0 : index
    %c4 = arith.constant 4 : index
    %c0_38 = arith.constant 0 : index
    %c0_39 = arith.constant 0 : index
    %62 = vector.load %arg4[%c0_37, %c4, %c0_38, %c0_39] : memref<2x9x4x4xf32, #tpu.memory_space<vmem>>, vector<1x1x4x4xf32>
    %63 = vector.shape_cast %62 : vector<1x1x4x4xf32> to vector<4x4xf32>
    %64 = vector.extract_strided_slice %56 {offsets = [0, 32], sizes = [4, 256], strides = [1, 1]} : vector<4x320xf32> to vector<4x256xf32>
    %cst_40 = arith.constant dense<0.000000e+00> : vector<4x256xf32>
    %65 = tpu.matmul %63, %64, %cst_40 {dimension_numbers = #tpu.dot_dimension_numbers<[1], [0], [0], [1], [0, 0, 1, 1], [], []>} : vector<4x4xf32>, vector<4x256xf32>, vector<4x256xf32> -> vector<4x256xf32>
    %66 = arith.addf %61, %65 : vector<4x256xf32>
    %c0_41 = arith.constant 0 : index
    %c7 = arith.constant 7 : index
    %c0_42 = arith.constant 0 : index
    %c0_43 = arith.constant 0 : index
    %67 = vector.load %arg4[%c0_41, %c7, %c0_42, %c0_43] : memref<2x9x4x4xf32, #tpu.memory_space<vmem>>, vector<1x1x4x4xf32>
    %68 = vector.shape_cast %67 : vector<1x1x4x4xf32> to vector<4x4xf32>
    %69 = vector.extract_strided_slice %56 {offsets = [0, 48], sizes = [4, 256], strides = [1, 1]} : vector<4x320xf32> to vector<4x256xf32>
    %cst_44 = arith.constant dense<0.000000e+00> : vector<4x256xf32>
    %70 = tpu.matmul %68, %69, %cst_44 {dimension_numbers = #tpu.dot_dimension_numbers<[1], [0], [0], [1], [0, 0, 1, 1], [], []>} : vector<4x4xf32>, vector<4x256xf32>, vector<4x256xf32> -> vector<4x256xf32>
    %71 = arith.addf %66, %70 : vector<4x256xf32>
    %c0_45 = arith.constant 0 : index
    %c97 = arith.constant 97 : index
    %72 = vector.load %arg13[%c0_45, %c97] : memref<4x512xf32, #tpu.memory_space<vmem>>, vector<4x320xf32>
    %c15_i32 = arith.constant 15 : i32
    %73 = vector.broadcast %c15_i32 : i32 to vector<1x320xi32>
    %74 = arith.cmpi slt, %22, %73 : vector<1x320xi32>
    %cst_46 = arith.constant 0.000000e+00 : f32
    %75 = vector.shape_cast %74 : vector<1x320xi1> to vector<1x320xi1>
    %76 = vector.broadcast %75 : vector<1x320xi1> to vector<4x320xi1>
    %77 = vector.broadcast %cst_46 : f32 to vector<4x320xf32>
    %78 = arith.select %76, %72, %77 : vector<4x320xi1>, vector<4x320xf32>
    %c0_47 = arith.constant 0 : index
    %c2 = arith.constant 2 : index
    %c0_48 = arith.constant 0 : index
    %c0_49 = arith.constant 0 : index
    %79 = vector.load %arg4[%c0_47, %c2, %c0_48, %c0_49] : memref<2x9x4x4xf32, #tpu.memory_space<vmem>>, vector<1x1x4x4xf32>
    %80 = vector.shape_cast %79 : vector<1x1x4x4xf32> to vector<4x4xf32>
    %81 = vector.extract_strided_slice %78 {offsets = [0, 16], sizes = [4, 256], strides = [1, 1]} : vector<4x320xf32> to vector<4x256xf32>
    %cst_50 = arith.constant dense<0.000000e+00> : vector<4x256xf32>
    %82 = tpu.matmul %80, %81, %cst_50 {dimension_numbers = #tpu.dot_dimension_numbers<[1], [0], [0], [1], [0, 0, 1, 1], [], []>} : vector<4x4xf32>, vector<4x256xf32>, vector<4x256xf32> -> vector<4x256xf32>
    %83 = arith.addf %71, %82 : vector<4x256xf32>
    %c0_51 = arith.constant 0 : index
    %c5 = arith.constant 5 : index
    %c0_52 = arith.constant 0 : index
    %c0_53 = arith.constant 0 : index
    %84 = vector.load %arg4[%c0_51, %c5, %c0_52, %c0_53] : memref<2x9x4x4xf32, #tpu.memory_space<vmem>>, vector<1x1x4x4xf32>
    %85 = vector.shape_cast %84 : vector<1x1x4x4xf32> to vector<4x4xf32>
    %86 = vector.extract_strided_slice %78 {offsets = [0, 32], sizes = [4, 256], strides = [1, 1]} : vector<4x320xf32> to vector<4x256xf32>
    %cst_54 = arith.constant dense<0.000000e+00> : vector<4x256xf32>
    %87 = tpu.matmul %85, %86, %cst_54 {dimension_numbers = #tpu.dot_dimension_numbers<[1], [0], [0], [1], [0, 0, 1, 1], [], []>} : vector<4x4xf32>, vector<4x256xf32>, vector<4x256xf32> -> vector<4x256xf32>
    %88 = arith.addf %83, %87 : vector<4x256xf32>
    %c0_55 = arith.constant 0 : index
    %c8 = arith.constant 8 : index
    %c0_56 = arith.constant 0 : index
    %c0_57 = arith.constant 0 : index
    %89 = vector.load %arg4[%c0_55, %c8, %c0_56, %c0_57] : memref<2x9x4x4xf32, #tpu.memory_space<vmem>>, vector<1x1x4x4xf32>
    %90 = vector.shape_cast %89 : vector<1x1x4x4xf32> to vector<4x4xf32>
    %91 = vector.extract_strided_slice %78 {offsets = [0, 48], sizes = [4, 256], strides = [1, 1]} : vector<4x320xf32> to vector<4x256xf32>
    %cst_58 = arith.constant dense<0.000000e+00> : vector<4x256xf32>
    %92 = tpu.matmul %90, %91, %cst_58 {dimension_numbers = #tpu.dot_dimension_numbers<[1], [0], [0], [1], [0, 0, 1, 1], [], []>} : vector<4x4xf32>, vector<4x256xf32>, vector<4x256xf32> -> vector<4x256xf32>
    %93 = arith.addf %88, %92 : vector<4x256xf32>
    %c0_59 = arith.constant 0 : index
    %c0_60 = arith.constant 0 : index
    %c0_61 = arith.constant 0 : index
    %94 = vector.load %arg5[%c0_59, %c0_60, %c0_61] : memref<2x4x1xf32, #tpu.memory_space<vmem>>, vector<1x4x1xf32>
    %95 = vector.shape_cast %94 : vector<1x4x1xf32> to vector<4x1xf32>
    %96 = vector.broadcast %95 : vector<4x1xf32> to vector<4x256xf32>
    %97 = arith.addf %93, %96 : vector<4x256xf32>
    %cst_62 = arith.constant 0.000000e+00 : f32
    %98 = vector.broadcast %cst_62 : f32 to vector<4x256xf32>
    %99 = arith.maximumf %97, %98 : vector<4x256xf32>
    %cst_63 = arith.constant dense<0xFF800000> : vector<4xf32>
    %100 = vector.multi_reduction <maximumf>, %99, %cst_63 [1] : vector<4x256xf32> to vector<4xf32>
    %101 = vector.shape_cast %100 : vector<4xf32> to vector<4x1xf32>
    %102 = vector.extract_strided_slice %32 {offsets = [4, 0], sizes = [4, 256], strides = [1, 1]} : vector<8x256xf32> to vector<4x256xf32>
    %c0_64 = arith.constant 0 : index
    %c128_65 = arith.constant 128 : index
    %103 = vector.load %arg13[%c0_64, %c128_65] : memref<4x512xf32, #tpu.memory_space<vmem>>, vector<4x256xf32>
    tpu.vector_store %arg13[%c0_64, %c128_65], %102 {strides = array<i32>} : memref<4x512xf32, #tpu.memory_space<vmem>>, vector<4x256xf32>,
    %c0_66 = arith.constant 0 : index
    %c94 = arith.constant 94 : index
    %104 = vector.load %arg13[%c0_66, %c94] : memref<4x512xf32, #tpu.memory_space<vmem>>, vector<4x320xf32>
    %c2_i32 = arith.constant 2 : i32
    %105 = vector.broadcast %c2_i32 : i32 to vector<1x320xi32>
    %106 = arith.cmpi sge, %22, %105 : vector<1x320xi32>
    %cst_67 = arith.constant 0.000000e+00 : f32
    %107 = vector.shape_cast %106 : vector<1x320xi1> to vector<1x320xi1>
    %108 = vector.broadcast %107 : vector<1x320xi1> to vector<4x320xi1>
    %109 = vector.broadcast %cst_67 : f32 to vector<4x320xf32>
    %110 = arith.select %108, %104, %109 : vector<4x320xi1>, vector<4x320xf32>
    %c1_68 = arith.constant 1 : index
    %c0_69 = arith.constant 0 : index
    %c0_70 = arith.constant 0 : index
    %c0_71 = arith.constant 0 : index
    %111 = vector.load %arg4[%c1_68, %c0_69, %c0_70, %c0_71] : memref<2x9x4x4xf32, #tpu.memory_space<vmem>>, vector<1x1x4x4xf32>
    %112 = vector.shape_cast %111 : vector<1x1x4x4xf32> to vector<4x4xf32>
    %113 = vector.extract_strided_slice %110 {offsets = [0, 0], sizes = [4, 256], strides = [1, 1]} : vector<4x320xf32> to vector<4x256xf32>
    %cst_72 = arith.constant dense<0.000000e+00> : vector<4x256xf32>
    %114 = tpu.matmul %112, %113, %cst_72 {dimension_numbers = #tpu.dot_dimension_numbers<[1], [0], [0], [1], [0, 0, 1, 1], [], []>} : vector<4x4xf32>, vector<4x256xf32>, vector<4x256xf32> -> vector<4x256xf32>
    %c1_73 = arith.constant 1 : index
    %c3_74 = arith.constant 3 : index
    %c0_75 = arith.constant 0 : index
    %c0_76 = arith.constant 0 : index
    %115 = vector.load %arg4[%c1_73, %c3_74, %c0_75, %c0_76] : memref<2x9x4x4xf32, #tpu.memory_space<vmem>>, vector<1x1x4x4xf32>
    %116 = vector.shape_cast %115 : vector<1x1x4x4xf32> to vector<4x4xf32>
    %117 = vector.extract_strided_slice %110 {offsets = [0, 32], sizes = [4, 256], strides = [1, 1]} : vector<4x320xf32> to vector<4x256xf32>
    %cst_77 = arith.constant dense<0.000000e+00> : vector<4x256xf32>
    %118 = tpu.matmul %116, %117, %cst_77 {dimension_numbers = #tpu.dot_dimension_numbers<[1], [0], [0], [1], [0, 0, 1, 1], [], []>} : vector<4x4xf32>, vector<4x256xf32>, vector<4x256xf32> -> vector<4x256xf32>
    %119 = arith.addf %114, %118 : vector<4x256xf32>
    %c1_78 = arith.constant 1 : index
    %c6_79 = arith.constant 6 : index
    %c0_80 = arith.constant 0 : index
    %c0_81 = arith.constant 0 : index
    %120 = vector.load %arg4[%c1_78, %c6_79, %c0_80, %c0_81] : memref<2x9x4x4xf32, #tpu.memory_space<vmem>>, vector<1x1x4x4xf32>
    %121 = vector.shape_cast %120 : vector<1x1x4x4xf32> to vector<4x4xf32>
    %122 = vector.extract_strided_slice %110 {offsets = [0, 64], sizes = [4, 256], strides = [1, 1]} : vector<4x320xf32> to vector<4x256xf32>
    %cst_82 = arith.constant dense<0.000000e+00> : vector<4x256xf32>
    %123 = tpu.matmul %121, %122, %cst_82 {dimension_numbers = #tpu.dot_dimension_numbers<[1], [0], [0], [1], [0, 0, 1, 1], [], []>} : vector<4x4xf32>, vector<4x256xf32>, vector<4x256xf32> -> vector<4x256xf32>
    %124 = arith.addf %119, %123 : vector<4x256xf32>
    %c0_83 = arith.constant 0 : index
    %c96_84 = arith.constant 96 : index
    %125 = vector.load %arg13[%c0_83, %c96_84] : memref<4x512xf32, #tpu.memory_space<vmem>>, vector<4x320xf32>
    %c1_85 = arith.constant 1 : index
    %c1_86 = arith.constant 1 : index
    %c0_87 = arith.constant 0 : index
    %c0_88 = arith.constant 0 : index
    %126 = vector.load %arg4[%c1_85, %c1_86, %c0_87, %c0_88] : memref<2x9x4x4xf32, #tpu.memory_space<vmem>>, vector<1x1x4x4xf32>
    %127 = vector.shape_cast %126 : vector<1x1x4x4xf32> to vector<4x4xf32>
    %128 = vector.extract_strided_slice %125 {offsets = [0, 0], sizes = [4, 256], strides = [1, 1]} : vector<4x320xf32> to vector<4x256xf32>
    %cst_89 = arith.constant dense<0.000000e+00> : vector<4x256xf32>
    %129 = tpu.matmul %127, %128, %cst_89 {dimension_numbers = #tpu.dot_dimension_numbers<[1], [0], [0], [1], [0, 0, 1, 1], [], []>} : vector<4x4xf32>, vector<4x256xf32>, vector<4x256xf32> -> vector<4x256xf32>
    %130 = arith.addf %124, %129 : vector<4x256xf32>
    %c1_90 = arith.constant 1 : index
    %c4_91 = arith.constant 4 : index
    %c0_92 = arith.constant 0 : index
    %c0_93 = arith.constant 0 : index
    %131 = vector.load %arg4[%c1_90, %c4_91, %c0_92, %c0_93] : memref<2x9x4x4xf32, #tpu.memory_space<vmem>>, vector<1x1x4x4xf32>
    %132 = vector.shape_cast %131 : vector<1x1x4x4xf32> to vector<4x4xf32>
    %133 = vector.extract_strided_slice %125 {offsets = [0, 32], sizes = [4, 256], strides = [1, 1]} : vector<4x320xf32> to vector<4x256xf32>
    %cst_94 = arith.constant dense<0.000000e+00> : vector<4x256xf32>
    %134 = tpu.matmul %132, %133, %cst_94 {dimension_numbers = #tpu.dot_dimension_numbers<[1], [0], [0], [1], [0, 0, 1, 1], [], []>} : vector<4x4xf32>, vector<4x256xf32>, vector<4x256xf32> -> vector<4x256xf32>
    %135 = arith.addf %130, %134 : vector<4x256xf32>
    %c1_95 = arith.constant 1 : index
    %c7_96 = arith.constant 7 : index
    %c0_97 = arith.constant 0 : index
    %c0_98 = arith.constant 0 : index
    %136 = vector.load %arg4[%c1_95, %c7_96, %c0_97, %c0_98] : memref<2x9x4x4xf32, #tpu.memory_space<vmem>>, vector<1x1x4x4xf32>
    %137 = vector.shape_cast %136 : vector<1x1x4x4xf32> to vector<4x4xf32>
    %138 = vector.extract_strided_slice %125 {offsets = [0, 64], sizes = [4, 256], strides = [1, 1]} : vector<4x320xf32> to vector<4x256xf32>
    %cst_99 = arith.constant dense<0.000000e+00> : vector<4x256xf32>
    %139 = tpu.matmul %137, %138, %cst_99 {dimension_numbers = #tpu.dot_dimension_numbers<[1], [0], [0], [1], [0, 0, 1, 1], [], []>} : vector<4x4xf32>, vector<4x256xf32>, vector<4x256xf32> -> vector<4x256xf32>
    %140 = arith.addf %135, %139 : vector<4x256xf32>
    %c0_100 = arith.constant 0 : index
    %c98 = arith.constant 98 : index
    %141 = vector.load %arg13[%c0_100, %c98] : memref<4x512xf32, #tpu.memory_space<vmem>>, vector<4x320xf32>
    %c14_i32 = arith.constant 14 : i32
    %142 = vector.broadcast %c14_i32 : i32 to vector<1x320xi32>
    %143 = arith.cmpi slt, %22, %142 : vector<1x320xi32>
    %cst_101 = arith.constant 0.000000e+00 : f32
    %144 = vector.shape_cast %143 : vector<1x320xi1> to vector<1x320xi1>
    %145 = vector.broadcast %144 : vector<1x320xi1> to vector<4x320xi1>
    %146 = vector.broadcast %cst_101 : f32 to vector<4x320xf32>
    %147 = arith.select %145, %141, %146 : vector<4x320xi1>, vector<4x320xf32>
    %c1_102 = arith.constant 1 : index
    %c2_103 = arith.constant 2 : index
    %c0_104 = arith.constant 0 : index
    %c0_105 = arith.constant 0 : index
    %148 = vector.load %arg4[%c1_102, %c2_103, %c0_104, %c0_105] : memref<2x9x4x4xf32, #tpu.memory_space<vmem>>, vector<1x1x4x4xf32>
    %149 = vector.shape_cast %148 : vector<1x1x4x4xf32> to vector<4x4xf32>
    %150 = vector.extract_strided_slice %147 {offsets = [0, 0], sizes = [4, 256], strides = [1, 1]} : vector<4x320xf32> to vector<4x256xf32>
    %cst_106 = arith.constant dense<0.000000e+00> : vector<4x256xf32>
    %151 = tpu.matmul %149, %150, %cst_106 {dimension_numbers = #tpu.dot_dimension_numbers<[1], [0], [0], [1], [0, 0, 1, 1], [], []>} : vector<4x4xf32>, vector<4x256xf32>, vector<4x256xf32> -> vector<4x256xf32>
    %152 = arith.addf %140, %151 : vector<4x256xf32>
    %c1_107 = arith.constant 1 : index
    %c5_108 = arith.constant 5 : index
    %c0_109 = arith.constant 0 : index
    %c0_110 = arith.constant 0 : index
    %153 = vector.load %arg4[%c1_107, %c5_108, %c0_109, %c0_110] : memref<2x9x4x4xf32, #tpu.memory_space<vmem>>, vector<1x1x4x4xf32>
    %154 = vector.shape_cast %153 : vector<1x1x4x4xf32> to vector<4x4xf32>
    %155 = vector.extract_strided_slice %147 {offsets = [0, 32], sizes = [4, 256], strides = [1, 1]} : vector<4x320xf32> to vector<4x256xf32>
    %cst_111 = arith.constant dense<0.000000e+00> : vector<4x256xf32>
    %156 = tpu.matmul %154, %155, %cst_111 {dimension_numbers = #tpu.dot_dimension_numbers<[1], [0], [0], [1], [0, 0, 1, 1], [], []>} : vector<4x4xf32>, vector<4x256xf32>, vector<4x256xf32> -> vector<4x256xf32>
    %157 = arith.addf %152, %156 : vector<4x256xf32>
    %c1_112 = arith.constant 1 : index
    %c8_113 = arith.constant 8 : index
    %c0_114 = arith.constant 0 : index
    %c0_115 = arith.constant 0 : index
    %158 = vector.load %arg4[%c1_112, %c8_113, %c0_114, %c0_115] : memref<2x9x4x4xf32, #tpu.memory_space<vmem>>, vector<1x1x4x4xf32>
    %159 = vector.shape_cast %158 : vector<1x1x4x4xf32> to vector<4x4xf32>
    %160 = vector.extract_strided_slice %147 {offsets = [0, 64], sizes = [4, 256], strides = [1, 1]} : vector<4x320xf32> to vector<4x256xf32>
    %cst_116 = arith.constant dense<0.000000e+00> : vector<4x256xf32>
    %161 = tpu.matmul %159, %160, %cst_116 {dimension_numbers = #tpu.dot_dimension_numbers<[1], [0], [0], [1], [0, 0, 1, 1], [], []>} : vector<4x4xf32>, vector<4x256xf32>, vector<4x256xf32> -> vector<4x256xf32>
    %162 = arith.addf %157, %161 : vector<4x256xf32>
    %c1_117 = arith.constant 1 : index
    %c0_118 = arith.constant 0 : index
    %c0_119 = arith.constant 0 : index
    %163 = vector.load %arg5[%c1_117, %c0_118, %c0_119] : memref<2x4x1xf32, #tpu.memory_space<vmem>>, vector<1x4x1xf32>
    %164 = vector.shape_cast %163 : vector<1x4x1xf32> to vector<4x1xf32>
    %165 = vector.broadcast %164 : vector<4x1xf32> to vector<4x256xf32>
    %166 = arith.addf %162, %165 : vector<4x256xf32>
    %cst_120 = arith.constant 0.000000e+00 : f32
    %167 = vector.broadcast %cst_120 : f32 to vector<4x256xf32>
    %168 = arith.maximumf %166, %167 : vector<4x256xf32>
    %cst_121 = arith.constant dense<0xFF800000> : vector<4xf32>
    %169 = vector.multi_reduction <maximumf>, %168, %cst_121 [1] : vector<4x256xf32> to vector<4xf32>
    %170 = vector.shape_cast %169 : vector<4xf32> to vector<4x1xf32>
    %c0_122 = arith.constant 0 : index
    %c0_123 = arith.constant 0 : index
    %c0_124 = arith.constant 0 : index
    %171 = vector.load %arg6[%c0_122, %c0_123, %c0_124] : memref<2x4x4xf32, #tpu.memory_space<vmem>>, vector<1x4x4xf32>
    %172 = vector.shape_cast %171 : vector<1x4x4xf32> to vector<4x4xf32>
    %cst_125 = arith.constant dense<0.000000e+00> : vector<4x1xf32>
    %173 = tpu.matmul %172, %101, %cst_125 {dimension_numbers = #tpu.dot_dimension_numbers<[1], [0], [0], [1], [0, 0, 1, 1], [], []>} : vector<4x4xf32>, vector<4x1xf32>, vector<4x1xf32> -> vector<4x1xf32>
    %c1_126 = arith.constant 1 : index
    %c0_127 = arith.constant 0 : index
    %c0_128 = arith.constant 0 : index
    %174 = vector.load %arg6[%c1_126, %c0_127, %c0_128] : memref<2x4x4xf32, #tpu.memory_space<vmem>>, vector<1x4x4xf32>
    %175 = vector.shape_cast %174 : vector<1x4x4xf32> to vector<4x4xf32>
    %cst_129 = arith.constant dense<0.000000e+00> : vector<4x1xf32>
    %176 = tpu.matmul %175, %170, %cst_129 {dimension_numbers = #tpu.dot_dimension_numbers<[1], [0], [0], [1], [0, 0, 1, 1], [], []>} : vector<4x4xf32>, vector<4x1xf32>, vector<4x1xf32> -> vector<4x1xf32>
    %177 = arith.addf %173, %176 : vector<4x1xf32>
    %cst_130 = arith.constant 0.000000e+00 : f32
    %178 = vector.broadcast %cst_130 : f32 to vector<4x1xf32>
    %179 = arith.maximumf %177, %178 : vector<4x1xf32>
    %c0_131 = arith.constant 0 : index
    %c0_132 = arith.constant 0 : index
    %180 = vector.load %arg7[%c0_131, %c0_132] : memref<8x4xf32, #tpu.memory_space<vmem>>, vector<8x4xf32>
    %cst_133 = arith.constant dense<0.000000e+00> : vector<8x1xf32>
    %181 = tpu.matmul %180, %179, %cst_133 {dimension_numbers = #tpu.dot_dimension_numbers<[1], [0], [0], [1], [0, 0, 1, 1], [], []>} : vector<8x4xf32>, vector<4x1xf32>, vector<8x1xf32> -> vector<8x1xf32>
    %182 = arith.negf %181 : vector<8x1xf32>
    %183 = math.exp %182 : vector<8x1xf32>
    %cst_134 = arith.constant 1.000000e+00 : f32
    %184 = vector.broadcast %cst_134 : f32 to vector<8x1xf32>
    %185 = arith.addf %184, %183 : vector<8x1xf32>
    %186 = arith.divf %184, %185 : vector<8x1xf32>
    %187 = vector.extract_strided_slice %186 {offsets = [0, 0], sizes = [4, 1], strides = [1, 1]} : vector<8x1xf32> to vector<4x1xf32>
    %c0_135 = arith.constant 0 : index
    %c0_136 = arith.constant 0 : index
    %c0_137 = arith.constant 0 : index
    %188 = vector.load %arg8[%c0_135, %c0_136, %c0_137] : memref<2x8x4xf32, #tpu.memory_space<vmem>>, vector<1x8x4xf32>
    %189 = vector.shape_cast %188 : vector<1x8x4xf32> to vector<8x4xf32>
    %cst_138 = arith.constant 0.000000e+00 : f32
    %190 = vector.shape_cast %187 : vector<4x1xf32> to vector<4x1xf32>
    %191 = vector.broadcast %190 : vector<4x1xf32> to vector<4x4xf32>
    %192 = vector.broadcast %cst_138 : f32 to vector<4x4xf32>
    %193 = arith.select %25, %191, %192 : vector<4x4xi1>, vector<4x4xf32>
    %cst_139 = arith.constant dense<0.000000e+00> : vector<8x4xf32>
    %194 = tpu.matmul %189, %193, %cst_139 {dimension_numbers = #tpu.dot_dimension_numbers<[1], [0], [0], [1], [0, 0, 1, 1], [], []>} : vector<8x4xf32>, vector<4x4xf32>, vector<8x4xf32> -> vector<8x4xf32>
    %cst_140 = arith.constant dense<0.000000e+00> : vector<8x256xf32>
    %195 = tpu.matmul %194, %99, %cst_140 {dimension_numbers = #tpu.dot_dimension_numbers<[1], [0], [0], [1], [0, 0, 1, 1], [], []>} : vector<8x4xf32>, vector<4x256xf32>, vector<8x256xf32> -> vector<8x256xf32>
    %196 = vector.extract_strided_slice %186 {offsets = [4, 0], sizes = [4, 1], strides = [1, 1]} : vector<8x1xf32> to vector<4x1xf32>
    %c1_141 = arith.constant 1 : index
    %c0_142 = arith.constant 0 : index
    %c0_143 = arith.constant 0 : index
    %197 = vector.load %arg8[%c1_141, %c0_142, %c0_143] : memref<2x8x4xf32, #tpu.memory_space<vmem>>, vector<1x8x4xf32>
    %198 = vector.shape_cast %197 : vector<1x8x4xf32> to vector<8x4xf32>
    %cst_144 = arith.constant 0.000000e+00 : f32
    %199 = vector.shape_cast %196 : vector<4x1xf32> to vector<4x1xf32>
    %200 = vector.broadcast %199 : vector<4x1xf32> to vector<4x4xf32>
    %201 = vector.broadcast %cst_144 : f32 to vector<4x4xf32>
    %202 = arith.select %25, %200, %201 : vector<4x4xi1>, vector<4x4xf32>
    %cst_145 = arith.constant dense<0.000000e+00> : vector<8x4xf32>
    %203 = tpu.matmul %198, %202, %cst_145 {dimension_numbers = #tpu.dot_dimension_numbers<[1], [0], [0], [1], [0, 0, 1, 1], [], []>} : vector<8x4xf32>, vector<4x4xf32>, vector<8x4xf32> -> vector<8x4xf32>
    %cst_146 = arith.constant dense<0.000000e+00> : vector<8x256xf32>
    %204 = tpu.matmul %203, %168, %cst_146 {dimension_numbers = #tpu.dot_dimension_numbers<[1], [0], [0], [1], [0, 0, 1, 1], [], []>} : vector<8x4xf32>, vector<4x256xf32>, vector<8x256xf32> -> vector<8x256xf32>
    %205 = arith.addf %195, %204 : vector<8x256xf32>
    %c0_147 = arith.constant 0 : index
    %c0_148 = arith.constant 0 : index
    %206 = vector.load %arg9[%c0_147, %c0_148] : memref<8x1xf32, #tpu.memory_space<vmem>>, vector<8x1xf32>
    %207 = vector.broadcast %206 : vector<8x1xf32> to vector<8x256xf32>
    %208 = arith.addf %205, %207 : vector<8x256xf32>
    %cst_149 = arith.constant 0.000000e+00 : f32
    %209 = vector.broadcast %cst_149 : f32 to vector<8x256xf32>
    %210 = arith.maximumf %208, %209 : vector<8x256xf32>
    %cst_150 = arith.constant dense<0.000000e+00> : vector<4xf32>
    %211 = vector.multi_reduction <add>, %1, %cst_150 [1] : vector<4x256xf32> to vector<4xf32>
    %212 = vector.shape_cast %211 : vector<4xf32> to vector<4x1xf32>
    %cst_151 = arith.constant 2.560000e+02 : f32
    %213 = vector.broadcast %cst_151 : f32 to vector<4x1xf32>
    %214 = arith.divf %212, %213 : vector<4x1xf32>
    %c0_152 = arith.constant 0 : index
    %c0_153 = arith.constant 0 : index
    %215 = vector.load %arg10[%c0_152, %c0_153] : memref<8x4xf32, #tpu.memory_space<vmem>>, vector<8x4xf32>
    %cst_154 = arith.constant dense<0.000000e+00> : vector<8x1xf32>
    %216 = tpu.matmul %215, %214, %cst_154 {dimension_numbers = #tpu.dot_dimension_numbers<[1], [0], [0], [1], [0, 0, 1, 1], [], []>} : vector<8x4xf32>, vector<4x1xf32>, vector<8x1xf32> -> vector<8x1xf32>
    %c0_155 = arith.constant 0 : index
    %c0_156 = arith.constant 0 : index
    %217 = vector.load %arg11[%c0_155, %c0_156] : memref<8x1xf32, #tpu.memory_space<vmem>>, vector<8x1xf32>
    %218 = arith.addf %216, %217 : vector<8x1xf32>
    %cst_157 = arith.constant 0.000000e+00 : f32
    %219 = vector.broadcast %cst_157 : f32 to vector<8x1xf32>
    %220 = arith.maximumf %218, %219 : vector<8x1xf32>
    %221 = vector.broadcast %220 : vector<8x1xf32> to vector<8x256xf32>
    %222 = arith.addf %210, %221 : vector<8x256xf32>
    %cst_158 = arith.constant 0.000000e+00 : f32
    %223 = vector.broadcast %cst_158 : f32 to vector<8x256xf32>
    %224 = arith.maximumf %222, %223 : vector<8x256xf32>
    %c0_159 = arith.constant 0 : index
    %c0_160 = arith.constant 0 : index
    %c0_161 = arith.constant 0 : index
    %225 = vector.load %arg12[%c0_159, %c0_160, %c0_161] : memref<1x8x256xf32, #tpu.memory_space<vmem>>, vector<1x8x256xf32>
    %226 = vector.shape_cast %225 : vector<1x8x256xf32> to vector<8x256xf32>
    %227 = vector.shape_cast %224 : vector<8x256xf32> to vector<1x8x256xf32>
    tpu.vector_store %arg12[%c0_159, %c0_160, %c0_161], %227 {strides = array<i32>} : memref<1x8x256xf32, #tpu.memory_space<vmem>>, vector<1x8x256xf32>,
    return
  }
  func.func @transform_0(%arg0: i32) -> (i32, i32, i32) {
    %c0_i32 = arith.constant 0 : i32
    %c0_i32_0 = arith.constant 0 : i32
    %c0_i32_1 = arith.constant 0 : i32
    return %arg0, %c0_i32, %c0_i32_0 : i32, i32, i32
  }
  func.func @transform_1(%arg0: i32) -> (i32, i32) {
    %c0_i32 = arith.constant 0 : i32
    %c0_i32_0 = arith.constant 0 : i32
    %c0_i32_1 = arith.constant 0 : i32
    return %c0_i32, %c0_i32_0 : i32, i32
  }
  func.func @transform_2(%arg0: i32) -> (i32, i32) {
    %c0_i32 = arith.constant 0 : i32
    %c0_i32_0 = arith.constant 0 : i32
    %c0_i32_1 = arith.constant 0 : i32
    return %c0_i32, %c0_i32_0 : i32, i32
  }
  func.func @transform_3(%arg0: i32) -> (i32, i32, i32, i32) {
    %c0_i32 = arith.constant 0 : i32
    %c0_i32_0 = arith.constant 0 : i32
    %c0_i32_1 = arith.constant 0 : i32
    %c0_i32_2 = arith.constant 0 : i32
    %c0_i32_3 = arith.constant 0 : i32
    return %c0_i32, %c0_i32_0, %c0_i32_1, %c0_i32_2 : i32, i32, i32, i32
  }
  func.func @transform_4(%arg0: i32) -> (i32, i32, i32) {
    %c0_i32 = arith.constant 0 : i32
    %c0_i32_0 = arith.constant 0 : i32
    %c0_i32_1 = arith.constant 0 : i32
    %c0_i32_2 = arith.constant 0 : i32
    return %c0_i32, %c0_i32_0, %c0_i32_1 : i32, i32, i32
  }
  func.func @transform_5(%arg0: i32) -> (i32, i32, i32) {
    %c0_i32 = arith.constant 0 : i32
    %c0_i32_0 = arith.constant 0 : i32
    %c0_i32_1 = arith.constant 0 : i32
    %c0_i32_2 = arith.constant 0 : i32
    return %c0_i32, %c0_i32_0, %c0_i32_1 : i32, i32, i32
  }
  func.func @transform_6(%arg0: i32) -> (i32, i32) {
    %c0_i32 = arith.constant 0 : i32
    %c0_i32_0 = arith.constant 0 : i32
    %c0_i32_1 = arith.constant 0 : i32
    return %c0_i32, %c0_i32_0 : i32, i32
  }
  func.func @transform_7(%arg0: i32) -> (i32, i32, i32) {
    %c0_i32 = arith.constant 0 : i32
    %c0_i32_0 = arith.constant 0 : i32
    %c0_i32_1 = arith.constant 0 : i32
    %c0_i32_2 = arith.constant 0 : i32
    return %c0_i32, %c0_i32_0, %c0_i32_1 : i32, i32, i32
  }
  func.func @transform_8(%arg0: i32) -> (i32, i32) {
    %c0_i32 = arith.constant 0 : i32
    %c0_i32_0 = arith.constant 0 : i32
    %c0_i32_1 = arith.constant 0 : i32
    return %c0_i32, %c0_i32_0 : i32, i32
  }
  func.func @transform_9(%arg0: i32) -> (i32, i32) {
    %c0_i32 = arith.constant 0 : i32
    %c0_i32_0 = arith.constant 0 : i32
    %c0_i32_1 = arith.constant 0 : i32
    return %c0_i32, %c0_i32_0 : i32, i32
  }
  func.func @transform_10(%arg0: i32) -> (i32, i32) {
    %c0_i32 = arith.constant 0 : i32
    %c0_i32_0 = arith.constant 0 : i32
    %c0_i32_1 = arith.constant 0 : i32
    return %c0_i32, %c0_i32_0 : i32, i32
  }
  func.func @transform_11(%arg0: i32) -> (i32, i32, i32) {
    %c0_i32 = arith.constant 0 : i32
    %c0_i32_0 = arith.constant 0 : i32
    %c0_i32_1 = arith.constant 0 : i32
    return %arg0, %c0_i32, %c0_i32_0 : i32, i32, i32
  }
}

</mosaic_0001>

<llo_original>
// kernel: tpu_custom_call.1
$region0: #{tpu_custom_call.1}
  #allocation0 [shape = 'u32[]', space=smem, size = 0x4, offset = 0x4, fixed_abs, tag = 'smem constant byte address 0x4 - core index']
  #allocation1 [shape = 'u32[144,128]{1,0:T(1,128)}', space=vmem, size = 0x12000, scoped, tag = 'internal scratch']
  #allocation2 [shape = 'f32[4,512]{1,0:T(4,128)}', space=vmem, size = 0x2000, scoped, tag = 'scratch operand']
  %s0 = inlined_call_operand.vmem [shape: f32[2,4,256], index: 0, kind: input, shape index: {}]
  %s1 = inlined_call_operand.vmem [shape: f32[8,4], index: 1, kind: input, shape index: {}]
  %s2 = inlined_call_operand.vmem [shape: f32[8,1], index: 2, kind: input, shape index: {}]
  %s3 = inlined_call_operand.vmem [shape: f32[2,9,4,4], index: 3, kind: input, shape index: {}]
  %s4 = inlined_call_operand.vmem [shape: f32[2,4,1], index: 4, kind: input, shape index: {}]
  %s5 = inlined_call_operand.vmem [shape: f32[2,4,4], index: 5, kind: input, shape index: {}]
  %s6 = inlined_call_operand.vmem [shape: f32[8,4], index: 6, kind: input, shape index: {}]
  %s7 = inlined_call_operand.vmem [shape: f32[2,8,4], index: 7, kind: input, shape index: {}]
  %s8 = inlined_call_operand.vmem [shape: f32[8,1], index: 8, kind: input, shape index: {}]
  %s9 = inlined_call_operand.vmem [shape: f32[8,4], index: 9, kind: input, shape index: {}]
  %s10 = inlined_call_operand.vmem [shape: f32[8,1], index: 10, kind: input, shape index: {}]
  %s11 = inlined_call_operand.hbm [shape: f32[2,8,256], index: 11, kind: output, shape index: {}]
  %s12 = sld [smem:[#allocation0]]
  $region77: #{tpu_custom_call.1} parent=0
    _
  %s14 = ssub.s32 1, %s12
  %s15 = scalar_select 0, %s14, %s12
  $region1: #{tpu_custom_call.1} parent=0
    #allocation3 [shape = 'u8[16384]{0}', space=vmem, size = 0x4000, scoped, tag = 'output window, operand 0']
    #allocation4 [shape = 's32[2]{0}', space=sflag, size = 0x8, scoped, tag = 'scoped memory for tpu_custom_call.1']
    %16 = vsyncpa [#allocation4], 0
    %s17 = scalar_lea.sflag [#allocation4], 1
    %18 = vsyncpa %s17, 0
    loop: start=0, step=1, limit=4
    $region2: #{tpu_custom_call.1} parent=1 // loop_pre_header
      _
    $region3: #{tpu_custom_call.1} parent=1 // loop_header
      %s20 = sphi 0, %s24
      %p21 = scmp.ge.s32.totalorder %s20, 4
      %s30 = sphi 0, %s32
      %s33 = sphi 0, %s30
      %s34 = sphi 0, %s33
      %s50 = sphi 0, %s34
      %s54 = sphi 0, %s54
      %s56 = sphi 0, %s54
      %s57 = sphi 0, %s56
      %s71 = sphi 0, %s57
      %s75 = sphi 0, %s75
      %s77 = sphi 0, %s75
      %s78 = sphi 0, %s77
      %s92 = sphi 0, %s78
      %s96 = sphi 0, %s96
      %s98 = sphi 0, %s96
      %s99 = sphi 0, %s98
      %s113 = sphi 0, %s99
      %s117 = sphi 0, %s117
      %s119 = sphi 0, %s117
      %s120 = sphi 0, %s119
      %s134 = sphi 0, %s120
      %s138 = sphi 0, %s138
      %s140 = sphi 0, %s138
      %s141 = sphi 0, %s140
      %s155 = sphi 0, %s141
      %s159 = sphi 0, %s159
      %s161 = sphi 0, %s159
      %s162 = sphi 0, %s161
      %s176 = sphi 0, %s162
      %s180 = sphi 0, %s180
      %s182 = sphi 0, %s180
      %s183 = sphi 0, %s182
      %s197 = sphi 0, %s183
      %s201 = sphi 0, %s201
      %s203 = sphi 0, %s201
      %s204 = sphi 0, %s203
      %s218 = sphi 0, %s204
      %s222 = sphi 0, %s222
      %s224 = sphi 0, %s222
      %s225 = sphi 0, %s224
      %s239 = sphi 0, %s225
      %s243 = sphi 0, %s243
      %s245 = sphi 0, %s243
      %s246 = sphi 0, %s245
      %s260 = sphi 0, %s246
      %s266 = sphi 0, %s268
      %s269 = sphi 0, %s266
      %s270 = sphi 0, %s269
      %s286 = sphi 0, %s270
    $region4: #{tpu_custom_call.1} parent=1 // loop_header_branch
      %23 = sbr.rel (%p21) target = $region8
    $region5: #{tpu_custom_call.1} parent=1 // loop_body
      %s25 = ssub.s32 %s20, 1
      %s26 = ssub.s32 %s20, 2
      %s27 = sadd.s32 %s20, 1
      %s28 = ssub.s32 %s20, %s27
      %p29 = scmp.eq.s32.totalorder %s28, 0
      %s31 = sadd.s32 %s30, 1
      %s32 = scalar_select %p29, %s30, %s31
      %p35 = pneg %p29
      %p36 = scmp.eq.s32.totalorder %s20, 1
      %p37 = por %p35, %p36
      %p38 = scmp.ne.s32.totalorder %s30, %s33
      %p39 = scmp.eq.s32.totalorder %s20, 0
      %p40 = por %p38, %p39
      %p41 = scmp.ne.s32.totalorder %s30, %s33
      %p42 = scmp.eq.s32.totalorder %s25, 1
      %p43 = por %p41, %p42
      %p44 = scmp.ne.s32.totalorder %s33, %s34
      %p45 = scmp.eq.s32.totalorder %s25, 0
      %p46 = por %p44, %p45
      %p47 = scmp.ne.s32.totalorder %s33, %s34
      %p48 = scmp.eq.s32.totalorder %s26, 1
      %p49 = por %p47, %p48
      %p51 = scmp.ne.s32.totalorder %s34, %s50
      %p52 = scmp.eq.s32.totalorder %s26, 0
      %p53 = por %p51, %p52
      %s55 = sadd.s32 %s54, 1
      %p58 = scmp.eq.s32.totalorder %s20, 1
      %p59 = scmp.ne.s32.totalorder %s54, %s56
      %p60 = scmp.eq.s32.totalorder %s20, 0
      %p61 = por %p59, %p60
      %p62 = scmp.ne.s32.totalorder %s54, %s56
      %p63 = scmp.eq.s32.totalorder %s25, 1
      %p64 = por %p62, %p63
      %p65 = scmp.ne.s32.totalorder %s56, %s57
      %p66 = scmp.eq.s32.totalorder %s25, 0
      %p67 = por %p65, %p66
      %p68 = scmp.ne.s32.totalorder %s56, %s57
      %p69 = scmp.eq.s32.totalorder %s26, 1
      %p70 = por %p68, %p69
      %p72 = scmp.ne.s32.totalorder %s57, %s71
      %p73 = scmp.eq.s32.totalorder %s26, 0
      %p74 = por %p72, %p73
      %s76 = sadd.s32 %s75, 1
      %p79 = scmp.eq.s32.totalorder %s20, 1
      %p80 = scmp.ne.s32.totalorder %s75, %s77
      %p81 = scmp.eq.s32.totalorder %s20, 0
      %p82 = por %p80, %p81
      %p83 = scmp.ne.s32.totalorder %s75, %s77
      %p84 = scmp.eq.s32.totalorder %s25, 1
      %p85 = por %p83, %p84
      %p86 = scmp.ne.s32.totalorder %s77, %s78
      %p87 = scmp.eq.s32.totalorder %s25, 0
      %p88 = por %p86, %p87
      %p89 = scmp.ne.s32.totalorder %s77, %s78
      %p90 = scmp.eq.s32.totalorder %s26, 1
      %p91 = por %p89, %p90
      %p93 = scmp.ne.s32.totalorder %s78, %s92
      %p94 = scmp.eq.s32.totalorder %s26, 0
      %p95 = por %p93, %p94
      %s97 = sadd.s32 %s96, 1
      %p100 = scmp.eq.s32.totalorder %s20, 1
      %p101 = scmp.ne.s32.totalorder %s96, %s98
      %p102 = scmp.eq.s32.totalorder %s20, 0
      %p103 = por %p101, %p102
      %p104 = scmp.ne.s32.totalorder %s96, %s98
      %p105 = scmp.eq.s32.totalorder %s25, 1
      %p106 = por %p104, %p105
      %p107 = scmp.ne.s32.totalorder %s98, %s99
      %p108 = scmp.eq.s32.totalorder %s25, 0
      %p109 = por %p107, %p108
      %p110 = scmp.ne.s32.totalorder %s98, %s99
      %p111 = scmp.eq.s32.totalorder %s26, 1
      %p112 = por %p110, %p111
      %p114 = scmp.ne.s32.totalorder %s99, %s113
      %p115 = scmp.eq.s32.totalorder %s26, 0
      %p116 = por %p114, %p115
      %s118 = sadd.s32 %s117, 1
      %p121 = scmp.eq.s32.totalorder %s20, 1
      %p122 = scmp.ne.s32.totalorder %s117, %s119
      %p123 = scmp.eq.s32.totalorder %s20, 0
      %p124 = por %p122, %p123
      %p125 = scmp.ne.s32.totalorder %s117, %s119
      %p126 = scmp.eq.s32.totalorder %s25, 1
      %p127 = por %p125, %p126
      %p128 = scmp.ne.s32.totalorder %s119, %s120
      %p129 = scmp.eq.s32.totalorder %s25, 0
      %p130 = por %p128, %p129
      %p131 = scmp.ne.s32.totalorder %s119, %s120
      %p132 = scmp.eq.s32.totalorder %s26, 1
      %p133 = por %p131, %p132
      %p135 = scmp.ne.s32.totalorder %s120, %s134
      %p136 = scmp.eq.s32.totalorder %s26, 0
      %p137 = por %p135, %p136
      %s139 = sadd.s32 %s138, 1
      %p142 = scmp.eq.s32.totalorder %s20, 1
      %p143 = scmp.ne.s32.totalorder %s138, %s140
      %p144 = scmp.eq.s32.totalorder %s20, 0
      %p145 = por %p143, %p144
      %p146 = scmp.ne.s32.totalorder %s138, %s140
      %p147 = scmp.eq.s32.totalorder %s25, 1
      %p148 = por %p146, %p147
      %p149 = scmp.ne.s32.totalorder %s140, %s141
      %p150 = scmp.eq.s32.totalorder %s25, 0
      %p151 = por %p149, %p150
      %p152 = scmp.ne.s32.totalorder %s140, %s141
      %p153 = scmp.eq.s32.totalorder %s26, 1
      %p154 = por %p152, %p153
      %p156 = scmp.ne.s32.totalorder %s141, %s155
      %p157 = scmp.eq.s32.totalorder %s26, 0
      %p158 = por %p156, %p157
      %s160 = sadd.s32 %s159, 1
      %p163 = scmp.eq.s32.totalorder %s20, 1
      %p164 = scmp.ne.s32.totalorder %s159, %s161
      %p165 = scmp.eq.s32.totalorder %s20, 0
      %p166 = por %p164, %p165
      %p167 = scmp.ne.s32.totalorder %s159, %s161
      %p168 = scmp.eq.s32.totalorder %s25, 1
      %p169 = por %p167, %p168
      %p170 = scmp.ne.s32.totalorder %s161, %s162
      %p171 = scmp.eq.s32.totalorder %s25, 0
      %p172 = por %p170, %p171
      %p173 = scmp.ne.s32.totalorder %s161, %s162
      %p174 = scmp.eq.s32.totalorder %s26, 1
      %p175 = por %p173, %p174
      %p177 = scmp.ne.s32.totalorder %s162, %s176
      %p178 = scmp.eq.s32.totalorder %s26, 0
      %p179 = por %p177, %p178
      %s181 = sadd.s32 %s180, 1
      %p184 = scmp.eq.s32.totalorder %s20, 1
      %p185 = scmp.ne.s32.totalorder %s180, %s182
      %p186 = scmp.eq.s32.totalorder %s20, 0
      %p187 = por %p185, %p186
      %p188 = scmp.ne.s32.totalorder %s180, %s182
      %p189 = scmp.eq.s32.totalorder %s25, 1
      %p190 = por %p188, %p189
      %p191 = scmp.ne.s32.totalorder %s182, %s183
      %p192 = scmp.eq.s32.totalorder %s25, 0
      %p193 = por %p191, %p192
      %p194 = scmp.ne.s32.totalorder %s182, %s183
      %p195 = scmp.eq.s32.totalorder %s26, 1
      %p196 = por %p194, %p195
      %p198 = scmp.ne.s32.totalorder %s183, %s197
      %p199 = scmp.eq.s32.totalorder %s26, 0
      %p200 = por %p198, %p199
      %s202 = sadd.s32 %s201, 1
      %p205 = scmp.eq.s32.totalorder %s20, 1
      %p206 = scmp.ne.s32.totalorder %s201, %s203
      %p207 = scmp.eq.s32.totalorder %s20, 0
      %p208 = por %p206, %p207
      %p209 = scmp.ne.s32.totalorder %s201, %s203
      %p210 = scmp.eq.s32.totalorder %s25, 1
      %p211 = por %p209, %p210
      %p212 = scmp.ne.s32.totalorder %s203, %s204
      %p213 = scmp.eq.s32.totalorder %s25, 0
      %p214 = por %p212, %p213
      %p215 = scmp.ne.s32.totalorder %s203, %s204
      %p216 = scmp.eq.s32.totalorder %s26, 1
      %p217 = por %p215, %p216
      %p219 = scmp.ne.s32.totalorder %s204, %s218
      %p220 = scmp.eq.s32.totalorder %s26, 0
      %p221 = por %p219, %p220
      %s223 = sadd.s32 %s222, 1
      %p226 = scmp.eq.s32.totalorder %s20, 1
      %p227 = scmp.ne.s32.totalorder %s222, %s224
      %p228 = scmp.eq.s32.totalorder %s20, 0
      %p229 = por %p227, %p228
      %p230 = scmp.ne.s32.totalorder %s222, %s224
      %p231 = scmp.eq.s32.totalorder %s25, 1
      %p232 = por %p230, %p231
      %p233 = scmp.ne.s32.totalorder %s224, %s225
      %p234 = scmp.eq.s32.totalorder %s25, 0
      %p235 = por %p233, %p234
      %p236 = scmp.ne.s32.totalorder %s224, %s225
      %p237 = scmp.eq.s32.totalorder %s26, 1
      %p238 = por %p236, %p237
      %p240 = scmp.ne.s32.totalorder %s225, %s239
      %p241 = scmp.eq.s32.totalorder %s26, 0
      %p242 = por %p240, %p241
      %s244 = sadd.s32 %s243, 1
      %p247 = scmp.eq.s32.totalorder %s20, 1
      %p248 = scmp.ne.s32.totalorder %s243, %s245
      %p249 = scmp.eq.s32.totalorder %s20, 0
      %p250 = por %p248, %p249
      %p251 = scmp.ne.s32.totalorder %s243, %s245
      %p252 = scmp.eq.s32.totalorder %s25, 1
      %p253 = por %p251, %p252
      %p254 = scmp.ne.s32.totalorder %s245, %s246
      %p255 = scmp.eq.s32.totalorder %s25, 0
      %p256 = por %p254, %p255
      %p257 = scmp.ne.s32.totalorder %s245, %s246
      %p258 = scmp.eq.s32.totalorder %s26, 1
      %p259 = por %p257, %p258
      %p261 = scmp.ne.s32.totalorder %s246, %s260
      %p262 = scmp.eq.s32.totalorder %s26, 0
      %p263 = por %p261, %p262
      %s264 = ssub.s32 %s20, %s27
      %p265 = scmp.eq.s32.totalorder %s264, 0
      %s267 = sadd.s32 %s266, 1
      %s268 = scalar_select %p265, %s266, %s267
      %p271 = pneg %p265
      %p272 = scmp.eq.s32.totalorder %s20, 1
      %p273 = por %p271, %p272
      %p274 = scmp.ne.s32.totalorder %s266, %s269
      %p275 = scmp.eq.s32.totalorder %s20, 0
      %p276 = por %p274, %p275
      %p277 = scmp.ne.s32.totalorder %s266, %s269
      %p278 = scmp.eq.s32.totalorder %s25, 1
      %p279 = por %p277, %p278
      %p280 = scmp.ne.s32.totalorder %s269, %s270
      %p281 = scmp.eq.s32.totalorder %s25, 0
      %p282 = por %p280, %p281
      %p283 = scmp.ne.s32.totalorder %s269, %s270
      %p284 = scmp.eq.s32.totalorder %s26, 1
      %p285 = por %p283, %p284
      %p287 = scmp.ne.s32.totalorder %s270, %s286
      %p288 = scmp.eq.s32.totalorder %s26, 0
      %p289 = por %p287, %p288
      %p290 = scmp.le.s32.totalorder 1, %s20
      %p291 = scmp.lt.s32.totalorder %s20, 3
      %p292 = pnand %p290, %p291
      %p293 = pneg %p292
      // Predicated region
      $region9: #{tpu_custom_call.1} parent=5 // pred_check
        _
      $region10: #{tpu_custom_call.1} parent=5 // pred_check_branch
        %295 = sbr.rel (%p292) target = $region12
      $region11: #{tpu_custom_call.1} parent=5 // pred_region
        %s296 = ssub.s32 %s20, 1
        // Predicated region
        $region13: #{tpu_custom_call.1} parent=11 // pred_check
          %p297 = pneg %p67
        $region14: #{tpu_custom_call.1} parent=11 // pred_check_branch
          %299 = sbr.rel (%p297) target = $region16
        $region15: #{tpu_custom_call.1} parent=11 // pred_region
          _
        $region16: #{tpu_custom_call.1} parent=11 // pred_fallthru
          _
        // Predicated region
        $region17: #{tpu_custom_call.1} parent=11 // pred_check
          %p300 = pneg %p88
        $region18: #{tpu_custom_call.1} parent=11 // pred_check_branch
          %302 = sbr.rel (%p300) target = $region20
        $region19: #{tpu_custom_call.1} parent=11 // pred_region
          _
        $region20: #{tpu_custom_call.1} parent=11 // pred_fallthru
          _
        // Predicated region
        $region21: #{tpu_custom_call.1} parent=11 // pred_check
          %p303 = pneg %p109
        $region22: #{tpu_custom_call.1} parent=11 // pred_check_branch
          %305 = sbr.rel (%p303) target = $region24
        $region23: #{tpu_custom_call.1} parent=11 // pred_region
          _
        $region24: #{tpu_custom_call.1} parent=11 // pred_fallthru
          _
        // Predicated region
        $region25: #{tpu_custom_call.1} parent=11 // pred_check
          %p306 = pneg %p130
        $region26: #{tpu_custom_call.1} parent=11 // pred_check_branch
          %308 = sbr.rel (%p306) target = $region28
        $region27: #{tpu_custom_call.1} parent=11 // pred_region
          _
        $region28: #{tpu_custom_call.1} parent=11 // pred_fallthru
          _
        // Predicated region
        $region29: #{tpu_custom_call.1} parent=11 // pred_check
          %p309 = pneg %p151
        $region30: #{tpu_custom_call.1} parent=11 // pred_check_branch
          %311 = sbr.rel (%p309) target = $region32
        $region31: #{tpu_custom_call.1} parent=11 // pred_region
          _
        $region32: #{tpu_custom_call.1} parent=11 // pred_fallthru
          _
        // Predicated region
        $region33: #{tpu_custom_call.1} parent=11 // pred_check
          %p312 = pneg %p172
        $region34: #{tpu_custom_call.1} parent=11 // pred_check_branch
          %314 = sbr.rel (%p312) target = $region36
        $region35: #{tpu_custom_call.1} parent=11 // pred_region
          _
        $region36: #{tpu_custom_call.1} parent=11 // pred_fallthru
          _
        // Predicated region
        $region37: #{tpu_custom_call.1} parent=11 // pred_check
          %p315 = pneg %p193
        $region38: #{tpu_custom_call.1} parent=11 // pred_check_branch
          %317 = sbr.rel (%p315) target = $region40
        $region39: #{tpu_custom_call.1} parent=11 // pred_region
          _
        $region40: #{tpu_custom_call.1} parent=11 // pred_fallthru
          _
        // Predicated region
        $region41: #{tpu_custom_call.1} parent=11 // pred_check
          %p318 = pneg %p214
        $region42: #{tpu_custom_call.1} parent=11 // pred_check_branch
          %320 = sbr.rel (%p318) target = $region44
        $region43: #{tpu_custom_call.1} parent=11 // pred_region
          _
        $region44: #{tpu_custom_call.1} parent=11 // pred_fallthru
          _
        // Predicated region
        $region45: #{tpu_custom_call.1} parent=11 // pred_check
          %p321 = pneg %p235
        $region46: #{tpu_custom_call.1} parent=11 // pred_check_branch
          %323 = sbr.rel (%p321) target = $region48
        $region47: #{tpu_custom_call.1} parent=11 // pred_region
          _
        $region48: #{tpu_custom_call.1} parent=11 // pred_fallthru
          _
        // Predicated region
        $region49: #{tpu_custom_call.1} parent=11 // pred_check
          %p324 = pneg %p256
        $region50: #{tpu_custom_call.1} parent=11 // pred_check_branch
          %326 = sbr.rel (%p324) target = $region52
        $region51: #{tpu_custom_call.1} parent=11 // pred_region
          _
        $region52: #{tpu_custom_call.1} parent=11 // pred_fallthru
          _
      $region12: #{tpu_custom_call.1} parent=5 // pred_fallthru
        _
      %p327 = scmp.lt.s32.totalorder %s20, 2
      // Predicated region
      $region53: #{tpu_custom_call.1} parent=5 // pred_check
        %p328 = pneg %p327
      $region54: #{tpu_custom_call.1} parent=5 // pred_check_branch
        %330 = sbr.rel (%p328) target = $region56
      $region55: #{tpu_custom_call.1} parent=5 // pred_region
        // Predicated region
        $region57: #{tpu_custom_call.1} parent=55 // pred_check
          %p331 = pneg %p40
        $region58: #{tpu_custom_call.1} parent=55 // pred_check_branch
          %333 = sbr.rel (%p331) target = $region60
        $region59: #{tpu_custom_call.1} parent=55 // pred_region
          %p334 = scmp.lt.s32.totalorder %s20, 1
          %s335 = scalar_select %p334, %s20, 1
          %s336 = smul.addr %s335, 2
          %s337 = smul.addr %s336, 4
          %s338 = scalar_lea.vmem %s0, %s337
        $region60: #{tpu_custom_call.1} parent=55 // pred_fallthru
          _
      $region56: #{tpu_custom_call.1} parent=5 // pred_fallthru
        _
      %p339 = scmp.le.s32.totalorder 1, %s20
      %p340 = scmp.lt.s32.totalorder %s20, 3
      %p341 = pnand %p339, %p340
      %p342 = pneg %p341
      // Predicated region
      $region61: #{tpu_custom_call.1} parent=5 // pred_check
        _
      $region62: #{tpu_custom_call.1} parent=5 // pred_check_branch
        %344 = sbr.rel (%p341) target = $region64
      $region63: #{tpu_custom_call.1} parent=5 // pred_region
        %s345 = ssub.s32 %s20, 1
        %p346 = scmp.lt.s32.totalorder %s25, 1
        %s347 = scalar_select %p346, %s25, 1
        %s348 = smul.addr %s347, 2
        %s349 = smul.addr %s348, 4
        %s350 = scalar_lea.vmem %s0, %s349
        %p351 = pneg %p46
        %p352 = pneg %p43
        %p353 = pneg %p67
        %p354 = pneg %p64
        %p355 = pneg %p88
        %p356 = pneg %p85
        %p357 = pneg %p109
        %p358 = pneg %p106
        %p359 = pneg %p130
        %p360 = pneg %p127
        %p361 = pneg %p151
        %p362 = pneg %p148
        %p363 = pneg %p172
        %p364 = pneg %p169
        %p365 = pneg %p193
        %p366 = pneg %p190
        %p367 = pneg %p214
        %p368 = pneg %p211
        %p369 = pneg %p235
        %p370 = pneg %p232
        %p371 = pneg %p256
        %p372 = pneg %p253
        %p373 = pneg %p282
        %p374 = pneg %p279
        %s375 = sand.u32 %s269, 1
        %s376 = scalar_lea.sflag [#allocation4], %s375
        %s377 = sand.u32 %s269, 1
        %s378 = smul.addr %s377, 16
        %s379 = scalar_lea.vmem [#allocation3], %s378
        %p380 = scmp.lt.s32.totalorder %s25, 1
        %s381 = scalar_select %p380, %s25, 1
        %s382 = smul.addr %s381, 2
        %s383 = smul.addr %s382, 4
        %s384 = scalar_lea.vmem %s0, %s383
        %v385 = vld [vmem:[%s384] sm:$0xff]
        %386 = vst [vmem:[#allocation2] sm:$0xf] 0.0
        %387 = vst [vmem:[#allocation2 + $0xc] sm:$0xf] 0.0
        %v388 = vlaneseq
        %v389 = vand.u32 %v388, 127
        %v390 = vadd.s32 %v389, 128
        %v391 = vadd.s32 %v389, 256
        %vm392 = vcmp.lt.s32.totalorder %v389, 0
        %v393 = vsub.s32 0, %v389
        %v394 = vsel %vm392, %v393, %v389
        %v395 = vshrl.u32 %v394, 4
        %v396 = vand.u32 %v394, 15
        %v397 = vsub.s32 0, %v396
        %v398 = vsel %vm392, %v397, %v396
        %vm399 = vcmp.lt.s32.totalorder %v390, 0
        %v400 = vsub.s32 0, %v390
        %v401 = vsel %vm399, %v400, %v390
        %v402 = vshrl.u32 %v401, 4
        %v403 = vand.u32 %v401, 15
        %v404 = vsub.s32 0, %v403
        %v405 = vsel %vm399, %v404, %v403
        %vm406 = vcmp.lt.s32.totalorder %v391, 0
        %v407 = vsub.s32 0, %v391
        %v408 = vsel %vm406, %v407, %v391
        %v409 = vshrl.u32 %v408, 4
        %v410 = vand.u32 %v408, 15
        %v411 = vsub.s32 0, %v410
        %v412 = vsel %vm406, %v411, %v410
        %vm413 = vcmp.ne.s32.totalorder %v398, 0
        %vm414 = vcmp.ne.s32.totalorder %v405, 0
        %vm415 = vcmp.ne.s32.totalorder %v412, 0
        %vm416 = vcmp.lt.s32.totalorder %v398, 0
        %vm417 = vcmp.lt.s32.totalorder %v405, 0
        %vm418 = vcmp.lt.s32.totalorder %v412, 0
        %vm419 = vmand %vm416, %vm413
        %vm420 = vmand %vm417, %vm414
        %vm421 = vmand %vm418, %vm415
        %v422 = vadd.s32 %v398, 16
        %v423 = vadd.s32 %v405, 16
        %v424 = vadd.s32 %v412, 16
        %v425 = vsel %vm419, %v422, %v398
        %v426 = vsel %vm420, %v423, %v405
        %v427 = vsel %vm421, %v424, %v412
        %v428 = vlaneseq
        %v429 = vshrl.u32 %v428, 7
        %vm430 = vcmp.eq.s32.totalorder %v429, %v389
        %v431 = vld [vmem:[%s1] sm:$0xff]
        %v432 = vld [vmem:[%s2] sm:$0xff]
        %434 = vset.pattern.permute.xlu0 0
        %435 = vperm.xlu0 %434, %v432
        %v436 = vpop.permute.xlu0 %435
        %v439 = vcombine.high %v385, %v385
        %vm440 = vcmask 31744
        %v442 = vsel %vm440, %v431, 0
        %vm444 = vcmask 1043456
        %v445 = vsel %vm444, %v385, 0
        %v447 = vsel %vm444, %v439, 0
        %449 = vmatprep.subr.mxu0 0.0
        %450 = vmatpush1.msra.mxu0 0.0
        %451 = vmatprep.subr.mxu0 0.0
        %452 = vmatpush1.msra.mxu0 0.0
        %453 = vmatprep.subr.mxu0 0.0
        %454 = vmatpush1.msra.mxu0 0.0
        %455 = vmatprep.subr.mxu0 0.0
        %456 = vmatpush1.msra.mxu0 0.0
        %457 = vmatprep.subr.mxu0 0.0
        %458 = vmatpush1.msra.mxu0 0.0
        %459 = vmatprep.subr.mxu0 0.0
        %460 = vmatpush1.msra.mxu0 0.0
        %461 = vmatprep.subr.mxu0 0.0
        %462 = vmatpush1.msra.mxu0 0.0
        %463 = vmatprep.subr.mxu0 0.0
        %464 = vmatpush1.msra.mxu0 0.0
        %465 = vmatprep.subr.mxu0 0.0
        %466 = vmatpush1.msra.mxu0 0.0
        %467 = vmatprep.subr.mxu0 0.0
        %468 = vmatpush1.msra.mxu0 0.0
        %469 = vmatprep.subr.mxu0 0.0
        %470 = vmatpush1.msra.mxu0 0.0
        %471 = vmatprep.subr.mxu0 0.0
        %472 = vmatpush1.msra.mxu0 0.0
        %473 = vmatprep.subr.mxu0 0.0
        %474 = vmatpush1.msra.mxu0 0.0
        %475 = vmatprep.subr.mxu0 0.0
        %476 = vmatpush1.msra.mxu0 0.0
        %477 = vmatprep.subr.mxu0 0.0
        %478 = vmatpush1.msra.mxu0 0.0
        %479 = vmatprep.subr.mxu0 %v447
        %480 = vmatpush1.msra.mxu0 %v445
        %481 = vmatprep.subr.mxu0 0.0
        %482 = vmatpush2.msra.mxu0 0.0
        %483 = vmatprep.subr.mxu0 0.0
        %484 = vmatpush2.msra.mxu0 0.0
        %485 = vmatprep.subr.mxu0 0.0
        %486 = vmatpush2.msra.mxu0 0.0
        %487 = vmatprep.subr.mxu0 0.0
        %488 = vmatpush2.msra.mxu0 0.0
        %489 = vmatprep.subr.mxu0 0.0
        %490 = vmatpush2.msra.mxu0 0.0
        %491 = vmatprep.subr.mxu0 0.0
        %492 = vmatpush2.msra.mxu0 0.0
        %493 = vmatprep.subr.mxu0 0.0
        %494 = vmatpush2.msra.mxu0 0.0
        %495 = vmatprep.subr.mxu0 0.0
        %496 = vmatpush2.msra.mxu0 0.0
        %497 = vmatprep.subr.mxu0 0.0
        %498 = vmatpush2.msra.mxu0 0.0
        %499 = vmatprep.subr.mxu0 0.0
        %500 = vmatpush2.msra.mxu0 0.0
        %501 = vmatprep.subr.mxu0 0.0
        %502 = vmatpush2.msra.mxu0 0.0
        %503 = vmatprep.subr.mxu0 0.0
        %504 = vmatpush2.msra.mxu0 0.0
        %505 = vmatprep.subr.mxu0 0.0
        %506 = vmatpush2.msra.mxu0 0.0
        %507 = vmatprep.subr.mxu0 0.0
        %508 = vmatpush2.msra.mxu0 0.0
        %509 = vmatprep.subr.mxu0 0.0
        %510 = vmatpush2.msra.mxu0 0.0
        %511 = vmatprep.subr.mxu0 0.0
        %512 = vmatpush2.msra.mxu0 0.0
        %513 = vmatprep.mubr.f32.mxu0 0.0
        %514 = vmatmul.mubr.f32.gmra.mxu0 %v442
        %v515 = vpop.f32.mrf.mxu0
        %v516 = vadd.f32 %v436, %v515
        %v517 = vpop.f32.mrf.mxu0
        %v518 = vadd.f32 %v436, %v517
        %519 = vdwg.mxu0
        %v520 = vmax.f32 %v516, 0.0
        %v521 = vmax.f32 %v518, 0.0
        %v524 = vcombine.low %v520, %v521
        %526 = vst [vmem:[#allocation2 + $0x4] sm:$0xff] %v524
        %v527 = vld [vmem:[#allocation2] sm:$0xff]
        %v528 = vld [vmem:[#allocation2 + $0x8] sm:$0xff]
        %vm529 = vcmp.ge.s32.totalorder %v425, 1
        %vm530 = vcmp.ge.s32.totalorder %v426, 1
        %vm531 = vcmp.ge.s32.totalorder %v427, 1
        %v532 = vsel %vm529, 1, 0
        %v533 = vsel %vm530, 1, 0
        %v534 = vsel %vm531, 1, 0
        %vm535 = vcmp.eq.s32.totalorder %v532, 1
        %vm536 = vcmp.eq.s32.totalorder %v533, 1
        %vm537 = vcmp.eq.s32.totalorder %v534, 1
        %v540 = vcombine.high %v527, %v527
        %v541 = vcombine.high %v528, %v528
        %542 = vrot.lane.b32.xlu0 %v527, 33
        %v543 = vpop.permute.xlu0 %542
        %544 = vrot.lane.b32.xlu0 %v540, 33
        %v545 = vpop.permute.xlu0 %544
        %546 = vrot.lane.b32.xlu0 %v528, 33
        %v547 = vpop.permute.xlu0 %546
        %548 = vrot.lane.b32.xlu0 %v541, 33
        %v549 = vpop.permute.xlu0 %548
        %vm550 = vcmask 269312
        %v551 = vsel %vm550, %v543, %v545
        %v552 = vsel %vm550, %v545, %v547
        %v553 = vsel %vm550, %v547, %v549
        %v557 = vsel %vm535, %v551, 0.0
        %v558 = vsel %vm536, %v552, 0.0
        %v559 = vsel %vm537, %v553, 0.0
        %v560 = vld [vmem:[%s3] sm:$0xf]
        %s561 = scalar_lea.vmem %s3, 12
        %v562 = vld [vmem:[%s561] sm:$0xf]
        %566 = vrot.lane.b32.xlu0 %v557, 96
        %v567 = vpop.permute.xlu0 %566
        %568 = vrot.lane.b32.xlu0 %v558, 96
        %v569 = vpop.permute.xlu0 %568
        %570 = vrot.lane.b32.xlu0 %v559, 96
        %v571 = vpop.permute.xlu0 %570
        %vm572 = vcmask 785408
        %v573 = vsel %vm572, %v567, %v569
        %v574 = vsel %vm572, %v569, %v571
        %v576 = vsel %vm440, %v562, 0
        %v578 = vsel %vm444, %v573, 0
        %v580 = vsel %vm444, %v574, 0
        %582 = vmatprep.subr.mxu0 0.0
        %583 = vmatpush1.msra.mxu0 0.0
        %584 = vmatprep.subr.mxu0 0.0
        %585 = vmatpush1.msra.mxu0 0.0
        %586 = vmatprep.subr.mxu0 0.0
        %587 = vmatpush1.msra.mxu0 0.0
        %588 = vmatprep.subr.mxu0 0.0
        %589 = vmatpush1.msra.mxu0 0.0
        %590 = vmatprep.subr.mxu0 0.0
        %591 = vmatpush1.msra.mxu0 0.0
        %592 = vmatprep.subr.mxu0 0.0
        %593 = vmatpush1.msra.mxu0 0.0
        %594 = vmatprep.subr.mxu0 0.0
        %595 = vmatpush1.msra.mxu0 0.0
        %596 = vmatprep.subr.mxu0 0.0
        %597 = vmatpush1.msra.mxu0 0.0
        %598 = vmatprep.subr.mxu0 0.0
        %599 = vmatpush1.msra.mxu0 0.0
        %600 = vmatprep.subr.mxu0 0.0
        %601 = vmatpush1.msra.mxu0 0.0
        %602 = vmatprep.subr.mxu0 0.0
        %603 = vmatpush1.msra.mxu0 0.0
        %604 = vmatprep.subr.mxu0 0.0
        %605 = vmatpush1.msra.mxu0 0.0
        %606 = vmatprep.subr.mxu0 0.0
        %607 = vmatpush1.msra.mxu0 0.0
        %608 = vmatprep.subr.mxu0 0.0
        %609 = vmatpush1.msra.mxu0 0.0
        %610 = vmatprep.subr.mxu0 0.0
        %611 = vmatpush1.msra.mxu0 0.0
        %612 = vmatprep.subr.mxu0 %v580
        %613 = vmatpush1.msra.mxu0 %v578
        %614 = vmatprep.subr.mxu0 0.0
        %615 = vmatpush2.msra.mxu0 0.0
        %616 = vmatprep.subr.mxu0 0.0
        %617 = vmatpush2.msra.mxu0 0.0
        %618 = vmatprep.subr.mxu0 0.0
        %619 = vmatpush2.msra.mxu0 0.0
        %620 = vmatprep.subr.mxu0 0.0
        %621 = vmatpush2.msra.mxu0 0.0
        %622 = vmatprep.subr.mxu0 0.0
        %623 = vmatpush2.msra.mxu0 0.0
        %624 = vmatprep.subr.mxu0 0.0
        %625 = vmatpush2.msra.mxu0 0.0
        %626 = vmatprep.subr.mxu0 0.0
        %627 = vmatpush2.msra.mxu0 0.0
        %628 = vmatprep.subr.mxu0 0.0
        %629 = vmatpush2.msra.mxu0 0.0
        %630 = vmatprep.subr.mxu0 0.0
        %631 = vmatpush2.msra.mxu0 0.0
        %632 = vmatprep.subr.mxu0 0.0
        %633 = vmatpush2.msra.mxu0 0.0
        %634 = vmatprep.subr.mxu0 0.0
        %635 = vmatpush2.msra.mxu0 0.0
        %636 = vmatprep.subr.mxu0 0.0
        %637 = vmatpush2.msra.mxu0 0.0
        %638 = vmatprep.subr.mxu0 0.0
        %639 = vmatpush2.msra.mxu0 0.0
        %640 = vmatprep.subr.mxu0 0.0
        %641 = vmatpush2.msra.mxu0 0.0
        %642 = vmatprep.subr.mxu0 0.0
        %643 = vmatpush2.msra.mxu0 0.0
        %644 = vmatprep.subr.mxu0 0.0
        %645 = vmatpush2.msra.mxu0 0.0
        %646 = vmatprep.mubr.f32.mxu0 0.0
        %647 = vmatmul.mubr.f32.gmra.mxu0 %v576
        %v648 = vpop.f32.mrf.mxu0
        %v649 = vadd.f32 0.0, %v648
        %v650 = vpop.f32.mrf.mxu0
        %v651 = vadd.f32 0.0, %v650
        %652 = vdwg.mxu0
        %653 = vrot.lane.b32.xlu0 %v557, 112
        %v654 = vpop.permute.xlu0 %653
        %655 = vrot.lane.b32.xlu0 %v558, 112
        %v656 = vpop.permute.xlu0 %655
        %657 = vrot.lane.b32.xlu0 %v559, 112
        %v658 = vpop.permute.xlu0 %657
        %vm659 = vcmask 916480
        %v660 = vsel %vm659, %v654, %v656
        %v661 = vsel %vm659, %v656, %v658
        %v663 = vsel %vm440, %v560, 0
        %v665 = vsel %vm444, %v660, 0
        %v667 = vsel %vm444, %v661, 0
        %669 = vmatprep.subr.mxu0 0.0
        %670 = vmatpush1.msra.mxu0 0.0
        %671 = vmatprep.subr.mxu0 0.0
        %672 = vmatpush1.msra.mxu0 0.0
        %673 = vmatprep.subr.mxu0 0.0
        %674 = vmatpush1.msra.mxu0 0.0
        %675 = vmatprep.subr.mxu0 0.0
        %676 = vmatpush1.msra.mxu0 0.0
        %677 = vmatprep.subr.mxu0 0.0
        %678 = vmatpush1.msra.mxu0 0.0
        %679 = vmatprep.subr.mxu0 0.0
        %680 = vmatpush1.msra.mxu0 0.0
        %681 = vmatprep.subr.mxu0 0.0
        %682 = vmatpush1.msra.mxu0 0.0
        %683 = vmatprep.subr.mxu0 0.0
        %684 = vmatpush1.msra.mxu0 0.0
        %685 = vmatprep.subr.mxu0 0.0
        %686 = vmatpush1.msra.mxu0 0.0
        %687 = vmatprep.subr.mxu0 0.0
        %688 = vmatpush1.msra.mxu0 0.0
        %689 = vmatprep.subr.mxu0 0.0
        %690 = vmatpush1.msra.mxu0 0.0
        %691 = vmatprep.subr.mxu0 0.0
        %692 = vmatpush1.msra.mxu0 0.0
        %693 = vmatprep.subr.mxu0 0.0
        %694 = vmatpush1.msra.mxu0 0.0
        %695 = vmatprep.subr.mxu0 0.0
        %696 = vmatpush1.msra.mxu0 0.0
        %697 = vmatprep.subr.mxu0 0.0
        %698 = vmatpush1.msra.mxu0 0.0
        %699 = vmatprep.subr.mxu0 %v667
        %700 = vmatpush1.msra.mxu0 %v665
        %701 = vmatprep.subr.mxu0 0.0
        %702 = vmatpush2.msra.mxu0 0.0
        %703 = vmatprep.subr.mxu0 0.0
        %704 = vmatpush2.msra.mxu0 0.0
        %705 = vmatprep.subr.mxu0 0.0
        %706 = vmatpush2.msra.mxu0 0.0
        %707 = vmatprep.subr.mxu0 0.0
        %708 = vmatpush2.msra.mxu0 0.0
        %709 = vmatprep.subr.mxu0 0.0
        %710 = vmatpush2.msra.mxu0 0.0
        %711 = vmatprep.subr.mxu0 0.0
        %712 = vmatpush2.msra.mxu0 0.0
        %713 = vmatprep.subr.mxu0 0.0
        %714 = vmatpush2.msra.mxu0 0.0
        %715 = vmatprep.subr.mxu0 0.0
        %716 = vmatpush2.msra.mxu0 0.0
        %717 = vmatprep.subr.mxu0 0.0
        %718 = vmatpush2.msra.mxu0 0.0
        %719 = vmatprep.subr.mxu0 0.0
        %720 = vmatpush2.msra.mxu0 0.0
        %721 = vmatprep.subr.mxu0 0.0
        %722 = vmatpush2.msra.mxu0 0.0
        %723 = vmatprep.subr.mxu0 0.0
        %724 = vmatpush2.msra.mxu0 0.0
        %725 = vmatprep.subr.mxu0 0.0
        %726 = vmatpush2.msra.mxu0 0.0
        %727 = vmatprep.subr.mxu0 0.0
        %728 = vmatpush2.msra.mxu0 0.0
        %729 = vmatprep.subr.mxu0 0.0
        %730 = vmatpush2.msra.mxu0 0.0
        %731 = vmatprep.subr.mxu0 0.0
        %732 = vmatpush2.msra.mxu0 0.0
        %733 = vmatprep.mubr.f32.mxu0 0.0
        %734 = vmatmul.mubr.f32.gmra.mxu0 %v663
        %v735 = vpop.f32.mrf.mxu0
        %v736 = vadd.f32 %v649, %v735
        %v737 = vpop.f32.mrf.mxu0
        %v738 = vadd.f32 %v651, %v737
        %739 = vdwg.mxu0
        %s740 = scalar_lea.vmem %s3, 24
        %v741 = vld [vmem:[%s740] sm:$0xf]
        %742 = vrot.lane.b32.xlu0 %v557, 80
        %v743 = vpop.permute.xlu0 %742
        %744 = vrot.lane.b32.xlu0 %v558, 80
        %v745 = vpop.permute.xlu0 %744
        %746 = vrot.lane.b32.xlu0 %v559, 80
        %v747 = vpop.permute.xlu0 %746
        %vm748 = vcmask 654336
        %v749 = vsel %vm748, %v743, %v745
        %v750 = vsel %vm748, %v745, %v747
        %v752 = vsel %vm440, %v741, 0
        %v754 = vsel %vm444, %v749, 0
        %v756 = vsel %vm444, %v750, 0
        %758 = vmatprep.subr.mxu0 0.0
        %759 = vmatpush1.msra.mxu0 0.0
        %760 = vmatprep.subr.mxu0 0.0
        %761 = vmatpush1.msra.mxu0 0.0
        %762 = vmatprep.subr.mxu0 0.0
        %763 = vmatpush1.msra.mxu0 0.0
        %764 = vmatprep.subr.mxu0 0.0
        %765 = vmatpush1.msra.mxu0 0.0
        %766 = vmatprep.subr.mxu0 0.0
        %767 = vmatpush1.msra.mxu0 0.0
        %768 = vmatprep.subr.mxu0 0.0
        %769 = vmatpush1.msra.mxu0 0.0
        %770 = vmatprep.subr.mxu0 0.0
        %771 = vmatpush1.msra.mxu0 0.0
        %772 = vmatprep.subr.mxu0 0.0
        %773 = vmatpush1.msra.mxu0 0.0
        %774 = vmatprep.subr.mxu0 0.0
        %775 = vmatpush1.msra.mxu0 0.0
        %776 = vmatprep.subr.mxu0 0.0
        %777 = vmatpush1.msra.mxu0 0.0
        %778 = vmatprep.subr.mxu0 0.0
        %779 = vmatpush1.msra.mxu0 0.0
        %780 = vmatprep.subr.mxu0 0.0
        %781 = vmatpush1.msra.mxu0 0.0
        %782 = vmatprep.subr.mxu0 0.0
        %783 = vmatpush1.msra.mxu0 0.0
        %784 = vmatprep.subr.mxu0 0.0
        %785 = vmatpush1.msra.mxu0 0.0
        %786 = vmatprep.subr.mxu0 0.0
        %787 = vmatpush1.msra.mxu0 0.0
        %788 = vmatprep.subr.mxu0 %v756
        %789 = vmatpush1.msra.mxu0 %v754
        %790 = vmatprep.subr.mxu0 0.0
        %791 = vmatpush2.msra.mxu0 0.0
        %792 = vmatprep.subr.mxu0 0.0
        %793 = vmatpush2.msra.mxu0 0.0
        %794 = vmatprep.subr.mxu0 0.0
        %795 = vmatpush2.msra.mxu0 0.0
        %796 = vmatprep.subr.mxu0 0.0
        %797 = vmatpush2.msra.mxu0 0.0
        %798 = vmatprep.subr.mxu0 0.0
        %799 = vmatpush2.msra.mxu0 0.0
        %800 = vmatprep.subr.mxu0 0.0
        %801 = vmatpush2.msra.mxu0 0.0
        %802 = vmatprep.subr.mxu0 0.0
        %803 = vmatpush2.msra.mxu0 0.0
        %804 = vmatprep.subr.mxu0 0.0
        %805 = vmatpush2.msra.mxu0 0.0
        %806 = vmatprep.subr.mxu0 0.0
        %807 = vmatpush2.msra.mxu0 0.0
        %808 = vmatprep.subr.mxu0 0.0
        %809 = vmatpush2.msra.mxu0 0.0
        %810 = vmatprep.subr.mxu0 0.0
        %811 = vmatpush2.msra.mxu0 0.0
        %812 = vmatprep.subr.mxu0 0.0
        %813 = vmatpush2.msra.mxu0 0.0
        %814 = vmatprep.subr.mxu0 0.0
        %815 = vmatpush2.msra.mxu0 0.0
        %816 = vmatprep.subr.mxu0 0.0
        %817 = vmatpush2.msra.mxu0 0.0
        %818 = vmatprep.subr.mxu0 0.0
        %819 = vmatpush2.msra.mxu0 0.0
        %820 = vmatprep.subr.mxu0 0.0
        %821 = vmatpush2.msra.mxu0 0.0
        %822 = vmatprep.mubr.f32.mxu0 0.0
        %823 = vmatmul.mubr.f32.gmra.mxu0 %v752
        %v824 = vpop.f32.mrf.mxu0
        %v825 = vadd.f32 0.0, %v824
        %v826 = vpop.f32.mrf.mxu0
        %v827 = vadd.f32 0.0, %v826
        %828 = vdwg.mxu0
        %v829 = vadd.f32 %v736, %v825
        %v830 = vadd.f32 %v738, %v827
        %v831 = vld [vmem:[#allocation2] sm:$0xff]
        %v832 = vld [vmem:[#allocation2 + $0x8] sm:$0xff]
        %s833 = scalar_lea.vmem %s3, 4
        %v834 = vld [vmem:[%s833] sm:$0xf]
        %v837 = vcombine.high %v831, %v831
        %838 = vrot.lane.b32.xlu0 %v831, 16
        %v839 = vpop.permute.xlu0 %838
        %840 = vrot.lane.b32.xlu0 %v837, 16
        %v841 = vpop.permute.xlu0 %840
        %842 = vrot.lane.b32.xlu0 %v832, 16
        %v843 = vpop.permute.xlu0 %842
        %vm844 = vcmask 130048
        %v845 = vsel %vm844, %v839, %v841
        %v846 = vsel %vm844, %v841, %v843
        %v848 = vsel %vm440, %v834, 0
        %v850 = vsel %vm444, %v845, 0
        %v852 = vsel %vm444, %v846, 0
        %854 = vmatprep.subr.mxu0 0.0
        %855 = vmatpush1.msra.mxu0 0.0
        %856 = vmatprep.subr.mxu0 0.0
        %857 = vmatpush1.msra.mxu0 0.0
        %858 = vmatprep.subr.mxu0 0.0
        %859 = vmatpush1.msra.mxu0 0.0
        %860 = vmatprep.subr.mxu0 0.0
        %861 = vmatpush1.msra.mxu0 0.0
        %862 = vmatprep.subr.mxu0 0.0
        %863 = vmatpush1.msra.mxu0 0.0
        %864 = vmatprep.subr.mxu0 0.0
        %865 = vmatpush1.msra.mxu0 0.0
        %866 = vmatprep.subr.mxu0 0.0
        %867 = vmatpush1.msra.mxu0 0.0
        %868 = vmatprep.subr.mxu0 0.0
        %869 = vmatpush1.msra.mxu0 0.0
        %870 = vmatprep.subr.mxu0 0.0
        %871 = vmatpush1.msra.mxu0 0.0
        %872 = vmatprep.subr.mxu0 0.0
        %873 = vmatpush1.msra.mxu0 0.0
        %874 = vmatprep.subr.mxu0 0.0
        %875 = vmatpush1.msra.mxu0 0.0
        %876 = vmatprep.subr.mxu0 0.0
        %877 = vmatpush1.msra.mxu0 0.0
        %878 = vmatprep.subr.mxu0 0.0
        %879 = vmatpush1.msra.mxu0 0.0
        %880 = vmatprep.subr.mxu0 0.0
        %881 = vmatpush1.msra.mxu0 0.0
        %882 = vmatprep.subr.mxu0 0.0
        %883 = vmatpush1.msra.mxu0 0.0
        %884 = vmatprep.subr.mxu0 %v852
        %885 = vmatpush1.msra.mxu0 %v850
        %886 = vmatprep.subr.mxu0 0.0
        %887 = vmatpush2.msra.mxu0 0.0
        %888 = vmatprep.subr.mxu0 0.0
        %889 = vmatpush2.msra.mxu0 0.0
        %890 = vmatprep.subr.mxu0 0.0
        %891 = vmatpush2.msra.mxu0 0.0
        %892 = vmatprep.subr.mxu0 0.0
        %893 = vmatpush2.msra.mxu0 0.0
        %894 = vmatprep.subr.mxu0 0.0
        %895 = vmatpush2.msra.mxu0 0.0
        %896 = vmatprep.subr.mxu0 0.0
        %897 = vmatpush2.msra.mxu0 0.0
        %898 = vmatprep.subr.mxu0 0.0
        %899 = vmatpush2.msra.mxu0 0.0
        %900 = vmatprep.subr.mxu0 0.0
        %901 = vmatpush2.msra.mxu0 0.0
        %902 = vmatprep.subr.mxu0 0.0
        %903 = vmatpush2.msra.mxu0 0.0
        %904 = vmatprep.subr.mxu0 0.0
        %905 = vmatpush2.msra.mxu0 0.0
        %906 = vmatprep.subr.mxu0 0.0
        %907 = vmatpush2.msra.mxu0 0.0
        %908 = vmatprep.subr.mxu0 0.0
        %909 = vmatpush2.msra.mxu0 0.0
        %910 = vmatprep.subr.mxu0 0.0
        %911 = vmatpush2.msra.mxu0 0.0
        %912 = vmatprep.subr.mxu0 0.0
        %913 = vmatpush2.msra.mxu0 0.0
        %914 = vmatprep.subr.mxu0 0.0
        %915 = vmatpush2.msra.mxu0 0.0
        %916 = vmatprep.subr.mxu0 0.0
        %917 = vmatpush2.msra.mxu0 0.0
        %918 = vmatprep.mubr.f32.mxu0 0.0
        %919 = vmatmul.mubr.f32.gmra.mxu0 %v848
        %v920 = vpop.f32.mrf.mxu0
        %v921 = vadd.f32 0.0, %v920
        %v922 = vpop.f32.mrf.mxu0
        %v923 = vadd.f32 0.0, %v922
        %924 = vdwg.mxu0
        %v925 = vadd.f32 %v829, %v921
        %v926 = vadd.f32 %v830, %v923
        %s927 = scalar_lea.vmem %s3, 16
        %v928 = vld [vmem:[%s927] sm:$0xf]
        %v930 = vsel %vm440, %v928, 0
        %v932 = vsel %vm444, %v837, 0
        %v934 = vsel %vm444, %v832, 0
        %936 = vmatprep.subr.mxu0 0.0
        %937 = vmatpush1.msra.mxu0 0.0
        %938 = vmatprep.subr.mxu0 0.0
        %939 = vmatpush1.msra.mxu0 0.0
        %940 = vmatprep.subr.mxu0 0.0
        %941 = vmatpush1.msra.mxu0 0.0
        %942 = vmatprep.subr.mxu0 0.0
        %943 = vmatpush1.msra.mxu0 0.0
        %944 = vmatprep.subr.mxu0 0.0
        %945 = vmatpush1.msra.mxu0 0.0
        %946 = vmatprep.subr.mxu0 0.0
        %947 = vmatpush1.msra.mxu0 0.0
        %948 = vmatprep.subr.mxu0 0.0
        %949 = vmatpush1.msra.mxu0 0.0
        %950 = vmatprep.subr.mxu0 0.0
        %951 = vmatpush1.msra.mxu0 0.0
        %952 = vmatprep.subr.mxu0 0.0
        %953 = vmatpush1.msra.mxu0 0.0
        %954 = vmatprep.subr.mxu0 0.0
        %955 = vmatpush1.msra.mxu0 0.0
        %956 = vmatprep.subr.mxu0 0.0
        %957 = vmatpush1.msra.mxu0 0.0
        %958 = vmatprep.subr.mxu0 0.0
        %959 = vmatpush1.msra.mxu0 0.0
        %960 = vmatprep.subr.mxu0 0.0
        %961 = vmatpush1.msra.mxu0 0.0
        %962 = vmatprep.subr.mxu0 0.0
        %963 = vmatpush1.msra.mxu0 0.0
        %964 = vmatprep.subr.mxu0 0.0
        %965 = vmatpush1.msra.mxu0 0.0
        %966 = vmatprep.subr.mxu0 %v934
        %967 = vmatpush1.msra.mxu0 %v932
        %968 = vmatprep.subr.mxu0 0.0
        %969 = vmatpush2.msra.mxu0 0.0
        %970 = vmatprep.subr.mxu0 0.0
        %971 = vmatpush2.msra.mxu0 0.0
        %972 = vmatprep.subr.mxu0 0.0
        %973 = vmatpush2.msra.mxu0 0.0
        %974 = vmatprep.subr.mxu0 0.0
        %975 = vmatpush2.msra.mxu0 0.0
        %976 = vmatprep.subr.mxu0 0.0
        %977 = vmatpush2.msra.mxu0 0.0
        %978 = vmatprep.subr.mxu0 0.0
        %979 = vmatpush2.msra.mxu0 0.0
        %980 = vmatprep.subr.mxu0 0.0
        %981 = vmatpush2.msra.mxu0 0.0
        %982 = vmatprep.subr.mxu0 0.0
        %983 = vmatpush2.msra.mxu0 0.0
        %984 = vmatprep.subr.mxu0 0.0
        %985 = vmatpush2.msra.mxu0 0.0
        %986 = vmatprep.subr.mxu0 0.0
        %987 = vmatpush2.msra.mxu0 0.0
        %988 = vmatprep.subr.mxu0 0.0
        %989 = vmatpush2.msra.mxu0 0.0
        %990 = vmatprep.subr.mxu0 0.0
        %991 = vmatpush2.msra.mxu0 0.0
        %992 = vmatprep.subr.mxu0 0.0
        %993 = vmatpush2.msra.mxu0 0.0
        %994 = vmatprep.subr.mxu0 0.0
        %995 = vmatpush2.msra.mxu0 0.0
        %996 = vmatprep.subr.mxu0 0.0
        %997 = vmatpush2.msra.mxu0 0.0
        %998 = vmatprep.subr.mxu0 0.0
        %999 = vmatpush2.msra.mxu0 0.0
        %1000 = vmatprep.mubr.f32.mxu0 0.0
        %1001 = vmatmul.mubr.f32.gmra.mxu0 %v930
        %v1002 = vpop.f32.mrf.mxu0
        %v1003 = vadd.f32 0.0, %v1002
        %v1004 = vpop.f32.mrf.mxu0
        %v1005 = vadd.f32 0.0, %v1004
        %1006 = vdwg.mxu0
        %v1007 = vadd.f32 %v925, %v1003
        %v1008 = vadd.f32 %v926, %v1005
        %s1009 = scalar_lea.vmem %s3, 28
        %v1010 = vld [vmem:[%s1009] sm:$0xf]
        %v1011 = vcombine.high %v832, %v832
        %1012 = vrot.lane.b32.xlu0 %v837, 112
        %v1013 = vpop.permute.xlu0 %1012
        %1014 = vrot.lane.b32.xlu0 %v832, 112
        %v1015 = vpop.permute.xlu0 %1014
        %1016 = vrot.lane.b32.xlu0 %v1011, 112
        %v1017 = vpop.permute.xlu0 %1016
        %v1018 = vsel %vm659, %v1013, %v1015
        %v1019 = vsel %vm659, %v1015, %v1017
        %v1021 = vsel %vm440, %v1010, 0
        %v1023 = vsel %vm444, %v1018, 0
        %v1025 = vsel %vm444, %v1019, 0
        %1027 = vmatprep.subr.mxu0 0.0
        %1028 = vmatpush1.msra.mxu0 0.0
        %1029 = vmatprep.subr.mxu0 0.0
        %1030 = vmatpush1.msra.mxu0 0.0
        %1031 = vmatprep.subr.mxu0 0.0
        %1032 = vmatpush1.msra.mxu0 0.0
        %1033 = vmatprep.subr.mxu0 0.0
        %1034 = vmatpush1.msra.mxu0 0.0
        %1035 = vmatprep.subr.mxu0 0.0
        %1036 = vmatpush1.msra.mxu0 0.0
        %1037 = vmatprep.subr.mxu0 0.0
        %1038 = vmatpush1.msra.mxu0 0.0
        %1039 = vmatprep.subr.mxu0 0.0
        %1040 = vmatpush1.msra.mxu0 0.0
        %1041 = vmatprep.subr.mxu0 0.0
        %1042 = vmatpush1.msra.mxu0 0.0
        %1043 = vmatprep.subr.mxu0 0.0
        %1044 = vmatpush1.msra.mxu0 0.0
        %1045 = vmatprep.subr.mxu0 0.0
        %1046 = vmatpush1.msra.mxu0 0.0
        %1047 = vmatprep.subr.mxu0 0.0
        %1048 = vmatpush1.msra.mxu0 0.0
        %1049 = vmatprep.subr.mxu0 0.0
        %1050 = vmatpush1.msra.mxu0 0.0
        %1051 = vmatprep.subr.mxu0 0.0
        %1052 = vmatpush1.msra.mxu0 0.0
        %1053 = vmatprep.subr.mxu0 0.0
        %1054 = vmatpush1.msra.mxu0 0.0
        %1055 = vmatprep.subr.mxu0 0.0
        %1056 = vmatpush1.msra.mxu0 0.0
        %1057 = vmatprep.subr.mxu0 %v1025
        %1058 = vmatpush1.msra.mxu0 %v1023
        %1059 = vmatprep.subr.mxu0 0.0
        %1060 = vmatpush2.msra.mxu0 0.0
        %1061 = vmatprep.subr.mxu0 0.0
        %1062 = vmatpush2.msra.mxu0 0.0
        %1063 = vmatprep.subr.mxu0 0.0
        %1064 = vmatpush2.msra.mxu0 0.0
        %1065 = vmatprep.subr.mxu0 0.0
        %1066 = vmatpush2.msra.mxu0 0.0
        %1067 = vmatprep.subr.mxu0 0.0
        %1068 = vmatpush2.msra.mxu0 0.0
        %1069 = vmatprep.subr.mxu0 0.0
        %1070 = vmatpush2.msra.mxu0 0.0
        %1071 = vmatprep.subr.mxu0 0.0
        %1072 = vmatpush2.msra.mxu0 0.0
        %1073 = vmatprep.subr.mxu0 0.0
        %1074 = vmatpush2.msra.mxu0 0.0
        %1075 = vmatprep.subr.mxu0 0.0
        %1076 = vmatpush2.msra.mxu0 0.0
        %1077 = vmatprep.subr.mxu0 0.0
        %1078 = vmatpush2.msra.mxu0 0.0
        %1079 = vmatprep.subr.mxu0 0.0
        %1080 = vmatpush2.msra.mxu0 0.0
        %1081 = vmatprep.subr.mxu0 0.0
        %1082 = vmatpush2.msra.mxu0 0.0
        %1083 = vmatprep.subr.mxu0 0.0
        %1084 = vmatpush2.msra.mxu0 0.0
        %1085 = vmatprep.subr.mxu0 0.0
        %1086 = vmatpush2.msra.mxu0 0.0
        %1087 = vmatprep.subr.mxu0 0.0
        %1088 = vmatpush2.msra.mxu0 0.0
        %1089 = vmatprep.subr.mxu0 0.0
        %1090 = vmatpush2.msra.mxu0 0.0
        %1091 = vmatprep.mubr.f32.mxu0 0.0
        %1092 = vmatmul.mubr.f32.gmra.mxu0 %v1021
        %v1093 = vpop.f32.mrf.mxu0
        %v1094 = vadd.f32 0.0, %v1093
        %v1095 = vpop.f32.mrf.mxu0
        %v1096 = vadd.f32 0.0, %v1095
        %1097 = vdwg.mxu0
        %v1098 = vadd.f32 %v1007, %v1094
        %v1099 = vadd.f32 %v1008, %v1096
        %v1100 = vld [vmem:[#allocation2] sm:$0xff]
        %v1101 = vld [vmem:[#allocation2 + $0x8] sm:$0xff]
        %vm1102 = vcmp.lt.s32.totalorder %v425, 15
        %vm1103 = vcmp.lt.s32.totalorder %v426, 15
        %vm1104 = vcmp.lt.s32.totalorder %v427, 15
        %v1105 = vsel %vm1102, 1, 0
        %v1106 = vsel %vm1103, 1, 0
        %v1107 = vsel %vm1104, 1, 0
        %vm1108 = vcmp.eq.s32.totalorder %v1105, 1
        %vm1109 = vcmp.eq.s32.totalorder %v1106, 1
        %vm1110 = vcmp.eq.s32.totalorder %v1107, 1
        %v1113 = vcombine.high %v1100, %v1100
        %v1114 = vcombine.high %v1101, %v1101
        %1115 = vrot.lane.b32.xlu0 %v1100, 31
        %v1116 = vpop.permute.xlu0 %1115
        %1117 = vrot.lane.b32.xlu0 %v1113, 31
        %v1118 = vpop.permute.xlu0 %1117
        %1119 = vrot.lane.b32.xlu0 %v1101, 31
        %v1120 = vpop.permute.xlu0 %1119
        %1121 = vrot.lane.b32.xlu0 %v1114, 31
        %v1122 = vpop.permute.xlu0 %1121
        %vm1123 = vcmask 252928
        %v1124 = vsel %vm1123, %v1116, %v1118
        %v1125 = vsel %vm1123, %v1118, %v1120
        %v1126 = vsel %vm1123, %v1120, %v1122
        %v1130 = vsel %vm1108, %v1124, 0.0
        %v1131 = vsel %vm1109, %v1125, 0.0
        %v1132 = vsel %vm1110, %v1126, 0.0
        %s1133 = scalar_lea.vmem %s3, 8
        %v1134 = vld [vmem:[%s1133] sm:$0xf]
        %1138 = vrot.lane.b32.xlu0 %v1130, 112
        %v1139 = vpop.permute.xlu0 %1138
        %1140 = vrot.lane.b32.xlu0 %v1131, 112
        %v1141 = vpop.permute.xlu0 %1140
        %1142 = vrot.lane.b32.xlu0 %v1132, 112
        %v1143 = vpop.permute.xlu0 %1142
        %v1144 = vsel %vm659, %v1139, %v1141
        %v1145 = vsel %vm659, %v1141, %v1143
        %v1147 = vsel %vm440, %v1134, 0
        %v1149 = vsel %vm444, %v1144, 0
        %v1151 = vsel %vm444, %v1145, 0
        %1153 = vmatprep.subr.mxu0 0.0
        %1154 = vmatpush1.msra.mxu0 0.0
        %1155 = vmatprep.subr.mxu0 0.0
        %1156 = vmatpush1.msra.mxu0 0.0
        %1157 = vmatprep.subr.mxu0 0.0
        %1158 = vmatpush1.msra.mxu0 0.0
        %1159 = vmatprep.subr.mxu0 0.0
        %1160 = vmatpush1.msra.mxu0 0.0
        %1161 = vmatprep.subr.mxu0 0.0
        %1162 = vmatpush1.msra.mxu0 0.0
        %1163 = vmatprep.subr.mxu0 0.0
        %1164 = vmatpush1.msra.mxu0 0.0
        %1165 = vmatprep.subr.mxu0 0.0
        %1166 = vmatpush1.msra.mxu0 0.0
        %1167 = vmatprep.subr.mxu0 0.0
        %1168 = vmatpush1.msra.mxu0 0.0
        %1169 = vmatprep.subr.mxu0 0.0
        %1170 = vmatpush1.msra.mxu0 0.0
        %1171 = vmatprep.subr.mxu0 0.0
        %1172 = vmatpush1.msra.mxu0 0.0
        %1173 = vmatprep.subr.mxu0 0.0
        %1174 = vmatpush1.msra.mxu0 0.0
        %1175 = vmatprep.subr.mxu0 0.0
        %1176 = vmatpush1.msra.mxu0 0.0
        %1177 = vmatprep.subr.mxu0 0.0
        %1178 = vmatpush1.msra.mxu0 0.0
        %1179 = vmatprep.subr.mxu0 0.0
        %1180 = vmatpush1.msra.mxu0 0.0
        %1181 = vmatprep.subr.mxu0 0.0
        %1182 = vmatpush1.msra.mxu0 0.0
        %1183 = vmatprep.subr.mxu0 %v1151
        %1184 = vmatpush1.msra.mxu0 %v1149
        %1185 = vmatprep.subr.mxu0 0.0
        %1186 = vmatpush2.msra.mxu0 0.0
        %1187 = vmatprep.subr.mxu0 0.0
        %1188 = vmatpush2.msra.mxu0 0.0
        %1189 = vmatprep.subr.mxu0 0.0
        %1190 = vmatpush2.msra.mxu0 0.0
        %1191 = vmatprep.subr.mxu0 0.0
        %1192 = vmatpush2.msra.mxu0 0.0
        %1193 = vmatprep.subr.mxu0 0.0
        %1194 = vmatpush2.msra.mxu0 0.0
        %1195 = vmatprep.subr.mxu0 0.0
        %1196 = vmatpush2.msra.mxu0 0.0
        %1197 = vmatprep.subr.mxu0 0.0
        %1198 = vmatpush2.msra.mxu0 0.0
        %1199 = vmatprep.subr.mxu0 0.0
        %1200 = vmatpush2.msra.mxu0 0.0
        %1201 = vmatprep.subr.mxu0 0.0
        %1202 = vmatpush2.msra.mxu0 0.0
        %1203 = vmatprep.subr.mxu0 0.0
        %1204 = vmatpush2.msra.mxu0 0.0
        %1205 = vmatprep.subr.mxu0 0.0
        %1206 = vmatpush2.msra.mxu0 0.0
        %1207 = vmatprep.subr.mxu0 0.0
        %1208 = vmatpush2.msra.mxu0 0.0
        %1209 = vmatprep.subr.mxu0 0.0
        %1210 = vmatpush2.msra.mxu0 0.0
        %1211 = vmatprep.subr.mxu0 0.0
        %1212 = vmatpush2.msra.mxu0 0.0
        %1213 = vmatprep.subr.mxu0 0.0
        %1214 = vmatpush2.msra.mxu0 0.0
        %1215 = vmatprep.subr.mxu0 0.0
        %1216 = vmatpush2.msra.mxu0 0.0
        %1217 = vmatprep.mubr.f32.mxu0 0.0
        %1218 = vmatmul.mubr.f32.gmra.mxu0 %v1147
        %v1219 = vpop.f32.mrf.mxu0
        %v1220 = vadd.f32 0.0, %v1219
        %v1221 = vpop.f32.mrf.mxu0
        %v1222 = vadd.f32 0.0, %v1221
        %1223 = vdwg.mxu0
        %v1224 = vadd.f32 %v1098, %v1220
        %v1225 = vadd.f32 %v1099, %v1222
        %s1226 = scalar_lea.vmem %s3, 20
        %v1227 = vld [vmem:[%s1226] sm:$0xf]
        %1228 = vrot.lane.b32.xlu0 %v1130, 96
        %v1229 = vpop.permute.xlu0 %1228
        %1230 = vrot.lane.b32.xlu0 %v1131, 96
        %v1231 = vpop.permute.xlu0 %1230
        %1232 = vrot.lane.b32.xlu0 %v1132, 96
        %v1233 = vpop.permute.xlu0 %1232
        %v1234 = vsel %vm572, %v1229, %v1231
        %v1235 = vsel %vm572, %v1231, %v1233
        %v1237 = vsel %vm440, %v1227, 0
        %v1239 = vsel %vm444, %v1234, 0
        %v1241 = vsel %vm444, %v1235, 0
        %1243 = vmatprep.subr.mxu0 0.0
        %1244 = vmatpush1.msra.mxu0 0.0
        %1245 = vmatprep.subr.mxu0 0.0
        %1246 = vmatpush1.msra.mxu0 0.0
        %1247 = vmatprep.subr.mxu0 0.0
        %1248 = vmatpush1.msra.mxu0 0.0
        %1249 = vmatprep.subr.mxu0 0.0
        %1250 = vmatpush1.msra.mxu0 0.0
        %1251 = vmatprep.subr.mxu0 0.0
        %1252 = vmatpush1.msra.mxu0 0.0
        %1253 = vmatprep.subr.mxu0 0.0
        %1254 = vmatpush1.msra.mxu0 0.0
        %1255 = vmatprep.subr.mxu0 0.0
        %1256 = vmatpush1.msra.mxu0 0.0
        %1257 = vmatprep.subr.mxu0 0.0
        %1258 = vmatpush1.msra.mxu0 0.0
        %1259 = vmatprep.subr.mxu0 0.0
        %1260 = vmatpush1.msra.mxu0 0.0
        %1261 = vmatprep.subr.mxu0 0.0
        %1262 = vmatpush1.msra.mxu0 0.0
        %1263 = vmatprep.subr.mxu0 0.0
        %1264 = vmatpush1.msra.mxu0 0.0
        %1265 = vmatprep.subr.mxu0 0.0
        %1266 = vmatpush1.msra.mxu0 0.0
        %1267 = vmatprep.subr.mxu0 0.0
        %1268 = vmatpush1.msra.mxu0 0.0
        %1269 = vmatprep.subr.mxu0 0.0
        %1270 = vmatpush1.msra.mxu0 0.0
        %1271 = vmatprep.subr.mxu0 0.0
        %1272 = vmatpush1.msra.mxu0 0.0
        %1273 = vmatprep.subr.mxu0 %v1241
        %1274 = vmatpush1.msra.mxu0 %v1239
        %1275 = vmatprep.subr.mxu0 0.0
        %1276 = vmatpush2.msra.mxu0 0.0
        %1277 = vmatprep.subr.mxu0 0.0
        %1278 = vmatpush2.msra.mxu0 0.0
        %1279 = vmatprep.subr.mxu0 0.0
        %1280 = vmatpush2.msra.mxu0 0.0
        %1281 = vmatprep.subr.mxu0 0.0
        %1282 = vmatpush2.msra.mxu0 0.0
        %1283 = vmatprep.subr.mxu0 0.0
        %1284 = vmatpush2.msra.mxu0 0.0
        %1285 = vmatprep.subr.mxu0 0.0
        %1286 = vmatpush2.msra.mxu0 0.0
        %1287 = vmatprep.subr.mxu0 0.0
        %1288 = vmatpush2.msra.mxu0 0.0
        %1289 = vmatprep.subr.mxu0 0.0
        %1290 = vmatpush2.msra.mxu0 0.0
        %1291 = vmatprep.subr.mxu0 0.0
        %1292 = vmatpush2.msra.mxu0 0.0
        %1293 = vmatprep.subr.mxu0 0.0
        %1294 = vmatpush2.msra.mxu0 0.0
        %1295 = vmatprep.subr.mxu0 0.0
        %1296 = vmatpush2.msra.mxu0 0.0
        %1297 = vmatprep.subr.mxu0 0.0
        %1298 = vmatpush2.msra.mxu0 0.0
        %1299 = vmatprep.subr.mxu0 0.0
        %1300 = vmatpush2.msra.mxu0 0.0
        %1301 = vmatprep.subr.mxu0 0.0
        %1302 = vmatpush2.msra.mxu0 0.0
        %1303 = vmatprep.subr.mxu0 0.0
        %1304 = vmatpush2.msra.mxu0 0.0
        %1305 = vmatprep.subr.mxu0 0.0
        %1306 = vmatpush2.msra.mxu0 0.0
        %1307 = vmatprep.mubr.f32.mxu0 0.0
        %1308 = vmatmul.mubr.f32.gmra.mxu0 %v1237
        %v1309 = vpop.f32.mrf.mxu0
        %v1310 = vadd.f32 0.0, %v1309
        %v1311 = vpop.f32.mrf.mxu0
        %v1312 = vadd.f32 0.0, %v1311
        %1313 = vdwg.mxu0
        %v1314 = vadd.f32 %v1224, %v1310
        %v1315 = vadd.f32 %v1225, %v1312
        %s1316 = scalar_lea.vmem %s3, 32
        %v1317 = vld [vmem:[%s1316] sm:$0xf]
        %1318 = vrot.lane.b32.xlu0 %v1130, 80
        %v1319 = vpop.permute.xlu0 %1318
        %1320 = vrot.lane.b32.xlu0 %v1131, 80
        %v1321 = vpop.permute.xlu0 %1320
        %1322 = vrot.lane.b32.xlu0 %v1132, 80
        %v1323 = vpop.permute.xlu0 %1322
        %v1324 = vsel %vm748, %v1319, %v1321
        %v1325 = vsel %vm748, %v1321, %v1323
        %v1327 = vsel %vm440, %v1317, 0
        %v1329 = vsel %vm444, %v1324, 0
        %v1331 = vsel %vm444, %v1325, 0
        %1333 = vmatprep.subr.mxu0 0.0
        %1334 = vmatpush1.msra.mxu0 0.0
        %1335 = vmatprep.subr.mxu0 0.0
        %1336 = vmatpush1.msra.mxu0 0.0
        %1337 = vmatprep.subr.mxu0 0.0
        %1338 = vmatpush1.msra.mxu0 0.0
        %1339 = vmatprep.subr.mxu0 0.0
        %1340 = vmatpush1.msra.mxu0 0.0
        %1341 = vmatprep.subr.mxu0 0.0
        %1342 = vmatpush1.msra.mxu0 0.0
        %1343 = vmatprep.subr.mxu0 0.0
        %1344 = vmatpush1.msra.mxu0 0.0
        %1345 = vmatprep.subr.mxu0 0.0
        %1346 = vmatpush1.msra.mxu0 0.0
        %1347 = vmatprep.subr.mxu0 0.0
        %1348 = vmatpush1.msra.mxu0 0.0
        %1349 = vmatprep.subr.mxu0 0.0
        %1350 = vmatpush1.msra.mxu0 0.0
        %1351 = vmatprep.subr.mxu0 0.0
        %1352 = vmatpush1.msra.mxu0 0.0
        %1353 = vmatprep.subr.mxu0 0.0
        %1354 = vmatpush1.msra.mxu0 0.0
        %1355 = vmatprep.subr.mxu0 0.0
        %1356 = vmatpush1.msra.mxu0 0.0
        %1357 = vmatprep.subr.mxu0 0.0
        %1358 = vmatpush1.msra.mxu0 0.0
        %1359 = vmatprep.subr.mxu0 0.0
        %1360 = vmatpush1.msra.mxu0 0.0
        %1361 = vmatprep.subr.mxu0 0.0
        %1362 = vmatpush1.msra.mxu0 0.0
        %1363 = vmatprep.subr.mxu0 %v1331
        %1364 = vmatpush1.msra.mxu0 %v1329
        %1365 = vmatprep.subr.mxu0 0.0
        %1366 = vmatpush2.msra.mxu0 0.0
        %1367 = vmatprep.subr.mxu0 0.0
        %1368 = vmatpush2.msra.mxu0 0.0
        %1369 = vmatprep.subr.mxu0 0.0
        %1370 = vmatpush2.msra.mxu0 0.0
        %1371 = vmatprep.subr.mxu0 0.0
        %1372 = vmatpush2.msra.mxu0 0.0
        %1373 = vmatprep.subr.mxu0 0.0
        %1374 = vmatpush2.msra.mxu0 0.0
        %1375 = vmatprep.subr.mxu0 0.0
        %1376 = vmatpush2.msra.mxu0 0.0
        %1377 = vmatprep.subr.mxu0 0.0
        %1378 = vmatpush2.msra.mxu0 0.0
        %1379 = vmatprep.subr.mxu0 0.0
        %1380 = vmatpush2.msra.mxu0 0.0
        %1381 = vmatprep.subr.mxu0 0.0
        %1382 = vmatpush2.msra.mxu0 0.0
        %1383 = vmatprep.subr.mxu0 0.0
        %1384 = vmatpush2.msra.mxu0 0.0
        %1385 = vmatprep.subr.mxu0 0.0
        %1386 = vmatpush2.msra.mxu0 0.0
        %1387 = vmatprep.subr.mxu0 0.0
        %1388 = vmatpush2.msra.mxu0 0.0
        %1389 = vmatprep.subr.mxu0 0.0
        %1390 = vmatpush2.msra.mxu0 0.0
        %1391 = vmatprep.subr.mxu0 0.0
        %1392 = vmatpush2.msra.mxu0 0.0
        %1393 = vmatprep.subr.mxu0 0.0
        %1394 = vmatpush2.msra.mxu0 0.0
        %1395 = vmatprep.subr.mxu0 0.0
        %1396 = vmatpush2.msra.mxu0 0.0
        %1397 = vmatprep.mubr.f32.mxu0 0.0
        %1398 = vmatmul.mubr.f32.gmra.mxu0 %v1327
        %v1399 = vpop.f32.mrf.mxu0
        %v1400 = vadd.f32 0.0, %v1399
        %v1401 = vpop.f32.mrf.mxu0
        %v1402 = vadd.f32 0.0, %v1401
        %1403 = vdwg.mxu0
        %v1404 = vadd.f32 %v1314, %v1400
        %v1405 = vadd.f32 %v1315, %v1402
        %v1406 = vld [vmem:[%s4] sm:$0xf]
        %1408 = vset.pattern.permute.xlu0 0
        %1409 = vperm.xlu0 %1408, %v1406
        %v1410 = vpop.permute.xlu0 %1409
        %v1412 = vadd.f32 %v1404, %v1410
        %v1413 = vadd.f32 %v1405, %v1410
        %v1414 = vmax.f32 %v1412, 0.0
        %v1415 = vmax.f32 %v1413, 0.0
        %v1416 = vsel %vm444, %v1414, -inf
        %v1417 = vsel %vm444, %v1415, -inf
        %v1418 = vmax.f32 %v1416, %v1417
        %1419 = vmax.xlane.f32.xlu0 %v1418
        %v1420 = vpop.xlane.xlu0 %1419
        %v1421 = vcombine.high %v520, %v521
        %1423 = vst [vmem:[#allocation2 + $0x4] sm:$0xff] %v1421
        %v1424 = vld [vmem:[#allocation2] sm:$0xff]
        %v1425 = vld [vmem:[#allocation2 + $0x8] sm:$0xff]
        %vm1426 = vcmp.ge.s32.totalorder %v425, 2
        %vm1427 = vcmp.ge.s32.totalorder %v426, 2
        %vm1428 = vcmp.ge.s32.totalorder %v427, 2
        %v1429 = vsel %vm1426, 1, 0
        %v1430 = vsel %vm1427, 1, 0
        %v1431 = vsel %vm1428, 1, 0
        %vm1432 = vcmp.eq.s32.totalorder %v1429, 1
        %vm1433 = vcmp.eq.s32.totalorder %v1430, 1
        %vm1434 = vcmp.eq.s32.totalorder %v1431, 1
        %v1437 = vcombine.high %v1424, %v1424
        %v1438 = vcombine.high %v1425, %v1425
        %1439 = vrot.lane.b32.xlu0 %v1424, 34
        %v1440 = vpop.permute.xlu0 %1439
        %1441 = vrot.lane.b32.xlu0 %v1437, 34
        %v1442 = vpop.permute.xlu0 %1441
        %1443 = vrot.lane.b32.xlu0 %v1425, 34
        %v1444 = vpop.permute.xlu0 %1443
        %1445 = vrot.lane.b32.xlu0 %v1438, 34
        %v1446 = vpop.permute.xlu0 %1445
        %vm1447 = vcmask 277504
        %v1448 = vsel %vm1447, %v1440, %v1442
        %v1449 = vsel %vm1447, %v1442, %v1444
        %v1450 = vsel %vm1447, %v1444, %v1446
        %v1454 = vsel %vm1432, %v1448, 0.0
        %v1455 = vsel %vm1433, %v1449, 0.0
        %v1456 = vsel %vm1434, %v1450, 0.0
        %s1457 = scalar_lea.vmem %s3, 36
        %v1458 = vld [vmem:[%s1457] sm:$0xf]
        %s1459 = scalar_lea.vmem %s3, 48
        %v1460 = vld [vmem:[%s1459] sm:$0xf]
        %1464 = vrot.lane.b32.xlu0 %v1454, 96
        %v1465 = vpop.permute.xlu0 %1464
        %1466 = vrot.lane.b32.xlu0 %v1455, 96
        %v1467 = vpop.permute.xlu0 %1466
        %1468 = vrot.lane.b32.xlu0 %v1456, 96
        %v1469 = vpop.permute.xlu0 %1468
        %v1470 = vsel %vm572, %v1465, %v1467
        %v1471 = vsel %vm572, %v1467, %v1469
        %v1473 = vsel %vm440, %v1460, 0
        %v1475 = vsel %vm444, %v1470, 0
        %v1477 = vsel %vm444, %v1471, 0
        %1479 = vmatprep.subr.mxu0 0.0
        %1480 = vmatpush1.msra.mxu0 0.0
        %1481 = vmatprep.subr.mxu0 0.0
        %1482 = vmatpush1.msra.mxu0 0.0
        %1483 = vmatprep.subr.mxu0 0.0
        %1484 = vmatpush1.msra.mxu0 0.0
        %1485 = vmatprep.subr.mxu0 0.0
        %1486 = vmatpush1.msra.mxu0 0.0
        %1487 = vmatprep.subr.mxu0 0.0
        %1488 = vmatpush1.msra.mxu0 0.0
        %1489 = vmatprep.subr.mxu0 0.0
        %1490 = vmatpush1.msra.mxu0 0.0
        %1491 = vmatprep.subr.mxu0 0.0
        %1492 = vmatpush1.msra.mxu0 0.0
        %1493 = vmatprep.subr.mxu0 0.0
        %1494 = vmatpush1.msra.mxu0 0.0
        %1495 = vmatprep.subr.mxu0 0.0
        %1496 = vmatpush1.msra.mxu0 0.0
        %1497 = vmatprep.subr.mxu0 0.0
        %1498 = vmatpush1.msra.mxu0 0.0
        %1499 = vmatprep.subr.mxu0 0.0
        %1500 = vmatpush1.msra.mxu0 0.0
        %1501 = vmatprep.subr.mxu0 0.0
        %1502 = vmatpush1.msra.mxu0 0.0
        %1503 = vmatprep.subr.mxu0 0.0
        %1504 = vmatpush1.msra.mxu0 0.0
        %1505 = vmatprep.subr.mxu0 0.0
        %1506 = vmatpush1.msra.mxu0 0.0
        %1507 = vmatprep.subr.mxu0 0.0
        %1508 = vmatpush1.msra.mxu0 0.0
        %1509 = vmatprep.subr.mxu0 %v1477
        %1510 = vmatpush1.msra.mxu0 %v1475
        %1511 = vmatprep.subr.mxu0 0.0
        %1512 = vmatpush2.msra.mxu0 0.0
        %1513 = vmatprep.subr.mxu0 0.0
        %1514 = vmatpush2.msra.mxu0 0.0
        %1515 = vmatprep.subr.mxu0 0.0
        %1516 = vmatpush2.msra.mxu0 0.0
        %1517 = vmatprep.subr.mxu0 0.0
        %1518 = vmatpush2.msra.mxu0 0.0
        %1519 = vmatprep.subr.mxu0 0.0
        %1520 = vmatpush2.msra.mxu0 0.0
        %1521 = vmatprep.subr.mxu0 0.0
        %1522 = vmatpush2.msra.mxu0 0.0
        %1523 = vmatprep.subr.mxu0 0.0
        %1524 = vmatpush2.msra.mxu0 0.0
        %1525 = vmatprep.subr.mxu0 0.0
        %1526 = vmatpush2.msra.mxu0 0.0
        %1527 = vmatprep.subr.mxu0 0.0
        %1528 = vmatpush2.msra.mxu0 0.0
        %1529 = vmatprep.subr.mxu0 0.0
        %1530 = vmatpush2.msra.mxu0 0.0
        %1531 = vmatprep.subr.mxu0 0.0
        %1532 = vmatpush2.msra.mxu0 0.0
        %1533 = vmatprep.subr.mxu0 0.0
        %1534 = vmatpush2.msra.mxu0 0.0
        %1535 = vmatprep.subr.mxu0 0.0
        %1536 = vmatpush2.msra.mxu0 0.0
        %1537 = vmatprep.subr.mxu0 0.0
        %1538 = vmatpush2.msra.mxu0 0.0
        %1539 = vmatprep.subr.mxu0 0.0
        %1540 = vmatpush2.msra.mxu0 0.0
        %1541 = vmatprep.subr.mxu0 0.0
        %1542 = vmatpush2.msra.mxu0 0.0
        %1543 = vmatprep.mubr.f32.mxu0 0.0
        %1544 = vmatmul.mubr.f32.gmra.mxu0 %v1473
        %v1545 = vpop.f32.mrf.mxu0
        %v1546 = vadd.f32 0.0, %v1545
        %v1547 = vpop.f32.mrf.mxu0
        %v1548 = vadd.f32 0.0, %v1547
        %1549 = vdwg.mxu0
        %v1551 = vsel %vm440, %v1458, 0
        %v1553 = vsel %vm444, %v1454, 0
        %v1555 = vsel %vm444, %v1455, 0
        %1557 = vmatprep.subr.mxu0 0.0
        %1558 = vmatpush1.msra.mxu0 0.0
        %1559 = vmatprep.subr.mxu0 0.0
        %1560 = vmatpush1.msra.mxu0 0.0
        %1561 = vmatprep.subr.mxu0 0.0
        %1562 = vmatpush1.msra.mxu0 0.0
        %1563 = vmatprep.subr.mxu0 0.0
        %1564 = vmatpush1.msra.mxu0 0.0
        %1565 = vmatprep.subr.mxu0 0.0
        %1566 = vmatpush1.msra.mxu0 0.0
        %1567 = vmatprep.subr.mxu0 0.0
        %1568 = vmatpush1.msra.mxu0 0.0
        %1569 = vmatprep.subr.mxu0 0.0
        %1570 = vmatpush1.msra.mxu0 0.0
        %1571 = vmatprep.subr.mxu0 0.0
        %1572 = vmatpush1.msra.mxu0 0.0
        %1573 = vmatprep.subr.mxu0 0.0
        %1574 = vmatpush1.msra.mxu0 0.0
        %1575 = vmatprep.subr.mxu0 0.0
        %1576 = vmatpush1.msra.mxu0 0.0
        %1577 = vmatprep.subr.mxu0 0.0
        %1578 = vmatpush1.msra.mxu0 0.0
        %1579 = vmatprep.subr.mxu0 0.0
        %1580 = vmatpush1.msra.mxu0 0.0
        %1581 = vmatprep.subr.mxu0 0.0
        %1582 = vmatpush1.msra.mxu0 0.0
        %1583 = vmatprep.subr.mxu0 0.0
        %1584 = vmatpush1.msra.mxu0 0.0
        %1585 = vmatprep.subr.mxu0 0.0
        %1586 = vmatpush1.msra.mxu0 0.0
        %1587 = vmatprep.subr.mxu0 %v1555
        %1588 = vmatpush1.msra.mxu0 %v1553
        %1589 = vmatprep.subr.mxu0 0.0
        %1590 = vmatpush2.msra.mxu0 0.0
        %1591 = vmatprep.subr.mxu0 0.0
        %1592 = vmatpush2.msra.mxu0 0.0
        %1593 = vmatprep.subr.mxu0 0.0
        %1594 = vmatpush2.msra.mxu0 0.0
        %1595 = vmatprep.subr.mxu0 0.0
        %1596 = vmatpush2.msra.mxu0 0.0
        %1597 = vmatprep.subr.mxu0 0.0
        %1598 = vmatpush2.msra.mxu0 0.0
        %1599 = vmatprep.subr.mxu0 0.0
        %1600 = vmatpush2.msra.mxu0 0.0
        %1601 = vmatprep.subr.mxu0 0.0
        %1602 = vmatpush2.msra.mxu0 0.0
        %1603 = vmatprep.subr.mxu0 0.0
        %1604 = vmatpush2.msra.mxu0 0.0
        %1605 = vmatprep.subr.mxu0 0.0
        %1606 = vmatpush2.msra.mxu0 0.0
        %1607 = vmatprep.subr.mxu0 0.0
        %1608 = vmatpush2.msra.mxu0 0.0
        %1609 = vmatprep.subr.mxu0 0.0
        %1610 = vmatpush2.msra.mxu0 0.0
        %1611 = vmatprep.subr.mxu0 0.0
        %1612 = vmatpush2.msra.mxu0 0.0
        %1613 = vmatprep.subr.mxu0 0.0
        %1614 = vmatpush2.msra.mxu0 0.0
        %1615 = vmatprep.subr.mxu0 0.0
        %1616 = vmatpush2.msra.mxu0 0.0
        %1617 = vmatprep.subr.mxu0 0.0
        %1618 = vmatpush2.msra.mxu0 0.0
        %1619 = vmatprep.subr.mxu0 0.0
        %1620 = vmatpush2.msra.mxu0 0.0
        %1621 = vmatprep.mubr.f32.mxu0 0.0
        %1622 = vmatmul.mubr.f32.gmra.mxu0 %v1551
        %v1623 = vpop.f32.mrf.mxu0
        %v1624 = vadd.f32 %v1546, %v1623
        %v1625 = vpop.f32.mrf.mxu0
        %v1626 = vadd.f32 %v1548, %v1625
        %1627 = vdwg.mxu0
        %s1628 = scalar_lea.vmem %s3, 60
        %v1629 = vld [vmem:[%s1628] sm:$0xf]
        %1630 = vrot.lane.b32.xlu0 %v1454, 64
        %v1631 = vpop.permute.xlu0 %1630
        %1632 = vrot.lane.b32.xlu0 %v1455, 64
        %v1633 = vpop.permute.xlu0 %1632
        %1634 = vrot.lane.b32.xlu0 %v1456, 64
        %v1635 = vpop.permute.xlu0 %1634
        %vm1636 = vcmask 523264
        %v1637 = vsel %vm1636, %v1631, %v1633
        %v1638 = vsel %vm1636, %v1633, %v1635
        %v1640 = vsel %vm440, %v1629, 0
        %v1642 = vsel %vm444, %v1637, 0
        %v1644 = vsel %vm444, %v1638, 0
        %1646 = vmatprep.subr.mxu0 0.0
        %1647 = vmatpush1.msra.mxu0 0.0
        %1648 = vmatprep.subr.mxu0 0.0
        %1649 = vmatpush1.msra.mxu0 0.0
        %1650 = vmatprep.subr.mxu0 0.0
        %1651 = vmatpush1.msra.mxu0 0.0
        %1652 = vmatprep.subr.mxu0 0.0
        %1653 = vmatpush1.msra.mxu0 0.0
        %1654 = vmatprep.subr.mxu0 0.0
        %1655 = vmatpush1.msra.mxu0 0.0
        %1656 = vmatprep.subr.mxu0 0.0
        %1657 = vmatpush1.msra.mxu0 0.0
        %1658 = vmatprep.subr.mxu0 0.0
        %1659 = vmatpush1.msra.mxu0 0.0
        %1660 = vmatprep.subr.mxu0 0.0
        %1661 = vmatpush1.msra.mxu0 0.0
        %1662 = vmatprep.subr.mxu0 0.0
        %1663 = vmatpush1.msra.mxu0 0.0
        %1664 = vmatprep.subr.mxu0 0.0
        %1665 = vmatpush1.msra.mxu0 0.0
        %1666 = vmatprep.subr.mxu0 0.0
        %1667 = vmatpush1.msra.mxu0 0.0
        %1668 = vmatprep.subr.mxu0 0.0
        %1669 = vmatpush1.msra.mxu0 0.0
        %1670 = vmatprep.subr.mxu0 0.0
        %1671 = vmatpush1.msra.mxu0 0.0
        %1672 = vmatprep.subr.mxu0 0.0
        %1673 = vmatpush1.msra.mxu0 0.0
        %1674 = vmatprep.subr.mxu0 0.0
        %1675 = vmatpush1.msra.mxu0 0.0
        %1676 = vmatprep.subr.mxu0 %v1644
        %1677 = vmatpush1.msra.mxu0 %v1642
        %1678 = vmatprep.subr.mxu0 0.0
        %1679 = vmatpush2.msra.mxu0 0.0
        %1680 = vmatprep.subr.mxu0 0.0
        %1681 = vmatpush2.msra.mxu0 0.0
        %1682 = vmatprep.subr.mxu0 0.0
        %1683 = vmatpush2.msra.mxu0 0.0
        %1684 = vmatprep.subr.mxu0 0.0
        %1685 = vmatpush2.msra.mxu0 0.0
        %1686 = vmatprep.subr.mxu0 0.0
        %1687 = vmatpush2.msra.mxu0 0.0
        %1688 = vmatprep.subr.mxu0 0.0
        %1689 = vmatpush2.msra.mxu0 0.0
        %1690 = vmatprep.subr.mxu0 0.0
        %1691 = vmatpush2.msra.mxu0 0.0
        %1692 = vmatprep.subr.mxu0 0.0
        %1693 = vmatpush2.msra.mxu0 0.0
        %1694 = vmatprep.subr.mxu0 0.0
        %1695 = vmatpush2.msra.mxu0 0.0
        %1696 = vmatprep.subr.mxu0 0.0
        %1697 = vmatpush2.msra.mxu0 0.0
        %1698 = vmatprep.subr.mxu0 0.0
        %1699 = vmatpush2.msra.mxu0 0.0
        %1700 = vmatprep.subr.mxu0 0.0
        %1701 = vmatpush2.msra.mxu0 0.0
        %1702 = vmatprep.subr.mxu0 0.0
        %1703 = vmatpush2.msra.mxu0 0.0
        %1704 = vmatprep.subr.mxu0 0.0
        %1705 = vmatpush2.msra.mxu0 0.0
        %1706 = vmatprep.subr.mxu0 0.0
        %1707 = vmatpush2.msra.mxu0 0.0
        %1708 = vmatprep.subr.mxu0 0.0
        %1709 = vmatpush2.msra.mxu0 0.0
        %1710 = vmatprep.mubr.f32.mxu0 0.0
        %1711 = vmatmul.mubr.f32.gmra.mxu0 %v1640
        %v1712 = vpop.f32.mrf.mxu0
        %v1713 = vadd.f32 0.0, %v1712
        %v1714 = vpop.f32.mrf.mxu0
        %v1715 = vadd.f32 0.0, %v1714
        %1716 = vdwg.mxu0
        %v1717 = vadd.f32 %v1624, %v1713
        %v1718 = vadd.f32 %v1626, %v1715
        %v1719 = vld [vmem:[#allocation2] sm:$0xff]
        %v1720 = vld [vmem:[#allocation2 + $0x8] sm:$0xff]
        %s1721 = scalar_lea.vmem %s3, 40
        %v1722 = vld [vmem:[%s1721] sm:$0xf]
        %v1725 = vcombine.high %v1719, %v1719
        %1726 = vrot.lane.b32.xlu0 %v1719, 32
        %v1727 = vpop.permute.xlu0 %1726
        %1728 = vrot.lane.b32.xlu0 %v1725, 32
        %v1729 = vpop.permute.xlu0 %1728
        %1730 = vrot.lane.b32.xlu0 %v1720, 32
        %v1731 = vpop.permute.xlu0 %1730
        %vm1732 = vcmask 261120
        %v1733 = vsel %vm1732, %v1727, %v1729
        %v1734 = vsel %vm1732, %v1729, %v1731
        %v1736 = vsel %vm440, %v1722, 0
        %v1738 = vsel %vm444, %v1733, 0
        %v1740 = vsel %vm444, %v1734, 0
        %1742 = vmatprep.subr.mxu0 0.0
        %1743 = vmatpush1.msra.mxu0 0.0
        %1744 = vmatprep.subr.mxu0 0.0
        %1745 = vmatpush1.msra.mxu0 0.0
        %1746 = vmatprep.subr.mxu0 0.0
        %1747 = vmatpush1.msra.mxu0 0.0
        %1748 = vmatprep.subr.mxu0 0.0
        %1749 = vmatpush1.msra.mxu0 0.0
        %1750 = vmatprep.subr.mxu0 0.0
        %1751 = vmatpush1.msra.mxu0 0.0
        %1752 = vmatprep.subr.mxu0 0.0
        %1753 = vmatpush1.msra.mxu0 0.0
        %1754 = vmatprep.subr.mxu0 0.0
        %1755 = vmatpush1.msra.mxu0 0.0
        %1756 = vmatprep.subr.mxu0 0.0
        %1757 = vmatpush1.msra.mxu0 0.0
        %1758 = vmatprep.subr.mxu0 0.0
        %1759 = vmatpush1.msra.mxu0 0.0
        %1760 = vmatprep.subr.mxu0 0.0
        %1761 = vmatpush1.msra.mxu0 0.0
        %1762 = vmatprep.subr.mxu0 0.0
        %1763 = vmatpush1.msra.mxu0 0.0
        %1764 = vmatprep.subr.mxu0 0.0
        %1765 = vmatpush1.msra.mxu0 0.0
        %1766 = vmatprep.subr.mxu0 0.0
        %1767 = vmatpush1.msra.mxu0 0.0
        %1768 = vmatprep.subr.mxu0 0.0
        %1769 = vmatpush1.msra.mxu0 0.0
        %1770 = vmatprep.subr.mxu0 0.0
        %1771 = vmatpush1.msra.mxu0 0.0
        %1772 = vmatprep.subr.mxu0 %v1740
        %1773 = vmatpush1.msra.mxu0 %v1738
        %1774 = vmatprep.subr.mxu0 0.0
        %1775 = vmatpush2.msra.mxu0 0.0
        %1776 = vmatprep.subr.mxu0 0.0
        %1777 = vmatpush2.msra.mxu0 0.0
        %1778 = vmatprep.subr.mxu0 0.0
        %1779 = vmatpush2.msra.mxu0 0.0
        %1780 = vmatprep.subr.mxu0 0.0
        %1781 = vmatpush2.msra.mxu0 0.0
        %1782 = vmatprep.subr.mxu0 0.0
        %1783 = vmatpush2.msra.mxu0 0.0
        %1784 = vmatprep.subr.mxu0 0.0
        %1785 = vmatpush2.msra.mxu0 0.0
        %1786 = vmatprep.subr.mxu0 0.0
        %1787 = vmatpush2.msra.mxu0 0.0
        %1788 = vmatprep.subr.mxu0 0.0
        %1789 = vmatpush2.msra.mxu0 0.0
        %1790 = vmatprep.subr.mxu0 0.0
        %1791 = vmatpush2.msra.mxu0 0.0
        %1792 = vmatprep.subr.mxu0 0.0
        %1793 = vmatpush2.msra.mxu0 0.0
        %1794 = vmatprep.subr.mxu0 0.0
        %1795 = vmatpush2.msra.mxu0 0.0
        %1796 = vmatprep.subr.mxu0 0.0
        %1797 = vmatpush2.msra.mxu0 0.0
        %1798 = vmatprep.subr.mxu0 0.0
        %1799 = vmatpush2.msra.mxu0 0.0
        %1800 = vmatprep.subr.mxu0 0.0
        %1801 = vmatpush2.msra.mxu0 0.0
        %1802 = vmatprep.subr.mxu0 0.0
        %1803 = vmatpush2.msra.mxu0 0.0
        %1804 = vmatprep.subr.mxu0 0.0
        %1805 = vmatpush2.msra.mxu0 0.0
        %1806 = vmatprep.mubr.f32.mxu0 0.0
        %1807 = vmatmul.mubr.f32.gmra.mxu0 %v1736
        %v1808 = vpop.f32.mrf.mxu0
        %v1809 = vadd.f32 0.0, %v1808
        %v1810 = vpop.f32.mrf.mxu0
        %v1811 = vadd.f32 0.0, %v1810
        %1812 = vdwg.mxu0
        %v1813 = vadd.f32 %v1717, %v1809
        %v1814 = vadd.f32 %v1718, %v1811
        %s1815 = scalar_lea.vmem %s3, 52
        %v1816 = vld [vmem:[%s1815] sm:$0xf]
        %v1818 = vsel %vm440, %v1816, 0
        %v1820 = vsel %vm444, %v1725, 0
        %v1822 = vsel %vm444, %v1720, 0
        %1824 = vmatprep.subr.mxu0 0.0
        %1825 = vmatpush1.msra.mxu0 0.0
        %1826 = vmatprep.subr.mxu0 0.0
        %1827 = vmatpush1.msra.mxu0 0.0
        %1828 = vmatprep.subr.mxu0 0.0
        %1829 = vmatpush1.msra.mxu0 0.0
        %1830 = vmatprep.subr.mxu0 0.0
        %1831 = vmatpush1.msra.mxu0 0.0
        %1832 = vmatprep.subr.mxu0 0.0
        %1833 = vmatpush1.msra.mxu0 0.0
        %1834 = vmatprep.subr.mxu0 0.0
        %1835 = vmatpush1.msra.mxu0 0.0
        %1836 = vmatprep.subr.mxu0 0.0
        %1837 = vmatpush1.msra.mxu0 0.0
        %1838 = vmatprep.subr.mxu0 0.0
        %1839 = vmatpush1.msra.mxu0 0.0
        %1840 = vmatprep.subr.mxu0 0.0
        %1841 = vmatpush1.msra.mxu0 0.0
        %1842 = vmatprep.subr.mxu0 0.0
        %1843 = vmatpush1.msra.mxu0 0.0
        %1844 = vmatprep.subr.mxu0 0.0
        %1845 = vmatpush1.msra.mxu0 0.0
        %1846 = vmatprep.subr.mxu0 0.0
        %1847 = vmatpush1.msra.mxu0 0.0
        %1848 = vmatprep.subr.mxu0 0.0
        %1849 = vmatpush1.msra.mxu0 0.0
        %1850 = vmatprep.subr.mxu0 0.0
        %1851 = vmatpush1.msra.mxu0 0.0
        %1852 = vmatprep.subr.mxu0 0.0
        %1853 = vmatpush1.msra.mxu0 0.0
        %1854 = vmatprep.subr.mxu0 %v1822
        %1855 = vmatpush1.msra.mxu0 %v1820
        %1856 = vmatprep.subr.mxu0 0.0
        %1857 = vmatpush2.msra.mxu0 0.0
        %1858 = vmatprep.subr.mxu0 0.0
        %1859 = vmatpush2.msra.mxu0 0.0
        %1860 = vmatprep.subr.mxu0 0.0
        %1861 = vmatpush2.msra.mxu0 0.0
        %1862 = vmatprep.subr.mxu0 0.0
        %1863 = vmatpush2.msra.mxu0 0.0
        %1864 = vmatprep.subr.mxu0 0.0
        %1865 = vmatpush2.msra.mxu0 0.0
        %1866 = vmatprep.subr.mxu0 0.0
        %1867 = vmatpush2.msra.mxu0 0.0
        %1868 = vmatprep.subr.mxu0 0.0
        %1869 = vmatpush2.msra.mxu0 0.0
        %1870 = vmatprep.subr.mxu0 0.0
        %1871 = vmatpush2.msra.mxu0 0.0
        %1872 = vmatprep.subr.mxu0 0.0
        %1873 = vmatpush2.msra.mxu0 0.0
        %1874 = vmatprep.subr.mxu0 0.0
        %1875 = vmatpush2.msra.mxu0 0.0
        %1876 = vmatprep.subr.mxu0 0.0
        %1877 = vmatpush2.msra.mxu0 0.0
        %1878 = vmatprep.subr.mxu0 0.0
        %1879 = vmatpush2.msra.mxu0 0.0
        %1880 = vmatprep.subr.mxu0 0.0
        %1881 = vmatpush2.msra.mxu0 0.0
        %1882 = vmatprep.subr.mxu0 0.0
        %1883 = vmatpush2.msra.mxu0 0.0
        %1884 = vmatprep.subr.mxu0 0.0
        %1885 = vmatpush2.msra.mxu0 0.0
        %1886 = vmatprep.subr.mxu0 0.0
        %1887 = vmatpush2.msra.mxu0 0.0
        %1888 = vmatprep.mubr.f32.mxu0 0.0
        %1889 = vmatmul.mubr.f32.gmra.mxu0 %v1818
        %v1890 = vpop.f32.mrf.mxu0
        %v1891 = vadd.f32 0.0, %v1890
        %v1892 = vpop.f32.mrf.mxu0
        %v1893 = vadd.f32 0.0, %v1892
        %1894 = vdwg.mxu0
        %v1895 = vadd.f32 %v1813, %v1891
        %v1896 = vadd.f32 %v1814, %v1893
        %s1897 = scalar_lea.vmem %s3, 64
        %v1898 = vld [vmem:[%s1897] sm:$0xf]
        %v1899 = vcombine.high %v1720, %v1720
        %1900 = vrot.lane.b32.xlu0 %v1725, 96
        %v1901 = vpop.permute.xlu0 %1900
        %1902 = vrot.lane.b32.xlu0 %v1720, 96
        %v1903 = vpop.permute.xlu0 %1902
        %1904 = vrot.lane.b32.xlu0 %v1899, 96
        %v1905 = vpop.permute.xlu0 %1904
        %v1906 = vsel %vm572, %v1901, %v1903
        %v1907 = vsel %vm572, %v1903, %v1905
        %v1909 = vsel %vm440, %v1898, 0
        %v1911 = vsel %vm444, %v1906, 0
        %v1913 = vsel %vm444, %v1907, 0
        %1915 = vmatprep.subr.mxu0 0.0
        %1916 = vmatpush1.msra.mxu0 0.0
        %1917 = vmatprep.subr.mxu0 0.0
        %1918 = vmatpush1.msra.mxu0 0.0
        %1919 = vmatprep.subr.mxu0 0.0
        %1920 = vmatpush1.msra.mxu0 0.0
        %1921 = vmatprep.subr.mxu0 0.0
        %1922 = vmatpush1.msra.mxu0 0.0
        %1923 = vmatprep.subr.mxu0 0.0
        %1924 = vmatpush1.msra.mxu0 0.0
        %1925 = vmatprep.subr.mxu0 0.0
        %1926 = vmatpush1.msra.mxu0 0.0
        %1927 = vmatprep.subr.mxu0 0.0
        %1928 = vmatpush1.msra.mxu0 0.0
        %1929 = vmatprep.subr.mxu0 0.0
        %1930 = vmatpush1.msra.mxu0 0.0
        %1931 = vmatprep.subr.mxu0 0.0
        %1932 = vmatpush1.msra.mxu0 0.0
        %1933 = vmatprep.subr.mxu0 0.0
        %1934 = vmatpush1.msra.mxu0 0.0
        %1935 = vmatprep.subr.mxu0 0.0
        %1936 = vmatpush1.msra.mxu0 0.0
        %1937 = vmatprep.subr.mxu0 0.0
        %1938 = vmatpush1.msra.mxu0 0.0
        %1939 = vmatprep.subr.mxu0 0.0
        %1940 = vmatpush1.msra.mxu0 0.0
        %1941 = vmatprep.subr.mxu0 0.0
        %1942 = vmatpush1.msra.mxu0 0.0
        %1943 = vmatprep.subr.mxu0 0.0
        %1944 = vmatpush1.msra.mxu0 0.0
        %1945 = vmatprep.subr.mxu0 %v1913
        %1946 = vmatpush1.msra.mxu0 %v1911
        %1947 = vmatprep.subr.mxu0 0.0
        %1948 = vmatpush2.msra.mxu0 0.0
        %1949 = vmatprep.subr.mxu0 0.0
        %1950 = vmatpush2.msra.mxu0 0.0
        %1951 = vmatprep.subr.mxu0 0.0
        %1952 = vmatpush2.msra.mxu0 0.0
        %1953 = vmatprep.subr.mxu0 0.0
        %1954 = vmatpush2.msra.mxu0 0.0
        %1955 = vmatprep.subr.mxu0 0.0
        %1956 = vmatpush2.msra.mxu0 0.0
        %1957 = vmatprep.subr.mxu0 0.0
        %1958 = vmatpush2.msra.mxu0 0.0
        %1959 = vmatprep.subr.mxu0 0.0
        %1960 = vmatpush2.msra.mxu0 0.0
        %1961 = vmatprep.subr.mxu0 0.0
        %1962 = vmatpush2.msra.mxu0 0.0
        %1963 = vmatprep.subr.mxu0 0.0
        %1964 = vmatpush2.msra.mxu0 0.0
        %1965 = vmatprep.subr.mxu0 0.0
        %1966 = vmatpush2.msra.mxu0 0.0
        %1967 = vmatprep.subr.mxu0 0.0
        %1968 = vmatpush2.msra.mxu0 0.0
        %1969 = vmatprep.subr.mxu0 0.0
        %1970 = vmatpush2.msra.mxu0 0.0
        %1971 = vmatprep.subr.mxu0 0.0
        %1972 = vmatpush2.msra.mxu0 0.0
        %1973 = vmatprep.subr.mxu0 0.0
        %1974 = vmatpush2.msra.mxu0 0.0
        %1975 = vmatprep.subr.mxu0 0.0
        %1976 = vmatpush2.msra.mxu0 0.0
        %1977 = vmatprep.subr.mxu0 0.0
        %1978 = vmatpush2.msra.mxu0 0.0
        %1979 = vmatprep.mubr.f32.mxu0 0.0
        %1980 = vmatmul.mubr.f32.gmra.mxu0 %v1909
        %v1981 = vpop.f32.mrf.mxu0
        %v1982 = vadd.f32 0.0, %v1981
        %v1983 = vpop.f32.mrf.mxu0
        %v1984 = vadd.f32 0.0, %v1983
        %1985 = vdwg.mxu0
        %v1986 = vadd.f32 %v1895, %v1982
        %v1987 = vadd.f32 %v1896, %v1984
        %v1988 = vld [vmem:[#allocation2] sm:$0xff]
        %v1989 = vld [vmem:[#allocation2 + $0x8] sm:$0xff]
        %vm1990 = vcmp.lt.s32.totalorder %v425, 14
        %vm1991 = vcmp.lt.s32.totalorder %v426, 14
        %vm1992 = vcmp.lt.s32.totalorder %v427, 14
        %v1993 = vsel %vm1990, 1, 0
        %v1994 = vsel %vm1991, 1, 0
        %v1995 = vsel %vm1992, 1, 0
        %vm1996 = vcmp.eq.s32.totalorder %v1993, 1
        %vm1997 = vcmp.eq.s32.totalorder %v1994, 1
        %vm1998 = vcmp.eq.s32.totalorder %v1995, 1
        %v2001 = vcombine.high %v1988, %v1988
        %v2002 = vcombine.high %v1989, %v1989
        %2003 = vrot.lane.b32.xlu0 %v1988, 30
        %v2004 = vpop.permute.xlu0 %2003
        %2005 = vrot.lane.b32.xlu0 %v2001, 30
        %v2006 = vpop.permute.xlu0 %2005
        %2007 = vrot.lane.b32.xlu0 %v1989, 30
        %v2008 = vpop.permute.xlu0 %2007
        %2009 = vrot.lane.b32.xlu0 %v2002, 30
        %v2010 = vpop.permute.xlu0 %2009
        %vm2011 = vcmask 244736
        %v2012 = vsel %vm2011, %v2004, %v2006
        %v2013 = vsel %vm2011, %v2006, %v2008
        %v2014 = vsel %vm2011, %v2008, %v2010
        %v2018 = vsel %vm1996, %v2012, 0.0
        %v2019 = vsel %vm1997, %v2013, 0.0
        %v2020 = vsel %vm1998, %v2014, 0.0
        %s2021 = scalar_lea.vmem %s3, 44
        %v2022 = vld [vmem:[%s2021] sm:$0xf]
        %v2024 = vsel %vm440, %v2022, 0
        %v2027 = vsel %vm444, %v2018, 0
        %v2030 = vsel %vm444, %v2019, 0
        %2032 = vmatprep.subr.mxu0 0.0
        %2033 = vmatpush1.msra.mxu0 0.0
        %2034 = vmatprep.subr.mxu0 0.0
        %2035 = vmatpush1.msra.mxu0 0.0
        %2036 = vmatprep.subr.mxu0 0.0
        %2037 = vmatpush1.msra.mxu0 0.0
        %2038 = vmatprep.subr.mxu0 0.0
        %2039 = vmatpush1.msra.mxu0 0.0
        %2040 = vmatprep.subr.mxu0 0.0
        %2041 = vmatpush1.msra.mxu0 0.0
        %2042 = vmatprep.subr.mxu0 0.0
        %2043 = vmatpush1.msra.mxu0 0.0
        %2044 = vmatprep.subr.mxu0 0.0
        %2045 = vmatpush1.msra.mxu0 0.0
        %2046 = vmatprep.subr.mxu0 0.0
        %2047 = vmatpush1.msra.mxu0 0.0
        %2048 = vmatprep.subr.mxu0 0.0
        %2049 = vmatpush1.msra.mxu0 0.0
        %2050 = vmatprep.subr.mxu0 0.0
        %2051 = vmatpush1.msra.mxu0 0.0
        %2052 = vmatprep.subr.mxu0 0.0
        %2053 = vmatpush1.msra.mxu0 0.0
        %2054 = vmatprep.subr.mxu0 0.0
        %2055 = vmatpush1.msra.mxu0 0.0
        %2056 = vmatprep.subr.mxu0 0.0
        %2057 = vmatpush1.msra.mxu0 0.0
        %2058 = vmatprep.subr.mxu0 0.0
        %2059 = vmatpush1.msra.mxu0 0.0
        %2060 = vmatprep.subr.mxu0 0.0
        %2061 = vmatpush1.msra.mxu0 0.0
        %2062 = vmatprep.subr.mxu0 %v2030
        %2063 = vmatpush1.msra.mxu0 %v2027
        %2064 = vmatprep.subr.mxu0 0.0
        %2065 = vmatpush2.msra.mxu0 0.0
        %2066 = vmatprep.subr.mxu0 0.0
        %2067 = vmatpush2.msra.mxu0 0.0
        %2068 = vmatprep.subr.mxu0 0.0
        %2069 = vmatpush2.msra.mxu0 0.0
        %2070 = vmatprep.subr.mxu0 0.0
        %2071 = vmatpush2.msra.mxu0 0.0
        %2072 = vmatprep.subr.mxu0 0.0
        %2073 = vmatpush2.msra.mxu0 0.0
        %2074 = vmatprep.subr.mxu0 0.0
        %2075 = vmatpush2.msra.mxu0 0.0
        %2076 = vmatprep.subr.mxu0 0.0
        %2077 = vmatpush2.msra.mxu0 0.0
        %2078 = vmatprep.subr.mxu0 0.0
        %2079 = vmatpush2.msra.mxu0 0.0
        %2080 = vmatprep.subr.mxu0 0.0
        %2081 = vmatpush2.msra.mxu0 0.0
        %2082 = vmatprep.subr.mxu0 0.0
        %2083 = vmatpush2.msra.mxu0 0.0
        %2084 = vmatprep.subr.mxu0 0.0
        %2085 = vmatpush2.msra.mxu0 0.0
        %2086 = vmatprep.subr.mxu0 0.0
        %2087 = vmatpush2.msra.mxu0 0.0
        %2088 = vmatprep.subr.mxu0 0.0
        %2089 = vmatpush2.msra.mxu0 0.0
        %2090 = vmatprep.subr.mxu0 0.0
        %2091 = vmatpush2.msra.mxu0 0.0
        %2092 = vmatprep.subr.mxu0 0.0
        %2093 = vmatpush2.msra.mxu0 0.0
        %2094 = vmatprep.subr.mxu0 0.0
        %2095 = vmatpush2.msra.mxu0 0.0
        %2096 = vmatprep.mubr.f32.mxu0 0.0
        %2097 = vmatmul.mubr.f32.gmra.mxu0 %v2024
        %v2098 = vpop.f32.mrf.mxu0
        %v2099 = vadd.f32 0.0, %v2098
        %v2100 = vpop.f32.mrf.mxu0
        %v2101 = vadd.f32 0.0, %v2100
        %2102 = vdwg.mxu0
        %v2103 = vadd.f32 %v1986, %v2099
        %v2104 = vadd.f32 %v1987, %v2101
        %s2105 = scalar_lea.vmem %s3, 56
        %v2106 = vld [vmem:[%s2105] sm:$0xf]
        %2108 = vrot.lane.b32.xlu0 %v2018, 96
        %v2109 = vpop.permute.xlu0 %2108
        %2110 = vrot.lane.b32.xlu0 %v2019, 96
        %v2111 = vpop.permute.xlu0 %2110
        %2112 = vrot.lane.b32.xlu0 %v2020, 96
        %v2113 = vpop.permute.xlu0 %2112
        %v2114 = vsel %vm572, %v2109, %v2111
        %v2115 = vsel %vm572, %v2111, %v2113
        %v2117 = vsel %vm440, %v2106, 0
        %v2119 = vsel %vm444, %v2114, 0
        %v2121 = vsel %vm444, %v2115, 0
        %2123 = vmatprep.subr.mxu0 0.0
        %2124 = vmatpush1.msra.mxu0 0.0
        %2125 = vmatprep.subr.mxu0 0.0
        %2126 = vmatpush1.msra.mxu0 0.0
        %2127 = vmatprep.subr.mxu0 0.0
        %2128 = vmatpush1.msra.mxu0 0.0
        %2129 = vmatprep.subr.mxu0 0.0
        %2130 = vmatpush1.msra.mxu0 0.0
        %2131 = vmatprep.subr.mxu0 0.0
        %2132 = vmatpush1.msra.mxu0 0.0
        %2133 = vmatprep.subr.mxu0 0.0
        %2134 = vmatpush1.msra.mxu0 0.0
        %2135 = vmatprep.subr.mxu0 0.0
        %2136 = vmatpush1.msra.mxu0 0.0
        %2137 = vmatprep.subr.mxu0 0.0
        %2138 = vmatpush1.msra.mxu0 0.0
        %2139 = vmatprep.subr.mxu0 0.0
        %2140 = vmatpush1.msra.mxu0 0.0
        %2141 = vmatprep.subr.mxu0 0.0
        %2142 = vmatpush1.msra.mxu0 0.0
        %2143 = vmatprep.subr.mxu0 0.0
        %2144 = vmatpush1.msra.mxu0 0.0
        %2145 = vmatprep.subr.mxu0 0.0
        %2146 = vmatpush1.msra.mxu0 0.0
        %2147 = vmatprep.subr.mxu0 0.0
        %2148 = vmatpush1.msra.mxu0 0.0
        %2149 = vmatprep.subr.mxu0 0.0
        %2150 = vmatpush1.msra.mxu0 0.0
        %2151 = vmatprep.subr.mxu0 0.0
        %2152 = vmatpush1.msra.mxu0 0.0
        %2153 = vmatprep.subr.mxu0 %v2121
        %2154 = vmatpush1.msra.mxu0 %v2119
        %2155 = vmatprep.subr.mxu0 0.0
        %2156 = vmatpush2.msra.mxu0 0.0
        %2157 = vmatprep.subr.mxu0 0.0
        %2158 = vmatpush2.msra.mxu0 0.0
        %2159 = vmatprep.subr.mxu0 0.0
        %2160 = vmatpush2.msra.mxu0 0.0
        %2161 = vmatprep.subr.mxu0 0.0
        %2162 = vmatpush2.msra.mxu0 0.0
        %2163 = vmatprep.subr.mxu0 0.0
        %2164 = vmatpush2.msra.mxu0 0.0
        %2165 = vmatprep.subr.mxu0 0.0
        %2166 = vmatpush2.msra.mxu0 0.0
        %2167 = vmatprep.subr.mxu0 0.0
        %2168 = vmatpush2.msra.mxu0 0.0
        %2169 = vmatprep.subr.mxu0 0.0
        %2170 = vmatpush2.msra.mxu0 0.0
        %2171 = vmatprep.subr.mxu0 0.0
        %2172 = vmatpush2.msra.mxu0 0.0
        %2173 = vmatprep.subr.mxu0 0.0
        %2174 = vmatpush2.msra.mxu0 0.0
        %2175 = vmatprep.subr.mxu0 0.0
        %2176 = vmatpush2.msra.mxu0 0.0
        %2177 = vmatprep.subr.mxu0 0.0
        %2178 = vmatpush2.msra.mxu0 0.0
        %2179 = vmatprep.subr.mxu0 0.0
        %2180 = vmatpush2.msra.mxu0 0.0
        %2181 = vmatprep.subr.mxu0 0.0
        %2182 = vmatpush2.msra.mxu0 0.0
        %2183 = vmatprep.subr.mxu0 0.0
        %2184 = vmatpush2.msra.mxu0 0.0
        %2185 = vmatprep.subr.mxu0 0.0
        %2186 = vmatpush2.msra.mxu0 0.0
        %2187 = vmatprep.mubr.f32.mxu0 0.0
        %2188 = vmatmul.mubr.f32.gmra.mxu0 %v2117
        %v2189 = vpop.f32.mrf.mxu0
        %v2190 = vadd.f32 0.0, %v2189
        %v2191 = vpop.f32.mrf.mxu0
        %v2192 = vadd.f32 0.0, %v2191
        %2193 = vdwg.mxu0
        %v2194 = vadd.f32 %v2103, %v2190
        %v2195 = vadd.f32 %v2104, %v2192
        %s2196 = scalar_lea.vmem %s3, 68
        %v2197 = vld [vmem:[%s2196] sm:$0xf]
        %2198 = vrot.lane.b32.xlu0 %v2018, 64
        %v2199 = vpop.permute.xlu0 %2198
        %2200 = vrot.lane.b32.xlu0 %v2019, 64
        %v2201 = vpop.permute.xlu0 %2200
        %2202 = vrot.lane.b32.xlu0 %v2020, 64
        %v2203 = vpop.permute.xlu0 %2202
        %v2204 = vsel %vm1636, %v2199, %v2201
        %v2205 = vsel %vm1636, %v2201, %v2203
        %v2207 = vsel %vm440, %v2197, 0
        %v2209 = vsel %vm444, %v2204, 0
        %v2211 = vsel %vm444, %v2205, 0
        %2213 = vmatprep.subr.mxu0 0.0
        %2214 = vmatpush1.msra.mxu0 0.0
        %2215 = vmatprep.subr.mxu0 0.0
        %2216 = vmatpush1.msra.mxu0 0.0
        %2217 = vmatprep.subr.mxu0 0.0
        %2218 = vmatpush1.msra.mxu0 0.0
        %2219 = vmatprep.subr.mxu0 0.0
        %2220 = vmatpush1.msra.mxu0 0.0
        %2221 = vmatprep.subr.mxu0 0.0
        %2222 = vmatpush1.msra.mxu0 0.0
        %2223 = vmatprep.subr.mxu0 0.0
        %2224 = vmatpush1.msra.mxu0 0.0
        %2225 = vmatprep.subr.mxu0 0.0
        %2226 = vmatpush1.msra.mxu0 0.0
        %2227 = vmatprep.subr.mxu0 0.0
        %2228 = vmatpush1.msra.mxu0 0.0
        %2229 = vmatprep.subr.mxu0 0.0
        %2230 = vmatpush1.msra.mxu0 0.0
        %2231 = vmatprep.subr.mxu0 0.0
        %2232 = vmatpush1.msra.mxu0 0.0
        %2233 = vmatprep.subr.mxu0 0.0
        %2234 = vmatpush1.msra.mxu0 0.0
        %2235 = vmatprep.subr.mxu0 0.0
        %2236 = vmatpush1.msra.mxu0 0.0
        %2237 = vmatprep.subr.mxu0 0.0
        %2238 = vmatpush1.msra.mxu0 0.0
        %2239 = vmatprep.subr.mxu0 0.0
        %2240 = vmatpush1.msra.mxu0 0.0
        %2241 = vmatprep.subr.mxu0 0.0
        %2242 = vmatpush1.msra.mxu0 0.0
        %2243 = vmatprep.subr.mxu0 %v2211
        %2244 = vmatpush1.msra.mxu0 %v2209
        %2245 = vmatprep.subr.mxu0 0.0
        %2246 = vmatpush2.msra.mxu0 0.0
        %2247 = vmatprep.subr.mxu0 0.0
        %2248 = vmatpush2.msra.mxu0 0.0
        %2249 = vmatprep.subr.mxu0 0.0
        %2250 = vmatpush2.msra.mxu0 0.0
        %2251 = vmatprep.subr.mxu0 0.0
        %2252 = vmatpush2.msra.mxu0 0.0
        %2253 = vmatprep.subr.mxu0 0.0
        %2254 = vmatpush2.msra.mxu0 0.0
        %2255 = vmatprep.subr.mxu0 0.0
        %2256 = vmatpush2.msra.mxu0 0.0
        %2257 = vmatprep.subr.mxu0 0.0
        %2258 = vmatpush2.msra.mxu0 0.0
        %2259 = vmatprep.subr.mxu0 0.0
        %2260 = vmatpush2.msra.mxu0 0.0
        %2261 = vmatprep.subr.mxu0 0.0
        %2262 = vmatpush2.msra.mxu0 0.0
        %2263 = vmatprep.subr.mxu0 0.0
        %2264 = vmatpush2.msra.mxu0 0.0
        %2265 = vmatprep.subr.mxu0 0.0
        %2266 = vmatpush2.msra.mxu0 0.0
        %2267 = vmatprep.subr.mxu0 0.0
        %2268 = vmatpush2.msra.mxu0 0.0
        %2269 = vmatprep.subr.mxu0 0.0
        %2270 = vmatpush2.msra.mxu0 0.0
        %2271 = vmatprep.subr.mxu0 0.0
        %2272 = vmatpush2.msra.mxu0 0.0
        %2273 = vmatprep.subr.mxu0 0.0
        %2274 = vmatpush2.msra.mxu0 0.0
        %2275 = vmatprep.subr.mxu0 0.0
        %2276 = vmatpush2.msra.mxu0 0.0
        %2277 = vmatprep.mubr.f32.mxu0 0.0
        %2278 = vmatmul.mubr.f32.gmra.mxu0 %v2207
        %v2279 = vpop.f32.mrf.mxu0
        %v2280 = vadd.f32 0.0, %v2279
        %v2281 = vpop.f32.mrf.mxu0
        %v2282 = vadd.f32 0.0, %v2281
        %2283 = vdwg.mxu0
        %v2284 = vadd.f32 %v2194, %v2280
        %v2285 = vadd.f32 %v2195, %v2282
        %s2286 = scalar_lea.vmem %s4, 4
        %v2287 = vld [vmem:[%s2286] sm:$0xf]
        %2289 = vset.pattern.permute.xlu0 0
        %2290 = vperm.xlu0 %2289, %v2287
        %v2291 = vpop.permute.xlu0 %2290
        %v2293 = vadd.f32 %v2284, %v2291
        %v2294 = vadd.f32 %v2285, %v2291
        %v2295 = vmax.f32 %v2293, 0.0
        %v2296 = vmax.f32 %v2294, 0.0
        %v2297 = vsel %vm444, %v2295, -inf
        %v2298 = vsel %vm444, %v2296, -inf
        %v2299 = vmax.f32 %v2297, %v2298
        %2300 = vmax.xlane.f32.xlu0 %v2299
        %v2301 = vpop.xlane.xlu0 %2300
        %v2302 = vld [vmem:[%s5] sm:$0xf]
        %s2303 = scalar_lea.vmem %s5, 4
        %v2304 = vld [vmem:[%s2303] sm:$0xf]
        %v2306 = vsel %vm440, %v2304, 0
        %v2309 = vsel %vm444, %v2301, 0
        %2311 = vmatprep.subr.mxu0 0.0
        %2312 = vmatpush1.msra.mxu0 0.0
        %2313 = vmatprep.subr.mxu0 0.0
        %2314 = vmatpush1.msra.mxu0 0.0
        %2315 = vmatprep.subr.mxu0 0.0
        %2316 = vmatpush1.msra.mxu0 0.0
        %2317 = vmatprep.subr.mxu0 0.0
        %2318 = vmatpush1.msra.mxu0 0.0
        %2319 = vmatprep.subr.mxu0 0.0
        %2320 = vmatpush1.msra.mxu0 0.0
        %2321 = vmatprep.subr.mxu0 0.0
        %2322 = vmatpush1.msra.mxu0 0.0
        %2323 = vmatprep.subr.mxu0 0.0
        %2324 = vmatpush1.msra.mxu0 0.0
        %2325 = vmatprep.subr.mxu0 0.0
        %2326 = vmatpush1.msra.mxu0 0.0
        %2327 = vmatprep.subr.mxu0 0.0
        %2328 = vmatpush1.msra.mxu0 0.0
        %2329 = vmatprep.subr.mxu0 0.0
        %2330 = vmatpush1.msra.mxu0 0.0
        %2331 = vmatprep.subr.mxu0 0.0
        %2332 = vmatpush1.msra.mxu0 0.0
        %2333 = vmatprep.subr.mxu0 0.0
        %2334 = vmatpush1.msra.mxu0 0.0
        %2335 = vmatprep.subr.mxu0 0.0
        %2336 = vmatpush1.msra.mxu0 0.0
        %2337 = vmatprep.subr.mxu0 0.0
        %2338 = vmatpush1.msra.mxu0 0.0
        %2339 = vmatprep.subr.mxu0 0.0
        %2340 = vmatpush1.msra.mxu0 0.0
        %2341 = vmatprep.subr.mxu0 0.0
        %2342 = vmatpush1.msra.mxu0 %v2309
        %2343 = vmatprep.subr.mxu0 0.0
        %2344 = vmatpush2.msra.mxu0 0.0
        %2345 = vmatprep.subr.mxu0 0.0
        %2346 = vmatpush2.msra.mxu0 0.0
        %2347 = vmatprep.subr.mxu0 0.0
        %2348 = vmatpush2.msra.mxu0 0.0
        %2349 = vmatprep.subr.mxu0 0.0
        %2350 = vmatpush2.msra.mxu0 0.0
        %2351 = vmatprep.subr.mxu0 0.0
        %2352 = vmatpush2.msra.mxu0 0.0
        %2353 = vmatprep.subr.mxu0 0.0
        %2354 = vmatpush2.msra.mxu0 0.0
        %2355 = vmatprep.subr.mxu0 0.0
        %2356 = vmatpush2.msra.mxu0 0.0
        %2357 = vmatprep.subr.mxu0 0.0
        %2358 = vmatpush2.msra.mxu0 0.0
        %2359 = vmatprep.subr.mxu0 0.0
        %2360 = vmatpush2.msra.mxu0 0.0
        %2361 = vmatprep.subr.mxu0 0.0
        %2362 = vmatpush2.msra.mxu0 0.0
        %2363 = vmatprep.subr.mxu0 0.0
        %2364 = vmatpush2.msra.mxu0 0.0
        %2365 = vmatprep.subr.mxu0 0.0
        %2366 = vmatpush2.msra.mxu0 0.0
        %2367 = vmatprep.subr.mxu0 0.0
        %2368 = vmatpush2.msra.mxu0 0.0
        %2369 = vmatprep.subr.mxu0 0.0
        %2370 = vmatpush2.msra.mxu0 0.0
        %2371 = vmatprep.subr.mxu0 0.0
        %2372 = vmatpush2.msra.mxu0 0.0
        %2373 = vmatprep.subr.mxu0 0.0
        %2374 = vmatpush2.msra.mxu0 0.0
        %2375 = vmatprep.mubr.f32.mxu0 0.0
        %2376 = vmatmul.mubr.f32.gmra.mxu0 %v2306
        %v2377 = vpop.f32.mrf.mxu0
        %v2378 = vadd.f32 0.0, %v2377
        %v2379 = vpop.f32.mrf.mxu0
        %2380 = vdwg.mxu0
        %v2382 = vsel %vm440, %v2302, 0
        %v2385 = vsel %vm444, %v1420, 0
        %2387 = vmatprep.subr.mxu0 0.0
        %2388 = vmatpush1.msra.mxu0 0.0
        %2389 = vmatprep.subr.mxu0 0.0
        %2390 = vmatpush1.msra.mxu0 0.0
        %2391 = vmatprep.subr.mxu0 0.0
        %2392 = vmatpush1.msra.mxu0 0.0
        %2393 = vmatprep.subr.mxu0 0.0
        %2394 = vmatpush1.msra.mxu0 0.0
        %2395 = vmatprep.subr.mxu0 0.0
        %2396 = vmatpush1.msra.mxu0 0.0
        %2397 = vmatprep.subr.mxu0 0.0
        %2398 = vmatpush1.msra.mxu0 0.0
        %2399 = vmatprep.subr.mxu0 0.0
        %2400 = vmatpush1.msra.mxu0 0.0
        %2401 = vmatprep.subr.mxu0 0.0
        %2402 = vmatpush1.msra.mxu0 0.0
        %2403 = vmatprep.subr.mxu0 0.0
        %2404 = vmatpush1.msra.mxu0 0.0
        %2405 = vmatprep.subr.mxu0 0.0
        %2406 = vmatpush1.msra.mxu0 0.0
        %2407 = vmatprep.subr.mxu0 0.0
        %2408 = vmatpush1.msra.mxu0 0.0
        %2409 = vmatprep.subr.mxu0 0.0
        %2410 = vmatpush1.msra.mxu0 0.0
        %2411 = vmatprep.subr.mxu0 0.0
        %2412 = vmatpush1.msra.mxu0 0.0
        %2413 = vmatprep.subr.mxu0 0.0
        %2414 = vmatpush1.msra.mxu0 0.0
        %2415 = vmatprep.subr.mxu0 0.0
        %2416 = vmatpush1.msra.mxu0 0.0
        %2417 = vmatprep.subr.mxu0 0.0
        %2418 = vmatpush1.msra.mxu0 %v2385
        %2419 = vmatprep.subr.mxu0 0.0
        %2420 = vmatpush2.msra.mxu0 0.0
        %2421 = vmatprep.subr.mxu0 0.0
        %2422 = vmatpush2.msra.mxu0 0.0
        %2423 = vmatprep.subr.mxu0 0.0
        %2424 = vmatpush2.msra.mxu0 0.0
        %2425 = vmatprep.subr.mxu0 0.0
        %2426 = vmatpush2.msra.mxu0 0.0
        %2427 = vmatprep.subr.mxu0 0.0
        %2428 = vmatpush2.msra.mxu0 0.0
        %2429 = vmatprep.subr.mxu0 0.0
        %2430 = vmatpush2.msra.mxu0 0.0
        %2431 = vmatprep.subr.mxu0 0.0
        %2432 = vmatpush2.msra.mxu0 0.0
        %2433 = vmatprep.subr.mxu0 0.0
        %2434 = vmatpush2.msra.mxu0 0.0
        %2435 = vmatprep.subr.mxu0 0.0
        %2436 = vmatpush2.msra.mxu0 0.0
        %2437 = vmatprep.subr.mxu0 0.0
        %2438 = vmatpush2.msra.mxu0 0.0
        %2439 = vmatprep.subr.mxu0 0.0
        %2440 = vmatpush2.msra.mxu0 0.0
        %2441 = vmatprep.subr.mxu0 0.0
        %2442 = vmatpush2.msra.mxu0 0.0
        %2443 = vmatprep.subr.mxu0 0.0
        %2444 = vmatpush2.msra.mxu0 0.0
        %2445 = vmatprep.subr.mxu0 0.0
        %2446 = vmatpush2.msra.mxu0 0.0
        %2447 = vmatprep.subr.mxu0 0.0
        %2448 = vmatpush2.msra.mxu0 0.0
        %2449 = vmatprep.subr.mxu0 0.0
        %2450 = vmatpush2.msra.mxu0 0.0
        %2451 = vmatprep.mubr.f32.mxu0 0.0
        %2452 = vmatmul.mubr.f32.gmra.mxu0 %v2382
        %v2453 = vpop.f32.mrf.mxu0
        %v2454 = vadd.f32 %v2378, %v2453
        %v2455 = vpop.f32.mrf.mxu0
        %2456 = vdwg.mxu0
        %v2457 = vmax.f32 %v2454, 0.0
        %v2458 = vld [vmem:[%s6] sm:$0xff]
        %v2460 = vsel %vm440, %v2458, 0
        %v2463 = vsel %vm444, %v2457, 0
        %2465 = vmatprep.subr.mxu0 0.0
        %2466 = vmatpush1.msra.mxu0 0.0
        %2467 = vmatprep.subr.mxu0 0.0
        %2468 = vmatpush1.msra.mxu0 0.0
        %2469 = vmatprep.subr.mxu0 0.0
        %2470 = vmatpush1.msra.mxu0 0.0
        %2471 = vmatprep.subr.mxu0 0.0
        %2472 = vmatpush1.msra.mxu0 0.0
        %2473 = vmatprep.subr.mxu0 0.0
        %2474 = vmatpush1.msra.mxu0 0.0
        %2475 = vmatprep.subr.mxu0 0.0
        %2476 = vmatpush1.msra.mxu0 0.0
        %2477 = vmatprep.subr.mxu0 0.0
        %2478 = vmatpush1.msra.mxu0 0.0
        %2479 = vmatprep.subr.mxu0 0.0
        %2480 = vmatpush1.msra.mxu0 0.0
        %2481 = vmatprep.subr.mxu0 0.0
        %2482 = vmatpush1.msra.mxu0 0.0
        %2483 = vmatprep.subr.mxu0 0.0
        %2484 = vmatpush1.msra.mxu0 0.0
        %2485 = vmatprep.subr.mxu0 0.0
        %2486 = vmatpush1.msra.mxu0 0.0
        %2487 = vmatprep.subr.mxu0 0.0
        %2488 = vmatpush1.msra.mxu0 0.0
        %2489 = vmatprep.subr.mxu0 0.0
        %2490 = vmatpush1.msra.mxu0 0.0
        %2491 = vmatprep.subr.mxu0 0.0
        %2492 = vmatpush1.msra.mxu0 0.0
        %2493 = vmatprep.subr.mxu0 0.0
        %2494 = vmatpush1.msra.mxu0 0.0
        %2495 = vmatprep.subr.mxu0 0.0
        %2496 = vmatpush1.msra.mxu0 %v2463
        %2497 = vmatprep.subr.mxu0 0.0
        %2498 = vmatpush2.msra.mxu0 0.0
        %2499 = vmatprep.subr.mxu0 0.0
        %2500 = vmatpush2.msra.mxu0 0.0
        %2501 = vmatprep.subr.mxu0 0.0
        %2502 = vmatpush2.msra.mxu0 0.0
        %2503 = vmatprep.subr.mxu0 0.0
        %2504 = vmatpush2.msra.mxu0 0.0
        %2505 = vmatprep.subr.mxu0 0.0
        %2506 = vmatpush2.msra.mxu0 0.0
        %2507 = vmatprep.subr.mxu0 0.0
        %2508 = vmatpush2.msra.mxu0 0.0
        %2509 = vmatprep.subr.mxu0 0.0
        %2510 = vmatpush2.msra.mxu0 0.0
        %2511 = vmatprep.subr.mxu0 0.0
        %2512 = vmatpush2.msra.mxu0 0.0
        %2513 = vmatprep.subr.mxu0 0.0
        %2514 = vmatpush2.msra.mxu0 0.0
        %2515 = vmatprep.subr.mxu0 0.0
        %2516 = vmatpush2.msra.mxu0 0.0
        %2517 = vmatprep.subr.mxu0 0.0
        %2518 = vmatpush2.msra.mxu0 0.0
        %2519 = vmatprep.subr.mxu0 0.0
        %2520 = vmatpush2.msra.mxu0 0.0
        %2521 = vmatprep.subr.mxu0 0.0
        %2522 = vmatpush2.msra.mxu0 0.0
        %2523 = vmatprep.subr.mxu0 0.0
        %2524 = vmatpush2.msra.mxu0 0.0
        %2525 = vmatprep.subr.mxu0 0.0
        %2526 = vmatpush2.msra.mxu0 0.0
        %2527 = vmatprep.subr.mxu0 0.0
        %2528 = vmatpush2.msra.mxu0 0.0
        %2529 = vmatprep.mubr.f32.mxu0 0.0
        %2530 = vmatmul.mubr.f32.gmra.mxu0 %v2460
        %v2531 = vpop.f32.mrf.mxu0
        %v2532 = vadd.f32 0.0, %v2531
        %v2533 = vpop.f32.mrf.mxu0
        %2534 = vdwg.mxu0
        %v2535 = vxor.u32 %v2532, 2147483648
        %v2536 = vmul.f32 %v2535, 1.442695
        %v2537 = vpow.pop %v2536
        %v2538 = vadd.f32 %v2537, 1.0
        %v2539 = vrcp.pop %v2538
        %v2540 = vmul.f32 1.0, %v2539
        %v2541 = vld [vmem:[%s7] sm:$0xff]
        %2543 = vset.pattern.permute.xlu0 0
        %2544 = vperm.xlu0 %2543, %v2540
        %v2545 = vpop.permute.xlu0 %2544
        %v2547 = vsel %vm430, %v2545, 0.0
        %v2549 = vsel %vm440, %v2541, 0
        %v2552 = vsel %vm444, %v2547, 0
        %2554 = vmatprep.subr.mxu0 0.0
        %2555 = vmatpush1.msra.mxu0 0.0
        %2556 = vmatprep.subr.mxu0 0.0
        %2557 = vmatpush1.msra.mxu0 0.0
        %2558 = vmatprep.subr.mxu0 0.0
        %2559 = vmatpush1.msra.mxu0 0.0
        %2560 = vmatprep.subr.mxu0 0.0
        %2561 = vmatpush1.msra.mxu0 0.0
        %2562 = vmatprep.subr.mxu0 0.0
        %2563 = vmatpush1.msra.mxu0 0.0
        %2564 = vmatprep.subr.mxu0 0.0
        %2565 = vmatpush1.msra.mxu0 0.0
        %2566 = vmatprep.subr.mxu0 0.0
        %2567 = vmatpush1.msra.mxu0 0.0
        %2568 = vmatprep.subr.mxu0 0.0
        %2569 = vmatpush1.msra.mxu0 0.0
        %2570 = vmatprep.subr.mxu0 0.0
        %2571 = vmatpush1.msra.mxu0 0.0
        %2572 = vmatprep.subr.mxu0 0.0
        %2573 = vmatpush1.msra.mxu0 0.0
        %2574 = vmatprep.subr.mxu0 0.0
        %2575 = vmatpush1.msra.mxu0 0.0
        %2576 = vmatprep.subr.mxu0 0.0
        %2577 = vmatpush1.msra.mxu0 0.0
        %2578 = vmatprep.subr.mxu0 0.0
        %2579 = vmatpush1.msra.mxu0 0.0
        %2580 = vmatprep.subr.mxu0 0.0
        %2581 = vmatpush1.msra.mxu0 0.0
        %2582 = vmatprep.subr.mxu0 0.0
        %2583 = vmatpush1.msra.mxu0 0.0
        %2584 = vmatprep.subr.mxu0 0.0
        %2585 = vmatpush1.msra.mxu0 %v2552
        %2586 = vmatprep.subr.mxu0 0.0
        %2587 = vmatpush2.msra.mxu0 0.0
        %2588 = vmatprep.subr.mxu0 0.0
        %2589 = vmatpush2.msra.mxu0 0.0
        %2590 = vmatprep.subr.mxu0 0.0
        %2591 = vmatpush2.msra.mxu0 0.0
        %2592 = vmatprep.subr.mxu0 0.0
        %2593 = vmatpush2.msra.mxu0 0.0
        %2594 = vmatprep.subr.mxu0 0.0
        %2595 = vmatpush2.msra.mxu0 0.0
        %2596 = vmatprep.subr.mxu0 0.0
        %2597 = vmatpush2.msra.mxu0 0.0
        %2598 = vmatprep.subr.mxu0 0.0
        %2599 = vmatpush2.msra.mxu0 0.0
        %2600 = vmatprep.subr.mxu0 0.0
        %2601 = vmatpush2.msra.mxu0 0.0
        %2602 = vmatprep.subr.mxu0 0.0
        %2603 = vmatpush2.msra.mxu0 0.0
        %2604 = vmatprep.subr.mxu0 0.0
        %2605 = vmatpush2.msra.mxu0 0.0
        %2606 = vmatprep.subr.mxu0 0.0
        %2607 = vmatpush2.msra.mxu0 0.0
        %2608 = vmatprep.subr.mxu0 0.0
        %2609 = vmatpush2.msra.mxu0 0.0
        %2610 = vmatprep.subr.mxu0 0.0
        %2611 = vmatpush2.msra.mxu0 0.0
        %2612 = vmatprep.subr.mxu0 0.0
        %2613 = vmatpush2.msra.mxu0 0.0
        %2614 = vmatprep.subr.mxu0 0.0
        %2615 = vmatpush2.msra.mxu0 0.0
        %2616 = vmatprep.subr.mxu0 0.0
        %2617 = vmatpush2.msra.mxu0 0.0
        %2618 = vmatprep.mubr.f32.mxu0 0.0
        %2619 = vmatmul.mubr.f32.gmra.mxu0 %v2549
        %v2620 = vpop.f32.mrf.mxu0
        %v2621 = vadd.f32 0.0, %v2620
        %v2622 = vpop.f32.mrf.mxu0
        %2623 = vdwg.mxu0
        %s2624 = scalar_lea.vmem %s7, 8
        %v2625 = vld [vmem:[%s2624] sm:$0xff]
        %v2626 = vrot.slane %v2545, 4
        %v2628 = vsel %vm430, %v2626, 0.0
        %v2630 = vsel %vm440, %v2625, 0
        %v2633 = vsel %vm444, %v2628, 0
        %2635 = vmatprep.subr.mxu0 0.0
        %2636 = vmatpush1.msra.mxu0 0.0
        %2637 = vmatprep.subr.mxu0 0.0
        %2638 = vmatpush1.msra.mxu0 0.0
        %2639 = vmatprep.subr.mxu0 0.0
        %2640 = vmatpush1.msra.mxu0 0.0
        %2641 = vmatprep.subr.mxu0 0.0
        %2642 = vmatpush1.msra.mxu0 0.0
        %2643 = vmatprep.subr.mxu0 0.0
        %2644 = vmatpush1.msra.mxu0 0.0
        %2645 = vmatprep.subr.mxu0 0.0
        %2646 = vmatpush1.msra.mxu0 0.0
        %2647 = vmatprep.subr.mxu0 0.0
        %2648 = vmatpush1.msra.mxu0 0.0
        %2649 = vmatprep.subr.mxu0 0.0
        %2650 = vmatpush1.msra.mxu0 0.0
        %2651 = vmatprep.subr.mxu0 0.0
        %2652 = vmatpush1.msra.mxu0 0.0
        %2653 = vmatprep.subr.mxu0 0.0
        %2654 = vmatpush1.msra.mxu0 0.0
        %2655 = vmatprep.subr.mxu0 0.0
        %2656 = vmatpush1.msra.mxu0 0.0
        %2657 = vmatprep.subr.mxu0 0.0
        %2658 = vmatpush1.msra.mxu0 0.0
        %2659 = vmatprep.subr.mxu0 0.0
        %2660 = vmatpush1.msra.mxu0 0.0
        %2661 = vmatprep.subr.mxu0 0.0
        %2662 = vmatpush1.msra.mxu0 0.0
        %2663 = vmatprep.subr.mxu0 0.0
        %2664 = vmatpush1.msra.mxu0 0.0
        %2665 = vmatprep.subr.mxu0 0.0
        %2666 = vmatpush1.msra.mxu0 %v2633
        %2667 = vmatprep.subr.mxu0 0.0
        %2668 = vmatpush2.msra.mxu0 0.0
        %2669 = vmatprep.subr.mxu0 0.0
        %2670 = vmatpush2.msra.mxu0 0.0
        %2671 = vmatprep.subr.mxu0 0.0
        %2672 = vmatpush2.msra.mxu0 0.0
        %2673 = vmatprep.subr.mxu0 0.0
        %2674 = vmatpush2.msra.mxu0 0.0
        %2675 = vmatprep.subr.mxu0 0.0
        %2676 = vmatpush2.msra.mxu0 0.0
        %2677 = vmatprep.subr.mxu0 0.0
        %2678 = vmatpush2.msra.mxu0 0.0
        %2679 = vmatprep.subr.mxu0 0.0
        %2680 = vmatpush2.msra.mxu0 0.0
        %2681 = vmatprep.subr.mxu0 0.0
        %2682 = vmatpush2.msra.mxu0 0.0
        %2683 = vmatprep.subr.mxu0 0.0
        %2684 = vmatpush2.msra.mxu0 0.0
        %2685 = vmatprep.subr.mxu0 0.0
        %2686 = vmatpush2.msra.mxu0 0.0
        %2687 = vmatprep.subr.mxu0 0.0
        %2688 = vmatpush2.msra.mxu0 0.0
        %2689 = vmatprep.subr.mxu0 0.0
        %2690 = vmatpush2.msra.mxu0 0.0
        %2691 = vmatprep.subr.mxu0 0.0
        %2692 = vmatpush2.msra.mxu0 0.0
        %2693 = vmatprep.subr.mxu0 0.0
        %2694 = vmatpush2.msra.mxu0 0.0
        %2695 = vmatprep.subr.mxu0 0.0
        %2696 = vmatpush2.msra.mxu0 0.0
        %2697 = vmatprep.subr.mxu0 0.0
        %2698 = vmatpush2.msra.mxu0 0.0
        %2699 = vmatprep.mubr.f32.mxu0 0.0
        %2700 = vmatmul.mubr.f32.gmra.mxu0 %v2630
        %v2701 = vpop.f32.mrf.mxu0
        %v2702 = vadd.f32 0.0, %v2701
        %v2703 = vpop.f32.mrf.mxu0
        %2704 = vdwg.mxu0
        %v2706 = vsel %vm440, %v2702, 0
        %v2709 = vsel %vm444, %v2295, 0
        %v2712 = vsel %vm444, %v2296, 0
        %2714 = vmatprep.subr.mxu0 0.0
        %2715 = vmatpush1.msra.mxu0 0.0
        %2716 = vmatprep.subr.mxu0 0.0
        %2717 = vmatpush1.msra.mxu0 0.0
        %2718 = vmatprep.subr.mxu0 0.0
        %2719 = vmatpush1.msra.mxu0 0.0
        %2720 = vmatprep.subr.mxu0 0.0
        %2721 = vmatpush1.msra.mxu0 0.0
        %2722 = vmatprep.subr.mxu0 0.0
        %2723 = vmatpush1.msra.mxu0 0.0
        %2724 = vmatprep.subr.mxu0 0.0
        %2725 = vmatpush1.msra.mxu0 0.0
        %2726 = vmatprep.subr.mxu0 0.0
        %2727 = vmatpush1.msra.mxu0 0.0
        %2728 = vmatprep.subr.mxu0 0.0
        %2729 = vmatpush1.msra.mxu0 0.0
        %2730 = vmatprep.subr.mxu0 0.0
        %2731 = vmatpush1.msra.mxu0 0.0
        %2732 = vmatprep.subr.mxu0 0.0
        %2733 = vmatpush1.msra.mxu0 0.0
        %2734 = vmatprep.subr.mxu0 0.0
        %2735 = vmatpush1.msra.mxu0 0.0
        %2736 = vmatprep.subr.mxu0 0.0
        %2737 = vmatpush1.msra.mxu0 0.0
        %2738 = vmatprep.subr.mxu0 0.0
        %2739 = vmatpush1.msra.mxu0 0.0
        %2740 = vmatprep.subr.mxu0 0.0
        %2741 = vmatpush1.msra.mxu0 0.0
        %2742 = vmatprep.subr.mxu0 0.0
        %2743 = vmatpush1.msra.mxu0 0.0
        %2744 = vmatprep.subr.mxu0 %v2712
        %2745 = vmatpush1.msra.mxu0 %v2709
        %2746 = vmatprep.subr.mxu0 0.0
        %2747 = vmatpush2.msra.mxu0 0.0
        %2748 = vmatprep.subr.mxu0 0.0
        %2749 = vmatpush2.msra.mxu0 0.0
        %2750 = vmatprep.subr.mxu0 0.0
        %2751 = vmatpush2.msra.mxu0 0.0
        %2752 = vmatprep.subr.mxu0 0.0
        %2753 = vmatpush2.msra.mxu0 0.0
        %2754 = vmatprep.subr.mxu0 0.0
        %2755 = vmatpush2.msra.mxu0 0.0
        %2756 = vmatprep.subr.mxu0 0.0
        %2757 = vmatpush2.msra.mxu0 0.0
        %2758 = vmatprep.subr.mxu0 0.0
        %2759 = vmatpush2.msra.mxu0 0.0
        %2760 = vmatprep.subr.mxu0 0.0
        %2761 = vmatpush2.msra.mxu0 0.0
        %2762 = vmatprep.subr.mxu0 0.0
        %2763 = vmatpush2.msra.mxu0 0.0
        %2764 = vmatprep.subr.mxu0 0.0
        %2765 = vmatpush2.msra.mxu0 0.0
        %2766 = vmatprep.subr.mxu0 0.0
        %2767 = vmatpush2.msra.mxu0 0.0
        %2768 = vmatprep.subr.mxu0 0.0
        %2769 = vmatpush2.msra.mxu0 0.0
        %2770 = vmatprep.subr.mxu0 0.0
        %2771 = vmatpush2.msra.mxu0 0.0
        %2772 = vmatprep.subr.mxu0 0.0
        %2773 = vmatpush2.msra.mxu0 0.0
        %2774 = vmatprep.subr.mxu0 0.0
        %2775 = vmatpush2.msra.mxu0 0.0
        %2776 = vmatprep.subr.mxu0 0.0
        %2777 = vmatpush2.msra.mxu0 0.0
        %2778 = vmatprep.mubr.f32.mxu0 0.0
        %2779 = vmatmul.mubr.f32.gmra.mxu0 %v2706
        %v2780 = vpop.f32.mrf.mxu0
        %v2781 = vadd.f32 0.0, %v2780
        %v2782 = vpop.f32.mrf.mxu0
        %v2783 = vadd.f32 0.0, %v2782
        %2784 = vdwg.mxu0
        %v2786 = vsel %vm440, %v2621, 0
        %v2789 = vsel %vm444, %v1414, 0
        %v2792 = vsel %vm444, %v1415, 0
        %2794 = vmatprep.subr.mxu0 0.0
        %2795 = vmatpush1.msra.mxu0 0.0
        %2796 = vmatprep.subr.mxu0 0.0
        %2797 = vmatpush1.msra.mxu0 0.0
        %2798 = vmatprep.subr.mxu0 0.0
        %2799 = vmatpush1.msra.mxu0 0.0
        %2800 = vmatprep.subr.mxu0 0.0
        %2801 = vmatpush1.msra.mxu0 0.0
        %2802 = vmatprep.subr.mxu0 0.0
        %2803 = vmatpush1.msra.mxu0 0.0
        %2804 = vmatprep.subr.mxu0 0.0
        %2805 = vmatpush1.msra.mxu0 0.0
        %2806 = vmatprep.subr.mxu0 0.0
        %2807 = vmatpush1.msra.mxu0 0.0
        %2808 = vmatprep.subr.mxu0 0.0
        %2809 = vmatpush1.msra.mxu0 0.0
        %2810 = vmatprep.subr.mxu0 0.0
        %2811 = vmatpush1.msra.mxu0 0.0
        %2812 = vmatprep.subr.mxu0 0.0
        %2813 = vmatpush1.msra.mxu0 0.0
        %2814 = vmatprep.subr.mxu0 0.0
        %2815 = vmatpush1.msra.mxu0 0.0
        %2816 = vmatprep.subr.mxu0 0.0
        %2817 = vmatpush1.msra.mxu0 0.0
        %2818 = vmatprep.subr.mxu0 0.0
        %2819 = vmatpush1.msra.mxu0 0.0
        %2820 = vmatprep.subr.mxu0 0.0
        %2821 = vmatpush1.msra.mxu0 0.0
        %2822 = vmatprep.subr.mxu0 0.0
        %2823 = vmatpush1.msra.mxu0 0.0
        %2824 = vmatprep.subr.mxu0 %v2792
        %2825 = vmatpush1.msra.mxu0 %v2789
        %2826 = vmatprep.subr.mxu0 0.0
        %2827 = vmatpush2.msra.mxu0 0.0
        %2828 = vmatprep.subr.mxu0 0.0
        %2829 = vmatpush2.msra.mxu0 0.0
        %2830 = vmatprep.subr.mxu0 0.0
        %2831 = vmatpush2.msra.mxu0 0.0
        %2832 = vmatprep.subr.mxu0 0.0
        %2833 = vmatpush2.msra.mxu0 0.0
        %2834 = vmatprep.subr.mxu0 0.0
        %2835 = vmatpush2.msra.mxu0 0.0
        %2836 = vmatprep.subr.mxu0 0.0
        %2837 = vmatpush2.msra.mxu0 0.0
        %2838 = vmatprep.subr.mxu0 0.0
        %2839 = vmatpush2.msra.mxu0 0.0
        %2840 = vmatprep.subr.mxu0 0.0
        %2841 = vmatpush2.msra.mxu0 0.0
        %2842 = vmatprep.subr.mxu0 0.0
        %2843 = vmatpush2.msra.mxu0 0.0
        %2844 = vmatprep.subr.mxu0 0.0
        %2845 = vmatpush2.msra.mxu0 0.0
        %2846 = vmatprep.subr.mxu0 0.0
        %2847 = vmatpush2.msra.mxu0 0.0
        %2848 = vmatprep.subr.mxu0 0.0
        %2849 = vmatpush2.msra.mxu0 0.0
        %2850 = vmatprep.subr.mxu0 0.0
        %2851 = vmatpush2.msra.mxu0 0.0
        %2852 = vmatprep.subr.mxu0 0.0
        %2853 = vmatpush2.msra.mxu0 0.0
        %2854 = vmatprep.subr.mxu0 0.0
        %2855 = vmatpush2.msra.mxu0 0.0
        %2856 = vmatprep.subr.mxu0 0.0
        %2857 = vmatpush2.msra.mxu0 0.0
        %2858 = vmatprep.mubr.f32.mxu0 0.0
        %2859 = vmatmul.mubr.f32.gmra.mxu0 %v2786
        %v2860 = vpop.f32.mrf.mxu0
        %v2861 = vadd.f32 %v2781, %v2860
        %v2862 = vpop.f32.mrf.mxu0
        %v2863 = vadd.f32 %v2783, %v2862
        %2864 = vdwg.mxu0
        %v2865 = vld [vmem:[%s8] sm:$0xff]
        %2867 = vset.pattern.permute.xlu0 0
        %2868 = vperm.xlu0 %2867, %v2865
        %v2869 = vpop.permute.xlu0 %2868
        %v2871 = vadd.f32 %v2861, %v2869
        %v2872 = vadd.f32 %v2863, %v2869
        %v2873 = vmax.f32 %v2871, 0.0
        %v2874 = vmax.f32 %v2872, 0.0
        %v2876 = vsel %vm444, %v385, 0.0
        %v2877 = vsel %vm444, %v439, 0.0
        %v2878 = vadd.f32 %v2876, %v2877
        %2879 = vadd.xlane.f32.xlu0 %v2878
        %v2880 = vpop.xlane.xlu0 %2879
        %v2881 = vrcp.pop 256.0
        %v2882 = vmul.f32 %v2880, %v2881
        %v2883 = vld [vmem:[%s9] sm:$0xff]
        %v2884 = vld [vmem:[%s10] sm:$0xff]
        %v2886 = vsel %vm440, %v2883, 0
        %v2889 = vsel %vm444, %v2882, 0
        %2891 = vmatprep.subr.mxu0 0.0
        %2892 = vmatpush1.msra.mxu0 0.0
        %2893 = vmatprep.subr.mxu0 0.0
        %2894 = vmatpush1.msra.mxu0 0.0
        %2895 = vmatprep.subr.mxu0 0.0
        %2896 = vmatpush1.msra.mxu0 0.0
        %2897 = vmatprep.subr.mxu0 0.0
        %2898 = vmatpush1.msra.mxu0 0.0
        %2899 = vmatprep.subr.mxu0 0.0
        %2900 = vmatpush1.msra.mxu0 0.0
        %2901 = vmatprep.subr.mxu0 0.0
        %2902 = vmatpush1.msra.mxu0 0.0
        %2903 = vmatprep.subr.mxu0 0.0
        %2904 = vmatpush1.msra.mxu0 0.0
        %2905 = vmatprep.subr.mxu0 0.0
        %2906 = vmatpush1.msra.mxu0 0.0
        %2907 = vmatprep.subr.mxu0 0.0
        %2908 = vmatpush1.msra.mxu0 0.0
        %2909 = vmatprep.subr.mxu0 0.0
        %2910 = vmatpush1.msra.mxu0 0.0
        %2911 = vmatprep.subr.mxu0 0.0
        %2912 = vmatpush1.msra.mxu0 0.0
        %2913 = vmatprep.subr.mxu0 0.0
        %2914 = vmatpush1.msra.mxu0 0.0
        %2915 = vmatprep.subr.mxu0 0.0
        %2916 = vmatpush1.msra.mxu0 0.0
        %2917 = vmatprep.subr.mxu0 0.0
        %2918 = vmatpush1.msra.mxu0 0.0
        %2919 = vmatprep.subr.mxu0 0.0
        %2920 = vmatpush1.msra.mxu0 0.0
        %2921 = vmatprep.subr.mxu0 0.0
        %2922 = vmatpush1.msra.mxu0 %v2889
        %2923 = vmatprep.subr.mxu0 0.0
        %2924 = vmatpush2.msra.mxu0 0.0
        %2925 = vmatprep.subr.mxu0 0.0
        %2926 = vmatpush2.msra.mxu0 0.0
        %2927 = vmatprep.subr.mxu0 0.0
        %2928 = vmatpush2.msra.mxu0 0.0
        %2929 = vmatprep.subr.mxu0 0.0
        %2930 = vmatpush2.msra.mxu0 0.0
        %2931 = vmatprep.subr.mxu0 0.0
        %2932 = vmatpush2.msra.mxu0 0.0
        %2933 = vmatprep.subr.mxu0 0.0
        %2934 = vmatpush2.msra.mxu0 0.0
        %2935 = vmatprep.subr.mxu0 0.0
        %2936 = vmatpush2.msra.mxu0 0.0
        %2937 = vmatprep.subr.mxu0 0.0
        %2938 = vmatpush2.msra.mxu0 0.0
        %2939 = vmatprep.subr.mxu0 0.0
        %2940 = vmatpush2.msra.mxu0 0.0
        %2941 = vmatprep.subr.mxu0 0.0
        %2942 = vmatpush2.msra.mxu0 0.0
        %2943 = vmatprep.subr.mxu0 0.0
        %2944 = vmatpush2.msra.mxu0 0.0
        %2945 = vmatprep.subr.mxu0 0.0
        %2946 = vmatpush2.msra.mxu0 0.0
        %2947 = vmatprep.subr.mxu0 0.0
        %2948 = vmatpush2.msra.mxu0 0.0
        %2949 = vmatprep.subr.mxu0 0.0
        %2950 = vmatpush2.msra.mxu0 0.0
        %2951 = vmatprep.subr.mxu0 0.0
        %2952 = vmatpush2.msra.mxu0 0.0
        %2953 = vmatprep.subr.mxu0 0.0
        %2954 = vmatpush2.msra.mxu0 0.0
        %2955 = vmatprep.mubr.f32.mxu0 0.0
        %2956 = vmatmul.mubr.f32.gmra.mxu0 %v2886
        %v2957 = vpop.f32.mrf.mxu0
        %v2958 = vadd.f32 %v2884, %v2957
        %v2959 = vpop.f32.mrf.mxu0
        %2960 = vdwg.mxu0
        %v2961 = vmax.f32 %v2958, 0.0
        %2963 = vset.pattern.permute.xlu0 0
        %2964 = vperm.xlu0 %2963, %v2961
        %v2965 = vpop.permute.xlu0 %2964
        %v2967 = vadd.f32 %v2873, %v2965
        %v2968 = vadd.f32 %v2874, %v2965
        %v2969 = vmax.f32 %v2967, 0.0
        %v2970 = vmax.f32 %v2968, 0.0
        %2971 = vst [vmem:[%s379] sm:$0xff] %v2969
        %2972 = vst [vmem:[%s379 + $0x8] sm:$0xff] %v2970
        %s2973 = sand.u32 %s269, 1
        %s2974 = scalar_lea.sflag [#allocation4], %s2973
        %s2975 = sand.u32 %s269, 1
        %s2976 = smul.addr %s2975, 16
        %s2977 = scalar_lea.vmem [#allocation3], %s2976
        // Predicated region
        $region65: #{tpu_custom_call.1} parent=63 // pred_check
          %p2978 = pneg %p279
        $region66: #{tpu_custom_call.1} parent=63 // pred_check_branch
          %2980 = sbr.rel (%p2978) target = $region68
        $region67: #{tpu_custom_call.1} parent=63 // pred_region
          %s2982 = ssub.s32 256, 256
          %2983 = vsyncadd %s2974, %s2982
          %s2984 = smul.addr %s25, 2
          %s2985 = smul.addr %s2984, 128
          %s2986 = scalar_lea.hbm %s11, %s2985
          %s2988 = sshll.u32 %s2977, 4
          %s2989 = int_to_ptr.vmem [resolvable:$true] %s2988
          %2991 = dma.vmem_to_hbm [thread:$0]  %s2989, 256, %s2986, %s2974
        $region68: #{tpu_custom_call.1} parent=63 // pred_fallthru
          _
      $region64: #{tpu_custom_call.1} parent=5 // pred_fallthru
        _
      %p2992 = scmp.le.s32.totalorder 2, %s20
      // Predicated region
      $region69: #{tpu_custom_call.1} parent=5 // pred_check
        %p2993 = pneg %p2992
      $region70: #{tpu_custom_call.1} parent=5 // pred_check_branch
        %2995 = sbr.rel (%p2993) target = $region72
      $region71: #{tpu_custom_call.1} parent=5 // pred_region
        %s2996 = ssub.s32 %s20, 2
        // Predicated region
        $region73: #{tpu_custom_call.1} parent=71 // pred_check
          %p2997 = pneg %p285
        $region74: #{tpu_custom_call.1} parent=71 // pred_check_branch
          %2999 = sbr.rel (%p2997) target = $region76
        $region75: #{tpu_custom_call.1} parent=71 // pred_region
          %s3000 = sand.u32 %s270, 1
          %s3001 = scalar_lea.sflag [#allocation4], %s3000
          %s3002 = sand.u32 %s270, 1
          %s3003 = smul.addr %s3002, 16
          %s3004 = scalar_lea.vmem [#allocation3], %s3003
          %3005 = dma.done %s3001, 256
        $region76: #{tpu_custom_call.1} parent=71 // pred_fallthru
          _
      $region72: #{tpu_custom_call.1} parent=5 // pred_fallthru
        _
    $region6: #{tpu_custom_call.1} parent=1 // loop_footer
      %s24 = sadd.s32 1, %s20
    $region7: #{tpu_custom_call.1} parent=1 // loop_footer_branch
      %19 = sbr.rel target = $region3
    $region8: #{tpu_custom_call.1} parent=1 // loop_exit
      _
    %3006 = vsyncpa [#allocation4], 1
    %s3007 = scalar_lea.sflag [#allocation4], 1
    %3008 = vsyncpa %s3007, 1

// kernel: tpu_custom_call.1
$region0: #{tpu_custom_call.1}
  #allocation0 [shape = 'u32[]', space=smem, size = 0x4, offset = 0x4, fixed_abs, tag = 'smem constant byte address 0x4 - core index']
  #allocation1 [shape = 'u32[144,128]{1,0:T(1,128)}', space=vmem, size = 0x12000, scoped, tag = 'internal scratch']
  #allocation2 [shape = 'f32[4,512]{1,0:T(4,128)}', space=vmem, size = 0x2000, scoped, tag = 'scratch operand']
  %s0 = inlined_call_operand.vmem [shape: f32[2,4,256], index: 0, kind: input, shape index: {}]
  %s1 = inlined_call_operand.vmem [shape: f32[8,4], index: 1, kind: input, shape index: {}]
  %s2 = inlined_call_operand.vmem [shape: f32[8,1], index: 2, kind: input, shape index: {}]
  %s3 = inlined_call_operand.vmem [shape: f32[2,9,4,4], index: 3, kind: input, shape index: {}]
  %s4 = inlined_call_operand.vmem [shape: f32[2,4,1], index: 4, kind: input, shape index: {}]
  %s5 = inlined_call_operand.vmem [shape: f32[2,4,4], index: 5, kind: input, shape index: {}]
  %s6 = inlined_call_operand.vmem [shape: f32[8,4], index: 6, kind: input, shape index: {}]
  %s7 = inlined_call_operand.vmem [shape: f32[2,8,4], index: 7, kind: input, shape index: {}]
  %s8 = inlined_call_operand.vmem [shape: f32[8,1], index: 8, kind: input, shape index: {}]
  %s9 = inlined_call_operand.vmem [shape: f32[8,4], index: 9, kind: input, shape index: {}]
  %s10 = inlined_call_operand.vmem [shape: f32[8,1], index: 10, kind: input, shape index: {}]
  %s11 = inlined_call_operand.hbm [shape: f32[2,8,256], index: 11, kind: output, shape index: {}]
  %s12 = sld [smem:[#allocation0]]
  $region77: #{tpu_custom_call.1} parent=0
    _
  %s14 = ssub.s32 1, %s12
  %s15 = scalar_select 0, %s14, %s12
  $region1: #{tpu_custom_call.1} parent=0
    #allocation3 [shape = 'u8[16384]{0}', space=vmem, size = 0x4000, scoped, tag = 'output window, operand 0']
    #allocation4 [shape = 's32[2]{0}', space=sflag, size = 0x8, scoped, tag = 'scoped memory for tpu_custom_call.1']
    %16 = vsyncpa [#allocation4], 0
    %s17 = scalar_lea.sflag [#allocation4], 1
    %18 = vsyncpa %s17, 0
    loop: start=0, step=1, limit=4
    $region2: #{tpu_custom_call.1} parent=1 // loop_pre_header
      _
    $region3: #{tpu_custom_call.1} parent=1 // loop_header
      %s20 = sphi 0, %s24
      %p21 = scmp.ge.s32.totalorder %s20, 4
      %s30 = sphi 0, %s32
      %s33 = sphi 0, %s30
      %s34 = sphi 0, %s33
      %s50 = sphi 0, %s34
      %s54 = sphi 0, %s54
      %s56 = sphi 0, %s54
      %s57 = sphi 0, %s56
      %s71 = sphi 0, %s57
      %s75 = sphi 0, %s75
      %s77 = sphi 0, %s75
      %s78 = sphi 0, %s77
      %s92 = sphi 0, %s78
      %s96 = sphi 0, %s96
      %s98 = sphi 0, %s96
      %s99 = sphi 0, %s98
      %s113 = sphi 0, %s99
      %s117 = sphi 0, %s117
      %s119 = sphi 0, %s117
      %s120 = sphi 0, %s119
      %s134 = sphi 0, %s120
      %s138 = sphi 0, %s138
      %s140 = sphi 0, %s138
      %s141 = sphi 0, %s140
      %s155 = sphi 0, %s141
      %s159 = sphi 0, %s159
      %s161 = sphi 0, %s159
      %s162 = sphi 0, %s161
      %s176 = sphi 0, %s162
      %s180 = sphi 0, %s180
      %s182 = sphi 0, %s180
      %s183 = sphi 0, %s182
      %s197 = sphi 0, %s183
      %s201 = sphi 0, %s201
      %s203 = sphi 0, %s201
      %s204 = sphi 0, %s203
      %s218 = sphi 0, %s204
      %s222 = sphi 0, %s222
      %s224 = sphi 0, %s222
      %s225 = sphi 0, %s224
      %s239 = sphi 0, %s225
      %s243 = sphi 0, %s243
      %s245 = sphi 0, %s243
      %s246 = sphi 0, %s245
      %s260 = sphi 0, %s246
      %s266 = sphi 0, %s268
      %s269 = sphi 0, %s266
      %s270 = sphi 0, %s269
      %s286 = sphi 0, %s270
    $region4: #{tpu_custom_call.1} parent=1 // loop_header_branch
      %23 = sbr.rel (%p21) target = $region8
    $region5: #{tpu_custom_call.1} parent=1 // loop_body
      %s25 = ssub.s32 %s20, 1
      %s26 = ssub.s32 %s20, 2
      %s27 = sadd.s32 %s20, 1
      %s28 = ssub.s32 %s20, %s27
      %p29 = scmp.eq.s32.totalorder %s28, 0
      %s31 = sadd.s32 %s30, 1
      %s32 = scalar_select %p29, %s30, %s31
      %p35 = pneg %p29
      %p36 = scmp.eq.s32.totalorder %s20, 1
      %p37 = por %p35, %p36
      %p38 = scmp.ne.s32.totalorder %s30, %s33
      %p39 = scmp.eq.s32.totalorder %s20, 0
      %p40 = por %p38, %p39
      %p41 = scmp.ne.s32.totalorder %s30, %s33
      %p42 = scmp.eq.s32.totalorder %s25, 1
      %p43 = por %p41, %p42
      %p44 = scmp.ne.s32.totalorder %s33, %s34
      %p45 = scmp.eq.s32.totalorder %s25, 0
      %p46 = por %p44, %p45
      %p47 = scmp.ne.s32.totalorder %s33, %s34
      %p48 = scmp.eq.s32.totalorder %s26, 1
      %p49 = por %p47, %p48
      %p51 = scmp.ne.s32.totalorder %s34, %s50
      %p52 = scmp.eq.s32.totalorder %s26, 0
      %p53 = por %p51, %p52
      %s55 = sadd.s32 %s54, 1
      %p58 = scmp.eq.s32.totalorder %s20, 1
      %p59 = scmp.ne.s32.totalorder %s54, %s56
      %p60 = scmp.eq.s32.totalorder %s20, 0
      %p61 = por %p59, %p60
      %p62 = scmp.ne.s32.totalorder %s54, %s56
      %p63 = scmp.eq.s32.totalorder %s25, 1
      %p64 = por %p62, %p63
      %p65 = scmp.ne.s32.totalorder %s56, %s57
      %p66 = scmp.eq.s32.totalorder %s25, 0
      %p67 = por %p65, %p66
      %p68 = scmp.ne.s32.totalorder %s56, %s57
      %p69 = scmp.eq.s32.totalorder %s26, 1
      %p70 = por %p68, %p69
      %p72 = scmp.ne.s32.totalorder %s57, %s71
      %p73 = scmp.eq.s32.totalorder %s26, 0
      %p74 = por %p72, %p73
      %s76 = sadd.s32 %s75, 1
      %p79 = scmp.eq.s32.totalorder %s20, 1
      %p80 = scmp.ne.s32.totalorder %s75, %s77
      %p81 = scmp.eq.s32.totalorder %s20, 0
      %p82 = por %p80, %p81
      %p83 = scmp.ne.s32.totalorder %s75, %s77
      %p84 = scmp.eq.s32.totalorder %s25, 1
      %p85 = por %p83, %p84
      %p86 = scmp.ne.s32.totalorder %s77, %s78
      %p87 = scmp.eq.s32.totalorder %s25, 0
      %p88 = por %p86, %p87
      %p89 = scmp.ne.s32.totalorder %s77, %s78
      %p90 = scmp.eq.s32.totalorder %s26, 1
      %p91 = por %p89, %p90
      %p93 = scmp.ne.s32.totalorder %s78, %s92
      %p94 = scmp.eq.s32.totalorder %s26, 0
      %p95 = por %p93, %p94
      %s97 = sadd.s32 %s96, 1
      %p100 = scmp.eq.s32.totalorder %s20, 1
      %p101 = scmp.ne.s32.totalorder %s96, %s98
      %p102 = scmp.eq.s32.totalorder %s20, 0
      %p103 = por %p101, %p102
      %p104 = scmp.ne.s32.totalorder %s96, %s98
      %p105 = scmp.eq.s32.totalorder %s25, 1
      %p106 = por %p104, %p105
      %p107 = scmp.ne.s32.totalorder %s98, %s99
      %p108 = scmp.eq.s32.totalorder %s25, 0
      %p109 = por %p107, %p108
      %p110 = scmp.ne.s32.totalorder %s98, %s99
      %p111 = scmp.eq.s32.totalorder %s26, 1
      %p112 = por %p110, %p111
      %p114 = scmp.ne.s32.totalorder %s99, %s113
      %p115 = scmp.eq.s32.totalorder %s26, 0
      %p116 = por %p114, %p115
      %s118 = sadd.s32 %s117, 1
      %p121 = scmp.eq.s32.totalorder %s20, 1
      %p122 = scmp.ne.s32.totalorder %s117, %s119
      %p123 = scmp.eq.s32.totalorder %s20, 0
      %p124 = por %p122, %p123
      %p125 = scmp.ne.s32.totalorder %s117, %s119
      %p126 = scmp.eq.s32.totalorder %s25, 1
      %p127 = por %p125, %p126
      %p128 = scmp.ne.s32.totalorder %s119, %s120
      %p129 = scmp.eq.s32.totalorder %s25, 0
      %p130 = por %p128, %p129
      %p131 = scmp.ne.s32.totalorder %s119, %s120
      %p132 = scmp.eq.s32.totalorder %s26, 1
      %p133 = por %p131, %p132
      %p135 = scmp.ne.s32.totalorder %s120, %s134
      %p136 = scmp.eq.s32.totalorder %s26, 0
      %p137 = por %p135, %p136
      %s139 = sadd.s32 %s138, 1
      %p142 = scmp.eq.s32.totalorder %s20, 1
      %p143 = scmp.ne.s32.totalorder %s138, %s140
      %p144 = scmp.eq.s32.totalorder %s20, 0
      %p145 = por %p143, %p144
      %p146 = scmp.ne.s32.totalorder %s138, %s140
      %p147 = scmp.eq.s32.totalorder %s25, 1
      %p148 = por %p146, %p147
      %p149 = scmp.ne.s32.totalorder %s140, %s141
      %p150 = scmp.eq.s32.totalorder %s25, 0
      %p151 = por %p149, %p150
      %p152 = scmp.ne.s32.totalorder %s140, %s141
      %p153 = scmp.eq.s32.totalorder %s26, 1
      %p154 = por %p152, %p153
      %p156 = scmp.ne.s32.totalorder %s141, %s155
      %p157 = scmp.eq.s32.totalorder %s26, 0
      %p158 = por %p156, %p157
      %s160 = sadd.s32 %s159, 1
      %p163 = scmp.eq.s32.totalorder %s20, 1
      %p164 = scmp.ne.s32.totalorder %s159, %s161
      %p165 = scmp.eq.s32.totalorder %s20, 0
      %p166 = por %p164, %p165
      %p167 = scmp.ne.s32.totalorder %s159, %s161
      %p168 = scmp.eq.s32.totalorder %s25, 1
      %p169 = por %p167, %p168
      %p170 = scmp.ne.s32.totalorder %s161, %s162
      %p171 = scmp.eq.s32.totalorder %s25, 0
      %p172 = por %p170, %p171
      %p173 = scmp.ne.s32.totalorder %s161, %s162
      %p174 = scmp.eq.s32.totalorder %s26, 1
      %p175 = por %p173, %p174
      %p177 = scmp.ne.s32.totalorder %s162, %s176
      %p178 = scmp.eq.s32.totalorder %s26, 0
      %p179 = por %p177, %p178
      %s181 = sadd.s32 %s180, 1
      %p184 = scmp.eq.s32.totalorder %s20, 1
      %p185 = scmp.ne.s32.totalorder %s180, %s182
      %p186 = scmp.eq.s32.totalorder %s20, 0
      %p187 = por %p185, %p186
      %p188 = scmp.ne.s32.totalorder %s180, %s182
      %p189 = scmp.eq.s32.totalorder %s25, 1
      %p190 = por %p188, %p189
      %p191 = scmp.ne.s32.totalorder %s182, %s183
      %p192 = scmp.eq.s32.totalorder %s25, 0
      %p193 = por %p191, %p192
      %p194 = scmp.ne.s32.totalorder %s182, %s183
      %p195 = scmp.eq.s32.totalorder %s26, 1
      %p196 = por %p194, %p195
      %p198 = scmp.ne.s32.totalorder %s183, %s197
      %p199 = scmp.eq.s32.totalorder %s26, 0
      %p200 = por %p198, %p199
      %s202 = sadd.s32 %s201, 1
      %p205 = scmp.eq.s32.totalorder %s20, 1
      %p206 = scmp.ne.s32.totalorder %s201, %s203
      %p207 = scmp.eq.s32.totalorder %s20, 0
      %p208 = por %p206, %p207
      %p209 = scmp.ne.s32.totalorder %s201, %s203
      %p210 = scmp.eq.s32.totalorder %s25, 1
      %p211 = por %p209, %p210
      %p212 = scmp.ne.s32.totalorder %s203, %s204
      %p213 = scmp.eq.s32.totalorder %s25, 0
      %p214 = por %p212, %p213
      %p215 = scmp.ne.s32.totalorder %s203, %s204
      %p216 = scmp.eq.s32.totalorder %s26, 1
      %p217 = por %p215, %p216
      %p219 = scmp.ne.s32.totalorder %s204, %s218
      %p220 = scmp.eq.s32.totalorder %s26, 0
      %p221 = por %p219, %p220
      %s223 = sadd.s32 %s222, 1
      %p226 = scmp.eq.s32.totalorder %s20, 1
      %p227 = scmp.ne.s32.totalorder %s222, %s224
      %p228 = scmp.eq.s32.totalorder %s20, 0
      %p229 = por %p227, %p228
      %p230 = scmp.ne.s32.totalorder %s222, %s224
      %p231 = scmp.eq.s32.totalorder %s25, 1
      %p232 = por %p230, %p231
      %p233 = scmp.ne.s32.totalorder %s224, %s225
      %p234 = scmp.eq.s32.totalorder %s25, 0
      %p235 = por %p233, %p234
      %p236 = scmp.ne.s32.totalorder %s224, %s225
      %p237 = scmp.eq.s32.totalorder %s26, 1
      %p238 = por %p236, %p237
      %p240 = scmp.ne.s32.totalorder %s225, %s239
      %p241 = scmp.eq.s32.totalorder %s26, 0
      %p242 = por %p240, %p241
      %s244 = sadd.s32 %s243, 1
      %p247 = scmp.eq.s32.totalorder %s20, 1
      %p248 = scmp.ne.s32.totalorder %s243, %s245
      %p249 = scmp.eq.s32.totalorder %s20, 0
      %p250 = por %p248, %p249
      %p251 = scmp.ne.s32.totalorder %s243, %s245
      %p252 = scmp.eq.s32.totalorder %s25, 1
      %p253 = por %p251, %p252
      %p254 = scmp.ne.s32.totalorder %s245, %s246
      %p255 = scmp.eq.s32.totalorder %s25, 0
      %p256 = por %p254, %p255
      %p257 = scmp.ne.s32.totalorder %s245, %s246
      %p258 = scmp.eq.s32.totalorder %s26, 1
      %p259 = por %p257, %p258
      %p261 = scmp.ne.s32.totalorder %s246, %s260
      %p262 = scmp.eq.s32.totalorder %s26, 0
      %p263 = por %p261, %p262
      %s264 = ssub.s32 %s20, %s27
      %p265 = scmp.eq.s32.totalorder %s264, 0
      %s267 = sadd.s32 %s266, 1
      %s268 = scalar_select %p265, %s266, %s267
      %p271 = pneg %p265
      %p272 = scmp.eq.s32.totalorder %s20, 1
      %p273 = por %p271, %p272
      %p274 = scmp.ne.s32.totalorder %s266, %s269
      %p275 = scmp.eq.s32.totalorder %s20, 0
      %p276 = por %p274, %p275
      %p277 = scmp.ne.s32.totalorder %s266, %s269
      %p278 = scmp.eq.s32.totalorder %s25, 1
      %p279 = por %p277, %p278
      %p280 = scmp.ne.s32.totalorder %s269, %s270
      %p281 = scmp.eq.s32.totalorder %s25, 0
      %p282 = por %p280, %p281
      %p283 = scmp.ne.s32.totalorder %s269, %s270
      %p284 = scmp.eq.s32.totalorder %s26, 1
      %p285 = por %p283, %p284
      %p287 = scmp.ne.s32.totalorder %s270, %s286
      %p288 = scmp.eq.s32.totalorder %s26, 0
      %p289 = por %p287, %p288
      %p290 = scmp.le.s32.totalorder 1, %s20
      %p291 = scmp.lt.s32.totalorder %s20, 3
      %p292 = pnand %p290, %p291
      %p293 = pneg %p292
      // Predicated region
      $region9: #{tpu_custom_call.1} parent=5 // pred_check
        _
      $region10: #{tpu_custom_call.1} parent=5 // pred_check_branch
        %295 = sbr.rel (%p292) target = $region12
      $region11: #{tpu_custom_call.1} parent=5 // pred_region
        %s296 = ssub.s32 %s20, 1
        // Predicated region
        $region13: #{tpu_custom_call.1} parent=11 // pred_check
          %p297 = pneg %p67
        $region14: #{tpu_custom_call.1} parent=11 // pred_check_branch
          %299 = sbr.rel (%p297) target = $region16
        $region15: #{tpu_custom_call.1} parent=11 // pred_region
          _
        $region16: #{tpu_custom_call.1} parent=11 // pred_fallthru
          _
        // Predicated region
        $region17: #{tpu_custom_call.1} parent=11 // pred_check
          %p300 = pneg %p88
        $region18: #{tpu_custom_call.1} parent=11 // pred_check_branch
          %302 = sbr.rel (%p300) target = $region20
        $region19: #{tpu_custom_call.1} parent=11 // pred_region
          _
        $region20: #{tpu_custom_call.1} parent=11 // pred_fallthru
          _
        // Predicated region
        $region21: #{tpu_custom_call.1} parent=11 // pred_check
          %p303 = pneg %p109
        $region22: #{tpu_custom_call.1} parent=11 // pred_check_branch
          %305 = sbr.rel (%p303) target = $region24
        $region23: #{tpu_custom_call.1} parent=11 // pred_region
          _
        $region24: #{tpu_custom_call.1} parent=11 // pred_fallthru
          _
        // Predicated region
        $region25: #{tpu_custom_call.1} parent=11 // pred_check
          %p306 = pneg %p130
        $region26: #{tpu_custom_call.1} parent=11 // pred_check_branch
          %308 = sbr.rel (%p306) target = $region28
        $region27: #{tpu_custom_call.1} parent=11 // pred_region
          _
        $region28: #{tpu_custom_call.1} parent=11 // pred_fallthru
          _
        // Predicated region
        $region29: #{tpu_custom_call.1} parent=11 // pred_check
          %p309 = pneg %p151
        $region30: #{tpu_custom_call.1} parent=11 // pred_check_branch
          %311 = sbr.rel (%p309) target = $region32
        $region31: #{tpu_custom_call.1} parent=11 // pred_region
          _
        $region32: #{tpu_custom_call.1} parent=11 // pred_fallthru
          _
        // Predicated region
        $region33: #{tpu_custom_call.1} parent=11 // pred_check
          %p312 = pneg %p172
        $region34: #{tpu_custom_call.1} parent=11 // pred_check_branch
          %314 = sbr.rel (%p312) target = $region36
        $region35: #{tpu_custom_call.1} parent=11 // pred_region
          _
        $region36: #{tpu_custom_call.1} parent=11 // pred_fallthru
          _
        // Predicated region
        $region37: #{tpu_custom_call.1} parent=11 // pred_check
          %p315 = pneg %p193
        $region38: #{tpu_custom_call.1} parent=11 // pred_check_branch
          %317 = sbr.rel (%p315) target = $region40
        $region39: #{tpu_custom_call.1} parent=11 // pred_region
          _
        $region40: #{tpu_custom_call.1} parent=11 // pred_fallthru
          _
        // Predicated region
        $region41: #{tpu_custom_call.1} parent=11 // pred_check
          %p318 = pneg %p214
        $region42: #{tpu_custom_call.1} parent=11 // pred_check_branch
          %320 = sbr.rel (%p318) target = $region44
        $region43: #{tpu_custom_call.1} parent=11 // pred_region
          _
        $region44: #{tpu_custom_call.1} parent=11 // pred_fallthru
          _
        // Predicated region
        $region45: #{tpu_custom_call.1} parent=11 // pred_check
          %p321 = pneg %p235
        $region46: #{tpu_custom_call.1} parent=11 // pred_check_branch
          %323 = sbr.rel (%p321) target = $region48
        $region47: #{tpu_custom_call.1} parent=11 // pred_region
          _
        $region48: #{tpu_custom_call.1} parent=11 // pred_fallthru
          _
        // Predicated region
        $region49: #{tpu_custom_call.1} parent=11 // pred_check
          %p324 = pneg %p256
        $region50: #{tpu_custom_call.1} parent=11 // pred_check_branch
          %326 = sbr.rel (%p324) target = $region52
        $region51: #{tpu_custom_call.1} parent=11 // pred_region
          _
        $region52: #{tpu_custom_call.1} parent=11 // pred_fallthru
          _
      $region12: #{tpu_custom_call.1} parent=5 // pred_fallthru
        _
      %p327 = scmp.lt.s32.totalorder %s20, 2
      // Predicated region
      $region53: #{tpu_custom_call.1} parent=5 // pred_check
        %p328 = pneg %p327
      $region54: #{tpu_custom_call.1} parent=5 // pred_check_branch
        %330 = sbr.rel (%p328) target = $region56
      $region55: #{tpu_custom_call.1} parent=5 // pred_region
        // Predicated region
        $region57: #{tpu_custom_call.1} parent=55 // pred_check
          %p331 = pneg %p40
        $region58: #{tpu_custom_call.1} parent=55 // pred_check_branch
          %333 = sbr.rel (%p331) target = $region60
        $region59: #{tpu_custom_call.1} parent=55 // pred_region
          %p334 = scmp.lt.s32.totalorder %s20, 1
          %s335 = scalar_select %p334, %s20, 1
          %s336 = smul.addr %s335, 2
          %s337 = smul.addr %s336, 4
          %s338 = scalar_lea.vmem %s0, %s337
        $region60: #{tpu_custom_call.1} parent=55 // pred_fallthru
          _
      $region56: #{tpu_custom_call.1} parent=5 // pred_fallthru
        _
      %p339 = scmp.le.s32.totalorder 1, %s20
      %p340 = scmp.lt.s32.totalorder %s20, 3
      %p341 = pnand %p339, %p340
      %p342 = pneg %p341
      // Predicated region
      $region61: #{tpu_custom_call.1} parent=5 // pred_check
        _
      $region62: #{tpu_custom_call.1} parent=5 // pred_check_branch
        %344 = sbr.rel (%p341) target = $region64
      $region63: #{tpu_custom_call.1} parent=5 // pred_region
        %s345 = ssub.s32 %s20, 1
        %p346 = scmp.lt.s32.totalorder %s25, 1
        %s347 = scalar_select %p346, %s25, 1
        %s348 = smul.addr %s347, 2
        %s349 = smul.addr %s348, 4
        %s350 = scalar_lea.vmem %s0, %s349
        %p351 = pneg %p46
        %p352 = pneg %p43
        %p353 = pneg %p67
        %p354 = pneg %p64
        %p355 = pneg %p88
        %p356 = pneg %p85
        %p357 = pneg %p109
        %p358 = pneg %p106
        %p359 = pneg %p130
        %p360 = pneg %p127
        %p361 = pneg %p151
        %p362 = pneg %p148
        %p363 = pneg %p172
        %p364 = pneg %p169
        %p365 = pneg %p193
        %p366 = pneg %p190
        %p367 = pneg %p214
        %p368 = pneg %p211
        %p369 = pneg %p235
        %p370 = pneg %p232
        %p371 = pneg %p256
        %p372 = pneg %p253
        %p373 = pneg %p282
        %p374 = pneg %p279
        %s375 = sand.u32 %s269, 1
        %s376 = scalar_lea.sflag [#allocation4], %s375
        %s377 = sand.u32 %s269, 1
        %s378 = smul.addr %s377, 16
        %s379 = scalar_lea.vmem [#allocation3], %s378
        %p380 = scmp.lt.s32.totalorder %s25, 1
        %s381 = scalar_select %p380, %s25, 1
        %s382 = smul.addr %s381, 2
        %s383 = smul.addr %s382, 4
        %s384 = scalar_lea.vmem %s0, %s383
        %v385 = vld [vmem:[%s384] sm:$0xff]
        %386 = vst [vmem:[#allocation2] sm:$0xf] 0.0
        %387 = vst [vmem:[#allocation2 + $0xc] sm:$0xf] 0.0
        %v388 = vlaneseq
        %v389 = vand.u32 %v388, 127
        %v390 = vadd.s32 %v389, 128
        %v391 = vadd.s32 %v389, 256
        %vm392 = vcmp.lt.s32.totalorder %v389, 0
        %v393 = vsub.s32 0, %v389
        %v394 = vsel %vm392, %v393, %v389
        %v395 = vshrl.u32 %v394, 4
        %v396 = vand.u32 %v394, 15
        %v397 = vsub.s32 0, %v396
        %v398 = vsel %vm392, %v397, %v396
        %vm399 = vcmp.lt.s32.totalorder %v390, 0
        %v400 = vsub.s32 0, %v390
        %v401 = vsel %vm399, %v400, %v390
        %v402 = vshrl.u32 %v401, 4
        %v403 = vand.u32 %v401, 15
        %v404 = vsub.s32 0, %v403
        %v405 = vsel %vm399, %v404, %v403
        %vm406 = vcmp.lt.s32.totalorder %v391, 0
        %v407 = vsub.s32 0, %v391
        %v408 = vsel %vm406, %v407, %v391
        %v409 = vshrl.u32 %v408, 4
        %v410 = vand.u32 %v408, 15
        %v411 = vsub.s32 0, %v410
        %v412 = vsel %vm406, %v411, %v410
        %vm413 = vcmp.ne.s32.totalorder %v398, 0
        %vm414 = vcmp.ne.s32.totalorder %v405, 0
        %vm415 = vcmp.ne.s32.totalorder %v412, 0
        %vm416 = vcmp.lt.s32.totalorder %v398, 0
        %vm417 = vcmp.lt.s32.totalorder %v405, 0
        %vm418 = vcmp.lt.s32.totalorder %v412, 0
        %vm419 = vmand %vm416, %vm413
        %vm420 = vmand %vm417, %vm414
        %vm421 = vmand %vm418, %vm415
        %v422 = vadd.s32 %v398, 16
        %v423 = vadd.s32 %v405, 16
        %v424 = vadd.s32 %v412, 16
        %v425 = vsel %vm419, %v422, %v398
        %v426 = vsel %vm420, %v423, %v405
        %v427 = vsel %vm421, %v424, %v412
        %v428 = vlaneseq
        %v429 = vshrl.u32 %v428, 7
        %vm430 = vcmp.eq.s32.totalorder %v429, %v389
        %v431 = vld [vmem:[%s1] sm:$0xff]
        %v432 = vld [vmem:[%s2] sm:$0xff]
        %434 = vset.pattern.permute.xlu0 0
        %435 = vperm.xlu0 %434, %v432
        %v436 = vpop.permute.xlu0 %435
        %v439 = vcombine.high %v385, %v385
        %vm440 = vcmask 31744
        %v442 = vsel %vm440, %v431, 0
        %vm444 = vcmask 1043456
        %v445 = vsel %vm444, %v385, 0
        %v447 = vsel %vm444, %v439, 0
        %449 = vmatprep.subr.mxu0 0.0
        %450 = vmatpush1.msra.mxu0 0.0
        %451 = vmatprep.subr.mxu0 0.0
        %452 = vmatpush1.msra.mxu0 0.0
        %453 = vmatprep.subr.mxu0 0.0
        %454 = vmatpush1.msra.mxu0 0.0
        %455 = vmatprep.subr.mxu0 0.0
        %456 = vmatpush1.msra.mxu0 0.0
        %457 = vmatprep.subr.mxu0 0.0
        %458 = vmatpush1.msra.mxu0 0.0
        %459 = vmatprep.subr.mxu0 0.0
        %460 = vmatpush1.msra.mxu0 0.0
        %461 = vmatprep.subr.mxu0 0.0
        %462 = vmatpush1.msra.mxu0 0.0
        %463 = vmatprep.subr.mxu0 0.0
        %464 = vmatpush1.msra.mxu0 0.0
        %465 = vmatprep.subr.mxu0 0.0
        %466 = vmatpush1.msra.mxu0 0.0
        %467 = vmatprep.subr.mxu0 0.0
        %468 = vmatpush1.msra.mxu0 0.0
        %469 = vmatprep.subr.mxu0 0.0
        %470 = vmatpush1.msra.mxu0 0.0
        %471 = vmatprep.subr.mxu0 0.0
        %472 = vmatpush1.msra.mxu0 0.0
        %473 = vmatprep.subr.mxu0 0.0
        %474 = vmatpush1.msra.mxu0 0.0
        %475 = vmatprep.subr.mxu0 0.0
        %476 = vmatpush1.msra.mxu0 0.0
        %477 = vmatprep.subr.mxu0 0.0
        %478 = vmatpush1.msra.mxu0 0.0
        %479 = vmatprep.subr.mxu0 %v447
        %480 = vmatpush1.msra.mxu0 %v445
        %481 = vmatprep.subr.mxu0 0.0
        %482 = vmatpush2.msra.mxu0 0.0
        %483 = vmatprep.subr.mxu0 0.0
        %484 = vmatpush2.msra.mxu0 0.0
        %485 = vmatprep.subr.mxu0 0.0
        %486 = vmatpush2.msra.mxu0 0.0
        %487 = vmatprep.subr.mxu0 0.0
        %488 = vmatpush2.msra.mxu0 0.0
        %489 = vmatprep.subr.mxu0 0.0
        %490 = vmatpush2.msra.mxu0 0.0
        %491 = vmatprep.subr.mxu0 0.0
        %492 = vmatpush2.msra.mxu0 0.0
        %493 = vmatprep.subr.mxu0 0.0
        %494 = vmatpush2.msra.mxu0 0.0
        %495 = vmatprep.subr.mxu0 0.0
        %496 = vmatpush2.msra.mxu0 0.0
        %497 = vmatprep.subr.mxu0 0.0
        %498 = vmatpush2.msra.mxu0 0.0
        %499 = vmatprep.subr.mxu0 0.0
        %500 = vmatpush2.msra.mxu0 0.0
        %501 = vmatprep.subr.mxu0 0.0
        %502 = vmatpush2.msra.mxu0 0.0
        %503 = vmatprep.subr.mxu0 0.0
        %504 = vmatpush2.msra.mxu0 0.0
        %505 = vmatprep.subr.mxu0 0.0
        %506 = vmatpush2.msra.mxu0 0.0
        %507 = vmatprep.subr.mxu0 0.0
        %508 = vmatpush2.msra.mxu0 0.0
        %509 = vmatprep.subr.mxu0 0.0
        %510 = vmatpush2.msra.mxu0 0.0
        %511 = vmatprep.subr.mxu0 0.0
        %512 = vmatpush2.msra.mxu0 0.0
        %513 = vmatprep.mubr.f32.mxu0 0.0
        %514 = vmatmul.mubr.f32.gmra.mxu0 %v442
        %v515 = vpop.f32.mrf.mxu0
        %v516 = vadd.f32 %v436, %v515
        %v517 = vpop.f32.mrf.mxu0
        %v518 = vadd.f32 %v436, %v517
        %519 = vdwg.mxu0
        %v520 = vmax.f32 %v516, 0.0
        %v521 = vmax.f32 %v518, 0.0
        %v524 = vcombine.low %v520, %v521
        %526 = vst [vmem:[#allocation2 + $0x4] sm:$0xff] %v524
        %v527 = vld [vmem:[#allocation2] sm:$0xff]
        %v528 = vld [vmem:[#allocation2 + $0x8] sm:$0xff]
        %vm529 = vcmp.ge.s32.totalorder %v425, 1
        %vm530 = vcmp.ge.s32.totalorder %v426, 1
        %vm531 = vcmp.ge.s32.totalorder %v427, 1
        %v532 = vsel %vm529, 1, 0
        %v533 = vsel %vm530, 1, 0
        %v534 = vsel %vm531, 1, 0
        %vm535 = vcmp.eq.s32.totalorder %v532, 1
        %vm536 = vcmp.eq.s32.totalorder %v533, 1
        %vm537 = vcmp.eq.s32.totalorder %v534, 1
        %v540 = vcombine.high %v527, %v527
        %v541 = vcombine.high %v528, %v528
        %542 = vrot.lane.b32.xlu0 %v527, 33
        %v543 = vpop.permute.xlu0 %542
        %544 = vrot.lane.b32.xlu0 %v540, 33
        %v545 = vpop.permute.xlu0 %544
        %546 = vrot.lane.b32.xlu0 %v528, 33
        %v547 = vpop.permute.xlu0 %546
        %548 = vrot.lane.b32.xlu0 %v541, 33
        %v549 = vpop.permute.xlu0 %548
        %vm550 = vcmask 269312
        %v551 = vsel %vm550, %v543, %v545
        %v552 = vsel %vm550, %v545, %v547
        %v553 = vsel %vm550, %v547, %v549
        %v557 = vsel %vm535, %v551, 0.0
        %v558 = vsel %vm536, %v552, 0.0
        %v559 = vsel %vm537, %v553, 0.0
        %v560 = vld [vmem:[%s3] sm:$0xf]
        %s561 = scalar_lea.vmem %s3, 12
        %v562 = vld [vmem:[%s561] sm:$0xf]
        %566 = vrot.lane.b32.xlu0 %v557, 96
        %v567 = vpop.permute.xlu0 %566
        %568 = vrot.lane.b32.xlu0 %v558, 96
        %v569 = vpop.permute.xlu0 %568
        %570 = vrot.lane.b32.xlu0 %v559, 96
        %v571 = vpop.permute.xlu0 %570
        %vm572 = vcmask 785408
        %v573 = vsel %vm572, %v567, %v569
        %v574 = vsel %vm572, %v569, %v571
        %v576 = vsel %vm440, %v562, 0
        %v578 = vsel %vm444, %v573, 0
        %v580 = vsel %vm444, %v574, 0
        %582 = vmatprep.subr.mxu0 0.0
        %583 = vmatpush1.msra.mxu0 0.0
        %584 = vmatprep.subr.mxu0 0.0
        %585 = vmatpush1.msra.mxu0 0.0
        %586 = vmatprep.subr.mxu0 0.0
        %587 = vmatpush1.msra.mxu0 0.0
        %588 = vmatprep.subr.mxu0 0.0
        %589 = vmatpush1.msra.mxu0 0.0
        %590 = vmatprep.subr.mxu0 0.0
        %591 = vmatpush1.msra.mxu0 0.0
        %592 = vmatprep.subr.mxu0 0.0
        %593 = vmatpush1.msra.mxu0 0.0
        %594 = vmatprep.subr.mxu0 0.0
        %595 = vmatpush1.msra.mxu0 0.0
        %596 = vmatprep.subr.mxu0 0.0
        %597 = vmatpush1.msra.mxu0 0.0
        %598 = vmatprep.subr.mxu0 0.0
        %599 = vmatpush1.msra.mxu0 0.0
        %600 = vmatprep.subr.mxu0 0.0
        %601 = vmatpush1.msra.mxu0 0.0
        %602 = vmatprep.subr.mxu0 0.0
        %603 = vmatpush1.msra.mxu0 0.0
        %604 = vmatprep.subr.mxu0 0.0
        %605 = vmatpush1.msra.mxu0 0.0
        %606 = vmatprep.subr.mxu0 0.0
        %607 = vmatpush1.msra.mxu0 0.0
        %608 = vmatprep.subr.mxu0 0.0
        %609 = vmatpush1.msra.mxu0 0.0
        %610 = vmatprep.subr.mxu0 0.0
        %611 = vmatpush1.msra.mxu0 0.0
        %612 = vmatprep.subr.mxu0 %v580
        %613 = vmatpush1.msra.mxu0 %v578
        %614 = vmatprep.subr.mxu0 0.0
        %615 = vmatpush2.msra.mxu0 0.0
        %616 = vmatprep.subr.mxu0 0.0
        %617 = vmatpush2.msra.mxu0 0.0
        %618 = vmatprep.subr.mxu0 0.0
        %619 = vmatpush2.msra.mxu0 0.0
        %620 = vmatprep.subr.mxu0 0.0
        %621 = vmatpush2.msra.mxu0 0.0
        %622 = vmatprep.subr.mxu0 0.0
        %623 = vmatpush2.msra.mxu0 0.0
        %624 = vmatprep.subr.mxu0 0.0
        %625 = vmatpush2.msra.mxu0 0.0
        %626 = vmatprep.subr.mxu0 0.0
        %627 = vmatpush2.msra.mxu0 0.0
        %628 = vmatprep.subr.mxu0 0.0
        %629 = vmatpush2.msra.mxu0 0.0
        %630 = vmatprep.subr.mxu0 0.0
        %631 = vmatpush2.msra.mxu0 0.0
        %632 = vmatprep.subr.mxu0 0.0
        %633 = vmatpush2.msra.mxu0 0.0
        %634 = vmatprep.subr.mxu0 0.0
        %635 = vmatpush2.msra.mxu0 0.0
        %636 = vmatprep.subr.mxu0 0.0
        %637 = vmatpush2.msra.mxu0 0.0
        %638 = vmatprep.subr.mxu0 0.0
        %639 = vmatpush2.msra.mxu0 0.0
        %640 = vmatprep.subr.mxu0 0.0
        %641 = vmatpush2.msra.mxu0 0.0
        %642 = vmatprep.subr.mxu0 0.0
        %643 = vmatpush2.msra.mxu0 0.0
        %644 = vmatprep.subr.mxu0 0.0
        %645 = vmatpush2.msra.mxu0 0.0
        %646 = vmatprep.mubr.f32.mxu0 0.0
        %647 = vmatmul.mubr.f32.gmra.mxu0 %v576
        %v648 = vpop.f32.mrf.mxu0
        %v649 = vadd.f32 0.0, %v648
        %v650 = vpop.f32.mrf.mxu0
        %v651 = vadd.f32 0.0, %v650
        %652 = vdwg.mxu0
        %653 = vrot.lane.b32.xlu0 %v557, 112
        %v654 = vpop.permute.xlu0 %653
        %655 = vrot.lane.b32.xlu0 %v558, 112
        %v656 = vpop.permute.xlu0 %655
        %657 = vrot.lane.b32.xlu0 %v559, 112
        %v658 = vpop.permute.xlu0 %657
        %vm659 = vcmask 916480
        %v660 = vsel %vm659, %v654, %v656
        %v661 = vsel %vm659, %v656, %v658
        %v663 = vsel %vm440, %v560, 0
        %v665 = vsel %vm444, %v660, 0
        %v667 = vsel %vm444, %v661, 0
        %669 = vmatprep.subr.mxu0 0.0
        %670 = vmatpush1.msra.mxu0 0.0
        %671 = vmatprep.subr.mxu0 0.0
        %672 = vmatpush1.msra.mxu0 0.0
        %673 = vmatprep.subr.mxu0 0.0
        %674 = vmatpush1.msra.mxu0 0.0
        %675 = vmatprep.subr.mxu0 0.0
        %676 = vmatpush1.msra.mxu0 0.0
        %677 = vmatprep.subr.mxu0 0.0
        %678 = vmatpush1.msra.mxu0 0.0
        %679 = vmatprep.subr.mxu0 0.0
        %680 = vmatpush1.msra.mxu0 0.0
        %681 = vmatprep.subr.mxu0 0.0
        %682 = vmatpush1.msra.mxu0 0.0
        %683 = vmatprep.subr.mxu0 0.0
        %684 = vmatpush1.msra.mxu0 0.0
        %685 = vmatprep.subr.mxu0 0.0
        %686 = vmatpush1.msra.mxu0 0.0
        %687 = vmatprep.subr.mxu0 0.0
        %688 = vmatpush1.msra.mxu0 0.0
        %689 = vmatprep.subr.mxu0 0.0
        %690 = vmatpush1.msra.mxu0 0.0
        %691 = vmatprep.subr.mxu0 0.0
        %692 = vmatpush1.msra.mxu0 0.0
        %693 = vmatprep.subr.mxu0 0.0
        %694 = vmatpush1.msra.mxu0 0.0
        %695 = vmatprep.subr.mxu0 0.0
        %696 = vmatpush1.msra.mxu0 0.0
        %697 = vmatprep.subr.mxu0 0.0
        %698 = vmatpush1.msra.mxu0 0.0
        %699 = vmatprep.subr.mxu0 %v667
        %700 = vmatpush1.msra.mxu0 %v665
        %701 = vmatprep.subr.mxu0 0.0
        %702 = vmatpush2.msra.mxu0 0.0
        %703 = vmatprep.subr.mxu0 0.0
        %704 = vmatpush2.msra.mxu0 0.0
        %705 = vmatprep.subr.mxu0 0.0
        %706 = vmatpush2.msra.mxu0 0.0
        %707 = vmatprep.subr.mxu0 0.0
        %708 = vmatpush2.msra.mxu0 0.0
        %709 = vmatprep.subr.mxu0 0.0
        %710 = vmatpush2.msra.mxu0 0.0
        %711 = vmatprep.subr.mxu0 0.0
        %712 = vmatpush2.msra.mxu0 0.0
        %713 = vmatprep.subr.mxu0 0.0
        %714 = vmatpush2.msra.mxu0 0.0
        %715 = vmatprep.subr.mxu0 0.0
        %716 = vmatpush2.msra.mxu0 0.0
        %717 = vmatprep.subr.mxu0 0.0
        %718 = vmatpush2.msra.mxu0 0.0
        %719 = vmatprep.subr.mxu0 0.0
        %720 = vmatpush2.msra.mxu0 0.0
        %721 = vmatprep.subr.mxu0 0.0
        %722 = vmatpush2.msra.mxu0 0.0
        %723 = vmatprep.subr.mxu0 0.0
        %724 = vmatpush2.msra.mxu0 0.0
        %725 = vmatprep.subr.mxu0 0.0
        %726 = vmatpush2.msra.mxu0 0.0
        %727 = vmatprep.subr.mxu0 0.0
        %728 = vmatpush2.msra.mxu0 0.0
        %729 = vmatprep.subr.mxu0 0.0
        %730 = vmatpush2.msra.mxu0 0.0
        %731 = vmatprep.subr.mxu0 0.0
        %732 = vmatpush2.msra.mxu0 0.0
        %733 = vmatprep.mubr.f32.mxu0 0.0
        %734 = vmatmul.mubr.f32.gmra.mxu0 %v663
        %v735 = vpop.f32.mrf.mxu0
        %v736 = vadd.f32 %v649, %v735
        %v737 = vpop.f32.mrf.mxu0
        %v738 = vadd.f32 %v651, %v737
        %739 = vdwg.mxu0
        %s740 = scalar_lea.vmem %s3, 24
        %v741 = vld [vmem:[%s740] sm:$0xf]
        %742 = vrot.lane.b32.xlu0 %v557, 80
        %v743 = vpop.permute.xlu0 %742
        %744 = vrot.lane.b32.xlu0 %v558, 80
        %v745 = vpop.permute.xlu0 %744
        %746 = vrot.lane.b32.xlu0 %v559, 80
        %v747 = vpop.permute.xlu0 %746
        %vm748 = vcmask 654336
        %v749 = vsel %vm748, %v743, %v745
        %v750 = vsel %vm748, %v745, %v747
        %v752 = vsel %vm440, %v741, 0
        %v754 = vsel %vm444, %v749, 0
        %v756 = vsel %vm444, %v750, 0
        %758 = vmatprep.subr.mxu0 0.0
        %759 = vmatpush1.msra.mxu0 0.0
        %760 = vmatprep.subr.mxu0 0.0
        %761 = vmatpush1.msra.mxu0 0.0
        %762 = vmatprep.subr.mxu0 0.0
        %763 = vmatpush1.msra.mxu0 0.0
        %764 = vmatprep.subr.mxu0 0.0
        %765 = vmatpush1.msra.mxu0 0.0
        %766 = vmatprep.subr.mxu0 0.0
        %767 = vmatpush1.msra.mxu0 0.0
        %768 = vmatprep.subr.mxu0 0.0
        %769 = vmatpush1.msra.mxu0 0.0
        %770 = vmatprep.subr.mxu0 0.0
        %771 = vmatpush1.msra.mxu0 0.0
        %772 = vmatprep.subr.mxu0 0.0
        %773 = vmatpush1.msra.mxu0 0.0
        %774 = vmatprep.subr.mxu0 0.0
        %775 = vmatpush1.msra.mxu0 0.0
        %776 = vmatprep.subr.mxu0 0.0
        %777 = vmatpush1.msra.mxu0 0.0
        %778 = vmatprep.subr.mxu0 0.0
        %779 = vmatpush1.msra.mxu0 0.0
        %780 = vmatprep.subr.mxu0 0.0
        %781 = vmatpush1.msra.mxu0 0.0
        %782 = vmatprep.subr.mxu0 0.0
        %783 = vmatpush1.msra.mxu0 0.0
        %784 = vmatprep.subr.mxu0 0.0
        %785 = vmatpush1.msra.mxu0 0.0
        %786 = vmatprep.subr.mxu0 0.0
        %787 = vmatpush1.msra.mxu0 0.0
        %788 = vmatprep.subr.mxu0 %v756
        %789 = vmatpush1.msra.mxu0 %v754
        %790 = vmatprep.subr.mxu0 0.0
        %791 = vmatpush2.msra.mxu0 0.0
        %792 = vmatprep.subr.mxu0 0.0
        %793 = vmatpush2.msra.mxu0 0.0
        %794 = vmatprep.subr.mxu0 0.0
        %795 = vmatpush2.msra.mxu0 0.0
        %796 = vmatprep.subr.mxu0 0.0
        %797 = vmatpush2.msra.mxu0 0.0
        %798 = vmatprep.subr.mxu0 0.0
        %799 = vmatpush2.msra.mxu0 0.0
        %800 = vmatprep.subr.mxu0 0.0
        %801 = vmatpush2.msra.mxu0 0.0
        %802 = vmatprep.subr.mxu0 0.0
        %803 = vmatpush2.msra.mxu0 0.0
        %804 = vmatprep.subr.mxu0 0.0
        %805 = vmatpush2.msra.mxu0 0.0
        %806 = vmatprep.subr.mxu0 0.0
        %807 = vmatpush2.msra.mxu0 0.0
        %808 = vmatprep.subr.mxu0 0.0
        %809 = vmatpush2.msra.mxu0 0.0
        %810 = vmatprep.subr.mxu0 0.0
        %811 = vmatpush2.msra.mxu0 0.0
        %812 = vmatprep.subr.mxu0 0.0
        %813 = vmatpush2.msra.mxu0 0.0
        %814 = vmatprep.subr.mxu0 0.0
        %815 = vmatpush2.msra.mxu0 0.0
        %816 = vmatprep.subr.mxu0 0.0
        %817 = vmatpush2.msra.mxu0 0.0
        %818 = vmatprep.subr.mxu0 0.0
        %819 = vmatpush2.msra.mxu0 0.0
        %820 = vmatprep.subr.mxu0 0.0
        %821 = vmatpush2.msra.mxu0 0.0
        %822 = vmatprep.mubr.f32.mxu0 0.0
        %823 = vmatmul.mubr.f32.gmra.mxu0 %v752
        %v824 = vpop.f32.mrf.mxu0
        %v825 = vadd.f32 0.0, %v824
        %v826 = vpop.f32.mrf.mxu0
        %v827 = vadd.f32 0.0, %v826
        %828 = vdwg.mxu0
        %v829 = vadd.f32 %v736, %v825
        %v830 = vadd.f32 %v738, %v827
        %v831 = vld [vmem:[#allocation2] sm:$0xff]
        %v832 = vld [vmem:[#allocation2 + $0x8] sm:$0xff]
        %s833 = scalar_lea.vmem %s3, 4
        %v834 = vld [vmem:[%s833] sm:$0xf]
        %v837 = vcombine.high %v831, %v831
        %838 = vrot.lane.b32.xlu0 %v831, 16
        %v839 = vpop.permute.xlu0 %838
        %840 = vrot.lane.b32.xlu0 %v837, 16
        %v841 = vpop.permute.xlu0 %840
        %842 = vrot.lane.b32.xlu0 %v832, 16
        %v843 = vpop.permute.xlu0 %842
        %vm844 = vcmask 130048
        %v845 = vsel %vm844, %v839, %v841
        %v846 = vsel %vm844, %v841, %v843
        %v848 = vsel %vm440, %v834, 0
        %v850 = vsel %vm444, %v845, 0
        %v852 = vsel %vm444, %v846, 0
        %854 = vmatprep.subr.mxu0 0.0
        %855 = vmatpush1.msra.mxu0 0.0
        %856 = vmatprep.subr.mxu0 0.0
        %857 = vmatpush1.msra.mxu0 0.0
        %858 = vmatprep.subr.mxu0 0.0
        %859 = vmatpush1.msra.mxu0 0.0
        %860 = vmatprep.subr.mxu0 0.0
        %861 = vmatpush1.msra.mxu0 0.0
        %862 = vmatprep.subr.mxu0 0.0
        %863 = vmatpush1.msra.mxu0 0.0
        %864 = vmatprep.subr.mxu0 0.0
        %865 = vmatpush1.msra.mxu0 0.0
        %866 = vmatprep.subr.mxu0 0.0
        %867 = vmatpush1.msra.mxu0 0.0
        %868 = vmatprep.subr.mxu0 0.0
        %869 = vmatpush1.msra.mxu0 0.0
        %870 = vmatprep.subr.mxu0 0.0
        %871 = vmatpush1.msra.mxu0 0.0
        %872 = vmatprep.subr.mxu0 0.0
        %873 = vmatpush1.msra.mxu0 0.0
        %874 = vmatprep.subr.mxu0 0.0
        %875 = vmatpush1.msra.mxu0 0.0
        %876 = vmatprep.subr.mxu0 0.0
        %877 = vmatpush1.msra.mxu0 0.0
        %878 = vmatprep.subr.mxu0 0.0
        %879 = vmatpush1.msra.mxu0 0.0
        %880 = vmatprep.subr.mxu0 0.0
        %881 = vmatpush1.msra.mxu0 0.0
        %882 = vmatprep.subr.mxu0 0.0
        %883 = vmatpush1.msra.mxu0 0.0
        %884 = vmatprep.subr.mxu0 %v852
        %885 = vmatpush1.msra.mxu0 %v850
        %886 = vmatprep.subr.mxu0 0.0
        %887 = vmatpush2.msra.mxu0 0.0
        %888 = vmatprep.subr.mxu0 0.0
        %889 = vmatpush2.msra.mxu0 0.0
        %890 = vmatprep.subr.mxu0 0.0
        %891 = vmatpush2.msra.mxu0 0.0
        %892 = vmatprep.subr.mxu0 0.0
        %893 = vmatpush2.msra.mxu0 0.0
        %894 = vmatprep.subr.mxu0 0.0
        %895 = vmatpush2.msra.mxu0 0.0
        %896 = vmatprep.subr.mxu0 0.0
        %897 = vmatpush2.msra.mxu0 0.0
        %898 = vmatprep.subr.mxu0 0.0
        %899 = vmatpush2.msra.mxu0 0.0
        %900 = vmatprep.subr.mxu0 0.0
        %901 = vmatpush2.msra.mxu0 0.0
        %902 = vmatprep.subr.mxu0 0.0
        %903 = vmatpush2.msra.mxu0 0.0
        %904 = vmatprep.subr.mxu0 0.0
        %905 = vmatpush2.msra.mxu0 0.0
        %906 = vmatprep.subr.mxu0 0.0
        %907 = vmatpush2.msra.mxu0 0.0
        %908 = vmatprep.subr.mxu0 0.0
        %909 = vmatpush2.msra.mxu0 0.0
        %910 = vmatprep.subr.mxu0 0.0
        %911 = vmatpush2.msra.mxu0 0.0
        %912 = vmatprep.subr.mxu0 0.0
        %913 = vmatpush2.msra.mxu0 0.0
        %914 = vmatprep.subr.mxu0 0.0
        %915 = vmatpush2.msra.mxu0 0.0
        %916 = vmatprep.subr.mxu0 0.0
        %917 = vmatpush2.msra.mxu0 0.0
        %918 = vmatprep.mubr.f32.mxu0 0.0
        %919 = vmatmul.mubr.f32.gmra.mxu0 %v848
        %v920 = vpop.f32.mrf.mxu0
        %v921 = vadd.f32 0.0, %v920
        %v922 = vpop.f32.mrf.mxu0
        %v923 = vadd.f32 0.0, %v922
        %924 = vdwg.mxu0
        %v925 = vadd.f32 %v829, %v921
        %v926 = vadd.f32 %v830, %v923
        %s927 = scalar_lea.vmem %s3, 16
        %v928 = vld [vmem:[%s927] sm:$0xf]
        %v930 = vsel %vm440, %v928, 0
        %v932 = vsel %vm444, %v837, 0
        %v934 = vsel %vm444, %v832, 0
        %936 = vmatprep.subr.mxu0 0.0
        %937 = vmatpush1.msra.mxu0 0.0
        %938 = vmatprep.subr.mxu0 0.0
        %939 = vmatpush1.msra.mxu0 0.0
        %940 = vmatprep.subr.mxu0 0.0
        %941 = vmatpush1.msra.mxu0 0.0
        %942 = vmatprep.subr.mxu0 0.0
        %943 = vmatpush1.msra.mxu0 0.0
        %944 = vmatprep.subr.mxu0 0.0
        %945 = vmatpush1.msra.mxu0 0.0
        %946 = vmatprep.subr.mxu0 0.0
        %947 = vmatpush1.msra.mxu0 0.0
        %948 = vmatprep.subr.mxu0 0.0
        %949 = vmatpush1.msra.mxu0 0.0
        %950 = vmatprep.subr.mxu0 0.0
        %951 = vmatpush1.msra.mxu0 0.0
        %952 = vmatprep.subr.mxu0 0.0
        %953 = vmatpush1.msra.mxu0 0.0
        %954 = vmatprep.subr.mxu0 0.0
        %955 = vmatpush1.msra.mxu0 0.0
        %956 = vmatprep.subr.mxu0 0.0
        %957 = vmatpush1.msra.mxu0 0.0
        %958 = vmatprep.subr.mxu0 0.0
        %959 = vmatpush1.msra.mxu0 0.0
        %960 = vmatprep.subr.mxu0 0.0
        %961 = vmatpush1.msra.mxu0 0.0
        %962 = vmatprep.subr.mxu0 0.0
        %963 = vmatpush1.msra.mxu0 0.0
        %964 = vmatprep.subr.mxu0 0.0
        %965 = vmatpush1.msra.mxu0 0.0
        %966 = vmatprep.subr.mxu0 %v934
        %967 = vmatpush1.msra.mxu0 %v932
        %968 = vmatprep.subr.mxu0 0.0
        %969 = vmatpush2.msra.mxu0 0.0
        %970 = vmatprep.subr.mxu0 0.0
        %971 = vmatpush2.msra.mxu0 0.0
        %972 = vmatprep.subr.mxu0 0.0
        %973 = vmatpush2.msra.mxu0 0.0
        %974 = vmatprep.subr.mxu0 0.0
        %975 = vmatpush2.msra.mxu0 0.0
        %976 = vmatprep.subr.mxu0 0.0
        %977 = vmatpush2.msra.mxu0 0.0
        %978 = vmatprep.subr.mxu0 0.0
        %979 = vmatpush2.msra.mxu0 0.0
        %980 = vmatprep.subr.mxu0 0.0
        %981 = vmatpush2.msra.mxu0 0.0
        %982 = vmatprep.subr.mxu0 0.0
        %983 = vmatpush2.msra.mxu0 0.0
        %984 = vmatprep.subr.mxu0 0.0
        %985 = vmatpush2.msra.mxu0 0.0
        %986 = vmatprep.subr.mxu0 0.0
        %987 = vmatpush2.msra.mxu0 0.0
        %988 = vmatprep.subr.mxu0 0.0
        %989 = vmatpush2.msra.mxu0 0.0
        %990 = vmatprep.subr.mxu0 0.0
        %991 = vmatpush2.msra.mxu0 0.0
        %992 = vmatprep.subr.mxu0 0.0
        %993 = vmatpush2.msra.mxu0 0.0
        %994 = vmatprep.subr.mxu0 0.0
        %995 = vmatpush2.msra.mxu0 0.0
        %996 = vmatprep.subr.mxu0 0.0
        %997 = vmatpush2.msra.mxu0 0.0
        %998 = vmatprep.subr.mxu0 0.0
        %999 = vmatpush2.msra.mxu0 0.0
        %1000 = vmatprep.mubr.f32.mxu0 0.0
        %1001 = vmatmul.mubr.f32.gmra.mxu0 %v930
        %v1002 = vpop.f32.mrf.mxu0
        %v1003 = vadd.f32 0.0, %v1002
        %v1004 = vpop.f32.mrf.mxu0
        %v1005 = vadd.f32 0.0, %v1004
        %1006 = vdwg.mxu0
        %v1007 = vadd.f32 %v925, %v1003
        %v1008 = vadd.f32 %v926, %v1005
        %s1009 = scalar_lea.vmem %s3, 28
        %v1010 = vld [vmem:[%s1009] sm:$0xf]
        %v1011 = vcombine.high %v832, %v832
        %1012 = vrot.lane.b32.xlu0 %v837, 112
        %v1013 = vpop.permute.xlu0 %1012
        %1014 = vrot.lane.b32.xlu0 %v832, 112
        %v1015 = vpop.permute.xlu0 %1014
        %1016 = vrot.lane.b32.xlu0 %v1011, 112
        %v1017 = vpop.permute.xlu0 %1016
        %v1018 = vsel %vm659, %v1013, %v1015
        %v1019 = vsel %vm659, %v1015, %v1017
        %v1021 = vsel %vm440, %v1010, 0
        %v1023 = vsel %vm444, %v1018, 0
        %v1025 = vsel %vm444, %v1019, 0
        %1027 = vmatprep.subr.mxu0 0.0
        %1028 = vmatpush1.msra.mxu0 0.0
        %1029 = vmatprep.subr.mxu0 0.0
        %1030 = vmatpush1.msra.mxu0 0.0
        %1031 = vmatprep.subr.mxu0 0.0
        %1032 = vmatpush1.msra.mxu0 0.0
        %1033 = vmatprep.subr.mxu0 0.0
        %1034 = vmatpush1.msra.mxu0 0.0
        %1035 = vmatprep.subr.mxu0 0.0
        %1036 = vmatpush1.msra.mxu0 0.0
        %1037 = vmatprep.subr.mxu0 0.0
        %1038 = vmatpush1.msra.mxu0 0.0
        %1039 = vmatprep.subr.mxu0 0.0
        %1040 = vmatpush1.msra.mxu0 0.0
        %1041 = vmatprep.subr.mxu0 0.0
        %1042 = vmatpush1.msra.mxu0 0.0
        %1043 = vmatprep.subr.mxu0 0.0
        %1044 = vmatpush1.msra.mxu0 0.0
        %1045 = vmatprep.subr.mxu0 0.0
        %1046 = vmatpush1.msra.mxu0 0.0
        %1047 = vmatprep.subr.mxu0 0.0
        %1048 = vmatpush1.msra.mxu0 0.0
        %1049 = vmatprep.subr.mxu0 0.0
        %1050 = vmatpush1.msra.mxu0 0.0
        %1051 = vmatprep.subr.mxu0 0.0
        %1052 = vmatpush1.msra.mxu0 0.0
        %1053 = vmatprep.subr.mxu0 0.0
        %1054 = vmatpush1.msra.mxu0 0.0
        %1055 = vmatprep.subr.mxu0 0.0
        %1056 = vmatpush1.msra.mxu0 0.0
        %1057 = vmatprep.subr.mxu0 %v1025
        %1058 = vmatpush1.msra.mxu0 %v1023
        %1059 = vmatprep.subr.mxu0 0.0
        %1060 = vmatpush2.msra.mxu0 0.0
        %1061 = vmatprep.subr.mxu0 0.0
        %1062 = vmatpush2.msra.mxu0 0.0
        %1063 = vmatprep.subr.mxu0 0.0
        %1064 = vmatpush2.msra.mxu0 0.0
        %1065 = vmatprep.subr.mxu0 0.0
        %1066 = vmatpush2.msra.mxu0 0.0
        %1067 = vmatprep.subr.mxu0 0.0
        %1068 = vmatpush2.msra.mxu0 0.0
        %1069 = vmatprep.subr.mxu0 0.0
        %1070 = vmatpush2.msra.mxu0 0.0
        %1071 = vmatprep.subr.mxu0 0.0
        %1072 = vmatpush2.msra.mxu0 0.0
        %1073 = vmatprep.subr.mxu0 0.0
        %1074 = vmatpush2.msra.mxu0 0.0
        %1075 = vmatprep.subr.mxu0 0.0
        %1076 = vmatpush2.msra.mxu0 0.0
        %1077 = vmatprep.subr.mxu0 0.0
        %1078 = vmatpush2.msra.mxu0 0.0
        %1079 = vmatprep.subr.mxu0 0.0
        %1080 = vmatpush2.msra.mxu0 0.0
        %1081 = vmatprep.subr.mxu0 0.0
        %1082 = vmatpush2.msra.mxu0 0.0
        %1083 = vmatprep.subr.mxu0 0.0
        %1084 = vmatpush2.msra.mxu0 0.0
        %1085 = vmatprep.subr.mxu0 0.0
        %1086 = vmatpush2.msra.mxu0 0.0
        %1087 = vmatprep.subr.mxu0 0.0
        %1088 = vmatpush2.msra.mxu0 0.0
        %1089 = vmatprep.subr.mxu0 0.0
        %1090 = vmatpush2.msra.mxu0 0.0
        %1091 = vmatprep.mubr.f32.mxu0 0.0
        %1092 = vmatmul.mubr.f32.gmra.mxu0 %v1021
        %v1093 = vpop.f32.mrf.mxu0
        %v1094 = vadd.f32 0.0, %v1093
        %v1095 = vpop.f32.mrf.mxu0
        %v1096 = vadd.f32 0.0, %v1095
        %1097 = vdwg.mxu0
        %v1098 = vadd.f32 %v1007, %v1094
        %v1099 = vadd.f32 %v1008, %v1096
        %v1100 = vld [vmem:[#allocation2] sm:$0xff]
        %v1101 = vld [vmem:[#allocation2 + $0x8] sm:$0xff]
        %vm1102 = vcmp.lt.s32.totalorder %v425, 15
        %vm1103 = vcmp.lt.s32.totalorder %v426, 15
        %vm1104 = vcmp.lt.s32.totalorder %v427, 15
        %v1105 = vsel %vm1102, 1, 0
        %v1106 = vsel %vm1103, 1, 0
        %v1107 = vsel %vm1104, 1, 0
        %vm1108 = vcmp.eq.s32.totalorder %v1105, 1
        %vm1109 = vcmp.eq.s32.totalorder %v1106, 1
        %vm1110 = vcmp.eq.s32.totalorder %v1107, 1
        %v1113 = vcombine.high %v1100, %v1100
        %v1114 = vcombine.high %v1101, %v1101
        %1115 = vrot.lane.b32.xlu0 %v1100, 31
        %v1116 = vpop.permute.xlu0 %1115
        %1117 = vrot.lane.b32.xlu0 %v1113, 31
        %v1118 = vpop.permute.xlu0 %1117
        %1119 = vrot.lane.b32.xlu0 %v1101, 31
        %v1120 = vpop.permute.xlu0 %1119
        %1121 = vrot.lane.b32.xlu0 %v1114, 31
        %v1122 = vpop.permute.xlu0 %1121
        %vm1123 = vcmask 252928
        %v1124 = vsel %vm1123, %v1116, %v1118
        %v1125 = vsel %vm1123, %v1118, %v1120
        %v1126 = vsel %vm1123, %v1120, %v1122
        %v1130 = vsel %vm1108, %v1124, 0.0
        %v1131 = vsel %vm1109, %v1125, 0.0
        %v1132 = vsel %vm1110, %v1126, 0.0
        %s1133 = scalar_lea.vmem %s3, 8
        %v1134 = vld [vmem:[%s1133] sm:$0xf]
        %1138 = vrot.lane.b32.xlu0 %v1130, 112
        %v1139 = vpop.permute.xlu0 %1138
        %1140 = vrot.lane.b32.xlu0 %v1131, 112
        %v1141 = vpop.permute.xlu0 %1140
        %1142 = vrot.lane.b32.xlu0 %v1132, 112
        %v1143 = vpop.permute.xlu0 %1142
        %v1144 = vsel %vm659, %v1139, %v1141
        %v1145 = vsel %vm659, %v1141, %v1143
        %v1147 = vsel %vm440, %v1134, 0
        %v1149 = vsel %vm444, %v1144, 0
        %v1151 = vsel %vm444, %v1145, 0
        %1153 = vmatprep.subr.mxu0 0.0
        %1154 = vmatpush1.msra.mxu0 0.0
        %1155 = vmatprep.subr.mxu0 0.0
        %1156 = vmatpush1.msra.mxu0 0.0
        %1157 = vmatprep.subr.mxu0 0.0
        %1158 = vmatpush1.msra.mxu0 0.0
        %1159 = vmatprep.subr.mxu0 0.0
        %1160 = vmatpush1.msra.mxu0 0.0
        %1161 = vmatprep.subr.mxu0 0.0
        %1162 = vmatpush1.msra.mxu0 0.0
        %1163 = vmatprep.subr.mxu0 0.0
        %1164 = vmatpush1.msra.mxu0 0.0
        %1165 = vmatprep.subr.mxu0 0.0
        %1166 = vmatpush1.msra.mxu0 0.0
        %1167 = vmatprep.subr.mxu0 0.0
        %1168 = vmatpush1.msra.mxu0 0.0
        %1169 = vmatprep.subr.mxu0 0.0
        %1170 = vmatpush1.msra.mxu0 0.0
        %1171 = vmatprep.subr.mxu0 0.0
        %1172 = vmatpush1.msra.mxu0 0.0
        %1173 = vmatprep.subr.mxu0 0.0
        %1174 = vmatpush1.msra.mxu0 0.0
        %1175 = vmatprep.subr.mxu0 0.0
        %1176 = vmatpush1.msra.mxu0 0.0
        %1177 = vmatprep.subr.mxu0 0.0
        %1178 = vmatpush1.msra.mxu0 0.0
        %1179 = vmatprep.subr.mxu0 0.0
        %1180 = vmatpush1.msra.mxu0 0.0
        %1181 = vmatprep.subr.mxu0 0.0
        %1182 = vmatpush1.msra.mxu0 0.0
        %1183 = vmatprep.subr.mxu0 %v1151
        %1184 = vmatpush1.msra.mxu0 %v1149
        %1185 = vmatprep.subr.mxu0 0.0
        %1186 = vmatpush2.msra.mxu0 0.0
        %1187 = vmatprep.subr.mxu0 0.0
        %1188 = vmatpush2.msra.mxu0 0.0
        %1189 = vmatprep.subr.mxu0 0.0
        %1190 = vmatpush2.msra.mxu0 0.0
        %1191 = vmatprep.subr.mxu0 0.0
        %1192 = vmatpush2.msra.mxu0 0.0
        %1193 = vmatprep.subr.mxu0 0.0
        %1194 = vmatpush2.msra.mxu0 0.0
        %1195 = vmatprep.subr.mxu0 0.0
        %1196 = vmatpush2.msra.mxu0 0.0
        %1197 = vmatprep.subr.mxu0 0.0
        %1198 = vmatpush2.msra.mxu0 0.0
        %1199 = vmatprep.subr.mxu0 0.0
        %1200 = vmatpush2.msra.mxu0 0.0
        %1201 = vmatprep.subr.mxu0 0.0
        %1202 = vmatpush2.msra.mxu0 0.0
        %1203 = vmatprep.subr.mxu0 0.0
        %1204 = vmatpush2.msra.mxu0 0.0
        %1205 = vmatprep.subr.mxu0 0.0
        %1206 = vmatpush2.msra.mxu0 0.0
        %1207 = vmatprep.subr.mxu0 0.0
        %1208 = vmatpush2.msra.mxu0 0.0
        %1209 = vmatprep.subr.mxu0 0.0
        %1210 = vmatpush2.msra.mxu0 0.0
        %1211 = vmatprep.subr.mxu0 0.0
        %1212 = vmatpush2.msra.mxu0 0.0
        %1213 = vmatprep.subr.mxu0 0.0
        %1214 = vmatpush2.msra.mxu0 0.0
        %1215 = vmatprep.subr.mxu0 0.0
        %1216 = vmatpush2.msra.mxu0 0.0
        %1217 = vmatprep.mubr.f32.mxu0 0.0
        %1218 = vmatmul.mubr.f32.gmra.mxu0 %v1147
        %v1219 = vpop.f32.mrf.mxu0
        %v1220 = vadd.f32 0.0, %v1219
        %v1221 = vpop.f32.mrf.mxu0
        %v1222 = vadd.f32 0.0, %v1221
        %1223 = vdwg.mxu0
        %v1224 = vadd.f32 %v1098, %v1220
        %v1225 = vadd.f32 %v1099, %v1222
        %s1226 = scalar_lea.vmem %s3, 20
        %v1227 = vld [vmem:[%s1226] sm:$0xf]
        %1228 = vrot.lane.b32.xlu0 %v1130, 96
        %v1229 = vpop.permute.xlu0 %1228
        %1230 = vrot.lane.b32.xlu0 %v1131, 96
        %v1231 = vpop.permute.xlu0 %1230
        %1232 = vrot.lane.b32.xlu0 %v1132, 96
        %v1233 = vpop.permute.xlu0 %1232
        %v1234 = vsel %vm572, %v1229, %v1231
        %v1235 = vsel %vm572, %v1231, %v1233
        %v1237 = vsel %vm440, %v1227, 0
        %v1239 = vsel %vm444, %v1234, 0
        %v1241 = vsel %vm444, %v1235, 0
        %1243 = vmatprep.subr.mxu0 0.0
        %1244 = vmatpush1.msra.mxu0 0.0
        %1245 = vmatprep.subr.mxu0 0.0
        %1246 = vmatpush1.msra.mxu0 0.0
        %1247 = vmatprep.subr.mxu0 0.0
        %1248 = vmatpush1.msra.mxu0 0.0
        %1249 = vmatprep.subr.mxu0 0.0
        %1250 = vmatpush1.msra.mxu0 0.0
        %1251 = vmatprep.subr.mxu0 0.0
        %1252 = vmatpush1.msra.mxu0 0.0
        %1253 = vmatprep.subr.mxu0 0.0
        %1254 = vmatpush1.msra.mxu0 0.0
        %1255 = vmatprep.subr.mxu0 0.0
        %1256 = vmatpush1.msra.mxu0 0.0
        %1257 = vmatprep.subr.mxu0 0.0
        %1258 = vmatpush1.msra.mxu0 0.0
        %1259 = vmatprep.subr.mxu0 0.0
        %1260 = vmatpush1.msra.mxu0 0.0
        %1261 = vmatprep.subr.mxu0 0.0
        %1262 = vmatpush1.msra.mxu0 0.0
        %1263 = vmatprep.subr.mxu0 0.0
        %1264 = vmatpush1.msra.mxu0 0.0
        %1265 = vmatprep.subr.mxu0 0.0
        %1266 = vmatpush1.msra.mxu0 0.0
        %1267 = vmatprep.subr.mxu0 0.0
        %1268 = vmatpush1.msra.mxu0 0.0
        %1269 = vmatprep.subr.mxu0 0.0
        %1270 = vmatpush1.msra.mxu0 0.0
        %1271 = vmatprep.subr.mxu0 0.0
        %1272 = vmatpush1.msra.mxu0 0.0
        %1273 = vmatprep.subr.mxu0 %v1241
        %1274 = vmatpush1.msra.mxu0 %v1239
        %1275 = vmatprep.subr.mxu0 0.0
        %1276 = vmatpush2.msra.mxu0 0.0
        %1277 = vmatprep.subr.mxu0 0.0
        %1278 = vmatpush2.msra.mxu0 0.0
        %1279 = vmatprep.subr.mxu0 0.0
        %1280 = vmatpush2.msra.mxu0 0.0
        %1281 = vmatprep.subr.mxu0 0.0
        %1282 = vmatpush2.msra.mxu0 0.0
        %1283 = vmatprep.subr.mxu0 0.0
        %1284 = vmatpush2.msra.mxu0 0.0
        %1285 = vmatprep.subr.mxu0 0.0
        %1286 = vmatpush2.msra.mxu0 0.0
        %1287 = vmatprep.subr.mxu0 0.0
        %1288 = vmatpush2.msra.mxu0 0.0
        %1289 = vmatprep.subr.mxu0 0.0
        %1290 = vmatpush2.msra.mxu0 0.0
        %1291 = vmatprep.subr.mxu0 0.0
        %1292 = vmatpush2.msra.mxu0 0.0
        %1293 = vmatprep.subr.mxu0 0.0
        %1294 = vmatpush2.msra.mxu0 0.0
        %1295 = vmatprep.subr.mxu0 0.0
        %1296 = vmatpush2.msra.mxu0 0.0
        %1297 = vmatprep.subr.mxu0 0.0
        %1298 = vmatpush2.msra.mxu0 0.0
        %1299 = vmatprep.subr.mxu0 0.0
        %1300 = vmatpush2.msra.mxu0 0.0
        %1301 = vmatprep.subr.mxu0 0.0
        %1302 = vmatpush2.msra.mxu0 0.0
        %1303 = vmatprep.subr.mxu0 0.0
        %1304 = vmatpush2.msra.mxu0 0.0
        %1305 = vmatprep.subr.mxu0 0.0
        %1306 = vmatpush2.msra.mxu0 0.0
        %1307 = vmatprep.mubr.f32.mxu0 0.0
        %1308 = vmatmul.mubr.f32.gmra.mxu0 %v1237
        %v1309 = vpop.f32.mrf.mxu0
        %v1310 = vadd.f32 0.0, %v1309
        %v1311 = vpop.f32.mrf.mxu0
        %v1312 = vadd.f32 0.0, %v1311
        %1313 = vdwg.mxu0
        %v1314 = vadd.f32 %v1224, %v1310
        %v1315 = vadd.f32 %v1225, %v1312
        %s1316 = scalar_lea.vmem %s3, 32
        %v1317 = vld [vmem:[%s1316] sm:$0xf]
        %1318 = vrot.lane.b32.xlu0 %v1130, 80
        %v1319 = vpop.permute.xlu0 %1318
        %1320 = vrot.lane.b32.xlu0 %v1131, 80
        %v1321 = vpop.permute.xlu0 %1320
        %1322 = vrot.lane.b32.xlu0 %v1132, 80
        %v1323 = vpop.permute.xlu0 %1322
        %v1324 = vsel %vm748, %v1319, %v1321
        %v1325 = vsel %vm748, %v1321, %v1323
        %v1327 = vsel %vm440, %v1317, 0
        %v1329 = vsel %vm444, %v1324, 0
        %v1331 = vsel %vm444, %v1325, 0
        %1333 = vmatprep.subr.mxu0 0.0
        %1334 = vmatpush1.msra.mxu0 0.0
        %1335 = vmatprep.subr.mxu0 0.0
        %1336 = vmatpush1.msra.mxu0 0.0
        %1337 = vmatprep.subr.mxu0 0.0
        %1338 = vmatpush1.msra.mxu0 0.0
        %1339 = vmatprep.subr.mxu0 0.0
        %1340 = vmatpush1.msra.mxu0 0.0
        %1341 = vmatprep.subr.mxu0 0.0
        %1342 = vmatpush1.msra.mxu0 0.0
        %1343 = vmatprep.subr.mxu0 0.0
        %1344 = vmatpush1.msra.mxu0 0.0
        %1345 = vmatprep.subr.mxu0 0.0
        %1346 = vmatpush1.msra.mxu0 0.0
        %1347 = vmatprep.subr.mxu0 0.0
        %1348 = vmatpush1.msra.mxu0 0.0
        %1349 = vmatprep.subr.mxu0 0.0
        %1350 = vmatpush1.msra.mxu0 0.0
        %1351 = vmatprep.subr.mxu0 0.0
        %1352 = vmatpush1.msra.mxu0 0.0
        %1353 = vmatprep.subr.mxu0 0.0
        %1354 = vmatpush1.msra.mxu0 0.0
        %1355 = vmatprep.subr.mxu0 0.0
        %1356 = vmatpush1.msra.mxu0 0.0
        %1357 = vmatprep.subr.mxu0 0.0
        %1358 = vmatpush1.msra.mxu0 0.0
        %1359 = vmatprep.subr.mxu0 0.0
        %1360 = vmatpush1.msra.mxu0 0.0
        %1361 = vmatprep.subr.mxu0 0.0
        %1362 = vmatpush1.msra.mxu0 0.0
        %1363 = vmatprep.subr.mxu0 %v1331
        %1364 = vmatpush1.msra.mxu0 %v1329
        %1365 = vmatprep.subr.mxu0 0.0
        %1366 = vmatpush2.msra.mxu0 0.0
        %1367 = vmatprep.subr.mxu0 0.0
        %1368 = vmatpush2.msra.mxu0 0.0
        %1369 = vmatprep.subr.mxu0 0.0
        %1370 = vmatpush2.msra.mxu0 0.0
        %1371 = vmatprep.subr.mxu0 0.0
        %1372 = vmatpush2.msra.mxu0 0.0
        %1373 = vmatprep.subr.mxu0 0.0
        %1374 = vmatpush2.msra.mxu0 0.0
        %1375 = vmatprep.subr.mxu0 0.0
        %1376 = vmatpush2.msra.mxu0 0.0
        %1377 = vmatprep.subr.mxu0 0.0
        %1378 = vmatpush2.msra.mxu0 0.0
        %1379 = vmatprep.subr.mxu0 0.0
        %1380 = vmatpush2.msra.mxu0 0.0
        %1381 = vmatprep.subr.mxu0 0.0
        %1382 = vmatpush2.msra.mxu0 0.0
        %1383 = vmatprep.subr.mxu0 0.0
        %1384 = vmatpush2.msra.mxu0 0.0
        %1385 = vmatprep.subr.mxu0 0.0
        %1386 = vmatpush2.msra.mxu0 0.0
        %1387 = vmatprep.subr.mxu0 0.0
        %1388 = vmatpush2.msra.mxu0 0.0
        %1389 = vmatprep.subr.mxu0 0.0
        %1390 = vmatpush2.msra.mxu0 0.0
        %1391 = vmatprep.subr.mxu0 0.0
        %1392 = vmatpush2.msra.mxu0 0.0
        %1393 = vmatprep.subr.mxu0 0.0
        %1394 = vmatpush2.msra.mxu0 0.0
        %1395 = vmatprep.subr.mxu0 0.0
        %1396 = vmatpush2.msra.mxu0 0.0
        %1397 = vmatprep.mubr.f32.mxu0 0.0
        %1398 = vmatmul.mubr.f32.gmra.mxu0 %v1327
        %v1399 = vpop.f32.mrf.mxu0
        %v1400 = vadd.f32 0.0, %v1399
        %v1401 = vpop.f32.mrf.mxu0
        %v1402 = vadd.f32 0.0, %v1401
        %1403 = vdwg.mxu0
        %v1404 = vadd.f32 %v1314, %v1400
        %v1405 = vadd.f32 %v1315, %v1402
        %v1406 = vld [vmem:[%s4] sm:$0xf]
        %1408 = vset.pattern.permute.xlu0 0
        %1409 = vperm.xlu0 %1408, %v1406
        %v1410 = vpop.permute.xlu0 %1409
        %v1412 = vadd.f32 %v1404, %v1410
        %v1413 = vadd.f32 %v1405, %v1410
        %v1414 = vmax.f32 %v1412, 0.0
        %v1415 = vmax.f32 %v1413, 0.0
        %v1416 = vsel %vm444, %v1414, -inf
        %v1417 = vsel %vm444, %v1415, -inf
        %v1418 = vmax.f32 %v1416, %v1417
        %1419 = vmax.xlane.f32.xlu0 %v1418
        %v1420 = vpop.xlane.xlu0 %1419
        %v1421 = vcombine.high %v520, %v521
        %1423 = vst [vmem:[#allocation2 + $0x4] sm:$0xff] %v1421
        %v1424 = vld [vmem:[#allocation2] sm:$0xff]
        %v1425 = vld [vmem:[#allocation2 + $0x8] sm:$0xff]
        %vm1426 = vcmp.ge.s32.totalorder %v425, 2
        %vm1427 = vcmp.ge.s32.totalorder %v426, 2
        %vm1428 = vcmp.ge.s32.totalorder %v427, 2
        %v1429 = vsel %vm1426, 1, 0
        %v1430 = vsel %vm1427, 1, 0
        %v1431 = vsel %vm1428, 1, 0
        %vm1432 = vcmp.eq.s32.totalorder %v1429, 1
        %vm1433 = vcmp.eq.s32.totalorder %v1430, 1
        %vm1434 = vcmp.eq.s32.totalorder %v1431, 1
        %v1437 = vcombine.high %v1424, %v1424
        %v1438 = vcombine.high %v1425, %v1425
        %1439 = vrot.lane.b32.xlu0 %v1424, 34
        %v1440 = vpop.permute.xlu0 %1439
        %1441 = vrot.lane.b32.xlu0 %v1437, 34
        %v1442 = vpop.permute.xlu0 %1441
        %1443 = vrot.lane.b32.xlu0 %v1425, 34
        %v1444 = vpop.permute.xlu0 %1443
        %1445 = vrot.lane.b32.xlu0 %v1438, 34
        %v1446 = vpop.permute.xlu0 %1445
        %vm1447 = vcmask 277504
        %v1448 = vsel %vm1447, %v1440, %v1442
        %v1449 = vsel %vm1447, %v1442, %v1444
        %v1450 = vsel %vm1447, %v1444, %v1446
        %v1454 = vsel %vm1432, %v1448, 0.0
        %v1455 = vsel %vm1433, %v1449, 0.0
        %v1456 = vsel %vm1434, %v1450, 0.0
        %s1457 = scalar_lea.vmem %s3, 36
        %v1458 = vld [vmem:[%s1457] sm:$0xf]
        %s1459 = scalar_lea.vmem %s3, 48
        %v1460 = vld [vmem:[%s1459] sm:$0xf]
        %1464 = vrot.lane.b32.xlu0 %v1454, 96
        %v1465 = vpop.permute.xlu0 %1464
        %1466 = vrot.lane.b32.xlu0 %v1455, 96
        %v1467 = vpop.permute.xlu0 %1466
        %1468 = vrot.lane.b32.xlu0 %v1456, 96
        %v1469 = vpop.permute.xlu0 %1468
        %v1470 = vsel %vm572, %v1465, %v1467
        %v1471 = vsel %vm572, %v1467, %v1469
        %v1473 = vsel %vm440, %v1460, 0
        %v1475 = vsel %vm444, %v1470, 0
        %v1477 = vsel %vm444, %v1471, 0
        %1479 = vmatprep.subr.mxu0 0.0
        %1480 = vmatpush1.msra.mxu0 0.0
        %1481 = vmatprep.subr.mxu0 0.0
        %1482 = vmatpush1.msra.mxu0 0.0
        %1483 = vmatprep.subr.mxu0 0.0
        %1484 = vmatpush1.msra.mxu0 0.0
        %1485 = vmatprep.subr.mxu0 0.0
        %1486 = vmatpush1.msra.mxu0 0.0
        %1487 = vmatprep.subr.mxu0 0.0
        %1488 = vmatpush1.msra.mxu0 0.0
        %1489 = vmatprep.subr.mxu0 0.0
        %1490 = vmatpush1.msra.mxu0 0.0
        %1491 = vmatprep.subr.mxu0 0.0
        %1492 = vmatpush1.msra.mxu0 0.0
        %1493 = vmatprep.subr.mxu0 0.0
        %1494 = vmatpush1.msra.mxu0 0.0
        %1495 = vmatprep.subr.mxu0 0.0
        %1496 = vmatpush1.msra.mxu0 0.0
        %1497 = vmatprep.subr.mxu0 0.0
        %1498 = vmatpush1.msra.mxu0 0.0
        %1499 = vmatprep.subr.mxu0 0.0
        %1500 = vmatpush1.msra.mxu0 0.0
        %1501 = vmatprep.subr.mxu0 0.0
        %1502 = vmatpush1.msra.mxu0 0.0
        %1503 = vmatprep.subr.mxu0 0.0
        %1504 = vmatpush1.msra.mxu0 0.0
        %1505 = vmatprep.subr.mxu0 0.0
        %1506 = vmatpush1.msra.mxu0 0.0
        %1507 = vmatprep.subr.mxu0 0.0
        %1508 = vmatpush1.msra.mxu0 0.0
        %1509 = vmatprep.subr.mxu0 %v1477
        %1510 = vmatpush1.msra.mxu0 %v1475
        %1511 = vmatprep.subr.mxu0 0.0
        %1512 = vmatpush2.msra.mxu0 0.0
        %1513 = vmatprep.subr.mxu0 0.0
        %1514 = vmatpush2.msra.mxu0 0.0
        %1515 = vmatprep.subr.mxu0 0.0
        %1516 = vmatpush2.msra.mxu0 0.0
        %1517 = vmatprep.subr.mxu0 0.0
        %1518 = vmatpush2.msra.mxu0 0.0
        %1519 = vmatprep.subr.mxu0 0.0
        %1520 = vmatpush2.msra.mxu0 0.0
        %1521 = vmatprep.subr.mxu0 0.0
        %1522 = vmatpush2.msra.mxu0 0.0
        %1523 = vmatprep.subr.mxu0 0.0
        %1524 = vmatpush2.msra.mxu0 0.0
        %1525 = vmatprep.subr.mxu0 0.0
        %1526 = vmatpush2.msra.mxu0 0.0
        %1527 = vmatprep.subr.mxu0 0.0
        %1528 = vmatpush2.msra.mxu0 0.0
        %1529 = vmatprep.subr.mxu0 0.0
        %1530 = vmatpush2.msra.mxu0 0.0
        %1531 = vmatprep.subr.mxu0 0.0
        %1532 = vmatpush2.msra.mxu0 0.0
        %1533 = vmatprep.subr.mxu0 0.0
        %1534 = vmatpush2.msra.mxu0 0.0
        %1535 = vmatprep.subr.mxu0 0.0
        %1536 = vmatpush2.msra.mxu0 0.0
        %1537 = vmatprep.subr.mxu0 0.0
        %1538 = vmatpush2.msra.mxu0 0.0
        %1539 = vmatprep.subr.mxu0 0.0
        %1540 = vmatpush2.msra.mxu0 0.0
        %1541 = vmatprep.subr.mxu0 0.0
        %1542 = vmatpush2.msra.mxu0 0.0
        %1543 = vmatprep.mubr.f32.mxu0 0.0
        %1544 = vmatmul.mubr.f32.gmra.mxu0 %v1473
        %v1545 = vpop.f32.mrf.mxu0
        %v1546 = vadd.f32 0.0, %v1545
        %v1547 = vpop.f32.mrf.mxu0
        %v1548 = vadd.f32 0.0, %v1547
        %1549 = vdwg.mxu0
        %v1551 = vsel %vm440, %v1458, 0
        %v1553 = vsel %vm444, %v1454, 0
        %v1555 = vsel %vm444, %v1455, 0
        %1557 = vmatprep.subr.mxu0 0.0
        %1558 = vmatpush1.msra.mxu0 0.0
        %1559 = vmatprep.subr.mxu0 0.0
        %1560 = vmatpush1.msra.mxu0 0.0
        %1561 = vmatprep.subr.mxu0 0.0
        %1562 = vmatpush1.msra.mxu0 0.0
        %1563 = vmatprep.subr.mxu0 0.0
        %1564 = vmatpush1.msra.mxu0 0.0
        %1565 = vmatprep.subr.mxu0 0.0
        %1566 = vmatpush1.msra.mxu0 0.0
        %1567 = vmatprep.subr.mxu0 0.0
        %1568 = vmatpush1.msra.mxu0 0.0
        %1569 = vmatprep.subr.mxu0 0.0
        %1570 = vmatpush1.msra.mxu0 0.0
        %1571 = vmatprep.subr.mxu0 0.0
        %1572 = vmatpush1.msra.mxu0 0.0
        %1573 = vmatprep.subr.mxu0 0.0
        %1574 = vmatpush1.msra.mxu0 0.0
        %1575 = vmatprep.subr.mxu0 0.0
        %1576 = vmatpush1.msra.mxu0 0.0
        %1577 = vmatprep.subr.mxu0 0.0
        %1578 = vmatpush1.msra.mxu0 0.0
        %1579 = vmatprep.subr.mxu0 0.0
        %1580 = vmatpush1.msra.mxu0 0.0
        %1581 = vmatprep.subr.mxu0 0.0
        %1582 = vmatpush1.msra.mxu0 0.0
        %1583 = vmatprep.subr.mxu0 0.0
        %1584 = vmatpush1.msra.mxu0 0.0
        %1585 = vmatprep.subr.mxu0 0.0
        %1586 = vmatpush1.msra.mxu0 0.0
        %1587 = vmatprep.subr.mxu0 %v1555
        %1588 = vmatpush1.msra.mxu0 %v1553
        %1589 = vmatprep.subr.mxu0 0.0
        %1590 = vmatpush2.msra.mxu0 0.0
        %1591 = vmatprep.subr.mxu0 0.0
        %1592 = vmatpush2.msra.mxu0 0.0
        %1593 = vmatprep.subr.mxu0 0.0
        %1594 = vmatpush2.msra.mxu0 0.0
        %1595 = vmatprep.subr.mxu0 0.0
        %1596 = vmatpush2.msra.mxu0 0.0
        %1597 = vmatprep.subr.mxu0 0.0
        %1598 = vmatpush2.msra.mxu0 0.0
        %1599 = vmatprep.subr.mxu0 0.0
        %1600 = vmatpush2.msra.mxu0 0.0
        %1601 = vmatprep.subr.mxu0 0.0
        %1602 = vmatpush2.msra.mxu0 0.0
        %1603 = vmatprep.subr.mxu0 0.0
        %1604 = vmatpush2.msra.mxu0 0.0
        %1605 = vmatprep.subr.mxu0 0.0
        %1606 = vmatpush2.msra.mxu0 0.0
        %1607 = vmatprep.subr.mxu0 0.0
        %1608 = vmatpush2.msra.mxu0 0.0
        %1609 = vmatprep.subr.mxu0 0.0
        %1610 = vmatpush2.msra.mxu0 0.0
        %1611 = vmatprep.subr.mxu0 0.0
        %1612 = vmatpush2.msra.mxu0 0.0
        %1613 = vmatprep.subr.mxu0 0.0
        %1614 = vmatpush2.msra.mxu0 0.0
        %1615 = vmatprep.subr.mxu0 0.0
        %1616 = vmatpush2.msra.mxu0 0.0
        %1617 = vmatprep.subr.mxu0 0.0
        %1618 = vmatpush2.msra.mxu0 0.0
        %1619 = vmatprep.subr.mxu0 0.0
        %1620 = vmatpush2.msra.mxu0 0.0
        %1621 = vmatprep.mubr.f32.mxu0 0.0
        %1622 = vmatmul.mubr.f32.gmra.mxu0 %v1551
        %v1623 = vpop.f32.mrf.mxu0
        %v1624 = vadd.f32 %v1546, %v1623
        %v1625 = vpop.f32.mrf.mxu0
        %v1626 = vadd.f32 %v1548, %v1625
        %1627 = vdwg.mxu0
        %s1628 = scalar_lea.vmem %s3, 60
        %v1629 = vld [vmem:[%s1628] sm:$0xf]
        %1630 = vrot.lane.b32.xlu0 %v1454, 64
        %v1631 = vpop.permute.xlu0 %1630
        %1632 = vrot.lane.b32.xlu0 %v1455, 64
        %v1633 = vpop.permute.xlu0 %1632
        %1634 = vrot.lane.b32.xlu0 %v1456, 64
        %v1635 = vpop.permute.xlu0 %1634
        %vm1636 = vcmask 523264
        %v1637 = vsel %vm1636, %v1631, %v1633
        %v1638 = vsel %vm1636, %v1633, %v1635
        %v1640 = vsel %vm440, %v1629, 0
        %v1642 = vsel %vm444, %v1637, 0
        %v1644 = vsel %vm444, %v1638, 0
        %1646 = vmatprep.subr.mxu0 0.0
        %1647 = vmatpush1.msra.mxu0 0.0
        %1648 = vmatprep.subr.mxu0 0.0
        %1649 = vmatpush1.msra.mxu0 0.0
        %1650 = vmatprep.subr.mxu0 0.0
        %1651 = vmatpush1.msra.mxu0 0.0
        %1652 = vmatprep.subr.mxu0 0.0
        %1653 = vmatpush1.msra.mxu0 0.0
        %1654 = vmatprep.subr.mxu0 0.0
        %1655 = vmatpush1.msra.mxu0 0.0
        %1656 = vmatprep.subr.mxu0 0.0
        %1657 = vmatpush1.msra.mxu0 0.0
        %1658 = vmatprep.subr.mxu0 0.0
        %1659 = vmatpush1.msra.mxu0 0.0
        %1660 = vmatprep.subr.mxu0 0.0
        %1661 = vmatpush1.msra.mxu0 0.0
        %1662 = vmatprep.subr.mxu0 0.0
        %1663 = vmatpush1.msra.mxu0 0.0
        %1664 = vmatprep.subr.mxu0 0.0
        %1665 = vmatpush1.msra.mxu0 0.0
        %1666 = vmatprep.subr.mxu0 0.0
        %1667 = vmatpush1.msra.mxu0 0.0
        %1668 = vmatprep.subr.mxu0 0.0
        %1669 = vmatpush1.msra.mxu0 0.0
        %1670 = vmatprep.subr.mxu0 0.0
        %1671 = vmatpush1.msra.mxu0 0.0
        %1672 = vmatprep.subr.mxu0 0.0
        %1673 = vmatpush1.msra.mxu0 0.0
        %1674 = vmatprep.subr.mxu0 0.0
        %1675 = vmatpush1.msra.mxu0 0.0
        %1676 = vmatprep.subr.mxu0 %v1644
        %1677 = vmatpush1.msra.mxu0 %v1642
        %1678 = vmatprep.subr.mxu0 0.0
        %1679 = vmatpush2.msra.mxu0 0.0
        %1680 = vmatprep.subr.mxu0 0.0
        %1681 = vmatpush2.msra.mxu0 0.0
        %1682 = vmatprep.subr.mxu0 0.0
        %1683 = vmatpush2.msra.mxu0 0.0
        %1684 = vmatprep.subr.mxu0 0.0
        %1685 = vmatpush2.msra.mxu0 0.0
        %1686 = vmatprep.subr.mxu0 0.0
        %1687 = vmatpush2.msra.mxu0 0.0
        %1688 = vmatprep.subr.mxu0 0.0
        %1689 = vmatpush2.msra.mxu0 0.0
        %1690 = vmatprep.subr.mxu0 0.0
        %1691 = vmatpush2.msra.mxu0 0.0
        %1692 = vmatprep.subr.mxu0 0.0
        %1693 = vmatpush2.msra.mxu0 0.0
        %1694 = vmatprep.subr.mxu0 0.0
        %1695 = vmatpush2.msra.mxu0 0.0
        %1696 = vmatprep.subr.mxu0 0.0
        %1697 = vmatpush2.msra.mxu0 0.0
        %1698 = vmatprep.subr.mxu0 0.0
        %1699 = vmatpush2.msra.mxu0 0.0
        %1700 = vmatprep.subr.mxu0 0.0
        %1701 = vmatpush2.msra.mxu0 0.0
        %1702 = vmatprep.subr.mxu0 0.0
        %1703 = vmatpush2.msra.mxu0 0.0
        %1704 = vmatprep.subr.mxu0 0.0
        %1705 = vmatpush2.msra.mxu0 0.0
        %1706 = vmatprep.subr.mxu0 0.0
        %1707 = vmatpush2.msra.mxu0 0.0
        %1708 = vmatprep.subr.mxu0 0.0
        %1709 = vmatpush2.msra.mxu0 0.0
        %1710 = vmatprep.mubr.f32.mxu0 0.0
        %1711 = vmatmul.mubr.f32.gmra.mxu0 %v1640
        %v1712 = vpop.f32.mrf.mxu0
        %v1713 = vadd.f32 0.0, %v1712
        %v1714 = vpop.f32.mrf.mxu0
        %v1715 = vadd.f32 0.0, %v1714
        %1716 = vdwg.mxu0
        %v1717 = vadd.f32 %v1624, %v1713
        %v1718 = vadd.f32 %v1626, %v1715
        %v1719 = vld [vmem:[#allocation2] sm:$0xff]
        %v1720 = vld [vmem:[#allocation2 + $0x8] sm:$0xff]
        %s1721 = scalar_lea.vmem %s3, 40
        %v1722 = vld [vmem:[%s1721] sm:$0xf]
        %v1725 = vcombine.high %v1719, %v1719
        %1726 = vrot.lane.b32.xlu0 %v1719, 32
        %v1727 = vpop.permute.xlu0 %1726
        %1728 = vrot.lane.b32.xlu0 %v1725, 32
        %v1729 = vpop.permute.xlu0 %1728
        %1730 = vrot.lane.b32.xlu0 %v1720, 32
        %v1731 = vpop.permute.xlu0 %1730
        %vm1732 = vcmask 261120
        %v1733 = vsel %vm1732, %v1727, %v1729
        %v1734 = vsel %vm1732, %v1729, %v1731
        %v1736 = vsel %vm440, %v1722, 0
        %v1738 = vsel %vm444, %v1733, 0
        %v1740 = vsel %vm444, %v1734, 0
        %1742 = vmatprep.subr.mxu0 0.0
        %1743 = vmatpush1.msra.mxu0 0.0
        %1744 = vmatprep.subr.mxu0 0.0
        %1745 = vmatpush1.msra.mxu0 0.0
        %1746 = vmatprep.subr.mxu0 0.0
        %1747 = vmatpush1.msra.mxu0 0.0
        %1748 = vmatprep.subr.mxu0 0.0
        %1749 = vmatpush1.msra.mxu0 0.0
        %1750 = vmatprep.subr.mxu0 0.0
        %1751 = vmatpush1.msra.mxu0 0.0
        %1752 = vmatprep.subr.mxu0 0.0
        %1753 = vmatpush1.msra.mxu0 0.0
        %1754 = vmatprep.subr.mxu0 0.0
        %1755 = vmatpush1.msra.mxu0 0.0
        %1756 = vmatprep.subr.mxu0 0.0
        %1757 = vmatpush1.msra.mxu0 0.0
        %1758 = vmatprep.subr.mxu0 0.0
        %1759 = vmatpush1.msra.mxu0 0.0
        %1760 = vmatprep.subr.mxu0 0.0
        %1761 = vmatpush1.msra.mxu0 0.0
        %1762 = vmatprep.subr.mxu0 0.0
        %1763 = vmatpush1.msra.mxu0 0.0
        %1764 = vmatprep.subr.mxu0 0.0
        %1765 = vmatpush1.msra.mxu0 0.0
        %1766 = vmatprep.subr.mxu0 0.0
        %1767 = vmatpush1.msra.mxu0 0.0
        %1768 = vmatprep.subr.mxu0 0.0
        %1769 = vmatpush1.msra.mxu0 0.0
        %1770 = vmatprep.subr.mxu0 0.0
        %1771 = vmatpush1.msra.mxu0 0.0
        %1772 = vmatprep.subr.mxu0 %v1740
        %1773 = vmatpush1.msra.mxu0 %v1738
        %1774 = vmatprep.subr.mxu0 0.0
        %1775 = vmatpush2.msra.mxu0 0.0
        %1776 = vmatprep.subr.mxu0 0.0
        %1777 = vmatpush2.msra.mxu0 0.0
        %1778 = vmatprep.subr.mxu0 0.0
        %1779 = vmatpush2.msra.mxu0 0.0
        %1780 = vmatprep.subr.mxu0 0.0
        %1781 = vmatpush2.msra.mxu0 0.0
        %1782 = vmatprep.subr.mxu0 0.0
        %1783 = vmatpush2.msra.mxu0 0.0
        %1784 = vmatprep.subr.mxu0 0.0
        %1785 = vmatpush2.msra.mxu0 0.0
        %1786 = vmatprep.subr.mxu0 0.0
        %1787 = vmatpush2.msra.mxu0 0.0
        %1788 = vmatprep.subr.mxu0 0.0
        %1789 = vmatpush2.msra.mxu0 0.0
        %1790 = vmatprep.subr.mxu0 0.0
        %1791 = vmatpush2.msra.mxu0 0.0
        %1792 = vmatprep.subr.mxu0 0.0
        %1793 = vmatpush2.msra.mxu0 0.0
        %1794 = vmatprep.subr.mxu0 0.0
        %1795 = vmatpush2.msra.mxu0 0.0
        %1796 = vmatprep.subr.mxu0 0.0
        %1797 = vmatpush2.msra.mxu0 0.0
        %1798 = vmatprep.subr.mxu0 0.0
        %1799 = vmatpush2.msra.mxu0 0.0
        %1800 = vmatprep.subr.mxu0 0.0
        %1801 = vmatpush2.msra.mxu0 0.0
        %1802 = vmatprep.subr.mxu0 0.0
        %1803 = vmatpush2.msra.mxu0 0.0
        %1804 = vmatprep.subr.mxu0 0.0
        %1805 = vmatpush2.msra.mxu0 0.0
        %1806 = vmatprep.mubr.f32.mxu0 0.0
        %1807 = vmatmul.mubr.f32.gmra.mxu0 %v1736
        %v1808 = vpop.f32.mrf.mxu0
        %v1809 = vadd.f32 0.0, %v1808
        %v1810 = vpop.f32.mrf.mxu0
        %v1811 = vadd.f32 0.0, %v1810
        %1812 = vdwg.mxu0
        %v1813 = vadd.f32 %v1717, %v1809
        %v1814 = vadd.f32 %v1718, %v1811
        %s1815 = scalar_lea.vmem %s3, 52
        %v1816 = vld [vmem:[%s1815] sm:$0xf]
        %v1818 = vsel %vm440, %v1816, 0
        %v1820 = vsel %vm444, %v1725, 0
        %v1822 = vsel %vm444, %v1720, 0
        %1824 = vmatprep.subr.mxu0 0.0
        %1825 = vmatpush1.msra.mxu0 0.0
        %1826 = vmatprep.subr.mxu0 0.0
        %1827 = vmatpush1.msra.mxu0 0.0
        %1828 = vmatprep.subr.mxu0 0.0
        %1829 = vmatpush1.msra.mxu0 0.0
        %1830 = vmatprep.subr.mxu0 0.0
        %1831 = vmatpush1.msra.mxu0 0.0
        %1832 = vmatprep.subr.mxu0 0.0
        %1833 = vmatpush1.msra.mxu0 0.0
        %1834 = vmatprep.subr.mxu0 0.0
        %1835 = vmatpush1.msra.mxu0 0.0
        %1836 = vmatprep.subr.mxu0 0.0
        %1837 = vmatpush1.msra.mxu0 0.0
        %1838 = vmatprep.subr.mxu0 0.0
        %1839 = vmatpush1.msra.mxu0 0.0
        %1840 = vmatprep.subr.mxu0 0.0
        %1841 = vmatpush1.msra.mxu0 0.0
        %1842 = vmatprep.subr.mxu0 0.0
        %1843 = vmatpush1.msra.mxu0 0.0
        %1844 = vmatprep.subr.mxu0 0.0
        %1845 = vmatpush1.msra.mxu0 0.0
        %1846 = vmatprep.subr.mxu0 0.0
        %1847 = vmatpush1.msra.mxu0 0.0
        %1848 = vmatprep.subr.mxu0 0.0
        %1849 = vmatpush1.msra.mxu0 0.0
        %1850 = vmatprep.subr.mxu0 0.0
        %1851 = vmatpush1.msra.mxu0 0.0
        %1852 = vmatprep.subr.mxu0 0.0
        %1853 = vmatpush1.msra.mxu0 0.0
        %1854 = vmatprep.subr.mxu0 %v1822
        %1855 = vmatpush1.msra.mxu0 %v1820
        %1856 = vmatprep.subr.mxu0 0.0
        %1857 = vmatpush2.msra.mxu0 0.0
        %1858 = vmatprep.subr.mxu0 0.0
        %1859 = vmatpush2.msra.mxu0 0.0
        %1860 = vmatprep.subr.mxu0 0.0
        %1861 = vmatpush2.msra.mxu0 0.0
        %1862 = vmatprep.subr.mxu0 0.0
        %1863 = vmatpush2.msra.mxu0 0.0
        %1864 = vmatprep.subr.mxu0 0.0
        %1865 = vmatpush2.msra.mxu0 0.0
        %1866 = vmatprep.subr.mxu0 0.0
        %1867 = vmatpush2.msra.mxu0 0.0
        %1868 = vmatprep.subr.mxu0 0.0
        %1869 = vmatpush2.msra.mxu0 0.0
        %1870 = vmatprep.subr.mxu0 0.0
        %1871 = vmatpush2.msra.mxu0 0.0
        %1872 = vmatprep.subr.mxu0 0.0
        %1873 = vmatpush2.msra.mxu0 0.0
        %1874 = vmatprep.subr.mxu0 0.0
        %1875 = vmatpush2.msra.mxu0 0.0
        %1876 = vmatprep.subr.mxu0 0.0
        %1877 = vmatpush2.msra.mxu0 0.0
        %1878 = vmatprep.subr.mxu0 0.0
        %1879 = vmatpush2.msra.mxu0 0.0
        %1880 = vmatprep.subr.mxu0 0.0
        %1881 = vmatpush2.msra.mxu0 0.0
        %1882 = vmatprep.subr.mxu0 0.0
        %1883 = vmatpush2.msra.mxu0 0.0
        %1884 = vmatprep.subr.mxu0 0.0
        %1885 = vmatpush2.msra.mxu0 0.0
        %1886 = vmatprep.subr.mxu0 0.0
        %1887 = vmatpush2.msra.mxu0 0.0
        %1888 = vmatprep.mubr.f32.mxu0 0.0
        %1889 = vmatmul.mubr.f32.gmra.mxu0 %v1818
        %v1890 = vpop.f32.mrf.mxu0
        %v1891 = vadd.f32 0.0, %v1890
        %v1892 = vpop.f32.mrf.mxu0
        %v1893 = vadd.f32 0.0, %v1892
        %1894 = vdwg.mxu0
        %v1895 = vadd.f32 %v1813, %v1891
        %v1896 = vadd.f32 %v1814, %v1893
        %s1897 = scalar_lea.vmem %s3, 64
        %v1898 = vld [vmem:[%s1897] sm:$0xf]
        %v1899 = vcombine.high %v1720, %v1720
        %1900 = vrot.lane.b32.xlu0 %v1725, 96
        %v1901 = vpop.permute.xlu0 %1900
        %1902 = vrot.lane.b32.xlu0 %v1720, 96
        %v1903 = vpop.permute.xlu0 %1902
        %1904 = vrot.lane.b32.xlu0 %v1899, 96
        %v1905 = vpop.permute.xlu0 %1904
        %v1906 = vsel %vm572, %v1901, %v1903
        %v1907 = vsel %vm572, %v1903, %v1905
        %v1909 = vsel %vm440, %v1898, 0
        %v1911 = vsel %vm444, %v1906, 0
        %v1913 = vsel %vm444, %v1907, 0
        %1915 = vmatprep.subr.mxu0 0.0
        %1916 = vmatpush1.msra.mxu0 0.0
        %1917 = vmatprep.subr.mxu0 0.0
        %1918 = vmatpush1.msra.mxu0 0.0
        %1919 = vmatprep.subr.mxu0 0.0
        %1920 = vmatpush1.msra.mxu0 0.0
        %1921 = vmatprep.subr.mxu0 0.0
        %1922 = vmatpush1.msra.mxu0 0.0
        %1923 = vmatprep.subr.mxu0 0.0
        %1924 = vmatpush1.msra.mxu0 0.0
        %1925 = vmatprep.subr.mxu0 0.0
        %1926 = vmatpush1.msra.mxu0 0.0
        %1927 = vmatprep.subr.mxu0 0.0
        %1928 = vmatpush1.msra.mxu0 0.0
        %1929 = vmatprep.subr.mxu0 0.0
        %1930 = vmatpush1.msra.mxu0 0.0
        %1931 = vmatprep.subr.mxu0 0.0
        %1932 = vmatpush1.msra.mxu0 0.0
        %1933 = vmatprep.subr.mxu0 0.0
        %1934 = vmatpush1.msra.mxu0 0.0
        %1935 = vmatprep.subr.mxu0 0.0
        %1936 = vmatpush1.msra.mxu0 0.0
        %1937 = vmatprep.subr.mxu0 0.0
        %1938 = vmatpush1.msra.mxu0 0.0
        %1939 = vmatprep.subr.mxu0 0.0
        %1940 = vmatpush1.msra.mxu0 0.0
        %1941 = vmatprep.subr.mxu0 0.0
        %1942 = vmatpush1.msra.mxu0 0.0
        %1943 = vmatprep.subr.mxu0 0.0
        %1944 = vmatpush1.msra.mxu0 0.0
        %1945 = vmatprep.subr.mxu0 %v1913
        %1946 = vmatpush1.msra.mxu0 %v1911
        %1947 = vmatprep.subr.mxu0 0.0
        %1948 = vmatpush2.msra.mxu0 0.0
        %1949 = vmatprep.subr.mxu0 0.0
        %1950 = vmatpush2.msra.mxu0 0.0
        %1951 = vmatprep.subr.mxu0 0.0
        %1952 = vmatpush2.msra.mxu0 0.0
        %1953 = vmatprep.subr.mxu0 0.0
        %1954 = vmatpush2.msra.mxu0 0.0
        %1955 = vmatprep.subr.mxu0 0.0
        %1956 = vmatpush2.msra.mxu0 0.0
        %1957 = vmatprep.subr.mxu0 0.0
        %1958 = vmatpush2.msra.mxu0 0.0
        %1959 = vmatprep.subr.mxu0 0.0
        %1960 = vmatpush2.msra.mxu0 0.0
        %1961 = vmatprep.subr.mxu0 0.0
        %1962 = vmatpush2.msra.mxu0 0.0
        %1963 = vmatprep.subr.mxu0 0.0
        %1964 = vmatpush2.msra.mxu0 0.0
        %1965 = vmatprep.subr.mxu0 0.0
        %1966 = vmatpush2.msra.mxu0 0.0
        %1967 = vmatprep.subr.mxu0 0.0
        %1968 = vmatpush2.msra.mxu0 0.0
        %1969 = vmatprep.subr.mxu0 0.0
        %1970 = vmatpush2.msra.mxu0 0.0
        %1971 = vmatprep.subr.mxu0 0.0
        %1972 = vmatpush2.msra.mxu0 0.0
        %1973 = vmatprep.subr.mxu0 0.0
        %1974 = vmatpush2.msra.mxu0 0.0
        %1975 = vmatprep.subr.mxu0 0.0
        %1976 = vmatpush2.msra.mxu0 0.0
        %1977 = vmatprep.subr.mxu0 0.0
        %1978 = vmatpush2.msra.mxu0 0.0
        %1979 = vmatprep.mubr.f32.mxu0 0.0
        %1980 = vmatmul.mubr.f32.gmra.mxu0 %v1909
        %v1981 = vpop.f32.mrf.mxu0
        %v1982 = vadd.f32 0.0, %v1981
        %v1983 = vpop.f32.mrf.mxu0
        %v1984 = vadd.f32 0.0, %v1983
        %1985 = vdwg.mxu0
        %v1986 = vadd.f32 %v1895, %v1982
        %v1987 = vadd.f32 %v1896, %v1984
        %v1988 = vld [vmem:[#allocation2] sm:$0xff]
        %v1989 = vld [vmem:[#allocation2 + $0x8] sm:$0xff]
        %vm1990 = vcmp.lt.s32.totalorder %v425, 14
        %vm1991 = vcmp.lt.s32.totalorder %v426, 14
        %vm1992 = vcmp.lt.s32.totalorder %v427, 14
        %v1993 = vsel %vm1990, 1, 0
        %v1994 = vsel %vm1991, 1, 0
        %v1995 = vsel %vm1992, 1, 0
        %vm1996 = vcmp.eq.s32.totalorder %v1993, 1
        %vm1997 = vcmp.eq.s32.totalorder %v1994, 1
        %vm1998 = vcmp.eq.s32.totalorder %v1995, 1
        %v2001 = vcombine.high %v1988, %v1988
        %v2002 = vcombine.high %v1989, %v1989
        %2003 = vrot.lane.b32.xlu0 %v1988, 30
        %v2004 = vpop.permute.xlu0 %2003
        %2005 = vrot.lane.b32.xlu0 %v2001, 30
        %v2006 = vpop.permute.xlu0 %2005
        %2007 = vrot.lane.b32.xlu0 %v1989, 30
        %v2008 = vpop.permute.xlu0 %2007
        %2009 = vrot.lane.b32.xlu0 %v2002, 30
        %v2010 = vpop.permute.xlu0 %2009
        %vm2011 = vcmask 244736
        %v2012 = vsel %vm2011, %v2004, %v2006
        %v2013 = vsel %vm2011, %v2006, %v2008
        %v2014 = vsel %vm2011, %v2008, %v2010
        %v2018 = vsel %vm1996, %v2012, 0.0
        %v2019 = vsel %vm1997, %v2013, 0.0
        %v2020 = vsel %vm1998, %v2014, 0.0
        %s2021 = scalar_lea.vmem %s3, 44
        %v2022 = vld [vmem:[%s2021] sm:$0xf]
        %v2024 = vsel %vm440, %v2022, 0
        %v2027 = vsel %vm444, %v2018, 0
        %v2030 = vsel %vm444, %v2019, 0
        %2032 = vmatprep.subr.mxu0 0.0
        %2033 = vmatpush1.msra.mxu0 0.0
        %2034 = vmatprep.subr.mxu0 0.0
        %2035 = vmatpush1.msra.mxu0 0.0
        %2036 = vmatprep.subr.mxu0 0.0
        %2037 = vmatpush1.msra.mxu0 0.0
        %2038 = vmatprep.subr.mxu0 0.0
        %2039 = vmatpush1.msra.mxu0 0.0
        %2040 = vmatprep.subr.mxu0 0.0
        %2041 = vmatpush1.msra.mxu0 0.0
        %2042 = vmatprep.subr.mxu0 0.0
        %2043 = vmatpush1.msra.mxu0 0.0
        %2044 = vmatprep.subr.mxu0 0.0
        %2045 = vmatpush1.msra.mxu0 0.0
        %2046 = vmatprep.subr.mxu0 0.0
        %2047 = vmatpush1.msra.mxu0 0.0
        %2048 = vmatprep.subr.mxu0 0.0
        %2049 = vmatpush1.msra.mxu0 0.0
        %2050 = vmatprep.subr.mxu0 0.0
        %2051 = vmatpush1.msra.mxu0 0.0
        %2052 = vmatprep.subr.mxu0 0.0
        %2053 = vmatpush1.msra.mxu0 0.0
        %2054 = vmatprep.subr.mxu0 0.0
        %2055 = vmatpush1.msra.mxu0 0.0
        %2056 = vmatprep.subr.mxu0 0.0
        %2057 = vmatpush1.msra.mxu0 0.0
        %2058 = vmatprep.subr.mxu0 0.0
        %2059 = vmatpush1.msra.mxu0 0.0
        %2060 = vmatprep.subr.mxu0 0.0
        %2061 = vmatpush1.msra.mxu0 0.0
        %2062 = vmatprep.subr.mxu0 %v2030
        %2063 = vmatpush1.msra.mxu0 %v2027
        %2064 = vmatprep.subr.mxu0 0.0
        %2065 = vmatpush2.msra.mxu0 0.0
        %2066 = vmatprep.subr.mxu0 0.0
        %2067 = vmatpush2.msra.mxu0 0.0
        %2068 = vmatprep.subr.mxu0 0.0
        %2069 = vmatpush2.msra.mxu0 0.0
        %2070 = vmatprep.subr.mxu0 0.0
        %2071 = vmatpush2.msra.mxu0 0.0
        %2072 = vmatprep.subr.mxu0 0.0
        %2073 = vmatpush2.msra.mxu0 0.0
        %2074 = vmatprep.subr.mxu0 0.0
        %2075 = vmatpush2.msra.mxu0 0.0
        %2076 = vmatprep.subr.mxu0 0.0
        %2077 = vmatpush2.msra.mxu0 0.0
        %2078 = vmatprep.subr.mxu0 0.0
        %2079 = vmatpush2.msra.mxu0 0.0
        %2080 = vmatprep.subr.mxu0 0.0
        %2081 = vmatpush2.msra.mxu0 0.0
        %2082 = vmatprep.subr.mxu0 0.0
        %2083 = vmatpush2.msra.mxu0 0.0
        %2084 = vmatprep.subr.mxu0 0.0
        %2085 = vmatpush2.msra.mxu0 0.0
        %2086 = vmatprep.subr.mxu0 0.0
        %2087 = vmatpush2.msra.mxu0 0.0
        %2088 = vmatprep.subr.mxu0 0.0
        %2089 = vmatpush2.msra.mxu0 0.0
        %2090 = vmatprep.subr.mxu0 0.0
        %2091 = vmatpush2.msra.mxu0 0.0
        %2092 = vmatprep.subr.mxu0 0.0
        %2093 = vmatpush2.msra.mxu0 0.0
        %2094 = vmatprep.subr.mxu0 0.0
        %2095 = vmatpush2.msra.mxu0 0.0
        %2096 = vmatprep.mubr.f32.mxu0 0.0
        %2097 = vmatmul.mubr.f32.gmra.mxu0 %v2024
        %v2098 = vpop.f32.mrf.mxu0
        %v2099 = vadd.f32 0.0, %v2098
        %v2100 = vpop.f32.mrf.mxu0
        %v2101 = vadd.f32 0.0, %v2100
        %2102 = vdwg.mxu0
        %v2103 = vadd.f32 %v1986, %v2099
        %v2104 = vadd.f32 %v1987, %v2101
        %s2105 = scalar_lea.vmem %s3, 56
        %v2106 = vld [vmem:[%s2105] sm:$0xf]
        %2108 = vrot.lane.b32.xlu0 %v2018, 96
        %v2109 = vpop.permute.xlu0 %2108
        %2110 = vrot.lane.b32.xlu0 %v2019, 96
        %v2111 = vpop.permute.xlu0 %2110
        %2112 = vrot.lane.b32.xlu0 %v2020, 96
        %v2113 = vpop.permute.xlu0 %2112
        %v2114 = vsel %vm572, %v2109, %v2111
        %v2115 = vsel %vm572, %v2111, %v2113
        %v2117 = vsel %vm440, %v2106, 0
        %v2119 = vsel %vm444, %v2114, 0
        %v2121 = vsel %vm444, %v2115, 0
        %2123 = vmatprep.subr.mxu0 0.0
        %2124 = vmatpush1.msra.mxu0 0.0
        %2125 = vmatprep.subr.mxu0 0.0
        %2126 = vmatpush1.msra.mxu0 0.0
        %2127 = vmatprep.subr.mxu0 0.0
        %2128 = vmatpush1.msra.mxu0 0.0
        %2129 = vmatprep.subr.mxu0 0.0
        %2130 = vmatpush1.msra.mxu0 0.0
        %2131 = vmatprep.subr.mxu0 0.0
        %2132 = vmatpush1.msra.mxu0 0.0
        %2133 = vmatprep.subr.mxu0 0.0
        %2134 = vmatpush1.msra.mxu0 0.0
        %2135 = vmatprep.subr.mxu0 0.0
        %2136 = vmatpush1.msra.mxu0 0.0
        %2137 = vmatprep.subr.mxu0 0.0
        %2138 = vmatpush1.msra.mxu0 0.0
        %2139 = vmatprep.subr.mxu0 0.0
        %2140 = vmatpush1.msra.mxu0 0.0
        %2141 = vmatprep.subr.mxu0 0.0
        %2142 = vmatpush1.msra.mxu0 0.0
        %2143 = vmatprep.subr.mxu0 0.0
        %2144 = vmatpush1.msra.mxu0 0.0
        %2145 = vmatprep.subr.mxu0 0.0
        %2146 = vmatpush1.msra.mxu0 0.0
        %2147 = vmatprep.subr.mxu0 0.0
        %2148 = vmatpush1.msra.mxu0 0.0
        %2149 = vmatprep.subr.mxu0 0.0
        %2150 = vmatpush1.msra.mxu0 0.0
        %2151 = vmatprep.subr.mxu0 0.0
        %2152 = vmatpush1.msra.mxu0 0.0
        %2153 = vmatprep.subr.mxu0 %v2121
        %2154 = vmatpush1.msra.mxu0 %v2119
        %2155 = vmatprep.subr.mxu0 0.0
        %2156 = vmatpush2.msra.mxu0 0.0
        %2157 = vmatprep.subr.mxu0 0.0
        %2158 = vmatpush2.msra.mxu0 0.0
        %2159 = vmatprep.subr.mxu0 0.0
        %2160 = vmatpush2.msra.mxu0 0.0
        %2161 = vmatprep.subr.mxu0 0.0
        %2162 = vmatpush2.msra.mxu0 0.0
        %2163 = vmatprep.subr.mxu0 0.0
        %2164 = vmatpush2.msra.mxu0 0.0
        %2165 = vmatprep.subr.mxu0 0.0
        %2166 = vmatpush2.msra.mxu0 0.0
        %2167 = vmatprep.subr.mxu0 0.0
        %2168 = vmatpush2.msra.mxu0 0.0
        %2169 = vmatprep.subr.mxu0 0.0
        %2170 = vmatpush2.msra.mxu0 0.0
        %2171 = vmatprep.subr.mxu0 0.0
        %2172 = vmatpush2.msra.mxu0 0.0
        %2173 = vmatprep.subr.mxu0 0.0
        %2174 = vmatpush2.msra.mxu0 0.0
        %2175 = vmatprep.subr.mxu0 0.0
        %2176 = vmatpush2.msra.mxu0 0.0
        %2177 = vmatprep.subr.mxu0 0.0
        %2178 = vmatpush2.msra.mxu0 0.0
        %2179 = vmatprep.subr.mxu0 0.0
        %2180 = vmatpush2.msra.mxu0 0.0
        %2181 = vmatprep.subr.mxu0 0.0
        %2182 = vmatpush2.msra.mxu0 0.0
        %2183 = vmatprep.subr.mxu0 0.0
        %2184 = vmatpush2.msra.mxu0 0.0
        %2185 = vmatprep.subr.mxu0 0.0
        %2186 = vmatpush2.msra.mxu0 0.0
        %2187 = vmatprep.mubr.f32.mxu0 0.0
        %2188 = vmatmul.mubr.f32.gmra.mxu0 %v2117
        %v2189 = vpop.f32.mrf.mxu0
        %v2190 = vadd.f32 0.0, %v2189
        %v2191 = vpop.f32.mrf.mxu0
        %v2192 = vadd.f32 0.0, %v2191
        %2193 = vdwg.mxu0
        %v2194 = vadd.f32 %v2103, %v2190
        %v2195 = vadd.f32 %v2104, %v2192
        %s2196 = scalar_lea.vmem %s3, 68
        %v2197 = vld [vmem:[%s2196] sm:$0xf]
        %2198 = vrot.lane.b32.xlu0 %v2018, 64
        %v2199 = vpop.permute.xlu0 %2198
        %2200 = vrot.lane.b32.xlu0 %v2019, 64
        %v2201 = vpop.permute.xlu0 %2200
        %2202 = vrot.lane.b32.xlu0 %v2020, 64
        %v2203 = vpop.permute.xlu0 %2202
        %v2204 = vsel %vm1636, %v2199, %v2201
        %v2205 = vsel %vm1636, %v2201, %v2203
        %v2207 = vsel %vm440, %v2197, 0
        %v2209 = vsel %vm444, %v2204, 0
        %v2211 = vsel %vm444, %v2205, 0
        %2213 = vmatprep.subr.mxu0 0.0
        %2214 = vmatpush1.msra.mxu0 0.0
        %2215 = vmatprep.subr.mxu0 0.0
        %2216 = vmatpush1.msra.mxu0 0.0
        %2217 = vmatprep.subr.mxu0 0.0
        %2218 = vmatpush1.msra.mxu0 0.0
        %2219 = vmatprep.subr.mxu0 0.0
        %2220 = vmatpush1.msra.mxu0 0.0
        %2221 = vmatprep.subr.mxu0 0.0
        %2222 = vmatpush1.msra.mxu0 0.0
        %2223 = vmatprep.subr.mxu0 0.0
        %2224 = vmatpush1.msra.mxu0 0.0
        %2225 = vmatprep.subr.mxu0 0.0
        %2226 = vmatpush1.msra.mxu0 0.0
        %2227 = vmatprep.subr.mxu0 0.0
        %2228 = vmatpush1.msra.mxu0 0.0
        %2229 = vmatprep.subr.mxu0 0.0
        %2230 = vmatpush1.msra.mxu0 0.0
        %2231 = vmatprep.subr.mxu0 0.0
        %2232 = vmatpush1.msra.mxu0 0.0
        %2233 = vmatprep.subr.mxu0 0.0
        %2234 = vmatpush1.msra.mxu0 0.0
        %2235 = vmatprep.subr.mxu0 0.0
        %2236 = vmatpush1.msra.mxu0 0.0
        %2237 = vmatprep.subr.mxu0 0.0
        %2238 = vmatpush1.msra.mxu0 0.0
        %2239 = vmatprep.subr.mxu0 0.0
        %2240 = vmatpush1.msra.mxu0 0.0
        %2241 = vmatprep.subr.mxu0 0.0
        %2242 = vmatpush1.msra.mxu0 0.0
        %2243 = vmatprep.subr.mxu0 %v2211
        %2244 = vmatpush1.msra.mxu0 %v2209
        %2245 = vmatprep.subr.mxu0 0.0
        %2246 = vmatpush2.msra.mxu0 0.0
        %2247 = vmatprep.subr.mxu0 0.0
        %2248 = vmatpush2.msra.mxu0 0.0
        %2249 = vmatprep.subr.mxu0 0.0
        %2250 = vmatpush2.msra.mxu0 0.0
        %2251 = vmatprep.subr.mxu0 0.0
        %2252 = vmatpush2.msra.mxu0 0.0
        %2253 = vmatprep.subr.mxu0 0.0
        %2254 = vmatpush2.msra.mxu0 0.0
        %2255 = vmatprep.subr.mxu0 0.0
        %2256 = vmatpush2.msra.mxu0 0.0
        %2257 = vmatprep.subr.mxu0 0.0
        %2258 = vmatpush2.msra.mxu0 0.0
        %2259 = vmatprep.subr.mxu0 0.0
        %2260 = vmatpush2.msra.mxu0 0.0
        %2261 = vmatprep.subr.mxu0 0.0
        %2262 = vmatpush2.msra.mxu0 0.0
        %2263 = vmatprep.subr.mxu0 0.0
        %2264 = vmatpush2.msra.mxu0 0.0
        %2265 = vmatprep.subr.mxu0 0.0
        %2266 = vmatpush2.msra.mxu0 0.0
        %2267 = vmatprep.subr.mxu0 0.0
        %2268 = vmatpush2.msra.mxu0 0.0
        %2269 = vmatprep.subr.mxu0 0.0
        %2270 = vmatpush2.msra.mxu0 0.0
        %2271 = vmatprep.subr.mxu0 0.0
        %2272 = vmatpush2.msra.mxu0 0.0
        %2273 = vmatprep.subr.mxu0 0.0
        %2274 = vmatpush2.msra.mxu0 0.0
        %2275 = vmatprep.subr.mxu0 0.0
        %2276 = vmatpush2.msra.mxu0 0.0
        %2277 = vmatprep.mubr.f32.mxu0 0.0
        %2278 = vmatmul.mubr.f32.gmra.mxu0 %v2207
        %v2279 = vpop.f32.mrf.mxu0
        %v2280 = vadd.f32 0.0, %v2279
        %v2281 = vpop.f32.mrf.mxu0
        %v2282 = vadd.f32 0.0, %v2281
        %2283 = vdwg.mxu0
        %v2284 = vadd.f32 %v2194, %v2280
        %v2285 = vadd.f32 %v2195, %v2282
        %s2286 = scalar_lea.vmem %s4, 4
        %v2287 = vld [vmem:[%s2286] sm:$0xf]
        %2289 = vset.pattern.permute.xlu0 0
        %2290 = vperm.xlu0 %2289, %v2287
        %v2291 = vpop.permute.xlu0 %2290
        %v2293 = vadd.f32 %v2284, %v2291
        %v2294 = vadd.f32 %v2285, %v2291
        %v2295 = vmax.f32 %v2293, 0.0
        %v2296 = vmax.f32 %v2294, 0.0
        %v2297 = vsel %vm444, %v2295, -inf
        %v2298 = vsel %vm444, %v2296, -inf
        %v2299 = vmax.f32 %v2297, %v2298
        %2300 = vmax.xlane.f32.xlu0 %v2299
        %v2301 = vpop.xlane.xlu0 %2300
        %v2302 = vld [vmem:[%s5] sm:$0xf]
        %s2303 = scalar_lea.vmem %s5, 4
        %v2304 = vld [vmem:[%s2303] sm:$0xf]
        %v2306 = vsel %vm440, %v2304, 0
        %v2309 = vsel %vm444, %v2301, 0
        %2311 = vmatprep.subr.mxu0 0.0
        %2312 = vmatpush1.msra.mxu0 0.0
        %2313 = vmatprep.subr.mxu0 0.0
        %2314 = vmatpush1.msra.mxu0 0.0
        %2315 = vmatprep.subr.mxu0 0.0
        %2316 = vmatpush1.msra.mxu0 0.0
        %2317 = vmatprep.subr.mxu0 0.0
        %2318 = vmatpush1.msra.mxu0 0.0
        %2319 = vmatprep.subr.mxu0 0.0
        %2320 = vmatpush1.msra.mxu0 0.0
        %2321 = vmatprep.subr.mxu0 0.0
        %2322 = vmatpush1.msra.mxu0 0.0
        %2323 = vmatprep.subr.mxu0 0.0
        %2324 = vmatpush1.msra.mxu0 0.0
        %2325 = vmatprep.subr.mxu0 0.0
        %2326 = vmatpush1.msra.mxu0 0.0
        %2327 = vmatprep.subr.mxu0 0.0
        %2328 = vmatpush1.msra.mxu0 0.0
        %2329 = vmatprep.subr.mxu0 0.0
        %2330 = vmatpush1.msra.mxu0 0.0
        %2331 = vmatprep.subr.mxu0 0.0
        %2332 = vmatpush1.msra.mxu0 0.0
        %2333 = vmatprep.subr.mxu0 0.0
        %2334 = vmatpush1.msra.mxu0 0.0
        %2335 = vmatprep.subr.mxu0 0.0
        %2336 = vmatpush1.msra.mxu0 0.0
        %2337 = vmatprep.subr.mxu0 0.0
        %2338 = vmatpush1.msra.mxu0 0.0
        %2339 = vmatprep.subr.mxu0 0.0
        %2340 = vmatpush1.msra.mxu0 0.0
        %2341 = vmatprep.subr.mxu0 0.0
        %2342 = vmatpush1.msra.mxu0 %v2309
        %2343 = vmatprep.subr.mxu0 0.0
        %2344 = vmatpush2.msra.mxu0 0.0
        %2345 = vmatprep.subr.mxu0 0.0
        %2346 = vmatpush2.msra.mxu0 0.0
        %2347 = vmatprep.subr.mxu0 0.0
        %2348 = vmatpush2.msra.mxu0 0.0
        %2349 = vmatprep.subr.mxu0 0.0
        %2350 = vmatpush2.msra.mxu0 0.0
        %2351 = vmatprep.subr.mxu0 0.0
        %2352 = vmatpush2.msra.mxu0 0.0
        %2353 = vmatprep.subr.mxu0 0.0
        %2354 = vmatpush2.msra.mxu0 0.0
        %2355 = vmatprep.subr.mxu0 0.0
        %2356 = vmatpush2.msra.mxu0 0.0
        %2357 = vmatprep.subr.mxu0 0.0
        %2358 = vmatpush2.msra.mxu0 0.0
        %2359 = vmatprep.subr.mxu0 0.0
        %2360 = vmatpush2.msra.mxu0 0.0
        %2361 = vmatprep.subr.mxu0 0.0
        %2362 = vmatpush2.msra.mxu0 0.0
        %2363 = vmatprep.subr.mxu0 0.0
        %2364 = vmatpush2.msra.mxu0 0.0
        %2365 = vmatprep.subr.mxu0 0.0
        %2366 = vmatpush2.msra.mxu0 0.0
        %2367 = vmatprep.subr.mxu0 0.0
        %2368 = vmatpush2.msra.mxu0 0.0
        %2369 = vmatprep.subr.mxu0 0.0
        %2370 = vmatpush2.msra.mxu0 0.0
        %2371 = vmatprep.subr.mxu0 0.0
        %2372 = vmatpush2.msra.mxu0 0.0
        %2373 = vmatprep.subr.mxu0 0.0
        %2374 = vmatpush2.msra.mxu0 0.0
        %2375 = vmatprep.mubr.f32.mxu0 0.0
        %2376 = vmatmul.mubr.f32.gmra.mxu0 %v2306
        %v2377 = vpop.f32.mrf.mxu0
        %v2378 = vadd.f32 0.0, %v2377
        %v2379 = vpop.f32.mrf.mxu0
        %2380 = vdwg.mxu0
        %v2382 = vsel %vm440, %v2302, 0
        %v2385 = vsel %vm444, %v1420, 0
        %2387 = vmatprep.subr.mxu0 0.0
        %2388 = vmatpush1.msra.mxu0 0.0
        %2389 = vmatprep.subr.mxu0 0.0
        %2390 = vmatpush1.msra.mxu0 0.0
        %2391 = vmatprep.subr.mxu0 0.0
        %2392 = vmatpush1.msra.mxu0 0.0
        %2393 = vmatprep.subr.mxu0 0.0
        %2394 = vmatpush1.msra.mxu0 0.0
        %2395 = vmatprep.subr.mxu0 0.0
        %2396 = vmatpush1.msra.mxu0 0.0
        %2397 = vmatprep.subr.mxu0 0.0
        %2398 = vmatpush1.msra.mxu0 0.0
        %2399 = vmatprep.subr.mxu0 0.0
        %2400 = vmatpush1.msra.mxu0 0.0
        %2401 = vmatprep.subr.mxu0 0.0
        %2402 = vmatpush1.msra.mxu0 0.0
        %2403 = vmatprep.subr.mxu0 0.0
        %2404 = vmatpush1.msra.mxu0 0.0
        %2405 = vmatprep.subr.mxu0 0.0
        %2406 = vmatpush1.msra.mxu0 0.0
        %2407 = vmatprep.subr.mxu0 0.0
        %2408 = vmatpush1.msra.mxu0 0.0
        %2409 = vmatprep.subr.mxu0 0.0
        %2410 = vmatpush1.msra.mxu0 0.0
        %2411 = vmatprep.subr.mxu0 0.0
        %2412 = vmatpush1.msra.mxu0 0.0
        %2413 = vmatprep.subr.mxu0 0.0
        %2414 = vmatpush1.msra.mxu0 0.0
        %2415 = vmatprep.subr.mxu0 0.0
        %2416 = vmatpush1.msra.mxu0 0.0
        %2417 = vmatprep.subr.mxu0 0.0
        %2418 = vmatpush1.msra.mxu0 %v2385
        %2419 = vmatprep.subr.mxu0 0.0
        %2420 = vmatpush2.msra.mxu0 0.0
        %2421 = vmatprep.subr.mxu0 0.0
        %2422 = vmatpush2.msra.mxu0 0.0
        %2423 = vmatprep.subr.mxu0 0.0
        %2424 = vmatpush2.msra.mxu0 0.0
        %2425 = vmatprep.subr.mxu0 0.0
        %2426 = vmatpush2.msra.mxu0 0.0
        %2427 = vmatprep.subr.mxu0 0.0
        %2428 = vmatpush2.msra.mxu0 0.0
        %2429 = vmatprep.subr.mxu0 0.0
        %2430 = vmatpush2.msra.mxu0 0.0
        %2431 = vmatprep.subr.mxu0 0.0
        %2432 = vmatpush2.msra.mxu0 0.0
        %2433 = vmatprep.subr.mxu0 0.0
        %2434 = vmatpush2.msra.mxu0 0.0
        %2435 = vmatprep.subr.mxu0 0.0
        %2436 = vmatpush2.msra.mxu0 0.0
        %2437 = vmatprep.subr.mxu0 0.0
        %2438 = vmatpush2.msra.mxu0 0.0
        %2439 = vmatprep.subr.mxu0 0.0
        %2440 = vmatpush2.msra.mxu0 0.0
        %2441 = vmatprep.subr.mxu0 0.0
        %2442 = vmatpush2.msra.mxu0 0.0
        %2443 = vmatprep.subr.mxu0 0.0
        %2444 = vmatpush2.msra.mxu0 0.0
        %2445 = vmatprep.subr.mxu0 0.0
        %2446 = vmatpush2.msra.mxu0 0.0
        %2447 = vmatprep.subr.mxu0 0.0
        %2448 = vmatpush2.msra.mxu0 0.0
        %2449 = vmatprep.subr.mxu0 0.0
        %2450 = vmatpush2.msra.mxu0 0.0
        %2451 = vmatprep.mubr.f32.mxu0 0.0
        %2452 = vmatmul.mubr.f32.gmra.mxu0 %v2382
        %v2453 = vpop.f32.mrf.mxu0
        %v2454 = vadd.f32 %v2378, %v2453
        %v2455 = vpop.f32.mrf.mxu0
        %2456 = vdwg.mxu0
        %v2457 = vmax.f32 %v2454, 0.0
        %v2458 = vld [vmem:[%s6] sm:$0xff]
        %v2460 = vsel %vm440, %v2458, 0
        %v2463 = vsel %vm444, %v2457, 0
        %2465 = vmatprep.subr.mxu0 0.0
        %2466 = vmatpush1.msra.mxu0 0.0
        %2467 = vmatprep.subr.mxu0 0.0
        %2468 = vmatpush1.msra.mxu0 0.0
        %2469 = vmatprep.subr.mxu0 0.0
        %2470 = vmatpush1.msra.mxu0 0.0
        %2471 = vmatprep.subr.mxu0 0.0
        %2472 = vmatpush1.msra.mxu0 0.0
        %2473 = vmatprep.subr.mxu0 0.0
        %2474 = vmatpush1.msra.mxu0 0.0
        %2475 = vmatprep.subr.mxu0 0.0
        %2476 = vmatpush1.msra.mxu0 0.0
        %2477 = vmatprep.subr.mxu0 0.0
        %2478 = vmatpush1.msra.mxu0 0.0
        %2479 = vmatprep.subr.mxu0 0.0
        %2480 = vmatpush1.msra.mxu0 0.0
        %2481 = vmatprep.subr.mxu0 0.0
        %2482 = vmatpush1.msra.mxu0 0.0
        %2483 = vmatprep.subr.mxu0 0.0
        %2484 = vmatpush1.msra.mxu0 0.0
        %2485 = vmatprep.subr.mxu0 0.0
        %2486 = vmatpush1.msra.mxu0 0.0
        %2487 = vmatprep.subr.mxu0 0.0
        %2488 = vmatpush1.msra.mxu0 0.0
        %2489 = vmatprep.subr.mxu0 0.0
        %2490 = vmatpush1.msra.mxu0 0.0
        %2491 = vmatprep.subr.mxu0 0.0
        %2492 = vmatpush1.msra.mxu0 0.0
        %2493 = vmatprep.subr.mxu0 0.0
        %2494 = vmatpush1.msra.mxu0 0.0
        %2495 = vmatprep.subr.mxu0 0.0
        %2496 = vmatpush1.msra.mxu0 %v2463
        %2497 = vmatprep.subr.mxu0 0.0
        %2498 = vmatpush2.msra.mxu0 0.0
        %2499 = vmatprep.subr.mxu0 0.0
        %2500 = vmatpush2.msra.mxu0 0.0
        %2501 = vmatprep.subr.mxu0 0.0
        %2502 = vmatpush2.msra.mxu0 0.0
        %2503 = vmatprep.subr.mxu0 0.0
        %2504 = vmatpush2.msra.mxu0 0.0
        %2505 = vmatprep.subr.mxu0 0.0
        %2506 = vmatpush2.msra.mxu0 0.0
        %2507 = vmatprep.subr.mxu0 0.0
        %2508 = vmatpush2.msra.mxu0 0.0
        %2509 = vmatprep.subr.mxu0 0.0
        %2510 = vmatpush2.msra.mxu0 0.0
        %2511 = vmatprep.subr.mxu0 0.0
        %2512 = vmatpush2.msra.mxu0 0.0
        %2513 = vmatprep.subr.mxu0 0.0
        %2514 = vmatpush2.msra.mxu0 0.0
        %2515 = vmatprep.subr.mxu0 0.0
        %2516 = vmatpush2.msra.mxu0 0.0
        %2517 = vmatprep.subr.mxu0 0.0
        %2518 = vmatpush2.msra.mxu0 0.0
        %2519 = vmatprep.subr.mxu0 0.0
        %2520 = vmatpush2.msra.mxu0 0.0
        %2521 = vmatprep.subr.mxu0 0.0
        %2522 = vmatpush2.msra.mxu0 0.0
        %2523 = vmatprep.subr.mxu0 0.0
        %2524 = vmatpush2.msra.mxu0 0.0
        %2525 = vmatprep.subr.mxu0 0.0
        %2526 = vmatpush2.msra.mxu0 0.0
        %2527 = vmatprep.subr.mxu0 0.0
        %2528 = vmatpush2.msra.mxu0 0.0
        %2529 = vmatprep.mubr.f32.mxu0 0.0
        %2530 = vmatmul.mubr.f32.gmra.mxu0 %v2460
        %v2531 = vpop.f32.mrf.mxu0
        %v2532 = vadd.f32 0.0, %v2531
        %v2533 = vpop.f32.mrf.mxu0
        %2534 = vdwg.mxu0
        %v2535 = vxor.u32 %v2532, 2147483648
        %v2536 = vmul.f32 %v2535, 1.442695
        %v2537 = vpow.pop %v2536
        %v2538 = vadd.f32 %v2537, 1.0
        %v2539 = vrcp.pop %v2538
        %v2540 = vmul.f32 1.0, %v2539
        %v2541 = vld [vmem:[%s7] sm:$0xff]
        %2543 = vset.pattern.permute.xlu0 0
        %2544 = vperm.xlu0 %2543, %v2540
        %v2545 = vpop.permute.xlu0 %2544
        %v2547 = vsel %vm430, %v2545, 0.0
        %v2549 = vsel %vm440, %v2541, 0
        %v2552 = vsel %vm444, %v2547, 0
        %2554 = vmatprep.subr.mxu0 0.0
        %2555 = vmatpush1.msra.mxu0 0.0
        %2556 = vmatprep.subr.mxu0 0.0
        %2557 = vmatpush1.msra.mxu0 0.0
        %2558 = vmatprep.subr.mxu0 0.0
        %2559 = vmatpush1.msra.mxu0 0.0
        %2560 = vmatprep.subr.mxu0 0.0
        %2561 = vmatpush1.msra.mxu0 0.0
        %2562 = vmatprep.subr.mxu0 0.0
        %2563 = vmatpush1.msra.mxu0 0.0
        %2564 = vmatprep.subr.mxu0 0.0
        %2565 = vmatpush1.msra.mxu0 0.0
        %2566 = vmatprep.subr.mxu0 0.0
        %2567 = vmatpush1.msra.mxu0 0.0
        %2568 = vmatprep.subr.mxu0 0.0
        %2569 = vmatpush1.msra.mxu0 0.0
        %2570 = vmatprep.subr.mxu0 0.0
        %2571 = vmatpush1.msra.mxu0 0.0
        %2572 = vmatprep.subr.mxu0 0.0
        %2573 = vmatpush1.msra.mxu0 0.0
        %2574 = vmatprep.subr.mxu0 0.0
        %2575 = vmatpush1.msra.mxu0 0.0
        %2576 = vmatprep.subr.mxu0 0.0
        %2577 = vmatpush1.msra.mxu0 0.0
        %2578 = vmatprep.subr.mxu0 0.0
        %2579 = vmatpush1.msra.mxu0 0.0
        %2580 = vmatprep.subr.mxu0 0.0
        %2581 = vmatpush1.msra.mxu0 0.0
        %2582 = vmatprep.subr.mxu0 0.0
        %2583 = vmatpush1.msra.mxu0 0.0
        %2584 = vmatprep.subr.mxu0 0.0
        %2585 = vmatpush1.msra.mxu0 %v2552
        %2586 = vmatprep.subr.mxu0 0.0
        %2587 = vmatpush2.msra.mxu0 0.0
        %2588 = vmatprep.subr.mxu0 0.0
        %2589 = vmatpush2.msra.mxu0 0.0
        %2590 = vmatprep.subr.mxu0 0.0
        %2591 = vmatpush2.msra.mxu0 0.0
        %2592 = vmatprep.subr.mxu0 0.0
        %2593 = vmatpush2.msra.mxu0 0.0
        %2594 = vmatprep.subr.mxu0 0.0
        %2595 = vmatpush2.msra.mxu0 0.0
        %2596 = vmatprep.subr.mxu0 0.0
        %2597 = vmatpush2.msra.mxu0 0.0
        %2598 = vmatprep.subr.mxu0 0.0
        %2599 = vmatpush2.msra.mxu0 0.0
        %2600 = vmatprep.subr.mxu0 0.0
        %2601 = vmatpush2.msra.mxu0 0.0
        %2602 = vmatprep.subr.mxu0 0.0
        %2603 = vmatpush2.msra.mxu0 0.0
        %2604 = vmatprep.subr.mxu0 0.0
        %2605 = vmatpush2.msra.mxu0 0.0
        %2606 = vmatprep.subr.mxu0 0.0
        %2607 = vmatpush2.msra.mxu0 0.0
        %2608 = vmatprep.subr.mxu0 0.0
        %2609 = vmatpush2.msra.mxu0 0.0
        %2610 = vmatprep.subr.mxu0 0.0
        %2611 = vmatpush2.msra.mxu0 0.0
        %2612 = vmatprep.subr.mxu0 0.0
        %2613 = vmatpush2.msra.mxu0 0.0
        %2614 = vmatprep.subr.mxu0 0.0
        %2615 = vmatpush2.msra.mxu0 0.0
        %2616 = vmatprep.subr.mxu0 0.0
        %2617 = vmatpush2.msra.mxu0 0.0
        %2618 = vmatprep.mubr.f32.mxu0 0.0
        %2619 = vmatmul.mubr.f32.gmra.mxu0 %v2549
        %v2620 = vpop.f32.mrf.mxu0
        %v2621 = vadd.f32 0.0, %v2620
        %v2622 = vpop.f32.mrf.mxu0
        %2623 = vdwg.mxu0
        %s2624 = scalar_lea.vmem %s7, 8
        %v2625 = vld [vmem:[%s2624] sm:$0xff]
        %v2626 = vrot.slane %v2545, 4
        %v2628 = vsel %vm430, %v2626, 0.0
        %v2630 = vsel %vm440, %v2625, 0
        %v2633 = vsel %vm444, %v2628, 0
        %2635 = vmatprep.subr.mxu0 0.0
        %2636 = vmatpush1.msra.mxu0 0.0
        %2637 = vmatprep.subr.mxu0 0.0
        %2638 = vmatpush1.msra.mxu0 0.0
        %2639 = vmatprep.subr.mxu0 0.0
        %2640 = vmatpush1.msra.mxu0 0.0
        %2641 = vmatprep.subr.mxu0 0.0
        %2642 = vmatpush1.msra.mxu0 0.0
        %2643 = vmatprep.subr.mxu0 0.0
        %2644 = vmatpush1.msra.mxu0 0.0
        %2645 = vmatprep.subr.mxu0 0.0
        %2646 = vmatpush1.msra.mxu0 0.0
        %2647 = vmatprep.subr.mxu0 0.0
        %2648 = vmatpush1.msra.mxu0 0.0
        %2649 = vmatprep.subr.mxu0 0.0
        %2650 = vmatpush1.msra.mxu0 0.0
        %2651 = vmatprep.subr.mxu0 0.0
        %2652 = vmatpush1.msra.mxu0 0.0
        %2653 = vmatprep.subr.mxu0 0.0
        %2654 = vmatpush1.msra.mxu0 0.0
        %2655 = vmatprep.subr.mxu0 0.0
        %2656 = vmatpush1.msra.mxu0 0.0
        %2657 = vmatprep.subr.mxu0 0.0
        %2658 = vmatpush1.msra.mxu0 0.0
        %2659 = vmatprep.subr.mxu0 0.0
        %2660 = vmatpush1.msra.mxu0 0.0
        %2661 = vmatprep.subr.mxu0 0.0
        %2662 = vmatpush1.msra.mxu0 0.0
        %2663 = vmatprep.subr.mxu0 0.0
        %2664 = vmatpush1.msra.mxu0 0.0
        %2665 = vmatprep.subr.mxu0 0.0
        %2666 = vmatpush1.msra.mxu0 %v2633
        %2667 = vmatprep.subr.mxu0 0.0
        %2668 = vmatpush2.msra.mxu0 0.0
        %2669 = vmatprep.subr.mxu0 0.0
        %2670 = vmatpush2.msra.mxu0 0.0
        %2671 = vmatprep.subr.mxu0 0.0
        %2672 = vmatpush2.msra.mxu0 0.0
        %2673 = vmatprep.subr.mxu0 0.0
        %2674 = vmatpush2.msra.mxu0 0.0
        %2675 = vmatprep.subr.mxu0 0.0
        %2676 = vmatpush2.msra.mxu0 0.0
        %2677 = vmatprep.subr.mxu0 0.0
        %2678 = vmatpush2.msra.mxu0 0.0
        %2679 = vmatprep.subr.mxu0 0.0
        %2680 = vmatpush2.msra.mxu0 0.0
        %2681 = vmatprep.subr.mxu0 0.0
        %2682 = vmatpush2.msra.mxu0 0.0
        %2683 = vmatprep.subr.mxu0 0.0
        %2684 = vmatpush2.msra.mxu0 0.0
        %2685 = vmatprep.subr.mxu0 0.0
        %2686 = vmatpush2.msra.mxu0 0.0
        %2687 = vmatprep.subr.mxu0 0.0
        %2688 = vmatpush2.msra.mxu0 0.0
        %2689 = vmatprep.subr.mxu0 0.0
        %2690 = vmatpush2.msra.mxu0 0.0
        %2691 = vmatprep.subr.mxu0 0.0
        %2692 = vmatpush2.msra.mxu0 0.0
        %2693 = vmatprep.subr.mxu0 0.0
        %2694 = vmatpush2.msra.mxu0 0.0
        %2695 = vmatprep.subr.mxu0 0.0
        %2696 = vmatpush2.msra.mxu0 0.0
        %2697 = vmatprep.subr.mxu0 0.0
        %2698 = vmatpush2.msra.mxu0 0.0
        %2699 = vmatprep.mubr.f32.mxu0 0.0
        %2700 = vmatmul.mubr.f32.gmra.mxu0 %v2630
        %v2701 = vpop.f32.mrf.mxu0
        %v2702 = vadd.f32 0.0, %v2701
        %v2703 = vpop.f32.mrf.mxu0
        %2704 = vdwg.mxu0
        %v2706 = vsel %vm440, %v2702, 0
        %v2709 = vsel %vm444, %v2295, 0
        %v2712 = vsel %vm444, %v2296, 0
        %2714 = vmatprep.subr.mxu0 0.0
        %2715 = vmatpush1.msra.mxu0 0.0
        %2716 = vmatprep.subr.mxu0 0.0
        %2717 = vmatpush1.msra.mxu0 0.0
        %2718 = vmatprep.subr.mxu0 0.0
        %2719 = vmatpush1.msra.mxu0 0.0
        %2720 = vmatprep.subr.mxu0 0.0
        %2721 = vmatpush1.msra.mxu0 0.0
        %2722 = vmatprep.subr.mxu0 0.0
        %2723 = vmatpush1.msra.mxu0 0.0
        %2724 = vmatprep.subr.mxu0 0.0
        %2725 = vmatpush1.msra.mxu0 0.0
        %2726 = vmatprep.subr.mxu0 0.0
        %2727 = vmatpush1.msra.mxu0 0.0
        %2728 = vmatprep.subr.mxu0 0.0
        %2729 = vmatpush1.msra.mxu0 0.0
        %2730 = vmatprep.subr.mxu0 0.0
        %2731 = vmatpush1.msra.mxu0 0.0
        %2732 = vmatprep.subr.mxu0 0.0
        %2733 = vmatpush1.msra.mxu0 0.0
        %2734 = vmatprep.subr.mxu0 0.0
        %2735 = vmatpush1.msra.mxu0 0.0
        %2736 = vmatprep.subr.mxu0 0.0
        %2737 = vmatpush1.msra.mxu0 0.0
        %2738 = vmatprep.subr.mxu0 0.0
        %2739 = vmatpush1.msra.mxu0 0.0
        %2740 = vmatprep.subr.mxu0 0.0
        %2741 = vmatpush1.msra.mxu0 0.0
        %2742 = vmatprep.subr.mxu0 0.0
        %2743 = vmatpush1.msra.mxu0 0.0
        %2744 = vmatprep.subr.mxu0 %v2712
        %2745 = vmatpush1.msra.mxu0 %v2709
        %2746 = vmatprep.subr.mxu0 0.0
        %2747 = vmatpush2.msra.mxu0 0.0
        %2748 = vmatprep.subr.mxu0 0.0
        %2749 = vmatpush2.msra.mxu0 0.0
        %2750 = vmatprep.subr.mxu0 0.0
        %2751 = vmatpush2.msra.mxu0 0.0
        %2752 = vmatprep.subr.mxu0 0.0
        %2753 = vmatpush2.msra.mxu0 0.0
        %2754 = vmatprep.subr.mxu0 0.0
        %2755 = vmatpush2.msra.mxu0 0.0
        %2756 = vmatprep.subr.mxu0 0.0
        %2757 = vmatpush2.msra.mxu0 0.0
        %2758 = vmatprep.subr.mxu0 0.0
        %2759 = vmatpush2.msra.mxu0 0.0
        %2760 = vmatprep.subr.mxu0 0.0
        %2761 = vmatpush2.msra.mxu0 0.0
        %2762 = vmatprep.subr.mxu0 0.0
        %2763 = vmatpush2.msra.mxu0 0.0
        %2764 = vmatprep.subr.mxu0 0.0
        %2765 = vmatpush2.msra.mxu0 0.0
        %2766 = vmatprep.subr.mxu0 0.0
        %2767 = vmatpush2.msra.mxu0 0.0
        %2768 = vmatprep.subr.mxu0 0.0
        %2769 = vmatpush2.msra.mxu0 0.0
        %2770 = vmatprep.subr.mxu0 0.0
        %2771 = vmatpush2.msra.mxu0 0.0
        %2772 = vmatprep.subr.mxu0 0.0
        %2773 = vmatpush2.msra.mxu0 0.0
        %2774 = vmatprep.subr.mxu0 0.0
        %2775 = vmatpush2.msra.mxu0 0.0
        %2776 = vmatprep.subr.mxu0 0.0
        %2777 = vmatpush2.msra.mxu0 0.0
        %2778 = vmatprep.mubr.f32.mxu0 0.0
        %2779 = vmatmul.mubr.f32.gmra.mxu0 %v2706
        %v2780 = vpop.f32.mrf.mxu0
        %v2781 = vadd.f32 0.0, %v2780
        %v2782 = vpop.f32.mrf.mxu0
        %v2783 = vadd.f32 0.0, %v2782
        %2784 = vdwg.mxu0
        %v2786 = vsel %vm440, %v2621, 0
        %v2789 = vsel %vm444, %v1414, 0
        %v2792 = vsel %vm444, %v1415, 0
        %2794 = vmatprep.subr.mxu0 0.0
        %2795 = vmatpush1.msra.mxu0 0.0
        %2796 = vmatprep.subr.mxu0 0.0
        %2797 = vmatpush1.msra.mxu0 0.0
        %2798 = vmatprep.subr.mxu0 0.0
        %2799 = vmatpush1.msra.mxu0 0.0
        %2800 = vmatprep.subr.mxu0 0.0
        %2801 = vmatpush1.msra.mxu0 0.0
        %2802 = vmatprep.subr.mxu0 0.0
        %2803 = vmatpush1.msra.mxu0 0.0
        %2804 = vmatprep.subr.mxu0 0.0
        %2805 = vmatpush1.msra.mxu0 0.0
        %2806 = vmatprep.subr.mxu0 0.0
        %2807 = vmatpush1.msra.mxu0 0.0
        %2808 = vmatprep.subr.mxu0 0.0
        %2809 = vmatpush1.msra.mxu0 0.0
        %2810 = vmatprep.subr.mxu0 0.0
        %2811 = vmatpush1.msra.mxu0 0.0
        %2812 = vmatprep.subr.mxu0 0.0
        %2813 = vmatpush1.msra.mxu0 0.0
        %2814 = vmatprep.subr.mxu0 0.0
        %2815 = vmatpush1.msra.mxu0 0.0
        %2816 = vmatprep.subr.mxu0 0.0
        %2817 = vmatpush1.msra.mxu0 0.0
        %2818 = vmatprep.subr.mxu0 0.0
        %2819 = vmatpush1.msra.mxu0 0.0
        %2820 = vmatprep.subr.mxu0 0.0
        %2821 = vmatpush1.msra.mxu0 0.0
        %2822 = vmatprep.subr.mxu0 0.0
        %2823 = vmatpush1.msra.mxu0 0.0
        %2824 = vmatprep.subr.mxu0 %v2792
        %2825 = vmatpush1.msra.mxu0 %v2789
        %2826 = vmatprep.subr.mxu0 0.0
        %2827 = vmatpush2.msra.mxu0 0.0
        %2828 = vmatprep.subr.mxu0 0.0
        %2829 = vmatpush2.msra.mxu0 0.0
        %2830 = vmatprep.subr.mxu0 0.0
        %2831 = vmatpush2.msra.mxu0 0.0
        %2832 = vmatprep.subr.mxu0 0.0
        %2833 = vmatpush2.msra.mxu0 0.0
        %2834 = vmatprep.subr.mxu0 0.0
        %2835 = vmatpush2.msra.mxu0 0.0
        %2836 = vmatprep.subr.mxu0 0.0
        %2837 = vmatpush2.msra.mxu0 0.0
        %2838 = vmatprep.subr.mxu0 0.0
        %2839 = vmatpush2.msra.mxu0 0.0
        %2840 = vmatprep.subr.mxu0 0.0
        %2841 = vmatpush2.msra.mxu0 0.0
        %2842 = vmatprep.subr.mxu0 0.0
        %2843 = vmatpush2.msra.mxu0 0.0
        %2844 = vmatprep.subr.mxu0 0.0
        %2845 = vmatpush2.msra.mxu0 0.0
        %2846 = vmatprep.subr.mxu0 0.0
        %2847 = vmatpush2.msra.mxu0 0.0
        %2848 = vmatprep.subr.mxu0 0.0
        %2849 = vmatpush2.msra.mxu0 0.0
        %2850 = vmatprep.subr.mxu0 0.0
        %2851 = vmatpush2.msra.mxu0 0.0
        %2852 = vmatprep.subr.mxu0 0.0
        %2853 = vmatpush2.msra.mxu0 0.0
        %2854 = vmatprep.subr.mxu0 0.0
        %2855 = vmatpush2.msra.mxu0 0.0
        %2856 = vmatprep.subr.mxu0 0.0
        %2857 = vmatpush2.msra.mxu0 0.0
        %2858 = vmatprep.mubr.f32.mxu0 0.0
        %2859 = vmatmul.mubr.f32.gmra.mxu0 %v2786
        %v2860 = vpop.f32.mrf.mxu0
        %v2861 = vadd.f32 %v2781, %v2860
        %v2862 = vpop.f32.mrf.mxu0
        %v2863 = vadd.f32 %v2783, %v2862
        %2864 = vdwg.mxu0
        %v2865 = vld [vmem:[%s8] sm:$0xff]
        %2867 = vset.pattern.permute.xlu0 0
        %2868 = vperm.xlu0 %2867, %v2865
        %v2869 = vpop.permute.xlu0 %2868
        %v2871 = vadd.f32 %v2861, %v2869
        %v2872 = vadd.f32 %v2863, %v2869
        %v2873 = vmax.f32 %v2871, 0.0
        %v2874 = vmax.f32 %v2872, 0.0
        %v2876 = vsel %vm444, %v385, 0.0
        %v2877 = vsel %vm444, %v439, 0.0
        %v2878 = vadd.f32 %v2876, %v2877
        %2879 = vadd.xlane.f32.xlu0 %v2878
        %v2880 = vpop.xlane.xlu0 %2879
        %v2881 = vrcp.pop 256.0
        %v2882 = vmul.f32 %v2880, %v2881
        %v2883 = vld [vmem:[%s9] sm:$0xff]
        %v2884 = vld [vmem:[%s10] sm:$0xff]
        %v2886 = vsel %vm440, %v2883, 0
        %v2889 = vsel %vm444, %v2882, 0
        %2891 = vmatprep.subr.mxu0 0.0
        %2892 = vmatpush1.msra.mxu0 0.0
        %2893 = vmatprep.subr.mxu0 0.0
        %2894 = vmatpush1.msra.mxu0 0.0
        %2895 = vmatprep.subr.mxu0 0.0
        %2896 = vmatpush1.msra.mxu0 0.0
        %2897 = vmatprep.subr.mxu0 0.0
        %2898 = vmatpush1.msra.mxu0 0.0
        %2899 = vmatprep.subr.mxu0 0.0
        %2900 = vmatpush1.msra.mxu0 0.0
        %2901 = vmatprep.subr.mxu0 0.0
        %2902 = vmatpush1.msra.mxu0 0.0
        %2903 = vmatprep.subr.mxu0 0.0
        %2904 = vmatpush1.msra.mxu0 0.0
        %2905 = vmatprep.subr.mxu0 0.0
        %2906 = vmatpush1.msra.mxu0 0.0
        %2907 = vmatprep.subr.mxu0 0.0
        %2908 = vmatpush1.msra.mxu0 0.0
        %2909 = vmatprep.subr.mxu0 0.0
        %2910 = vmatpush1.msra.mxu0 0.0
        %2911 = vmatprep.subr.mxu0 0.0
        %2912 = vmatpush1.msra.mxu0 0.0
        %2913 = vmatprep.subr.mxu0 0.0
        %2914 = vmatpush1.msra.mxu0 0.0
        %2915 = vmatprep.subr.mxu0 0.0
        %2916 = vmatpush1.msra.mxu0 0.0
        %2917 = vmatprep.subr.mxu0 0.0
        %2918 = vmatpush1.msra.mxu0 0.0
        %2919 = vmatprep.subr.mxu0 0.0
        %2920 = vmatpush1.msra.mxu0 0.0
        %2921 = vmatprep.subr.mxu0 0.0
        %2922 = vmatpush1.msra.mxu0 %v2889
        %2923 = vmatprep.subr.mxu0 0.0
        %2924 = vmatpush2.msra.mxu0 0.0
        %2925 = vmatprep.subr.mxu0 0.0
        %2926 = vmatpush2.msra.mxu0 0.0
        %2927 = vmatprep.subr.mxu0 0.0
        %2928 = vmatpush2.msra.mxu0 0.0
        %2929 = vmatprep.subr.mxu0 0.0
        %2930 = vmatpush2.msra.mxu0 0.0
        %2931 = vmatprep.subr.mxu0 0.0
        %2932 = vmatpush2.msra.mxu0 0.0
        %2933 = vmatprep.subr.mxu0 0.0
        %2934 = vmatpush2.msra.mxu0 0.0
        %2935 = vmatprep.subr.mxu0 0.0
        %2936 = vmatpush2.msra.mxu0 0.0
        %2937 = vmatprep.subr.mxu0 0.0
        %2938 = vmatpush2.msra.mxu0 0.0
        %2939 = vmatprep.subr.mxu0 0.0
        %2940 = vmatpush2.msra.mxu0 0.0
        %2941 = vmatprep.subr.mxu0 0.0
        %2942 = vmatpush2.msra.mxu0 0.0
        %2943 = vmatprep.subr.mxu0 0.0
        %2944 = vmatpush2.msra.mxu0 0.0
        %2945 = vmatprep.subr.mxu0 0.0
        %2946 = vmatpush2.msra.mxu0 0.0
        %2947 = vmatprep.subr.mxu0 0.0
        %2948 = vmatpush2.msra.mxu0 0.0
        %2949 = vmatprep.subr.mxu0 0.0
        %2950 = vmatpush2.msra.mxu0 0.0
        %2951 = vmatprep.subr.mxu0 0.0
        %2952 = vmatpush2.msra.mxu0 0.0
        %2953 = vmatprep.subr.mxu0 0.0
        %2954 = vmatpush2.msra.mxu0 0.0
        %2955 = vmatprep.mubr.f32.mxu0 0.0
        %2956 = vmatmul.mubr.f32.gmra.mxu0 %v2886
        %v2957 = vpop.f32.mrf.mxu0
        %v2958 = vadd.f32 %v2884, %v2957
        %v2959 = vpop.f32.mrf.mxu0
        %2960 = vdwg.mxu0
        %v2961 = vmax.f32 %v2958, 0.0
        %2963 = vset.pattern.permute.xlu0 0
        %2964 = vperm.xlu0 %2963, %v2961
        %v2965 = vpop.permute.xlu0 %2964
        %v2967 = vadd.f32 %v2873, %v2965
        %v2968 = vadd.f32 %v2874, %v2965
        %v2969 = vmax.f32 %v2967, 0.0
        %v2970 = vmax.f32 %v2968, 0.0
        %2971 = vst [vmem:[%s379] sm:$0xff] %v2969
        %2972 = vst [vmem:[%s379 + $0x8] sm:$0xff] %v2970
        %s2973 = sand.u32 %s269, 1
        %s2974 = scalar_lea.sflag [#allocation4], %s2973
        %s2975 = sand.u32 %s269, 1
        %s2976 = smul.addr %s2975, 16
        %s2977 = scalar_lea.vmem [#allocation3], %s2976
        // Predicated region
        $region65: #{tpu_custom_call.1} parent=63 // pred_check
          %p2978 = pneg %p279
        $region66: #{tpu_custom_call.1} parent=63 // pred_check_branch
          %2980 = sbr.rel (%p2978) target = $region68
        $region67: #{tpu_custom_call.1} parent=63 // pred_region
          %s2982 = ssub.s32 256, 256
          %2983 = vsyncadd %s2974, %s2982
          %s2984 = smul.addr %s25, 2
          %s2985 = smul.addr %s2984, 128
          %s2986 = scalar_lea.hbm %s11, %s2985
          %s2988 = sshll.u32 %s2977, 4
          %s2989 = int_to_ptr.vmem [resolvable:$true] %s2988
          %2991 = dma.vmem_to_hbm [thread:$0]  %s2989, 256, %s2986, %s2974
        $region68: #{tpu_custom_call.1} parent=63 // pred_fallthru
          _
      $region64: #{tpu_custom_call.1} parent=5 // pred_fallthru
        _
      %p2992 = scmp.le.s32.totalorder 2, %s20
      // Predicated region
      $region69: #{tpu_custom_call.1} parent=5 // pred_check
        %p2993 = pneg %p2992
      $region70: #{tpu_custom_call.1} parent=5 // pred_check_branch
        %2995 = sbr.rel (%p2993) target = $region72
      $region71: #{tpu_custom_call.1} parent=5 // pred_region
        %s2996 = ssub.s32 %s20, 2
        // Predicated region
        $region73: #{tpu_custom_call.1} parent=71 // pred_check
          %p2997 = pneg %p285
        $region74: #{tpu_custom_call.1} parent=71 // pred_check_branch
          %2999 = sbr.rel (%p2997) target = $region76
        $region75: #{tpu_custom_call.1} parent=71 // pred_region
          %s3000 = sand.u32 %s270, 1
          %s3001 = scalar_lea.sflag [#allocation4], %s3000
          %s3002 = sand.u32 %s270, 1
          %s3003 = smul.addr %s3002, 16
          %s3004 = scalar_lea.vmem [#allocation3], %s3003
          %3005 = dma.done %s3001, 256
        $region76: #{tpu_custom_call.1} parent=71 // pred_fallthru
          _
      $region72: #{tpu_custom_call.1} parent=5 // pred_fallthru
        _
    $region6: #{tpu_custom_call.1} parent=1 // loop_footer
      %s24 = sadd.s32 1, %s20
    $region7: #{tpu_custom_call.1} parent=1 // loop_footer_branch
      %19 = sbr.rel target = $region3
    $region8: #{tpu_custom_call.1} parent=1 // loop_exit
      _
    %3006 = vsyncpa [#allocation4], 1
    %s3007 = scalar_lea.sflag [#allocation4], 1
    %3008 = vsyncpa %s3007, 1

</llo_original>
